<compile_context>
chip_gen: v7x
topology: tpu7x:2x2x1
jax: 0.10.0
libtpu: 0.0.40
codegen_flags: <defaults>
</compile_context>

<pallas_src>
import numpy as np
import jax
import jax.numpy as jnp
from jax.experimental import pallas as pl
from jax.experimental.pallas import tpu as pltpu

# ----------------------------- config (small) --------------------------------
IMG_SIZE = 16
PATCH_SIZE = 4
IN_CHANS = 3
NUM_CLASSES = 10
EMBED_DIM = 32
DEPTH = 4                      # 2 "equivariant" blocks + 2 standard blocks
NUM_HEADS = 4
MLP_RATIO = 4.0
INIT_SCALE = 1e-4
EPS = 1e-6

NUM_PATCHES = (IMG_SIZE // PATCH_SIZE) ** 2        # 16
N_TOKENS = NUM_PATCHES + 1                         # 17
HEAD_DIM = EMBED_DIM // NUM_HEADS                  # 8
HIDDEN = int(EMBED_DIM * MLP_RATIO)                # 128
ATTN_SCALE = HEAD_DIM ** -0.5
PP = IN_CHANS * PATCH_SIZE * PATCH_SIZE            # 48 patch pixels

# Packed slab layouts:
#   blkw (DEPTH, 96, 128) bf16:
#     rows  0:32  fused QKV weight (D, 3*H*Dh) in lanes 0:96 (q|k|v, heads
#                 contiguous, 8 lanes each), zero-padded to 128 lanes
#     rows 32:64  attention proj weight (H*Dh, D) in lanes 0:32
#     rows 64:96  mlp fc1 weight (D, HIDDEN) in lanes 0:128
#   fc2w (DEPTH, 128, 32) bf16: mlp fc2 weight, lane-dense
#   blkv (DEPTH, 9, 128) f32 rows:
#     0 ln1_g  1 ln1_b  2 proj_b  3 gamma1  4 ln2_g  5 ln2_b  6 fc2_b  7 gamma2
#     (lanes 0:32) and 8 fc1_b (lanes 0:128)
#   miscw (80, 32) bf16: rows 0:48 patch_w, rows 48:80 head_w (lanes 0:NUM_CLASSES)
#   miscv (4, 32) f32:  0 patch_b  1 norm_g  2 norm_b  3 head_b (lanes 0:NUM_CLASSES)


# ----------------------------- fused kernel -----------------------------------
def _kernel(patches_ref, bstart_ref, target_ref, base_ref,
            blkw_ref, fc2w_ref, blkv_ref, miscw_ref, miscv_ref, out_ref):
    f32, bf16 = jnp.float32, jnp.bfloat16
    D, Dh, NH = EMBED_DIM, HEAD_DIM, NUM_HEADS
    BN = base_ref.shape[0]               # B * N_TOKENS
    B = BN // N_TOKENS
    BNP = patches_ref.shape[0]            # B * NUM_PATCHES

    def ln(v, g, b):
        mu = jnp.mean(v, axis=-1, keepdims=True)
        c = v - mu
        var = jnp.mean(c * c, axis=-1, keepdims=True)
        return c * jax.lax.rsqrt(var + EPS) * g + b

    def erf(z):
        # Abramowitz & Stegun 7.1.26 (|err| <= 1.5e-7); only exp/mul/add/div.
        az = jnp.abs(z)
        t = 1.0 / (1.0 + 0.3275911 * az)
        poly = t * (0.254829592 + t * (-0.284496736 + t * (1.421413741
                    + t * (-1.453152027 + t * 1.061405429))))
        e = 1.0 - poly * jnp.exp(-az * az)
        return jnp.where(z < 0.0, -e, e)

    def gelu(z):                           # exact-erf GELU (nn.GELU default)
        return 0.5 * z * (1.0 + erf(z * 0.7071067811865476))

    # ---- structural constants built in-kernel (no O(B^2) HBM traffic) --------
    bstart = bstart_ref[...]               # (BN,1) int32: b * N_TOKENS per row
    target = target_ref[...]               # (BN,1) int32: source patch row, -1 for cls
    lane_bn = jax.lax.broadcasted_iota(jnp.int32, (BN, BN), 1)
    amsk = jnp.where((lane_bn >= bstart) & (lane_bn < bstart + N_TOKENS),
                     0.0, -1e30).astype(f32)          # block-diag batch mask
    lane_np = jax.lax.broadcasted_iota(jnp.int32, (BN, BNP), 1)
    scat = (lane_np == target).astype(f32)            # one-hot [cls|tok] scatter
    lane_d = jax.lax.broadcasted_iota(jnp.int32, (BN, D), 1)
    hmask = [(lane_d >= hh * Dh) & (lane_d < (hh + 1) * Dh) for hh in range(NH)]

    # ---- patch embed -> scatter into [cls | tokens] slab -> + pos/cls base ----
    tok = jnp.dot(patches_ref[...].astype(bf16), miscw_ref[0:PP, :],
                  preferred_element_type=f32) + miscv_ref[0:1, :]      # (B*NP, D)
    xcur = jnp.dot(scat, tok, preferred_element_type=f32) + base_ref[...]   # (BN, D)

    def block(xin, l):
        ln1_g = blkv_ref[l, 0:1, 0:D]
        ln1_b = blkv_ref[l, 1:2, 0:D]
        proj_b = blkv_ref[l, 2:3, 0:D]
        g1 = blkv_ref[l, 3:4, 0:D]
        ln2_g = blkv_ref[l, 4:5, 0:D]
        ln2_b = blkv_ref[l, 5:6, 0:D]
        fc2_b = blkv_ref[l, 6:7, 0:D]
        g2 = blkv_ref[l, 7:8, 0:D]
        fc1_b = blkv_ref[l, 8:9, :]

        # --- MHSA: one fused lane-dense QKV matmul + per-head softmax + one proj
        h = ln(xin, ln1_g, ln1_b)
        qkv = jnp.dot(h.astype(bf16), blkw_ref[l, 0:D, :],
                      preferred_element_type=f32)                     # (BN, 128)
        q_all = qkv[:, 0:D] * ATTN_SCALE
        k_all = qkv[:, D:2 * D].astype(bf16)
        v_all = qkv[:, 2 * D:3 * D]
        o_cat = None
        for hh in range(NH):
            # zero out other heads' lanes: the score / PV matmuls then see only
            # head hh, and the per-head outputs land in disjoint lane ranges,
            # so the head-concatenated tensor is just a sum (no lane concat).
            qm = jnp.where(hmask[hh], q_all, 0.0).astype(bf16)
            vm = jnp.where(hmask[hh], v_all, 0.0).astype(bf16)
            s = jax.lax.dot_general(qm, k_all, (((1,), (1,)), ((), ())),
                                    preferred_element_type=f32) + amsk
            s = s - jnp.max(s, axis=-1, keepdims=True)
            pe = jnp.exp(s)
            pa = pe * pl.reciprocal(jnp.sum(pe, axis=-1, keepdims=True),
                                    approx=True)
            ov = jnp.dot(pa.astype(bf16), vm, preferred_element_type=f32)  # (BN, D)
            o_cat = ov if o_cat is None else o_cat + ov
        attn = jnp.dot(o_cat.astype(bf16), blkw_ref[l, D:2 * D, 0:D],
                       preferred_element_type=f32) + proj_b
        xmid = xin + g1 * attn

        # --- MLP (pre-LN, exact-erf GELU, LayerScale residual) ------------------
        h = ln(xmid, ln2_g, ln2_b)
        h = jnp.dot(h.astype(bf16), blkw_ref[l, 2 * D:3 * D, :],
                    preferred_element_type=f32) + fc1_b               # (BN, HIDDEN)
        h = gelu(h)
        h = jnp.dot(h.astype(bf16), fc2w_ref[l],
                    preferred_element_type=f32) + fc2_b               # (BN, D)
        return xmid + g2 * h

    # equivariant half (reconstructed blocks on the concatenated streams)
    for l in range(DEPTH // 2):
        xcur = block(xcur, l)

    # invariarize: cat(x1, |x2|) == abs() on the upper half of the lanes
    xcur = jnp.where(lane_d < (D // 2), xcur, jnp.abs(xcur))

    # standard half
    for l in range(DEPTH // 2, DEPTH):
        xcur = block(xcur, l)

    # final LayerNorm, cls-token rows (one-hot select matmul), classifier head
    xcur = ln(xcur, miscv_ref[1:2, :], miscv_ref[2:3, :])
    ri = jax.lax.broadcasted_iota(jnp.int32, (B, BN), 0)
    ci = jax.lax.broadcasted_iota(jnp.int32, (B, BN), 1)
    sel = (ci == ri * N_TOKENS).astype(f32)                           # (B, BN)
    cls_rows = jnp.dot(sel, xcur, preferred_element_type=f32)         # (B, D)
    # dropout_rate == 0.0 -> identity
    out_ref[...] = (jnp.dot(cls_rows.astype(bf16),
                            miscw_ref[PP:PP + D, 0:NUM_CLASSES],
                            preferred_element_type=f32)
                    + miscv_ref[3:4, 0:NUM_CLASSES]).astype(out_ref.dtype)


# ----------------------------- host wrapper -----------------------------------
def forward(packed, x):
    B, C, H, W = x.shape
    p = PATCH_SIZE
    NP = NUM_PATCHES
    BN = B * N_TOKENS

    # stride-p patchify == non-overlapping Conv2d patch extract (layout-only op)
    patches = x.reshape(B, C, H // p, p, W // p, p)
    patches = patches.transpose(0, 2, 4, 1, 3, 5).reshape(B * NP, C * p * p)

    # tiny structural columns; mask / scatter matrices are rebuilt in-kernel
    rows = np.arange(BN)
    r_b, r_i = rows // N_TOKENS, rows % N_TOKENS
    bstart = jnp.asarray((r_b * N_TOKENS).astype(np.int32)[:, None])           # (BN,1)
    target = jnp.asarray(np.where(r_i >= 1, r_b * NP + r_i - 1,
                                  -1).astype(np.int32)[:, None])               # (BN,1)

    base = jnp.tile(packed["base17"], (B, 1))                                   # (BN, D)

    inputs = (patches, bstart, target, base,
              packed["blkw"], packed["fc2w"], packed["blkv"],
              packed["miscw"], packed["miscv"])
    vmem = pl.BlockSpec(memory_space=pltpu.MemorySpace.VMEM)  # whole array, VMEM-resident
    return pl.pallas_call(
        _kernel,
        out_shape=jax.ShapeDtypeStruct((B, NUM_CLASSES), jnp.float32),
        in_specs=[vmem] * len(inputs),
        out_specs=vmem,
    )(*inputs)


# ----------------------------- parameter init / packing -----------------------
def init_params(key):
    keys = iter(jax.random.split(key, 64))

    def tn(shape, std=0.02):
        return std * jax.random.normal(next(keys), shape, dtype=jnp.float32)

    D, D2, Dh, Hh = EMBED_DIM, EMBED_DIM // 2, HEAD_DIM, NUM_HEADS
    params = {}
    conv_w = tn((D, IN_CHANS, PATCH_SIZE, PATCH_SIZE))       # torch Conv2d layout
    params["patch_w"] = conv_w.reshape(D, -1).T              # (C*p*p, D)
    params["patch_b"] = jnp.zeros((1, D), jnp.float32)
    params["cls0"] = tn((1, 1, D2))
    params["cls1"] = jnp.zeros((1, 1, D2), jnp.float32)      # requires_grad=False -> zeros
    params["pos0"] = tn((1, NUM_PATCHES // 2, D2))
    params["pos1"] = tn((1, NUM_PATCHES // 2, D2))

    params["n1_g"] = jnp.ones((DEPTH, 1, D), jnp.float32)
    params["n1_b"] = jnp.zeros((DEPTH, 1, D), jnp.float32)
    params["wq"] = tn((DEPTH, Hh, D, Dh))                    # qkv_bias=False
    params["wk"] = tn((DEPTH, Hh, D, Dh))
    params["wv"] = tn((DEPTH, Hh, D, Dh))
    params["proj_w"] = tn((DEPTH, Hh, Dh, D))
    params["proj_b"] = jnp.zeros((DEPTH, 1, D), jnp.float32)
    params["gamma1"] = INIT_SCALE * jnp.ones((DEPTH, 1, D), jnp.float32)
    params["n2_g"] = jnp.ones((DEPTH, 1, D), jnp.float32)
    params["n2_b"] = jnp.zeros((DEPTH, 1, D), jnp.float32)
    params["fc1_w"] = tn((DEPTH, D, HIDDEN))
    params["fc1_b"] = jnp.zeros((DEPTH, 1, HIDDEN), jnp.float32)
    params["fc2_w"] = tn((DEPTH, HIDDEN, D))
    params["fc2_b"] = jnp.zeros((DEPTH, 1, D), jnp.float32)
    params["gamma2"] = INIT_SCALE * jnp.ones((DEPTH, 1, D), jnp.float32)

    params["norm_g"] = jnp.ones((1, D), jnp.float32)
    params["norm_b"] = jnp.zeros((1, D), jnp.float32)
    params["head_w"] = tn((D, NUM_CLASSES))
    params["head_b"] = jnp.zeros((1, NUM_CLASSES), jnp.float32)
    return params


def pack_params(params):
    D, Dh, Hh = EMBED_DIM, HEAD_DIM, NUM_HEADS
    f32, bf16 = jnp.float32, jnp.bfloat16

    # pos/cls "base" slab: exactly the forward_features pos/cls math, per sample
    pos = jnp.concatenate([
        jnp.concatenate([params["pos0"], params["pos0"]], axis=1),
        jnp.concatenate([params["pos1"], -params["pos1"]], axis=1)], axis=-1)[0]   # (NP, D)
    cls = jnp.concatenate([params["cls0"], params["cls1"]], axis=-1)[0]            # (1, D)
    base17 = jnp.concatenate([cls, pos], axis=0).astype(f32)                        # (N_TOKENS, D)

    # fused QKV weight, (DEPTH, D, 3*H*Dh), heads contiguous (8 lanes each)
    wq = params["wq"].transpose(0, 2, 1, 3).reshape(DEPTH, D, Hh * Dh)
    wk = params["wk"].transpose(0, 2, 1, 3).reshape(DEPTH, D, Hh * Dh)
    wv = params["wv"].transpose(0, 2, 1, 3).reshape(DEPTH, D, Hh * Dh)
    wqkv = jnp.concatenate([wq, wk, wv], axis=-1)                                   # (DEPTH, D, 96)
    proj = params["proj_w"].reshape(DEPTH, Hh * Dh, D)                              # (DEPTH, 32, 32)

    blkw = jnp.zeros((DEPTH, 3 * D, HIDDEN), f32)
    blkw = blkw.at[:, 0:D, 0:3 * D].set(wqkv)
    blkw = blkw.at[:, D:2 * D, 0:D].set(proj)
    blkw = blkw.at[:, 2 * D:3 * D, :].set(params["fc1_w"])
    blkw = blkw.astype(bf16)

    fc2w = params["fc2_w"].astype(bf16)                                             # (DEPTH, 128, 32)

    blkv = jnp.zeros((DEPTH, 9, HIDDEN), f32)
    blkv = blkv.at[:, 0:1, 0:D].set(params["n1_g"])
    blkv = blkv.at[:, 1:2, 0:D].set(params["n1_b"])
    blkv = blkv.at[:, 2:3, 0:D].set(params["proj_b"])
    blkv = blkv.at[:, 3:4, 0:D].set(params["gamma1"])
    blkv = blkv.at[:, 4:5, 0:D].set(params["n2_g"])
    blkv = blkv.at[:, 5:6, 0:D].set(params["n2_b"])
    blkv = blkv.at[:, 6:7, 0:D].set(params["fc2_b"])
    blkv = blkv.at[:, 7:8, 0:D].set(params["gamma2"])
    blkv = blkv.at[:, 8:9, :].set(params["fc1_b"])

    miscw = jnp.zeros((PP + D, D), f32)
    miscw = miscw.at[0:PP, :].set(params["patch_w"])
    miscw = miscw.at[PP:PP + D, 0:NUM_CLASSES].set(params["head_w"])
    miscw = miscw.astype(bf16)

    miscv = jnp.zeros((4, D), f32)
    miscv = miscv.at[0:1, :].set(params["patch_b"])
    miscv = miscv.at[1:2, :].set(params["norm_g"])
    miscv = miscv.at[2:3, :].set(params["norm_b"])
    miscv = miscv.at[3:4, 0:NUM_CLASSES].set(params["head_b"])

    return dict(base17=base17, blkw=blkw, fc2w=fc2w, blkv=blkv,
                miscw=miscw, miscv=miscv)


# ----------------------------- main -------------------------------------------
if __name__ == "__main__":
    key = jax.random.PRNGKey(0)
    pkey, xkey = jax.random.split(key)
    params = init_params(pkey)
    packed = pack_params(params)
    x = jax.random.normal(xkey, (2, IN_CHANS, IMG_SIZE, IMG_SIZE), dtype=jnp.float32)

    out = jax.jit(forward)(packed, x)
    out = jax.block_until_ready(out)
    assert out.shape == (2, NUM_CLASSES), out.shape
    assert bool(jnp.all(jnp.isfinite(out)))
    print("KERNEL_OK")
</pallas_src>

<mosaic_0001>
module attributes {stable_mosaic.version = 11 : i64} {
  func.func @_kernel(%arg0: memref<32x48xf32, #tpu.memory_space<vmem>>, %arg1: memref<34x1xi32, #tpu.memory_space<vmem>>, %arg2: memref<34x1xi32, #tpu.memory_space<vmem>>, %arg3: memref<34x32xf32, #tpu.memory_space<vmem>>, %arg4: memref<4x96x128xbf16, #tpu.memory_space<vmem>>, %arg5: memref<4x128x32xbf16, #tpu.memory_space<vmem>>, %arg6: memref<4x9x128xf32, #tpu.memory_space<vmem>>, %arg7: memref<80x32xbf16, #tpu.memory_space<vmem>>, %arg8: memref<4x32xf32, #tpu.memory_space<vmem>>, %arg9: memref<2x10xf32, #tpu.memory_space<vmem>>) attributes {dimension_semantics = [], scalar_prefetch = 0 : i64, scratch_operands = 0 : i64, tpu.core_type = #tpu.core_type<tc>} {
    %c0 = arith.constant 0 : index
    %c0_0 = arith.constant 0 : index
    %0 = vector.load %arg1[%c0, %c0_0] : memref<34x1xi32, #tpu.memory_space<vmem>>, vector<34x1xi32>
    %c0_1 = arith.constant 0 : index
    %c0_2 = arith.constant 0 : index
    %1 = vector.load %arg2[%c0_1, %c0_2] : memref<34x1xi32, #tpu.memory_space<vmem>>, vector<34x1xi32>
    %2 = tpu.iota {dimensions = array<i32: 1>} : vector<34x34xi32>
    %3 = vector.broadcast %0 : vector<34x1xi32> to vector<34x34xi32>
    %4 = arith.cmpi sge, %2, %3 : vector<34x34xi32>
    %c17_i32 = arith.constant 17 : i32
    %5 = vector.broadcast %c17_i32 : i32 to vector<34x1xi32>
    %6 = arith.addi %0, %5 : vector<34x1xi32>
    %7 = vector.broadcast %6 : vector<34x1xi32> to vector<34x34xi32>
    %8 = arith.cmpi slt, %2, %7 : vector<34x34xi32>
    %9 = arith.andi %4, %8 : vector<34x34xi1>
    %cst = arith.constant 0.000000e+00 : f32
    %cst_3 = arith.constant -1.000000e+30 : f32
    %10 = vector.broadcast %cst : f32 to vector<34x34xf32>
    %11 = vector.broadcast %cst_3 : f32 to vector<34x34xf32>
    %12 = arith.select %9, %10, %11 : vector<34x34xi1>, vector<34x34xf32>
    %13 = tpu.iota {dimensions = array<i32: 1>} : vector<34x32xi32>
    %14 = vector.broadcast %1 : vector<34x1xi32> to vector<34x32xi32>
    %15 = arith.cmpi eq, %13, %14 : vector<34x32xi32>
    %16 = arith.extui %15 : vector<34x32xi1> to vector<34x32xi32>
    %17 = arith.sitofp %16 : vector<34x32xi32> to vector<34x32xf32>
    %18 = tpu.iota {dimensions = array<i32: 1>} : vector<34x32xi32>
    %c0_i32 = arith.constant 0 : i32
    %19 = vector.broadcast %c0_i32 : i32 to vector<34x32xi32>
    %20 = arith.cmpi sge, %18, %19 : vector<34x32xi32>
    %c8_i32 = arith.constant 8 : i32
    %21 = vector.broadcast %c8_i32 : i32 to vector<34x32xi32>
    %22 = arith.cmpi slt, %18, %21 : vector<34x32xi32>
    %23 = arith.andi %20, %22 : vector<34x32xi1>
    %c8_i32_4 = arith.constant 8 : i32
    %24 = vector.broadcast %c8_i32_4 : i32 to vector<34x32xi32>
    %25 = arith.cmpi sge, %18, %24 : vector<34x32xi32>
    %c16_i32 = arith.constant 16 : i32
    %26 = vector.broadcast %c16_i32 : i32 to vector<34x32xi32>
    %27 = arith.cmpi slt, %18, %26 : vector<34x32xi32>
    %28 = arith.andi %25, %27 : vector<34x32xi1>
    %c16_i32_5 = arith.constant 16 : i32
    %29 = vector.broadcast %c16_i32_5 : i32 to vector<34x32xi32>
    %30 = arith.cmpi sge, %18, %29 : vector<34x32xi32>
    %c24_i32 = arith.constant 24 : i32
    %31 = vector.broadcast %c24_i32 : i32 to vector<34x32xi32>
    %32 = arith.cmpi slt, %18, %31 : vector<34x32xi32>
    %33 = arith.andi %30, %32 : vector<34x32xi1>
    %c24_i32_6 = arith.constant 24 : i32
    %34 = vector.broadcast %c24_i32_6 : i32 to vector<34x32xi32>
    %35 = arith.cmpi sge, %18, %34 : vector<34x32xi32>
    %c32_i32 = arith.constant 32 : i32
    %36 = vector.broadcast %c32_i32 : i32 to vector<34x32xi32>
    %37 = arith.cmpi slt, %18, %36 : vector<34x32xi32>
    %38 = arith.andi %35, %37 : vector<34x32xi1>
    %c0_7 = arith.constant 0 : index
    %c0_8 = arith.constant 0 : index
    %39 = vector.load %arg0[%c0_7, %c0_8] : memref<32x48xf32, #tpu.memory_space<vmem>>, vector<32x48xf32>
    %40 = arith.truncf %39 : vector<32x48xf32> to vector<32x48xbf16>
    %c0_9 = arith.constant 0 : index
    %c0_10 = arith.constant 0 : index
    %41 = vector.load %arg7[%c0_9, %c0_10] : memref<80x32xbf16, #tpu.memory_space<vmem>>, vector<48x32xbf16>
    %cst_11 = arith.constant dense<0.000000e+00> : vector<32x32xf32>
    %42 = tpu.matmul %40, %41, %cst_11 {dimension_numbers = #tpu.dot_dimension_numbers<[1], [0], [0], [1], [0, 0, 1, 1], [], []>} : vector<32x48xbf16>, vector<48x32xbf16>, vector<32x32xf32> -> vector<32x32xf32>
    %c0_12 = arith.constant 0 : index
    %c0_13 = arith.constant 0 : index
    %43 = vector.load %arg8[%c0_12, %c0_13] : memref<4x32xf32, #tpu.memory_space<vmem>>, vector<1x32xf32>
    %44 = vector.broadcast %43 : vector<1x32xf32> to vector<32x32xf32>
    %45 = arith.addf %42, %44 : vector<32x32xf32>
    %cst_14 = arith.constant dense<0.000000e+00> : vector<34x32xf32>
    %46 = tpu.matmul %17, %45, %cst_14 {dimension_numbers = #tpu.dot_dimension_numbers<[1], [0], [0], [1], [0, 0, 1, 1], [], []>} : vector<34x32xf32>, vector<32x32xf32>, vector<34x32xf32> -> vector<34x32xf32>
    %c0_15 = arith.constant 0 : index
    %c0_16 = arith.constant 0 : index
    %47 = vector.load %arg3[%c0_15, %c0_16] : memref<34x32xf32, #tpu.memory_space<vmem>>, vector<34x32xf32>
    %48 = arith.addf %46, %47 : vector<34x32xf32>
    %c0_17 = arith.constant 0 : index
    %c0_18 = arith.constant 0 : index
    %c0_19 = arith.constant 0 : index
    %49 = vector.load %arg6[%c0_17, %c0_18, %c0_19] : memref<4x9x128xf32, #tpu.memory_space<vmem>>, vector<1x1x32xf32>
    %50 = vector.shape_cast %49 : vector<1x1x32xf32> to vector<1x32xf32>
    %c0_20 = arith.constant 0 : index
    %c1 = arith.constant 1 : index
    %c0_21 = arith.constant 0 : index
    %51 = vector.load %arg6[%c0_20, %c1, %c0_21] : memref<4x9x128xf32, #tpu.memory_space<vmem>>, vector<1x1x32xf32>
    %52 = vector.shape_cast %51 : vector<1x1x32xf32> to vector<1x32xf32>
    %c0_22 = arith.constant 0 : index
    %c2 = arith.constant 2 : index
    %c0_23 = arith.constant 0 : index
    %53 = vector.load %arg6[%c0_22, %c2, %c0_23] : memref<4x9x128xf32, #tpu.memory_space<vmem>>, vector<1x1x32xf32>
    %54 = vector.shape_cast %53 : vector<1x1x32xf32> to vector<1x32xf32>
    %c0_24 = arith.constant 0 : index
    %c3 = arith.constant 3 : index
    %c0_25 = arith.constant 0 : index
    %55 = vector.load %arg6[%c0_24, %c3, %c0_25] : memref<4x9x128xf32, #tpu.memory_space<vmem>>, vector<1x1x32xf32>
    %56 = vector.shape_cast %55 : vector<1x1x32xf32> to vector<1x32xf32>
    %c0_26 = arith.constant 0 : index
    %c4 = arith.constant 4 : index
    %c0_27 = arith.constant 0 : index
    %57 = vector.load %arg6[%c0_26, %c4, %c0_27] : memref<4x9x128xf32, #tpu.memory_space<vmem>>, vector<1x1x32xf32>
    %58 = vector.shape_cast %57 : vector<1x1x32xf32> to vector<1x32xf32>
    %c0_28 = arith.constant 0 : index
    %c5 = arith.constant 5 : index
    %c0_29 = arith.constant 0 : index
    %59 = vector.load %arg6[%c0_28, %c5, %c0_29] : memref<4x9x128xf32, #tpu.memory_space<vmem>>, vector<1x1x32xf32>
    %60 = vector.shape_cast %59 : vector<1x1x32xf32> to vector<1x32xf32>
    %c0_30 = arith.constant 0 : index
    %c6 = arith.constant 6 : index
    %c0_31 = arith.constant 0 : index
    %61 = vector.load %arg6[%c0_30, %c6, %c0_31] : memref<4x9x128xf32, #tpu.memory_space<vmem>>, vector<1x1x32xf32>
    %62 = vector.shape_cast %61 : vector<1x1x32xf32> to vector<1x32xf32>
    %c0_32 = arith.constant 0 : index
    %c7 = arith.constant 7 : index
    %c0_33 = arith.constant 0 : index
    %63 = vector.load %arg6[%c0_32, %c7, %c0_33] : memref<4x9x128xf32, #tpu.memory_space<vmem>>, vector<1x1x32xf32>
    %64 = vector.shape_cast %63 : vector<1x1x32xf32> to vector<1x32xf32>
    %c0_34 = arith.constant 0 : index
    %c8 = arith.constant 8 : index
    %c0_35 = arith.constant 0 : index
    %65 = vector.load %arg6[%c0_34, %c8, %c0_35] : memref<4x9x128xf32, #tpu.memory_space<vmem>>, vector<1x1x128xf32>
    %66 = vector.shape_cast %65 : vector<1x1x128xf32> to vector<1x128xf32>
    %cst_36 = arith.constant dense<0.000000e+00> : vector<34xf32>
    %67 = vector.multi_reduction <add>, %48, %cst_36 [1] : vector<34x32xf32> to vector<34xf32>
    %68 = vector.shape_cast %67 : vector<34xf32> to vector<34x1xf32>
    %cst_37 = arith.constant 3.200000e+01 : f32
    %69 = vector.broadcast %cst_37 : f32 to vector<34x1xf32>
    %70 = arith.divf %68, %69 : vector<34x1xf32>
    %71 = vector.broadcast %70 : vector<34x1xf32> to vector<34x32xf32>
    %72 = arith.subf %48, %71 : vector<34x32xf32>
    %73 = arith.mulf %72, %72 : vector<34x32xf32>
    %cst_38 = arith.constant dense<0.000000e+00> : vector<34xf32>
    %74 = vector.multi_reduction <add>, %73, %cst_38 [1] : vector<34x32xf32> to vector<34xf32>
    %75 = vector.shape_cast %74 : vector<34xf32> to vector<34x1xf32>
    %cst_39 = arith.constant 3.200000e+01 : f32
    %76 = vector.broadcast %cst_39 : f32 to vector<34x1xf32>
    %77 = arith.divf %75, %76 : vector<34x1xf32>
    %cst_40 = arith.constant 9.99999997E-7 : f32
    %78 = vector.broadcast %cst_40 : f32 to vector<34x1xf32>
    %79 = arith.addf %77, %78 : vector<34x1xf32>
    %80 = math.rsqrt %79 : vector<34x1xf32>
    %81 = vector.broadcast %80 : vector<34x1xf32> to vector<34x32xf32>
    %82 = arith.mulf %72, %81 : vector<34x32xf32>
    %83 = vector.broadcast %50 : vector<1x32xf32> to vector<34x32xf32>
    %84 = arith.mulf %82, %83 : vector<34x32xf32>
    %85 = vector.broadcast %52 : vector<1x32xf32> to vector<34x32xf32>
    %86 = arith.addf %84, %85 : vector<34x32xf32>
    %87 = arith.truncf %86 : vector<34x32xf32> to vector<34x32xbf16>
    %c0_41 = arith.constant 0 : index
    %c0_42 = arith.constant 0 : index
    %c0_43 = arith.constant 0 : index
    %88 = vector.load %arg4[%c0_41, %c0_42, %c0_43] : memref<4x96x128xbf16, #tpu.memory_space<vmem>>, vector<1x32x128xbf16>
    %89 = vector.shape_cast %88 : vector<1x32x128xbf16> to vector<32x128xbf16>
    %cst_44 = arith.constant dense<0.000000e+00> : vector<34x128xf32>
    %90 = tpu.matmul %87, %89, %cst_44 {dimension_numbers = #tpu.dot_dimension_numbers<[1], [0], [0], [1], [0, 0, 1, 1], [], []>} : vector<34x32xbf16>, vector<32x128xbf16>, vector<34x128xf32> -> vector<34x128xf32>
    %91 = vector.extract_strided_slice %90 {offsets = [0, 0], sizes = [34, 32], strides = [1, 1]} : vector<34x128xf32> to vector<34x32xf32>
    %cst_45 = arith.constant 0.353553385 : f32
    %92 = vector.broadcast %cst_45 : f32 to vector<34x32xf32>
    %93 = arith.mulf %91, %92 : vector<34x32xf32>
    %94 = vector.extract_strided_slice %90 {offsets = [0, 32], sizes = [34, 32], strides = [1, 1]} : vector<34x128xf32> to vector<34x32xf32>
    %95 = arith.truncf %94 : vector<34x32xf32> to vector<34x32xbf16>
    %96 = vector.extract_strided_slice %90 {offsets = [0, 64], sizes = [34, 32], strides = [1, 1]} : vector<34x128xf32> to vector<34x32xf32>
    %cst_46 = arith.constant 0.000000e+00 : f32
    %97 = vector.broadcast %cst_46 : f32 to vector<34x32xf32>
    %98 = arith.select %23, %93, %97 : vector<34x32xi1>, vector<34x32xf32>
    %99 = arith.truncf %98 : vector<34x32xf32> to vector<34x32xbf16>
    %cst_47 = arith.constant 0.000000e+00 : f32
    %100 = vector.broadcast %cst_47 : f32 to vector<34x32xf32>
    %101 = arith.select %23, %96, %100 : vector<34x32xi1>, vector<34x32xf32>
    %102 = arith.truncf %101 : vector<34x32xf32> to vector<34x32xbf16>
    %cst_48 = arith.constant dense<0.000000e+00> : vector<34x34xf32>
    %103 = tpu.matmul %99, %95, %cst_48 {dimension_numbers = #tpu.dot_dimension_numbers<[1], [1], [0], [0], [0, 0, 1, 0], [], []>} : vector<34x32xbf16>, vector<34x32xbf16>, vector<34x34xf32> -> vector<34x34xf32>
    %104 = arith.addf %103, %12 : vector<34x34xf32>
    %cst_49 = arith.constant dense<0xFF800000> : vector<34xf32>
    %105 = vector.multi_reduction <maximumf>, %104, %cst_49 [1] : vector<34x34xf32> to vector<34xf32>
    %106 = vector.shape_cast %105 : vector<34xf32> to vector<34x1xf32>
    %107 = vector.broadcast %106 : vector<34x1xf32> to vector<34x34xf32>
    %108 = arith.subf %104, %107 : vector<34x34xf32>
    %109 = math.exp %108 : vector<34x34xf32>
    %cst_50 = arith.constant dense<0.000000e+00> : vector<34xf32>
    %110 = vector.multi_reduction <add>, %109, %cst_50 [1] : vector<34x34xf32> to vector<34xf32>
    %111 = vector.shape_cast %110 : vector<34xf32> to vector<34x1xf32>
    %112 = tpu.reciprocal %111 {approx = true} : vector<34x1xf32> -> vector<34x1xf32>
    %113 = vector.broadcast %112 : vector<34x1xf32> to vector<34x34xf32>
    %114 = arith.mulf %109, %113 : vector<34x34xf32>
    %115 = arith.truncf %114 : vector<34x34xf32> to vector<34x34xbf16>
    %cst_51 = arith.constant dense<0.000000e+00> : vector<34x32xf32>
    %116 = tpu.matmul %115, %102, %cst_51 {dimension_numbers = #tpu.dot_dimension_numbers<[1], [0], [0], [1], [0, 0, 1, 1], [], []>} : vector<34x34xbf16>, vector<34x32xbf16>, vector<34x32xf32> -> vector<34x32xf32>
    %cst_52 = arith.constant 0.000000e+00 : f32
    %117 = vector.broadcast %cst_52 : f32 to vector<34x32xf32>
    %118 = arith.select %28, %93, %117 : vector<34x32xi1>, vector<34x32xf32>
    %119 = arith.truncf %118 : vector<34x32xf32> to vector<34x32xbf16>
    %cst_53 = arith.constant 0.000000e+00 : f32
    %120 = vector.broadcast %cst_53 : f32 to vector<34x32xf32>
    %121 = arith.select %28, %96, %120 : vector<34x32xi1>, vector<34x32xf32>
    %122 = arith.truncf %121 : vector<34x32xf32> to vector<34x32xbf16>
    %cst_54 = arith.constant dense<0.000000e+00> : vector<34x34xf32>
    %123 = tpu.matmul %119, %95, %cst_54 {dimension_numbers = #tpu.dot_dimension_numbers<[1], [1], [0], [0], [0, 0, 1, 0], [], []>} : vector<34x32xbf16>, vector<34x32xbf16>, vector<34x34xf32> -> vector<34x34xf32>
    %124 = arith.addf %123, %12 : vector<34x34xf32>
    %cst_55 = arith.constant dense<0xFF800000> : vector<34xf32>
    %125 = vector.multi_reduction <maximumf>, %124, %cst_55 [1] : vector<34x34xf32> to vector<34xf32>
    %126 = vector.shape_cast %125 : vector<34xf32> to vector<34x1xf32>
    %127 = vector.broadcast %126 : vector<34x1xf32> to vector<34x34xf32>
    %128 = arith.subf %124, %127 : vector<34x34xf32>
    %129 = math.exp %128 : vector<34x34xf32>
    %cst_56 = arith.constant dense<0.000000e+00> : vector<34xf32>
    %130 = vector.multi_reduction <add>, %129, %cst_56 [1] : vector<34x34xf32> to vector<34xf32>
    %131 = vector.shape_cast %130 : vector<34xf32> to vector<34x1xf32>
    %132 = tpu.reciprocal %131 {approx = true} : vector<34x1xf32> -> vector<34x1xf32>
    %133 = vector.broadcast %132 : vector<34x1xf32> to vector<34x34xf32>
    %134 = arith.mulf %129, %133 : vector<34x34xf32>
    %135 = arith.truncf %134 : vector<34x34xf32> to vector<34x34xbf16>
    %cst_57 = arith.constant dense<0.000000e+00> : vector<34x32xf32>
    %136 = tpu.matmul %135, %122, %cst_57 {dimension_numbers = #tpu.dot_dimension_numbers<[1], [0], [0], [1], [0, 0, 1, 1], [], []>} : vector<34x34xbf16>, vector<34x32xbf16>, vector<34x32xf32> -> vector<34x32xf32>
    %137 = arith.addf %116, %136 : vector<34x32xf32>
    %cst_58 = arith.constant 0.000000e+00 : f32
    %138 = vector.broadcast %cst_58 : f32 to vector<34x32xf32>
    %139 = arith.select %33, %93, %138 : vector<34x32xi1>, vector<34x32xf32>
    %140 = arith.truncf %139 : vector<34x32xf32> to vector<34x32xbf16>
    %cst_59 = arith.constant 0.000000e+00 : f32
    %141 = vector.broadcast %cst_59 : f32 to vector<34x32xf32>
    %142 = arith.select %33, %96, %141 : vector<34x32xi1>, vector<34x32xf32>
    %143 = arith.truncf %142 : vector<34x32xf32> to vector<34x32xbf16>
    %cst_60 = arith.constant dense<0.000000e+00> : vector<34x34xf32>
    %144 = tpu.matmul %140, %95, %cst_60 {dimension_numbers = #tpu.dot_dimension_numbers<[1], [1], [0], [0], [0, 0, 1, 0], [], []>} : vector<34x32xbf16>, vector<34x32xbf16>, vector<34x34xf32> -> vector<34x34xf32>
    %145 = arith.addf %144, %12 : vector<34x34xf32>
    %cst_61 = arith.constant dense<0xFF800000> : vector<34xf32>
    %146 = vector.multi_reduction <maximumf>, %145, %cst_61 [1] : vector<34x34xf32> to vector<34xf32>
    %147 = vector.shape_cast %146 : vector<34xf32> to vector<34x1xf32>
    %148 = vector.broadcast %147 : vector<34x1xf32> to vector<34x34xf32>
    %149 = arith.subf %145, %148 : vector<34x34xf32>
    %150 = math.exp %149 : vector<34x34xf32>
    %cst_62 = arith.constant dense<0.000000e+00> : vector<34xf32>
    %151 = vector.multi_reduction <add>, %150, %cst_62 [1] : vector<34x34xf32> to vector<34xf32>
    %152 = vector.shape_cast %151 : vector<34xf32> to vector<34x1xf32>
    %153 = tpu.reciprocal %152 {approx = true} : vector<34x1xf32> -> vector<34x1xf32>
    %154 = vector.broadcast %153 : vector<34x1xf32> to vector<34x34xf32>
    %155 = arith.mulf %150, %154 : vector<34x34xf32>
    %156 = arith.truncf %155 : vector<34x34xf32> to vector<34x34xbf16>
    %cst_63 = arith.constant dense<0.000000e+00> : vector<34x32xf32>
    %157 = tpu.matmul %156, %143, %cst_63 {dimension_numbers = #tpu.dot_dimension_numbers<[1], [0], [0], [1], [0, 0, 1, 1], [], []>} : vector<34x34xbf16>, vector<34x32xbf16>, vector<34x32xf32> -> vector<34x32xf32>
    %158 = arith.addf %137, %157 : vector<34x32xf32>
    %cst_64 = arith.constant 0.000000e+00 : f32
    %159 = vector.broadcast %cst_64 : f32 to vector<34x32xf32>
    %160 = arith.select %38, %93, %159 : vector<34x32xi1>, vector<34x32xf32>
    %161 = arith.truncf %160 : vector<34x32xf32> to vector<34x32xbf16>
    %cst_65 = arith.constant 0.000000e+00 : f32
    %162 = vector.broadcast %cst_65 : f32 to vector<34x32xf32>
    %163 = arith.select %38, %96, %162 : vector<34x32xi1>, vector<34x32xf32>
    %164 = arith.truncf %163 : vector<34x32xf32> to vector<34x32xbf16>
    %cst_66 = arith.constant dense<0.000000e+00> : vector<34x34xf32>
    %165 = tpu.matmul %161, %95, %cst_66 {dimension_numbers = #tpu.dot_dimension_numbers<[1], [1], [0], [0], [0, 0, 1, 0], [], []>} : vector<34x32xbf16>, vector<34x32xbf16>, vector<34x34xf32> -> vector<34x34xf32>
    %166 = arith.addf %165, %12 : vector<34x34xf32>
    %cst_67 = arith.constant dense<0xFF800000> : vector<34xf32>
    %167 = vector.multi_reduction <maximumf>, %166, %cst_67 [1] : vector<34x34xf32> to vector<34xf32>
    %168 = vector.shape_cast %167 : vector<34xf32> to vector<34x1xf32>
    %169 = vector.broadcast %168 : vector<34x1xf32> to vector<34x34xf32>
    %170 = arith.subf %166, %169 : vector<34x34xf32>
    %171 = math.exp %170 : vector<34x34xf32>
    %cst_68 = arith.constant dense<0.000000e+00> : vector<34xf32>
    %172 = vector.multi_reduction <add>, %171, %cst_68 [1] : vector<34x34xf32> to vector<34xf32>
    %173 = vector.shape_cast %172 : vector<34xf32> to vector<34x1xf32>
    %174 = tpu.reciprocal %173 {approx = true} : vector<34x1xf32> -> vector<34x1xf32>
    %175 = vector.broadcast %174 : vector<34x1xf32> to vector<34x34xf32>
    %176 = arith.mulf %171, %175 : vector<34x34xf32>
    %177 = arith.truncf %176 : vector<34x34xf32> to vector<34x34xbf16>
    %cst_69 = arith.constant dense<0.000000e+00> : vector<34x32xf32>
    %178 = tpu.matmul %177, %164, %cst_69 {dimension_numbers = #tpu.dot_dimension_numbers<[1], [0], [0], [1], [0, 0, 1, 1], [], []>} : vector<34x34xbf16>, vector<34x32xbf16>, vector<34x32xf32> -> vector<34x32xf32>
    %179 = arith.addf %158, %178 : vector<34x32xf32>
    %180 = arith.truncf %179 : vector<34x32xf32> to vector<34x32xbf16>
    %c0_70 = arith.constant 0 : index
    %c32 = arith.constant 32 : index
    %c0_71 = arith.constant 0 : index
    %181 = vector.load %arg4[%c0_70, %c32, %c0_71] : memref<4x96x128xbf16, #tpu.memory_space<vmem>>, vector<1x32x32xbf16>
    %182 = vector.shape_cast %181 : vector<1x32x32xbf16> to vector<32x32xbf16>
    %cst_72 = arith.constant dense<0.000000e+00> : vector<34x32xf32>
    %183 = tpu.matmul %180, %182, %cst_72 {dimension_numbers = #tpu.dot_dimension_numbers<[1], [0], [0], [1], [0, 0, 1, 1], [], []>} : vector<34x32xbf16>, vector<32x32xbf16>, vector<34x32xf32> -> vector<34x32xf32>
    %184 = vector.broadcast %54 : vector<1x32xf32> to vector<34x32xf32>
    %185 = arith.addf %183, %184 : vector<34x32xf32>
    %186 = vector.broadcast %56 : vector<1x32xf32> to vector<34x32xf32>
    %187 = arith.mulf %186, %185 : vector<34x32xf32>
    %188 = arith.addf %48, %187 : vector<34x32xf32>
    %cst_73 = arith.constant dense<0.000000e+00> : vector<34xf32>
    %189 = vector.multi_reduction <add>, %188, %cst_73 [1] : vector<34x32xf32> to vector<34xf32>
    %190 = vector.shape_cast %189 : vector<34xf32> to vector<34x1xf32>
    %cst_74 = arith.constant 3.200000e+01 : f32
    %191 = vector.broadcast %cst_74 : f32 to vector<34x1xf32>
    %192 = arith.divf %190, %191 : vector<34x1xf32>
    %193 = vector.broadcast %192 : vector<34x1xf32> to vector<34x32xf32>
    %194 = arith.subf %188, %193 : vector<34x32xf32>
    %195 = arith.mulf %194, %194 : vector<34x32xf32>
    %cst_75 = arith.constant dense<0.000000e+00> : vector<34xf32>
    %196 = vector.multi_reduction <add>, %195, %cst_75 [1] : vector<34x32xf32> to vector<34xf32>
    %197 = vector.shape_cast %196 : vector<34xf32> to vector<34x1xf32>
    %cst_76 = arith.constant 3.200000e+01 : f32
    %198 = vector.broadcast %cst_76 : f32 to vector<34x1xf32>
    %199 = arith.divf %197, %198 : vector<34x1xf32>
    %cst_77 = arith.constant 9.99999997E-7 : f32
    %200 = vector.broadcast %cst_77 : f32 to vector<34x1xf32>
    %201 = arith.addf %199, %200 : vector<34x1xf32>
    %202 = math.rsqrt %201 : vector<34x1xf32>
    %203 = vector.broadcast %202 : vector<34x1xf32> to vector<34x32xf32>
    %204 = arith.mulf %194, %203 : vector<34x32xf32>
    %205 = vector.broadcast %58 : vector<1x32xf32> to vector<34x32xf32>
    %206 = arith.mulf %204, %205 : vector<34x32xf32>
    %207 = vector.broadcast %60 : vector<1x32xf32> to vector<34x32xf32>
    %208 = arith.addf %206, %207 : vector<34x32xf32>
    %209 = arith.truncf %208 : vector<34x32xf32> to vector<34x32xbf16>
    %c0_78 = arith.constant 0 : index
    %c64 = arith.constant 64 : index
    %c0_79 = arith.constant 0 : index
    %210 = vector.load %arg4[%c0_78, %c64, %c0_79] : memref<4x96x128xbf16, #tpu.memory_space<vmem>>, vector<1x32x128xbf16>
    %211 = vector.shape_cast %210 : vector<1x32x128xbf16> to vector<32x128xbf16>
    %cst_80 = arith.constant dense<0.000000e+00> : vector<34x128xf32>
    %212 = tpu.matmul %209, %211, %cst_80 {dimension_numbers = #tpu.dot_dimension_numbers<[1], [0], [0], [1], [0, 0, 1, 1], [], []>} : vector<34x32xbf16>, vector<32x128xbf16>, vector<34x128xf32> -> vector<34x128xf32>
    %213 = vector.broadcast %66 : vector<1x128xf32> to vector<34x128xf32>
    %214 = arith.addf %212, %213 : vector<34x128xf32>
    %cst_81 = arith.constant 5.000000e-01 : f32
    %215 = vector.broadcast %cst_81 : f32 to vector<34x128xf32>
    %216 = arith.mulf %215, %214 : vector<34x128xf32>
    %cst_82 = arith.constant 0.707106769 : f32
    %217 = vector.broadcast %cst_82 : f32 to vector<34x128xf32>
    %218 = arith.mulf %214, %217 : vector<34x128xf32>
    %219 = math.absf %218 : vector<34x128xf32>
    %cst_83 = arith.constant 0.327591091 : f32
    %220 = vector.broadcast %cst_83 : f32 to vector<34x128xf32>
    %221 = arith.mulf %220, %219 : vector<34x128xf32>
    %cst_84 = arith.constant 1.000000e+00 : f32
    %222 = vector.broadcast %cst_84 : f32 to vector<34x128xf32>
    %223 = arith.addf %222, %221 : vector<34x128xf32>
    %cst_85 = arith.constant 1.000000e+00 : f32
    %224 = vector.broadcast %cst_85 : f32 to vector<34x128xf32>
    %225 = arith.divf %224, %223 : vector<34x128xf32>
    %cst_86 = arith.constant 1.06140542 : f32
    %226 = vector.broadcast %cst_86 : f32 to vector<34x128xf32>
    %227 = arith.mulf %225, %226 : vector<34x128xf32>
    %cst_87 = arith.constant -1.45315206 : f32
    %228 = vector.broadcast %cst_87 : f32 to vector<34x128xf32>
    %229 = arith.addf %228, %227 : vector<34x128xf32>
    %230 = arith.mulf %225, %229 : vector<34x128xf32>
    %cst_88 = arith.constant 1.42141378 : f32
    %231 = vector.broadcast %cst_88 : f32 to vector<34x128xf32>
    %232 = arith.addf %231, %230 : vector<34x128xf32>
    %233 = arith.mulf %225, %232 : vector<34x128xf32>
    %cst_89 = arith.constant -0.284496725 : f32
    %234 = vector.broadcast %cst_89 : f32 to vector<34x128xf32>
    %235 = arith.addf %234, %233 : vector<34x128xf32>
    %236 = arith.mulf %225, %235 : vector<34x128xf32>
    %cst_90 = arith.constant 0.254829586 : f32
    %237 = vector.broadcast %cst_90 : f32 to vector<34x128xf32>
    %238 = arith.addf %237, %236 : vector<34x128xf32>
    %239 = arith.mulf %225, %238 : vector<34x128xf32>
    %cst_91 = arith.constant 0.000000e+00 : f32
    %240 = vector.broadcast %cst_91 : f32 to vector<34x128xf32>
    %241 = arith.subf %240, %219 : vector<34x128xf32>
    %242 = arith.mulf %241, %219 : vector<34x128xf32>
    %243 = math.exp %242 : vector<34x128xf32>
    %244 = arith.mulf %239, %243 : vector<34x128xf32>
    %cst_92 = arith.constant 1.000000e+00 : f32
    %245 = vector.broadcast %cst_92 : f32 to vector<34x128xf32>
    %246 = arith.subf %245, %244 : vector<34x128xf32>
    %cst_93 = arith.constant 0.000000e+00 : f32
    %247 = vector.broadcast %cst_93 : f32 to vector<34x128xf32>
    %248 = arith.cmpf olt, %218, %247 : vector<34x128xf32>
    %cst_94 = arith.constant 0.000000e+00 : f32
    %249 = vector.broadcast %cst_94 : f32 to vector<34x128xf32>
    %250 = arith.subf %249, %246 : vector<34x128xf32>
    %251 = arith.select %248, %250, %246 : vector<34x128xi1>, vector<34x128xf32>
    %cst_95 = arith.constant 1.000000e+00 : f32
    %252 = vector.broadcast %cst_95 : f32 to vector<34x128xf32>
    %253 = arith.addf %252, %251 : vector<34x128xf32>
    %254 = arith.mulf %216, %253 : vector<34x128xf32>
    %255 = arith.truncf %254 : vector<34x128xf32> to vector<34x128xbf16>
    %c0_96 = arith.constant 0 : index
    %c0_97 = arith.constant 0 : index
    %c0_98 = arith.constant 0 : index
    %256 = vector.load %arg5[%c0_96, %c0_97, %c0_98] : memref<4x128x32xbf16, #tpu.memory_space<vmem>>, vector<1x128x32xbf16>
    %257 = vector.shape_cast %256 : vector<1x128x32xbf16> to vector<128x32xbf16>
    %cst_99 = arith.constant dense<0.000000e+00> : vector<34x32xf32>
    %258 = tpu.matmul %255, %257, %cst_99 {dimension_numbers = #tpu.dot_dimension_numbers<[1], [0], [0], [1], [0, 0, 1, 1], [], []>} : vector<34x128xbf16>, vector<128x32xbf16>, vector<34x32xf32> -> vector<34x32xf32>
    %259 = vector.broadcast %62 : vector<1x32xf32> to vector<34x32xf32>
    %260 = arith.addf %258, %259 : vector<34x32xf32>
    %261 = vector.broadcast %64 : vector<1x32xf32> to vector<34x32xf32>
    %262 = arith.mulf %261, %260 : vector<34x32xf32>
    %263 = arith.addf %188, %262 : vector<34x32xf32>
    %c1_100 = arith.constant 1 : index
    %c0_101 = arith.constant 0 : index
    %c0_102 = arith.constant 0 : index
    %264 = vector.load %arg6[%c1_100, %c0_101, %c0_102] : memref<4x9x128xf32, #tpu.memory_space<vmem>>, vector<1x1x32xf32>
    %265 = vector.shape_cast %264 : vector<1x1x32xf32> to vector<1x32xf32>
    %c1_103 = arith.constant 1 : index
    %c1_104 = arith.constant 1 : index
    %c0_105 = arith.constant 0 : index
    %266 = vector.load %arg6[%c1_103, %c1_104, %c0_105] : memref<4x9x128xf32, #tpu.memory_space<vmem>>, vector<1x1x32xf32>
    %267 = vector.shape_cast %266 : vector<1x1x32xf32> to vector<1x32xf32>
    %c1_106 = arith.constant 1 : index
    %c2_107 = arith.constant 2 : index
    %c0_108 = arith.constant 0 : index
    %268 = vector.load %arg6[%c1_106, %c2_107, %c0_108] : memref<4x9x128xf32, #tpu.memory_space<vmem>>, vector<1x1x32xf32>
    %269 = vector.shape_cast %268 : vector<1x1x32xf32> to vector<1x32xf32>
    %c1_109 = arith.constant 1 : index
    %c3_110 = arith.constant 3 : index
    %c0_111 = arith.constant 0 : index
    %270 = vector.load %arg6[%c1_109, %c3_110, %c0_111] : memref<4x9x128xf32, #tpu.memory_space<vmem>>, vector<1x1x32xf32>
    %271 = vector.shape_cast %270 : vector<1x1x32xf32> to vector<1x32xf32>
    %c1_112 = arith.constant 1 : index
    %c4_113 = arith.constant 4 : index
    %c0_114 = arith.constant 0 : index
    %272 = vector.load %arg6[%c1_112, %c4_113, %c0_114] : memref<4x9x128xf32, #tpu.memory_space<vmem>>, vector<1x1x32xf32>
    %273 = vector.shape_cast %272 : vector<1x1x32xf32> to vector<1x32xf32>
    %c1_115 = arith.constant 1 : index
    %c5_116 = arith.constant 5 : index
    %c0_117 = arith.constant 0 : index
    %274 = vector.load %arg6[%c1_115, %c5_116, %c0_117] : memref<4x9x128xf32, #tpu.memory_space<vmem>>, vector<1x1x32xf32>
    %275 = vector.shape_cast %274 : vector<1x1x32xf32> to vector<1x32xf32>
    %c1_118 = arith.constant 1 : index
    %c6_119 = arith.constant 6 : index
    %c0_120 = arith.constant 0 : index
    %276 = vector.load %arg6[%c1_118, %c6_119, %c0_120] : memref<4x9x128xf32, #tpu.memory_space<vmem>>, vector<1x1x32xf32>
    %277 = vector.shape_cast %276 : vector<1x1x32xf32> to vector<1x32xf32>
    %c1_121 = arith.constant 1 : index
    %c7_122 = arith.constant 7 : index
    %c0_123 = arith.constant 0 : index
    %278 = vector.load %arg6[%c1_121, %c7_122, %c0_123] : memref<4x9x128xf32, #tpu.memory_space<vmem>>, vector<1x1x32xf32>
    %279 = vector.shape_cast %278 : vector<1x1x32xf32> to vector<1x32xf32>
    %c1_124 = arith.constant 1 : index
    %c8_125 = arith.constant 8 : index
    %c0_126 = arith.constant 0 : index
    %280 = vector.load %arg6[%c1_124, %c8_125, %c0_126] : memref<4x9x128xf32, #tpu.memory_space<vmem>>, vector<1x1x128xf32>
    %281 = vector.shape_cast %280 : vector<1x1x128xf32> to vector<1x128xf32>
    %cst_127 = arith.constant dense<0.000000e+00> : vector<34xf32>
    %282 = vector.multi_reduction <add>, %263, %cst_127 [1] : vector<34x32xf32> to vector<34xf32>
    %283 = vector.shape_cast %282 : vector<34xf32> to vector<34x1xf32>
    %cst_128 = arith.constant 3.200000e+01 : f32
    %284 = vector.broadcast %cst_128 : f32 to vector<34x1xf32>
    %285 = arith.divf %283, %284 : vector<34x1xf32>
    %286 = vector.broadcast %285 : vector<34x1xf32> to vector<34x32xf32>
    %287 = arith.subf %263, %286 : vector<34x32xf32>
    %288 = arith.mulf %287, %287 : vector<34x32xf32>
    %cst_129 = arith.constant dense<0.000000e+00> : vector<34xf32>
    %289 = vector.multi_reduction <add>, %288, %cst_129 [1] : vector<34x32xf32> to vector<34xf32>
    %290 = vector.shape_cast %289 : vector<34xf32> to vector<34x1xf32>
    %cst_130 = arith.constant 3.200000e+01 : f32
    %291 = vector.broadcast %cst_130 : f32 to vector<34x1xf32>
    %292 = arith.divf %290, %291 : vector<34x1xf32>
    %cst_131 = arith.constant 9.99999997E-7 : f32
    %293 = vector.broadcast %cst_131 : f32 to vector<34x1xf32>
    %294 = arith.addf %292, %293 : vector<34x1xf32>
    %295 = math.rsqrt %294 : vector<34x1xf32>
    %296 = vector.broadcast %295 : vector<34x1xf32> to vector<34x32xf32>
    %297 = arith.mulf %287, %296 : vector<34x32xf32>
    %298 = vector.broadcast %265 : vector<1x32xf32> to vector<34x32xf32>
    %299 = arith.mulf %297, %298 : vector<34x32xf32>
    %300 = vector.broadcast %267 : vector<1x32xf32> to vector<34x32xf32>
    %301 = arith.addf %299, %300 : vector<34x32xf32>
    %302 = arith.truncf %301 : vector<34x32xf32> to vector<34x32xbf16>
    %c1_132 = arith.constant 1 : index
    %c0_133 = arith.constant 0 : index
    %c0_134 = arith.constant 0 : index
    %303 = vector.load %arg4[%c1_132, %c0_133, %c0_134] : memref<4x96x128xbf16, #tpu.memory_space<vmem>>, vector<1x32x128xbf16>
    %304 = vector.shape_cast %303 : vector<1x32x128xbf16> to vector<32x128xbf16>
    %cst_135 = arith.constant dense<0.000000e+00> : vector<34x128xf32>
    %305 = tpu.matmul %302, %304, %cst_135 {dimension_numbers = #tpu.dot_dimension_numbers<[1], [0], [0], [1], [0, 0, 1, 1], [], []>} : vector<34x32xbf16>, vector<32x128xbf16>, vector<34x128xf32> -> vector<34x128xf32>
    %306 = vector.extract_strided_slice %305 {offsets = [0, 0], sizes = [34, 32], strides = [1, 1]} : vector<34x128xf32> to vector<34x32xf32>
    %cst_136 = arith.constant 0.353553385 : f32
    %307 = vector.broadcast %cst_136 : f32 to vector<34x32xf32>
    %308 = arith.mulf %306, %307 : vector<34x32xf32>
    %309 = vector.extract_strided_slice %305 {offsets = [0, 32], sizes = [34, 32], strides = [1, 1]} : vector<34x128xf32> to vector<34x32xf32>
    %310 = arith.truncf %309 : vector<34x32xf32> to vector<34x32xbf16>
    %311 = vector.extract_strided_slice %305 {offsets = [0, 64], sizes = [34, 32], strides = [1, 1]} : vector<34x128xf32> to vector<34x32xf32>
    %cst_137 = arith.constant 0.000000e+00 : f32
    %312 = vector.broadcast %cst_137 : f32 to vector<34x32xf32>
    %313 = arith.select %23, %308, %312 : vector<34x32xi1>, vector<34x32xf32>
    %314 = arith.truncf %313 : vector<34x32xf32> to vector<34x32xbf16>
    %cst_138 = arith.constant 0.000000e+00 : f32
    %315 = vector.broadcast %cst_138 : f32 to vector<34x32xf32>
    %316 = arith.select %23, %311, %315 : vector<34x32xi1>, vector<34x32xf32>
    %317 = arith.truncf %316 : vector<34x32xf32> to vector<34x32xbf16>
    %cst_139 = arith.constant dense<0.000000e+00> : vector<34x34xf32>
    %318 = tpu.matmul %314, %310, %cst_139 {dimension_numbers = #tpu.dot_dimension_numbers<[1], [1], [0], [0], [0, 0, 1, 0], [], []>} : vector<34x32xbf16>, vector<34x32xbf16>, vector<34x34xf32> -> vector<34x34xf32>
    %319 = arith.addf %318, %12 : vector<34x34xf32>
    %cst_140 = arith.constant dense<0xFF800000> : vector<34xf32>
    %320 = vector.multi_reduction <maximumf>, %319, %cst_140 [1] : vector<34x34xf32> to vector<34xf32>
    %321 = vector.shape_cast %320 : vector<34xf32> to vector<34x1xf32>
    %322 = vector.broadcast %321 : vector<34x1xf32> to vector<34x34xf32>
    %323 = arith.subf %319, %322 : vector<34x34xf32>
    %324 = math.exp %323 : vector<34x34xf32>
    %cst_141 = arith.constant dense<0.000000e+00> : vector<34xf32>
    %325 = vector.multi_reduction <add>, %324, %cst_141 [1] : vector<34x34xf32> to vector<34xf32>
    %326 = vector.shape_cast %325 : vector<34xf32> to vector<34x1xf32>
    %327 = tpu.reciprocal %326 {approx = true} : vector<34x1xf32> -> vector<34x1xf32>
    %328 = vector.broadcast %327 : vector<34x1xf32> to vector<34x34xf32>
    %329 = arith.mulf %324, %328 : vector<34x34xf32>
    %330 = arith.truncf %329 : vector<34x34xf32> to vector<34x34xbf16>
    %cst_142 = arith.constant dense<0.000000e+00> : vector<34x32xf32>
    %331 = tpu.matmul %330, %317, %cst_142 {dimension_numbers = #tpu.dot_dimension_numbers<[1], [0], [0], [1], [0, 0, 1, 1], [], []>} : vector<34x34xbf16>, vector<34x32xbf16>, vector<34x32xf32> -> vector<34x32xf32>
    %cst_143 = arith.constant 0.000000e+00 : f32
    %332 = vector.broadcast %cst_143 : f32 to vector<34x32xf32>
    %333 = arith.select %28, %308, %332 : vector<34x32xi1>, vector<34x32xf32>
    %334 = arith.truncf %333 : vector<34x32xf32> to vector<34x32xbf16>
    %cst_144 = arith.constant 0.000000e+00 : f32
    %335 = vector.broadcast %cst_144 : f32 to vector<34x32xf32>
    %336 = arith.select %28, %311, %335 : vector<34x32xi1>, vector<34x32xf32>
    %337 = arith.truncf %336 : vector<34x32xf32> to vector<34x32xbf16>
    %cst_145 = arith.constant dense<0.000000e+00> : vector<34x34xf32>
    %338 = tpu.matmul %334, %310, %cst_145 {dimension_numbers = #tpu.dot_dimension_numbers<[1], [1], [0], [0], [0, 0, 1, 0], [], []>} : vector<34x32xbf16>, vector<34x32xbf16>, vector<34x34xf32> -> vector<34x34xf32>
    %339 = arith.addf %338, %12 : vector<34x34xf32>
    %cst_146 = arith.constant dense<0xFF800000> : vector<34xf32>
    %340 = vector.multi_reduction <maximumf>, %339, %cst_146 [1] : vector<34x34xf32> to vector<34xf32>
    %341 = vector.shape_cast %340 : vector<34xf32> to vector<34x1xf32>
    %342 = vector.broadcast %341 : vector<34x1xf32> to vector<34x34xf32>
    %343 = arith.subf %339, %342 : vector<34x34xf32>
    %344 = math.exp %343 : vector<34x34xf32>
    %cst_147 = arith.constant dense<0.000000e+00> : vector<34xf32>
    %345 = vector.multi_reduction <add>, %344, %cst_147 [1] : vector<34x34xf32> to vector<34xf32>
    %346 = vector.shape_cast %345 : vector<34xf32> to vector<34x1xf32>
    %347 = tpu.reciprocal %346 {approx = true} : vector<34x1xf32> -> vector<34x1xf32>
    %348 = vector.broadcast %347 : vector<34x1xf32> to vector<34x34xf32>
    %349 = arith.mulf %344, %348 : vector<34x34xf32>
    %350 = arith.truncf %349 : vector<34x34xf32> to vector<34x34xbf16>
    %cst_148 = arith.constant dense<0.000000e+00> : vector<34x32xf32>
    %351 = tpu.matmul %350, %337, %cst_148 {dimension_numbers = #tpu.dot_dimension_numbers<[1], [0], [0], [1], [0, 0, 1, 1], [], []>} : vector<34x34xbf16>, vector<34x32xbf16>, vector<34x32xf32> -> vector<34x32xf32>
    %352 = arith.addf %331, %351 : vector<34x32xf32>
    %cst_149 = arith.constant 0.000000e+00 : f32
    %353 = vector.broadcast %cst_149 : f32 to vector<34x32xf32>
    %354 = arith.select %33, %308, %353 : vector<34x32xi1>, vector<34x32xf32>
    %355 = arith.truncf %354 : vector<34x32xf32> to vector<34x32xbf16>
    %cst_150 = arith.constant 0.000000e+00 : f32
    %356 = vector.broadcast %cst_150 : f32 to vector<34x32xf32>
    %357 = arith.select %33, %311, %356 : vector<34x32xi1>, vector<34x32xf32>
    %358 = arith.truncf %357 : vector<34x32xf32> to vector<34x32xbf16>
    %cst_151 = arith.constant dense<0.000000e+00> : vector<34x34xf32>
    %359 = tpu.matmul %355, %310, %cst_151 {dimension_numbers = #tpu.dot_dimension_numbers<[1], [1], [0], [0], [0, 0, 1, 0], [], []>} : vector<34x32xbf16>, vector<34x32xbf16>, vector<34x34xf32> -> vector<34x34xf32>
    %360 = arith.addf %359, %12 : vector<34x34xf32>
    %cst_152 = arith.constant dense<0xFF800000> : vector<34xf32>
    %361 = vector.multi_reduction <maximumf>, %360, %cst_152 [1] : vector<34x34xf32> to vector<34xf32>
    %362 = vector.shape_cast %361 : vector<34xf32> to vector<34x1xf32>
    %363 = vector.broadcast %362 : vector<34x1xf32> to vector<34x34xf32>
    %364 = arith.subf %360, %363 : vector<34x34xf32>
    %365 = math.exp %364 : vector<34x34xf32>
    %cst_153 = arith.constant dense<0.000000e+00> : vector<34xf32>
    %366 = vector.multi_reduction <add>, %365, %cst_153 [1] : vector<34x34xf32> to vector<34xf32>
    %367 = vector.shape_cast %366 : vector<34xf32> to vector<34x1xf32>
    %368 = tpu.reciprocal %367 {approx = true} : vector<34x1xf32> -> vector<34x1xf32>
    %369 = vector.broadcast %368 : vector<34x1xf32> to vector<34x34xf32>
    %370 = arith.mulf %365, %369 : vector<34x34xf32>
    %371 = arith.truncf %370 : vector<34x34xf32> to vector<34x34xbf16>
    %cst_154 = arith.constant dense<0.000000e+00> : vector<34x32xf32>
    %372 = tpu.matmul %371, %358, %cst_154 {dimension_numbers = #tpu.dot_dimension_numbers<[1], [0], [0], [1], [0, 0, 1, 1], [], []>} : vector<34x34xbf16>, vector<34x32xbf16>, vector<34x32xf32> -> vector<34x32xf32>
    %373 = arith.addf %352, %372 : vector<34x32xf32>
    %cst_155 = arith.constant 0.000000e+00 : f32
    %374 = vector.broadcast %cst_155 : f32 to vector<34x32xf32>
    %375 = arith.select %38, %308, %374 : vector<34x32xi1>, vector<34x32xf32>
    %376 = arith.truncf %375 : vector<34x32xf32> to vector<34x32xbf16>
    %cst_156 = arith.constant 0.000000e+00 : f32
    %377 = vector.broadcast %cst_156 : f32 to vector<34x32xf32>
    %378 = arith.select %38, %311, %377 : vector<34x32xi1>, vector<34x32xf32>
    %379 = arith.truncf %378 : vector<34x32xf32> to vector<34x32xbf16>
    %cst_157 = arith.constant dense<0.000000e+00> : vector<34x34xf32>
    %380 = tpu.matmul %376, %310, %cst_157 {dimension_numbers = #tpu.dot_dimension_numbers<[1], [1], [0], [0], [0, 0, 1, 0], [], []>} : vector<34x32xbf16>, vector<34x32xbf16>, vector<34x34xf32> -> vector<34x34xf32>
    %381 = arith.addf %380, %12 : vector<34x34xf32>
    %cst_158 = arith.constant dense<0xFF800000> : vector<34xf32>
    %382 = vector.multi_reduction <maximumf>, %381, %cst_158 [1] : vector<34x34xf32> to vector<34xf32>
    %383 = vector.shape_cast %382 : vector<34xf32> to vector<34x1xf32>
    %384 = vector.broadcast %383 : vector<34x1xf32> to vector<34x34xf32>
    %385 = arith.subf %381, %384 : vector<34x34xf32>
    %386 = math.exp %385 : vector<34x34xf32>
    %cst_159 = arith.constant dense<0.000000e+00> : vector<34xf32>
    %387 = vector.multi_reduction <add>, %386, %cst_159 [1] : vector<34x34xf32> to vector<34xf32>
    %388 = vector.shape_cast %387 : vector<34xf32> to vector<34x1xf32>
    %389 = tpu.reciprocal %388 {approx = true} : vector<34x1xf32> -> vector<34x1xf32>
    %390 = vector.broadcast %389 : vector<34x1xf32> to vector<34x34xf32>
    %391 = arith.mulf %386, %390 : vector<34x34xf32>
    %392 = arith.truncf %391 : vector<34x34xf32> to vector<34x34xbf16>
    %cst_160 = arith.constant dense<0.000000e+00> : vector<34x32xf32>
    %393 = tpu.matmul %392, %379, %cst_160 {dimension_numbers = #tpu.dot_dimension_numbers<[1], [0], [0], [1], [0, 0, 1, 1], [], []>} : vector<34x34xbf16>, vector<34x32xbf16>, vector<34x32xf32> -> vector<34x32xf32>
    %394 = arith.addf %373, %393 : vector<34x32xf32>
    %395 = arith.truncf %394 : vector<34x32xf32> to vector<34x32xbf16>
    %c1_161 = arith.constant 1 : index
    %c32_162 = arith.constant 32 : index
    %c0_163 = arith.constant 0 : index
    %396 = vector.load %arg4[%c1_161, %c32_162, %c0_163] : memref<4x96x128xbf16, #tpu.memory_space<vmem>>, vector<1x32x32xbf16>
    %397 = vector.shape_cast %396 : vector<1x32x32xbf16> to vector<32x32xbf16>
    %cst_164 = arith.constant dense<0.000000e+00> : vector<34x32xf32>
    %398 = tpu.matmul %395, %397, %cst_164 {dimension_numbers = #tpu.dot_dimension_numbers<[1], [0], [0], [1], [0, 0, 1, 1], [], []>} : vector<34x32xbf16>, vector<32x32xbf16>, vector<34x32xf32> -> vector<34x32xf32>
    %399 = vector.broadcast %269 : vector<1x32xf32> to vector<34x32xf32>
    %400 = arith.addf %398, %399 : vector<34x32xf32>
    %401 = vector.broadcast %271 : vector<1x32xf32> to vector<34x32xf32>
    %402 = arith.mulf %401, %400 : vector<34x32xf32>
    %403 = arith.addf %263, %402 : vector<34x32xf32>
    %cst_165 = arith.constant dense<0.000000e+00> : vector<34xf32>
    %404 = vector.multi_reduction <add>, %403, %cst_165 [1] : vector<34x32xf32> to vector<34xf32>
    %405 = vector.shape_cast %404 : vector<34xf32> to vector<34x1xf32>
    %cst_166 = arith.constant 3.200000e+01 : f32
    %406 = vector.broadcast %cst_166 : f32 to vector<34x1xf32>
    %407 = arith.divf %405, %406 : vector<34x1xf32>
    %408 = vector.broadcast %407 : vector<34x1xf32> to vector<34x32xf32>
    %409 = arith.subf %403, %408 : vector<34x32xf32>
    %410 = arith.mulf %409, %409 : vector<34x32xf32>
    %cst_167 = arith.constant dense<0.000000e+00> : vector<34xf32>
    %411 = vector.multi_reduction <add>, %410, %cst_167 [1] : vector<34x32xf32> to vector<34xf32>
    %412 = vector.shape_cast %411 : vector<34xf32> to vector<34x1xf32>
    %cst_168 = arith.constant 3.200000e+01 : f32
    %413 = vector.broadcast %cst_168 : f32 to vector<34x1xf32>
    %414 = arith.divf %412, %413 : vector<34x1xf32>
    %cst_169 = arith.constant 9.99999997E-7 : f32
    %415 = vector.broadcast %cst_169 : f32 to vector<34x1xf32>
    %416 = arith.addf %414, %415 : vector<34x1xf32>
    %417 = math.rsqrt %416 : vector<34x1xf32>
    %418 = vector.broadcast %417 : vector<34x1xf32> to vector<34x32xf32>
    %419 = arith.mulf %409, %418 : vector<34x32xf32>
    %420 = vector.broadcast %273 : vector<1x32xf32> to vector<34x32xf32>
    %421 = arith.mulf %419, %420 : vector<34x32xf32>
    %422 = vector.broadcast %275 : vector<1x32xf32> to vector<34x32xf32>
    %423 = arith.addf %421, %422 : vector<34x32xf32>
    %424 = arith.truncf %423 : vector<34x32xf32> to vector<34x32xbf16>
    %c1_170 = arith.constant 1 : index
    %c64_171 = arith.constant 64 : index
    %c0_172 = arith.constant 0 : index
    %425 = vector.load %arg4[%c1_170, %c64_171, %c0_172] : memref<4x96x128xbf16, #tpu.memory_space<vmem>>, vector<1x32x128xbf16>
    %426 = vector.shape_cast %425 : vector<1x32x128xbf16> to vector<32x128xbf16>
    %cst_173 = arith.constant dense<0.000000e+00> : vector<34x128xf32>
    %427 = tpu.matmul %424, %426, %cst_173 {dimension_numbers = #tpu.dot_dimension_numbers<[1], [0], [0], [1], [0, 0, 1, 1], [], []>} : vector<34x32xbf16>, vector<32x128xbf16>, vector<34x128xf32> -> vector<34x128xf32>
    %428 = vector.broadcast %281 : vector<1x128xf32> to vector<34x128xf32>
    %429 = arith.addf %427, %428 : vector<34x128xf32>
    %cst_174 = arith.constant 5.000000e-01 : f32
    %430 = vector.broadcast %cst_174 : f32 to vector<34x128xf32>
    %431 = arith.mulf %430, %429 : vector<34x128xf32>
    %cst_175 = arith.constant 0.707106769 : f32
    %432 = vector.broadcast %cst_175 : f32 to vector<34x128xf32>
    %433 = arith.mulf %429, %432 : vector<34x128xf32>
    %434 = math.absf %433 : vector<34x128xf32>
    %cst_176 = arith.constant 0.327591091 : f32
    %435 = vector.broadcast %cst_176 : f32 to vector<34x128xf32>
    %436 = arith.mulf %435, %434 : vector<34x128xf32>
    %cst_177 = arith.constant 1.000000e+00 : f32
    %437 = vector.broadcast %cst_177 : f32 to vector<34x128xf32>
    %438 = arith.addf %437, %436 : vector<34x128xf32>
    %cst_178 = arith.constant 1.000000e+00 : f32
    %439 = vector.broadcast %cst_178 : f32 to vector<34x128xf32>
    %440 = arith.divf %439, %438 : vector<34x128xf32>
    %cst_179 = arith.constant 1.06140542 : f32
    %441 = vector.broadcast %cst_179 : f32 to vector<34x128xf32>
    %442 = arith.mulf %440, %441 : vector<34x128xf32>
    %cst_180 = arith.constant -1.45315206 : f32
    %443 = vector.broadcast %cst_180 : f32 to vector<34x128xf32>
    %444 = arith.addf %443, %442 : vector<34x128xf32>
    %445 = arith.mulf %440, %444 : vector<34x128xf32>
    %cst_181 = arith.constant 1.42141378 : f32
    %446 = vector.broadcast %cst_181 : f32 to vector<34x128xf32>
    %447 = arith.addf %446, %445 : vector<34x128xf32>
    %448 = arith.mulf %440, %447 : vector<34x128xf32>
    %cst_182 = arith.constant -0.284496725 : f32
    %449 = vector.broadcast %cst_182 : f32 to vector<34x128xf32>
    %450 = arith.addf %449, %448 : vector<34x128xf32>
    %451 = arith.mulf %440, %450 : vector<34x128xf32>
    %cst_183 = arith.constant 0.254829586 : f32
    %452 = vector.broadcast %cst_183 : f32 to vector<34x128xf32>
    %453 = arith.addf %452, %451 : vector<34x128xf32>
    %454 = arith.mulf %440, %453 : vector<34x128xf32>
    %cst_184 = arith.constant 0.000000e+00 : f32
    %455 = vector.broadcast %cst_184 : f32 to vector<34x128xf32>
    %456 = arith.subf %455, %434 : vector<34x128xf32>
    %457 = arith.mulf %456, %434 : vector<34x128xf32>
    %458 = math.exp %457 : vector<34x128xf32>
    %459 = arith.mulf %454, %458 : vector<34x128xf32>
    %cst_185 = arith.constant 1.000000e+00 : f32
    %460 = vector.broadcast %cst_185 : f32 to vector<34x128xf32>
    %461 = arith.subf %460, %459 : vector<34x128xf32>
    %cst_186 = arith.constant 0.000000e+00 : f32
    %462 = vector.broadcast %cst_186 : f32 to vector<34x128xf32>
    %463 = arith.cmpf olt, %433, %462 : vector<34x128xf32>
    %cst_187 = arith.constant 0.000000e+00 : f32
    %464 = vector.broadcast %cst_187 : f32 to vector<34x128xf32>
    %465 = arith.subf %464, %461 : vector<34x128xf32>
    %466 = arith.select %463, %465, %461 : vector<34x128xi1>, vector<34x128xf32>
    %cst_188 = arith.constant 1.000000e+00 : f32
    %467 = vector.broadcast %cst_188 : f32 to vector<34x128xf32>
    %468 = arith.addf %467, %466 : vector<34x128xf32>
    %469 = arith.mulf %431, %468 : vector<34x128xf32>
    %470 = arith.truncf %469 : vector<34x128xf32> to vector<34x128xbf16>
    %c1_189 = arith.constant 1 : index
    %c0_190 = arith.constant 0 : index
    %c0_191 = arith.constant 0 : index
    %471 = vector.load %arg5[%c1_189, %c0_190, %c0_191] : memref<4x128x32xbf16, #tpu.memory_space<vmem>>, vector<1x128x32xbf16>
    %472 = vector.shape_cast %471 : vector<1x128x32xbf16> to vector<128x32xbf16>
    %cst_192 = arith.constant dense<0.000000e+00> : vector<34x32xf32>
    %473 = tpu.matmul %470, %472, %cst_192 {dimension_numbers = #tpu.dot_dimension_numbers<[1], [0], [0], [1], [0, 0, 1, 1], [], []>} : vector<34x128xbf16>, vector<128x32xbf16>, vector<34x32xf32> -> vector<34x32xf32>
    %474 = vector.broadcast %277 : vector<1x32xf32> to vector<34x32xf32>
    %475 = arith.addf %473, %474 : vector<34x32xf32>
    %476 = vector.broadcast %279 : vector<1x32xf32> to vector<34x32xf32>
    %477 = arith.mulf %476, %475 : vector<34x32xf32>
    %478 = arith.addf %403, %477 : vector<34x32xf32>
    %c16_i32_193 = arith.constant 16 : i32
    %479 = vector.broadcast %c16_i32_193 : i32 to vector<34x32xi32>
    %480 = arith.cmpi slt, %18, %479 : vector<34x32xi32>
    %481 = math.absf %478 : vector<34x32xf32>
    %482 = arith.select %480, %478, %481 : vector<34x32xi1>, vector<34x32xf32>
    %c2_194 = arith.constant 2 : index
    %c0_195 = arith.constant 0 : index
    %c0_196 = arith.constant 0 : index
    %483 = vector.load %arg6[%c2_194, %c0_195, %c0_196] : memref<4x9x128xf32, #tpu.memory_space<vmem>>, vector<1x1x32xf32>
    %484 = vector.shape_cast %483 : vector<1x1x32xf32> to vector<1x32xf32>
    %c2_197 = arith.constant 2 : index
    %c1_198 = arith.constant 1 : index
    %c0_199 = arith.constant 0 : index
    %485 = vector.load %arg6[%c2_197, %c1_198, %c0_199] : memref<4x9x128xf32, #tpu.memory_space<vmem>>, vector<1x1x32xf32>
    %486 = vector.shape_cast %485 : vector<1x1x32xf32> to vector<1x32xf32>
    %c2_200 = arith.constant 2 : index
    %c2_201 = arith.constant 2 : index
    %c0_202 = arith.constant 0 : index
    %487 = vector.load %arg6[%c2_200, %c2_201, %c0_202] : memref<4x9x128xf32, #tpu.memory_space<vmem>>, vector<1x1x32xf32>
    %488 = vector.shape_cast %487 : vector<1x1x32xf32> to vector<1x32xf32>
    %c2_203 = arith.constant 2 : index
    %c3_204 = arith.constant 3 : index
    %c0_205 = arith.constant 0 : index
    %489 = vector.load %arg6[%c2_203, %c3_204, %c0_205] : memref<4x9x128xf32, #tpu.memory_space<vmem>>, vector<1x1x32xf32>
    %490 = vector.shape_cast %489 : vector<1x1x32xf32> to vector<1x32xf32>
    %c2_206 = arith.constant 2 : index
    %c4_207 = arith.constant 4 : index
    %c0_208 = arith.constant 0 : index
    %491 = vector.load %arg6[%c2_206, %c4_207, %c0_208] : memref<4x9x128xf32, #tpu.memory_space<vmem>>, vector<1x1x32xf32>
    %492 = vector.shape_cast %491 : vector<1x1x32xf32> to vector<1x32xf32>
    %c2_209 = arith.constant 2 : index
    %c5_210 = arith.constant 5 : index
    %c0_211 = arith.constant 0 : index
    %493 = vector.load %arg6[%c2_209, %c5_210, %c0_211] : memref<4x9x128xf32, #tpu.memory_space<vmem>>, vector<1x1x32xf32>
    %494 = vector.shape_cast %493 : vector<1x1x32xf32> to vector<1x32xf32>
    %c2_212 = arith.constant 2 : index
    %c6_213 = arith.constant 6 : index
    %c0_214 = arith.constant 0 : index
    %495 = vector.load %arg6[%c2_212, %c6_213, %c0_214] : memref<4x9x128xf32, #tpu.memory_space<vmem>>, vector<1x1x32xf32>
    %496 = vector.shape_cast %495 : vector<1x1x32xf32> to vector<1x32xf32>
    %c2_215 = arith.constant 2 : index
    %c7_216 = arith.constant 7 : index
    %c0_217 = arith.constant 0 : index
    %497 = vector.load %arg6[%c2_215, %c7_216, %c0_217] : memref<4x9x128xf32, #tpu.memory_space<vmem>>, vector<1x1x32xf32>
    %498 = vector.shape_cast %497 : vector<1x1x32xf32> to vector<1x32xf32>
    %c2_218 = arith.constant 2 : index
    %c8_219 = arith.constant 8 : index
    %c0_220 = arith.constant 0 : index
    %499 = vector.load %arg6[%c2_218, %c8_219, %c0_220] : memref<4x9x128xf32, #tpu.memory_space<vmem>>, vector<1x1x128xf32>
    %500 = vector.shape_cast %499 : vector<1x1x128xf32> to vector<1x128xf32>
    %cst_221 = arith.constant dense<0.000000e+00> : vector<34xf32>
    %501 = vector.multi_reduction <add>, %482, %cst_221 [1] : vector<34x32xf32> to vector<34xf32>
    %502 = vector.shape_cast %501 : vector<34xf32> to vector<34x1xf32>
    %cst_222 = arith.constant 3.200000e+01 : f32
    %503 = vector.broadcast %cst_222 : f32 to vector<34x1xf32>
    %504 = arith.divf %502, %503 : vector<34x1xf32>
    %505 = vector.broadcast %504 : vector<34x1xf32> to vector<34x32xf32>
    %506 = arith.subf %482, %505 : vector<34x32xf32>
    %507 = arith.mulf %506, %506 : vector<34x32xf32>
    %cst_223 = arith.constant dense<0.000000e+00> : vector<34xf32>
    %508 = vector.multi_reduction <add>, %507, %cst_223 [1] : vector<34x32xf32> to vector<34xf32>
    %509 = vector.shape_cast %508 : vector<34xf32> to vector<34x1xf32>
    %cst_224 = arith.constant 3.200000e+01 : f32
    %510 = vector.broadcast %cst_224 : f32 to vector<34x1xf32>
    %511 = arith.divf %509, %510 : vector<34x1xf32>
    %cst_225 = arith.constant 9.99999997E-7 : f32
    %512 = vector.broadcast %cst_225 : f32 to vector<34x1xf32>
    %513 = arith.addf %511, %512 : vector<34x1xf32>
    %514 = math.rsqrt %513 : vector<34x1xf32>
    %515 = vector.broadcast %514 : vector<34x1xf32> to vector<34x32xf32>
    %516 = arith.mulf %506, %515 : vector<34x32xf32>
    %517 = vector.broadcast %484 : vector<1x32xf32> to vector<34x32xf32>
    %518 = arith.mulf %516, %517 : vector<34x32xf32>
    %519 = vector.broadcast %486 : vector<1x32xf32> to vector<34x32xf32>
    %520 = arith.addf %518, %519 : vector<34x32xf32>
    %521 = arith.truncf %520 : vector<34x32xf32> to vector<34x32xbf16>
    %c2_226 = arith.constant 2 : index
    %c0_227 = arith.constant 0 : index
    %c0_228 = arith.constant 0 : index
    %522 = vector.load %arg4[%c2_226, %c0_227, %c0_228] : memref<4x96x128xbf16, #tpu.memory_space<vmem>>, vector<1x32x128xbf16>
    %523 = vector.shape_cast %522 : vector<1x32x128xbf16> to vector<32x128xbf16>
    %cst_229 = arith.constant dense<0.000000e+00> : vector<34x128xf32>
    %524 = tpu.matmul %521, %523, %cst_229 {dimension_numbers = #tpu.dot_dimension_numbers<[1], [0], [0], [1], [0, 0, 1, 1], [], []>} : vector<34x32xbf16>, vector<32x128xbf16>, vector<34x128xf32> -> vector<34x128xf32>
    %525 = vector.extract_strided_slice %524 {offsets = [0, 0], sizes = [34, 32], strides = [1, 1]} : vector<34x128xf32> to vector<34x32xf32>
    %cst_230 = arith.constant 0.353553385 : f32
    %526 = vector.broadcast %cst_230 : f32 to vector<34x32xf32>
    %527 = arith.mulf %525, %526 : vector<34x32xf32>
    %528 = vector.extract_strided_slice %524 {offsets = [0, 32], sizes = [34, 32], strides = [1, 1]} : vector<34x128xf32> to vector<34x32xf32>
    %529 = arith.truncf %528 : vector<34x32xf32> to vector<34x32xbf16>
    %530 = vector.extract_strided_slice %524 {offsets = [0, 64], sizes = [34, 32], strides = [1, 1]} : vector<34x128xf32> to vector<34x32xf32>
    %cst_231 = arith.constant 0.000000e+00 : f32
    %531 = vector.broadcast %cst_231 : f32 to vector<34x32xf32>
    %532 = arith.select %23, %527, %531 : vector<34x32xi1>, vector<34x32xf32>
    %533 = arith.truncf %532 : vector<34x32xf32> to vector<34x32xbf16>
    %cst_232 = arith.constant 0.000000e+00 : f32
    %534 = vector.broadcast %cst_232 : f32 to vector<34x32xf32>
    %535 = arith.select %23, %530, %534 : vector<34x32xi1>, vector<34x32xf32>
    %536 = arith.truncf %535 : vector<34x32xf32> to vector<34x32xbf16>
    %cst_233 = arith.constant dense<0.000000e+00> : vector<34x34xf32>
    %537 = tpu.matmul %533, %529, %cst_233 {dimension_numbers = #tpu.dot_dimension_numbers<[1], [1], [0], [0], [0, 0, 1, 0], [], []>} : vector<34x32xbf16>, vector<34x32xbf16>, vector<34x34xf32> -> vector<34x34xf32>
    %538 = arith.addf %537, %12 : vector<34x34xf32>
    %cst_234 = arith.constant dense<0xFF800000> : vector<34xf32>
    %539 = vector.multi_reduction <maximumf>, %538, %cst_234 [1] : vector<34x34xf32> to vector<34xf32>
    %540 = vector.shape_cast %539 : vector<34xf32> to vector<34x1xf32>
    %541 = vector.broadcast %540 : vector<34x1xf32> to vector<34x34xf32>
    %542 = arith.subf %538, %541 : vector<34x34xf32>
    %543 = math.exp %542 : vector<34x34xf32>
    %cst_235 = arith.constant dense<0.000000e+00> : vector<34xf32>
    %544 = vector.multi_reduction <add>, %543, %cst_235 [1] : vector<34x34xf32> to vector<34xf32>
    %545 = vector.shape_cast %544 : vector<34xf32> to vector<34x1xf32>
    %546 = tpu.reciprocal %545 {approx = true} : vector<34x1xf32> -> vector<34x1xf32>
    %547 = vector.broadcast %546 : vector<34x1xf32> to vector<34x34xf32>
    %548 = arith.mulf %543, %547 : vector<34x34xf32>
    %549 = arith.truncf %548 : vector<34x34xf32> to vector<34x34xbf16>
    %cst_236 = arith.constant dense<0.000000e+00> : vector<34x32xf32>
    %550 = tpu.matmul %549, %536, %cst_236 {dimension_numbers = #tpu.dot_dimension_numbers<[1], [0], [0], [1], [0, 0, 1, 1], [], []>} : vector<34x34xbf16>, vector<34x32xbf16>, vector<34x32xf32> -> vector<34x32xf32>
    %cst_237 = arith.constant 0.000000e+00 : f32
    %551 = vector.broadcast %cst_237 : f32 to vector<34x32xf32>
    %552 = arith.select %28, %527, %551 : vector<34x32xi1>, vector<34x32xf32>
    %553 = arith.truncf %552 : vector<34x32xf32> to vector<34x32xbf16>
    %cst_238 = arith.constant 0.000000e+00 : f32
    %554 = vector.broadcast %cst_238 : f32 to vector<34x32xf32>
    %555 = arith.select %28, %530, %554 : vector<34x32xi1>, vector<34x32xf32>
    %556 = arith.truncf %555 : vector<34x32xf32> to vector<34x32xbf16>
    %cst_239 = arith.constant dense<0.000000e+00> : vector<34x34xf32>
    %557 = tpu.matmul %553, %529, %cst_239 {dimension_numbers = #tpu.dot_dimension_numbers<[1], [1], [0], [0], [0, 0, 1, 0], [], []>} : vector<34x32xbf16>, vector<34x32xbf16>, vector<34x34xf32> -> vector<34x34xf32>
    %558 = arith.addf %557, %12 : vector<34x34xf32>
    %cst_240 = arith.constant dense<0xFF800000> : vector<34xf32>
    %559 = vector.multi_reduction <maximumf>, %558, %cst_240 [1] : vector<34x34xf32> to vector<34xf32>
    %560 = vector.shape_cast %559 : vector<34xf32> to vector<34x1xf32>
    %561 = vector.broadcast %560 : vector<34x1xf32> to vector<34x34xf32>
    %562 = arith.subf %558, %561 : vector<34x34xf32>
    %563 = math.exp %562 : vector<34x34xf32>
    %cst_241 = arith.constant dense<0.000000e+00> : vector<34xf32>
    %564 = vector.multi_reduction <add>, %563, %cst_241 [1] : vector<34x34xf32> to vector<34xf32>
    %565 = vector.shape_cast %564 : vector<34xf32> to vector<34x1xf32>
    %566 = tpu.reciprocal %565 {approx = true} : vector<34x1xf32> -> vector<34x1xf32>
    %567 = vector.broadcast %566 : vector<34x1xf32> to vector<34x34xf32>
    %568 = arith.mulf %563, %567 : vector<34x34xf32>
    %569 = arith.truncf %568 : vector<34x34xf32> to vector<34x34xbf16>
    %cst_242 = arith.constant dense<0.000000e+00> : vector<34x32xf32>
    %570 = tpu.matmul %569, %556, %cst_242 {dimension_numbers = #tpu.dot_dimension_numbers<[1], [0], [0], [1], [0, 0, 1, 1], [], []>} : vector<34x34xbf16>, vector<34x32xbf16>, vector<34x32xf32> -> vector<34x32xf32>
    %571 = arith.addf %550, %570 : vector<34x32xf32>
    %cst_243 = arith.constant 0.000000e+00 : f32
    %572 = vector.broadcast %cst_243 : f32 to vector<34x32xf32>
    %573 = arith.select %33, %527, %572 : vector<34x32xi1>, vector<34x32xf32>
    %574 = arith.truncf %573 : vector<34x32xf32> to vector<34x32xbf16>
    %cst_244 = arith.constant 0.000000e+00 : f32
    %575 = vector.broadcast %cst_244 : f32 to vector<34x32xf32>
    %576 = arith.select %33, %530, %575 : vector<34x32xi1>, vector<34x32xf32>
    %577 = arith.truncf %576 : vector<34x32xf32> to vector<34x32xbf16>
    %cst_245 = arith.constant dense<0.000000e+00> : vector<34x34xf32>
    %578 = tpu.matmul %574, %529, %cst_245 {dimension_numbers = #tpu.dot_dimension_numbers<[1], [1], [0], [0], [0, 0, 1, 0], [], []>} : vector<34x32xbf16>, vector<34x32xbf16>, vector<34x34xf32> -> vector<34x34xf32>
    %579 = arith.addf %578, %12 : vector<34x34xf32>
    %cst_246 = arith.constant dense<0xFF800000> : vector<34xf32>
    %580 = vector.multi_reduction <maximumf>, %579, %cst_246 [1] : vector<34x34xf32> to vector<34xf32>
    %581 = vector.shape_cast %580 : vector<34xf32> to vector<34x1xf32>
    %582 = vector.broadcast %581 : vector<34x1xf32> to vector<34x34xf32>
    %583 = arith.subf %579, %582 : vector<34x34xf32>
    %584 = math.exp %583 : vector<34x34xf32>
    %cst_247 = arith.constant dense<0.000000e+00> : vector<34xf32>
    %585 = vector.multi_reduction <add>, %584, %cst_247 [1] : vector<34x34xf32> to vector<34xf32>
    %586 = vector.shape_cast %585 : vector<34xf32> to vector<34x1xf32>
    %587 = tpu.reciprocal %586 {approx = true} : vector<34x1xf32> -> vector<34x1xf32>
    %588 = vector.broadcast %587 : vector<34x1xf32> to vector<34x34xf32>
    %589 = arith.mulf %584, %588 : vector<34x34xf32>
    %590 = arith.truncf %589 : vector<34x34xf32> to vector<34x34xbf16>
    %cst_248 = arith.constant dense<0.000000e+00> : vector<34x32xf32>
    %591 = tpu.matmul %590, %577, %cst_248 {dimension_numbers = #tpu.dot_dimension_numbers<[1], [0], [0], [1], [0, 0, 1, 1], [], []>} : vector<34x34xbf16>, vector<34x32xbf16>, vector<34x32xf32> -> vector<34x32xf32>
    %592 = arith.addf %571, %591 : vector<34x32xf32>
    %cst_249 = arith.constant 0.000000e+00 : f32
    %593 = vector.broadcast %cst_249 : f32 to vector<34x32xf32>
    %594 = arith.select %38, %527, %593 : vector<34x32xi1>, vector<34x32xf32>
    %595 = arith.truncf %594 : vector<34x32xf32> to vector<34x32xbf16>
    %cst_250 = arith.constant 0.000000e+00 : f32
    %596 = vector.broadcast %cst_250 : f32 to vector<34x32xf32>
    %597 = arith.select %38, %530, %596 : vector<34x32xi1>, vector<34x32xf32>
    %598 = arith.truncf %597 : vector<34x32xf32> to vector<34x32xbf16>
    %cst_251 = arith.constant dense<0.000000e+00> : vector<34x34xf32>
    %599 = tpu.matmul %595, %529, %cst_251 {dimension_numbers = #tpu.dot_dimension_numbers<[1], [1], [0], [0], [0, 0, 1, 0], [], []>} : vector<34x32xbf16>, vector<34x32xbf16>, vector<34x34xf32> -> vector<34x34xf32>
    %600 = arith.addf %599, %12 : vector<34x34xf32>
    %cst_252 = arith.constant dense<0xFF800000> : vector<34xf32>
    %601 = vector.multi_reduction <maximumf>, %600, %cst_252 [1] : vector<34x34xf32> to vector<34xf32>
    %602 = vector.shape_cast %601 : vector<34xf32> to vector<34x1xf32>
    %603 = vector.broadcast %602 : vector<34x1xf32> to vector<34x34xf32>
    %604 = arith.subf %600, %603 : vector<34x34xf32>
    %605 = math.exp %604 : vector<34x34xf32>
    %cst_253 = arith.constant dense<0.000000e+00> : vector<34xf32>
    %606 = vector.multi_reduction <add>, %605, %cst_253 [1] : vector<34x34xf32> to vector<34xf32>
    %607 = vector.shape_cast %606 : vector<34xf32> to vector<34x1xf32>
    %608 = tpu.reciprocal %607 {approx = true} : vector<34x1xf32> -> vector<34x1xf32>
    %609 = vector.broadcast %608 : vector<34x1xf32> to vector<34x34xf32>
    %610 = arith.mulf %605, %609 : vector<34x34xf32>
    %611 = arith.truncf %610 : vector<34x34xf32> to vector<34x34xbf16>
    %cst_254 = arith.constant dense<0.000000e+00> : vector<34x32xf32>
    %612 = tpu.matmul %611, %598, %cst_254 {dimension_numbers = #tpu.dot_dimension_numbers<[1], [0], [0], [1], [0, 0, 1, 1], [], []>} : vector<34x34xbf16>, vector<34x32xbf16>, vector<34x32xf32> -> vector<34x32xf32>
    %613 = arith.addf %592, %612 : vector<34x32xf32>
    %614 = arith.truncf %613 : vector<34x32xf32> to vector<34x32xbf16>
    %c2_255 = arith.constant 2 : index
    %c32_256 = arith.constant 32 : index
    %c0_257 = arith.constant 0 : index
    %615 = vector.load %arg4[%c2_255, %c32_256, %c0_257] : memref<4x96x128xbf16, #tpu.memory_space<vmem>>, vector<1x32x32xbf16>
    %616 = vector.shape_cast %615 : vector<1x32x32xbf16> to vector<32x32xbf16>
    %cst_258 = arith.constant dense<0.000000e+00> : vector<34x32xf32>
    %617 = tpu.matmul %614, %616, %cst_258 {dimension_numbers = #tpu.dot_dimension_numbers<[1], [0], [0], [1], [0, 0, 1, 1], [], []>} : vector<34x32xbf16>, vector<32x32xbf16>, vector<34x32xf32> -> vector<34x32xf32>
    %618 = vector.broadcast %488 : vector<1x32xf32> to vector<34x32xf32>
    %619 = arith.addf %617, %618 : vector<34x32xf32>
    %620 = vector.broadcast %490 : vector<1x32xf32> to vector<34x32xf32>
    %621 = arith.mulf %620, %619 : vector<34x32xf32>
    %622 = arith.addf %482, %621 : vector<34x32xf32>
    %cst_259 = arith.constant dense<0.000000e+00> : vector<34xf32>
    %623 = vector.multi_reduction <add>, %622, %cst_259 [1] : vector<34x32xf32> to vector<34xf32>
    %624 = vector.shape_cast %623 : vector<34xf32> to vector<34x1xf32>
    %cst_260 = arith.constant 3.200000e+01 : f32
    %625 = vector.broadcast %cst_260 : f32 to vector<34x1xf32>
    %626 = arith.divf %624, %625 : vector<34x1xf32>
    %627 = vector.broadcast %626 : vector<34x1xf32> to vector<34x32xf32>
    %628 = arith.subf %622, %627 : vector<34x32xf32>
    %629 = arith.mulf %628, %628 : vector<34x32xf32>
    %cst_261 = arith.constant dense<0.000000e+00> : vector<34xf32>
    %630 = vector.multi_reduction <add>, %629, %cst_261 [1] : vector<34x32xf32> to vector<34xf32>
    %631 = vector.shape_cast %630 : vector<34xf32> to vector<34x1xf32>
    %cst_262 = arith.constant 3.200000e+01 : f32
    %632 = vector.broadcast %cst_262 : f32 to vector<34x1xf32>
    %633 = arith.divf %631, %632 : vector<34x1xf32>
    %cst_263 = arith.constant 9.99999997E-7 : f32
    %634 = vector.broadcast %cst_263 : f32 to vector<34x1xf32>
    %635 = arith.addf %633, %634 : vector<34x1xf32>
    %636 = math.rsqrt %635 : vector<34x1xf32>
    %637 = vector.broadcast %636 : vector<34x1xf32> to vector<34x32xf32>
    %638 = arith.mulf %628, %637 : vector<34x32xf32>
    %639 = vector.broadcast %492 : vector<1x32xf32> to vector<34x32xf32>
    %640 = arith.mulf %638, %639 : vector<34x32xf32>
    %641 = vector.broadcast %494 : vector<1x32xf32> to vector<34x32xf32>
    %642 = arith.addf %640, %641 : vector<34x32xf32>
    %643 = arith.truncf %642 : vector<34x32xf32> to vector<34x32xbf16>
    %c2_264 = arith.constant 2 : index
    %c64_265 = arith.constant 64 : index
    %c0_266 = arith.constant 0 : index
    %644 = vector.load %arg4[%c2_264, %c64_265, %c0_266] : memref<4x96x128xbf16, #tpu.memory_space<vmem>>, vector<1x32x128xbf16>
    %645 = vector.shape_cast %644 : vector<1x32x128xbf16> to vector<32x128xbf16>
    %cst_267 = arith.constant dense<0.000000e+00> : vector<34x128xf32>
    %646 = tpu.matmul %643, %645, %cst_267 {dimension_numbers = #tpu.dot_dimension_numbers<[1], [0], [0], [1], [0, 0, 1, 1], [], []>} : vector<34x32xbf16>, vector<32x128xbf16>, vector<34x128xf32> -> vector<34x128xf32>
    %647 = vector.broadcast %500 : vector<1x128xf32> to vector<34x128xf32>
    %648 = arith.addf %646, %647 : vector<34x128xf32>
    %cst_268 = arith.constant 5.000000e-01 : f32
    %649 = vector.broadcast %cst_268 : f32 to vector<34x128xf32>
    %650 = arith.mulf %649, %648 : vector<34x128xf32>
    %cst_269 = arith.constant 0.707106769 : f32
    %651 = vector.broadcast %cst_269 : f32 to vector<34x128xf32>
    %652 = arith.mulf %648, %651 : vector<34x128xf32>
    %653 = math.absf %652 : vector<34x128xf32>
    %cst_270 = arith.constant 0.327591091 : f32
    %654 = vector.broadcast %cst_270 : f32 to vector<34x128xf32>
    %655 = arith.mulf %654, %653 : vector<34x128xf32>
    %cst_271 = arith.constant 1.000000e+00 : f32
    %656 = vector.broadcast %cst_271 : f32 to vector<34x128xf32>
    %657 = arith.addf %656, %655 : vector<34x128xf32>
    %cst_272 = arith.constant 1.000000e+00 : f32
    %658 = vector.broadcast %cst_272 : f32 to vector<34x128xf32>
    %659 = arith.divf %658, %657 : vector<34x128xf32>
    %cst_273 = arith.constant 1.06140542 : f32
    %660 = vector.broadcast %cst_273 : f32 to vector<34x128xf32>
    %661 = arith.mulf %659, %660 : vector<34x128xf32>
    %cst_274 = arith.constant -1.45315206 : f32
    %662 = vector.broadcast %cst_274 : f32 to vector<34x128xf32>
    %663 = arith.addf %662, %661 : vector<34x128xf32>
    %664 = arith.mulf %659, %663 : vector<34x128xf32>
    %cst_275 = arith.constant 1.42141378 : f32
    %665 = vector.broadcast %cst_275 : f32 to vector<34x128xf32>
    %666 = arith.addf %665, %664 : vector<34x128xf32>
    %667 = arith.mulf %659, %666 : vector<34x128xf32>
    %cst_276 = arith.constant -0.284496725 : f32
    %668 = vector.broadcast %cst_276 : f32 to vector<34x128xf32>
    %669 = arith.addf %668, %667 : vector<34x128xf32>
    %670 = arith.mulf %659, %669 : vector<34x128xf32>
    %cst_277 = arith.constant 0.254829586 : f32
    %671 = vector.broadcast %cst_277 : f32 to vector<34x128xf32>
    %672 = arith.addf %671, %670 : vector<34x128xf32>
    %673 = arith.mulf %659, %672 : vector<34x128xf32>
    %cst_278 = arith.constant 0.000000e+00 : f32
    %674 = vector.broadcast %cst_278 : f32 to vector<34x128xf32>
    %675 = arith.subf %674, %653 : vector<34x128xf32>
    %676 = arith.mulf %675, %653 : vector<34x128xf32>
    %677 = math.exp %676 : vector<34x128xf32>
    %678 = arith.mulf %673, %677 : vector<34x128xf32>
    %cst_279 = arith.constant 1.000000e+00 : f32
    %679 = vector.broadcast %cst_279 : f32 to vector<34x128xf32>
    %680 = arith.subf %679, %678 : vector<34x128xf32>
    %cst_280 = arith.constant 0.000000e+00 : f32
    %681 = vector.broadcast %cst_280 : f32 to vector<34x128xf32>
    %682 = arith.cmpf olt, %652, %681 : vector<34x128xf32>
    %cst_281 = arith.constant 0.000000e+00 : f32
    %683 = vector.broadcast %cst_281 : f32 to vector<34x128xf32>
    %684 = arith.subf %683, %680 : vector<34x128xf32>
    %685 = arith.select %682, %684, %680 : vector<34x128xi1>, vector<34x128xf32>
    %cst_282 = arith.constant 1.000000e+00 : f32
    %686 = vector.broadcast %cst_282 : f32 to vector<34x128xf32>
    %687 = arith.addf %686, %685 : vector<34x128xf32>
    %688 = arith.mulf %650, %687 : vector<34x128xf32>
    %689 = arith.truncf %688 : vector<34x128xf32> to vector<34x128xbf16>
    %c2_283 = arith.constant 2 : index
    %c0_284 = arith.constant 0 : index
    %c0_285 = arith.constant 0 : index
    %690 = vector.load %arg5[%c2_283, %c0_284, %c0_285] : memref<4x128x32xbf16, #tpu.memory_space<vmem>>, vector<1x128x32xbf16>
    %691 = vector.shape_cast %690 : vector<1x128x32xbf16> to vector<128x32xbf16>
    %cst_286 = arith.constant dense<0.000000e+00> : vector<34x32xf32>
    %692 = tpu.matmul %689, %691, %cst_286 {dimension_numbers = #tpu.dot_dimension_numbers<[1], [0], [0], [1], [0, 0, 1, 1], [], []>} : vector<34x128xbf16>, vector<128x32xbf16>, vector<34x32xf32> -> vector<34x32xf32>
    %693 = vector.broadcast %496 : vector<1x32xf32> to vector<34x32xf32>
    %694 = arith.addf %692, %693 : vector<34x32xf32>
    %695 = vector.broadcast %498 : vector<1x32xf32> to vector<34x32xf32>
    %696 = arith.mulf %695, %694 : vector<34x32xf32>
    %697 = arith.addf %622, %696 : vector<34x32xf32>
    %c3_287 = arith.constant 3 : index
    %c0_288 = arith.constant 0 : index
    %c0_289 = arith.constant 0 : index
    %698 = vector.load %arg6[%c3_287, %c0_288, %c0_289] : memref<4x9x128xf32, #tpu.memory_space<vmem>>, vector<1x1x32xf32>
    %699 = vector.shape_cast %698 : vector<1x1x32xf32> to vector<1x32xf32>
    %c3_290 = arith.constant 3 : index
    %c1_291 = arith.constant 1 : index
    %c0_292 = arith.constant 0 : index
    %700 = vector.load %arg6[%c3_290, %c1_291, %c0_292] : memref<4x9x128xf32, #tpu.memory_space<vmem>>, vector<1x1x32xf32>
    %701 = vector.shape_cast %700 : vector<1x1x32xf32> to vector<1x32xf32>
    %c3_293 = arith.constant 3 : index
    %c2_294 = arith.constant 2 : index
    %c0_295 = arith.constant 0 : index
    %702 = vector.load %arg6[%c3_293, %c2_294, %c0_295] : memref<4x9x128xf32, #tpu.memory_space<vmem>>, vector<1x1x32xf32>
    %703 = vector.shape_cast %702 : vector<1x1x32xf32> to vector<1x32xf32>
    %c3_296 = arith.constant 3 : index
    %c3_297 = arith.constant 3 : index
    %c0_298 = arith.constant 0 : index
    %704 = vector.load %arg6[%c3_296, %c3_297, %c0_298] : memref<4x9x128xf32, #tpu.memory_space<vmem>>, vector<1x1x32xf32>
    %705 = vector.shape_cast %704 : vector<1x1x32xf32> to vector<1x32xf32>
    %c3_299 = arith.constant 3 : index
    %c4_300 = arith.constant 4 : index
    %c0_301 = arith.constant 0 : index
    %706 = vector.load %arg6[%c3_299, %c4_300, %c0_301] : memref<4x9x128xf32, #tpu.memory_space<vmem>>, vector<1x1x32xf32>
    %707 = vector.shape_cast %706 : vector<1x1x32xf32> to vector<1x32xf32>
    %c3_302 = arith.constant 3 : index
    %c5_303 = arith.constant 5 : index
    %c0_304 = arith.constant 0 : index
    %708 = vector.load %arg6[%c3_302, %c5_303, %c0_304] : memref<4x9x128xf32, #tpu.memory_space<vmem>>, vector<1x1x32xf32>
    %709 = vector.shape_cast %708 : vector<1x1x32xf32> to vector<1x32xf32>
    %c3_305 = arith.constant 3 : index
    %c6_306 = arith.constant 6 : index
    %c0_307 = arith.constant 0 : index
    %710 = vector.load %arg6[%c3_305, %c6_306, %c0_307] : memref<4x9x128xf32, #tpu.memory_space<vmem>>, vector<1x1x32xf32>
    %711 = vector.shape_cast %710 : vector<1x1x32xf32> to vector<1x32xf32>
    %c3_308 = arith.constant 3 : index
    %c7_309 = arith.constant 7 : index
    %c0_310 = arith.constant 0 : index
    %712 = vector.load %arg6[%c3_308, %c7_309, %c0_310] : memref<4x9x128xf32, #tpu.memory_space<vmem>>, vector<1x1x32xf32>
    %713 = vector.shape_cast %712 : vector<1x1x32xf32> to vector<1x32xf32>
    %c3_311 = arith.constant 3 : index
    %c8_312 = arith.constant 8 : index
    %c0_313 = arith.constant 0 : index
    %714 = vector.load %arg6[%c3_311, %c8_312, %c0_313] : memref<4x9x128xf32, #tpu.memory_space<vmem>>, vector<1x1x128xf32>
    %715 = vector.shape_cast %714 : vector<1x1x128xf32> to vector<1x128xf32>
    %cst_314 = arith.constant dense<0.000000e+00> : vector<34xf32>
    %716 = vector.multi_reduction <add>, %697, %cst_314 [1] : vector<34x32xf32> to vector<34xf32>
    %717 = vector.shape_cast %716 : vector<34xf32> to vector<34x1xf32>
    %cst_315 = arith.constant 3.200000e+01 : f32
    %718 = vector.broadcast %cst_315 : f32 to vector<34x1xf32>
    %719 = arith.divf %717, %718 : vector<34x1xf32>
    %720 = vector.broadcast %719 : vector<34x1xf32> to vector<34x32xf32>
    %721 = arith.subf %697, %720 : vector<34x32xf32>
    %722 = arith.mulf %721, %721 : vector<34x32xf32>
    %cst_316 = arith.constant dense<0.000000e+00> : vector<34xf32>
    %723 = vector.multi_reduction <add>, %722, %cst_316 [1] : vector<34x32xf32> to vector<34xf32>
    %724 = vector.shape_cast %723 : vector<34xf32> to vector<34x1xf32>
    %cst_317 = arith.constant 3.200000e+01 : f32
    %725 = vector.broadcast %cst_317 : f32 to vector<34x1xf32>
    %726 = arith.divf %724, %725 : vector<34x1xf32>
    %cst_318 = arith.constant 9.99999997E-7 : f32
    %727 = vector.broadcast %cst_318 : f32 to vector<34x1xf32>
    %728 = arith.addf %726, %727 : vector<34x1xf32>
    %729 = math.rsqrt %728 : vector<34x1xf32>
    %730 = vector.broadcast %729 : vector<34x1xf32> to vector<34x32xf32>
    %731 = arith.mulf %721, %730 : vector<34x32xf32>
    %732 = vector.broadcast %699 : vector<1x32xf32> to vector<34x32xf32>
    %733 = arith.mulf %731, %732 : vector<34x32xf32>
    %734 = vector.broadcast %701 : vector<1x32xf32> to vector<34x32xf32>
    %735 = arith.addf %733, %734 : vector<34x32xf32>
    %736 = arith.truncf %735 : vector<34x32xf32> to vector<34x32xbf16>
    %c3_319 = arith.constant 3 : index
    %c0_320 = arith.constant 0 : index
    %c0_321 = arith.constant 0 : index
    %737 = vector.load %arg4[%c3_319, %c0_320, %c0_321] : memref<4x96x128xbf16, #tpu.memory_space<vmem>>, vector<1x32x128xbf16>
    %738 = vector.shape_cast %737 : vector<1x32x128xbf16> to vector<32x128xbf16>
    %cst_322 = arith.constant dense<0.000000e+00> : vector<34x128xf32>
    %739 = tpu.matmul %736, %738, %cst_322 {dimension_numbers = #tpu.dot_dimension_numbers<[1], [0], [0], [1], [0, 0, 1, 1], [], []>} : vector<34x32xbf16>, vector<32x128xbf16>, vector<34x128xf32> -> vector<34x128xf32>
    %740 = vector.extract_strided_slice %739 {offsets = [0, 0], sizes = [34, 32], strides = [1, 1]} : vector<34x128xf32> to vector<34x32xf32>
    %cst_323 = arith.constant 0.353553385 : f32
    %741 = vector.broadcast %cst_323 : f32 to vector<34x32xf32>
    %742 = arith.mulf %740, %741 : vector<34x32xf32>
    %743 = vector.extract_strided_slice %739 {offsets = [0, 32], sizes = [34, 32], strides = [1, 1]} : vector<34x128xf32> to vector<34x32xf32>
    %744 = arith.truncf %743 : vector<34x32xf32> to vector<34x32xbf16>
    %745 = vector.extract_strided_slice %739 {offsets = [0, 64], sizes = [34, 32], strides = [1, 1]} : vector<34x128xf32> to vector<34x32xf32>
    %cst_324 = arith.constant 0.000000e+00 : f32
    %746 = vector.broadcast %cst_324 : f32 to vector<34x32xf32>
    %747 = arith.select %23, %742, %746 : vector<34x32xi1>, vector<34x32xf32>
    %748 = arith.truncf %747 : vector<34x32xf32> to vector<34x32xbf16>
    %cst_325 = arith.constant 0.000000e+00 : f32
    %749 = vector.broadcast %cst_325 : f32 to vector<34x32xf32>
    %750 = arith.select %23, %745, %749 : vector<34x32xi1>, vector<34x32xf32>
    %751 = arith.truncf %750 : vector<34x32xf32> to vector<34x32xbf16>
    %cst_326 = arith.constant dense<0.000000e+00> : vector<34x34xf32>
    %752 = tpu.matmul %748, %744, %cst_326 {dimension_numbers = #tpu.dot_dimension_numbers<[1], [1], [0], [0], [0, 0, 1, 0], [], []>} : vector<34x32xbf16>, vector<34x32xbf16>, vector<34x34xf32> -> vector<34x34xf32>
    %753 = arith.addf %752, %12 : vector<34x34xf32>
    %cst_327 = arith.constant dense<0xFF800000> : vector<34xf32>
    %754 = vector.multi_reduction <maximumf>, %753, %cst_327 [1] : vector<34x34xf32> to vector<34xf32>
    %755 = vector.shape_cast %754 : vector<34xf32> to vector<34x1xf32>
    %756 = vector.broadcast %755 : vector<34x1xf32> to vector<34x34xf32>
    %757 = arith.subf %753, %756 : vector<34x34xf32>
    %758 = math.exp %757 : vector<34x34xf32>
    %cst_328 = arith.constant dense<0.000000e+00> : vector<34xf32>
    %759 = vector.multi_reduction <add>, %758, %cst_328 [1] : vector<34x34xf32> to vector<34xf32>
    %760 = vector.shape_cast %759 : vector<34xf32> to vector<34x1xf32>
    %761 = tpu.reciprocal %760 {approx = true} : vector<34x1xf32> -> vector<34x1xf32>
    %762 = vector.broadcast %761 : vector<34x1xf32> to vector<34x34xf32>
    %763 = arith.mulf %758, %762 : vector<34x34xf32>
    %764 = arith.truncf %763 : vector<34x34xf32> to vector<34x34xbf16>
    %cst_329 = arith.constant dense<0.000000e+00> : vector<34x32xf32>
    %765 = tpu.matmul %764, %751, %cst_329 {dimension_numbers = #tpu.dot_dimension_numbers<[1], [0], [0], [1], [0, 0, 1, 1], [], []>} : vector<34x34xbf16>, vector<34x32xbf16>, vector<34x32xf32> -> vector<34x32xf32>
    %cst_330 = arith.constant 0.000000e+00 : f32
    %766 = vector.broadcast %cst_330 : f32 to vector<34x32xf32>
    %767 = arith.select %28, %742, %766 : vector<34x32xi1>, vector<34x32xf32>
    %768 = arith.truncf %767 : vector<34x32xf32> to vector<34x32xbf16>
    %cst_331 = arith.constant 0.000000e+00 : f32
    %769 = vector.broadcast %cst_331 : f32 to vector<34x32xf32>
    %770 = arith.select %28, %745, %769 : vector<34x32xi1>, vector<34x32xf32>
    %771 = arith.truncf %770 : vector<34x32xf32> to vector<34x32xbf16>
    %cst_332 = arith.constant dense<0.000000e+00> : vector<34x34xf32>
    %772 = tpu.matmul %768, %744, %cst_332 {dimension_numbers = #tpu.dot_dimension_numbers<[1], [1], [0], [0], [0, 0, 1, 0], [], []>} : vector<34x32xbf16>, vector<34x32xbf16>, vector<34x34xf32> -> vector<34x34xf32>
    %773 = arith.addf %772, %12 : vector<34x34xf32>
    %cst_333 = arith.constant dense<0xFF800000> : vector<34xf32>
    %774 = vector.multi_reduction <maximumf>, %773, %cst_333 [1] : vector<34x34xf32> to vector<34xf32>
    %775 = vector.shape_cast %774 : vector<34xf32> to vector<34x1xf32>
    %776 = vector.broadcast %775 : vector<34x1xf32> to vector<34x34xf32>
    %777 = arith.subf %773, %776 : vector<34x34xf32>
    %778 = math.exp %777 : vector<34x34xf32>
    %cst_334 = arith.constant dense<0.000000e+00> : vector<34xf32>
    %779 = vector.multi_reduction <add>, %778, %cst_334 [1] : vector<34x34xf32> to vector<34xf32>
    %780 = vector.shape_cast %779 : vector<34xf32> to vector<34x1xf32>
    %781 = tpu.reciprocal %780 {approx = true} : vector<34x1xf32> -> vector<34x1xf32>
    %782 = vector.broadcast %781 : vector<34x1xf32> to vector<34x34xf32>
    %783 = arith.mulf %778, %782 : vector<34x34xf32>
    %784 = arith.truncf %783 : vector<34x34xf32> to vector<34x34xbf16>
    %cst_335 = arith.constant dense<0.000000e+00> : vector<34x32xf32>
    %785 = tpu.matmul %784, %771, %cst_335 {dimension_numbers = #tpu.dot_dimension_numbers<[1], [0], [0], [1], [0, 0, 1, 1], [], []>} : vector<34x34xbf16>, vector<34x32xbf16>, vector<34x32xf32> -> vector<34x32xf32>
    %786 = arith.addf %765, %785 : vector<34x32xf32>
    %cst_336 = arith.constant 0.000000e+00 : f32
    %787 = vector.broadcast %cst_336 : f32 to vector<34x32xf32>
    %788 = arith.select %33, %742, %787 : vector<34x32xi1>, vector<34x32xf32>
    %789 = arith.truncf %788 : vector<34x32xf32> to vector<34x32xbf16>
    %cst_337 = arith.constant 0.000000e+00 : f32
    %790 = vector.broadcast %cst_337 : f32 to vector<34x32xf32>
    %791 = arith.select %33, %745, %790 : vector<34x32xi1>, vector<34x32xf32>
    %792 = arith.truncf %791 : vector<34x32xf32> to vector<34x32xbf16>
    %cst_338 = arith.constant dense<0.000000e+00> : vector<34x34xf32>
    %793 = tpu.matmul %789, %744, %cst_338 {dimension_numbers = #tpu.dot_dimension_numbers<[1], [1], [0], [0], [0, 0, 1, 0], [], []>} : vector<34x32xbf16>, vector<34x32xbf16>, vector<34x34xf32> -> vector<34x34xf32>
    %794 = arith.addf %793, %12 : vector<34x34xf32>
    %cst_339 = arith.constant dense<0xFF800000> : vector<34xf32>
    %795 = vector.multi_reduction <maximumf>, %794, %cst_339 [1] : vector<34x34xf32> to vector<34xf32>
    %796 = vector.shape_cast %795 : vector<34xf32> to vector<34x1xf32>
    %797 = vector.broadcast %796 : vector<34x1xf32> to vector<34x34xf32>
    %798 = arith.subf %794, %797 : vector<34x34xf32>
    %799 = math.exp %798 : vector<34x34xf32>
    %cst_340 = arith.constant dense<0.000000e+00> : vector<34xf32>
    %800 = vector.multi_reduction <add>, %799, %cst_340 [1] : vector<34x34xf32> to vector<34xf32>
    %801 = vector.shape_cast %800 : vector<34xf32> to vector<34x1xf32>
    %802 = tpu.reciprocal %801 {approx = true} : vector<34x1xf32> -> vector<34x1xf32>
    %803 = vector.broadcast %802 : vector<34x1xf32> to vector<34x34xf32>
    %804 = arith.mulf %799, %803 : vector<34x34xf32>
    %805 = arith.truncf %804 : vector<34x34xf32> to vector<34x34xbf16>
    %cst_341 = arith.constant dense<0.000000e+00> : vector<34x32xf32>
    %806 = tpu.matmul %805, %792, %cst_341 {dimension_numbers = #tpu.dot_dimension_numbers<[1], [0], [0], [1], [0, 0, 1, 1], [], []>} : vector<34x34xbf16>, vector<34x32xbf16>, vector<34x32xf32> -> vector<34x32xf32>
    %807 = arith.addf %786, %806 : vector<34x32xf32>
    %cst_342 = arith.constant 0.000000e+00 : f32
    %808 = vector.broadcast %cst_342 : f32 to vector<34x32xf32>
    %809 = arith.select %38, %742, %808 : vector<34x32xi1>, vector<34x32xf32>
    %810 = arith.truncf %809 : vector<34x32xf32> to vector<34x32xbf16>
    %cst_343 = arith.constant 0.000000e+00 : f32
    %811 = vector.broadcast %cst_343 : f32 to vector<34x32xf32>
    %812 = arith.select %38, %745, %811 : vector<34x32xi1>, vector<34x32xf32>
    %813 = arith.truncf %812 : vector<34x32xf32> to vector<34x32xbf16>
    %cst_344 = arith.constant dense<0.000000e+00> : vector<34x34xf32>
    %814 = tpu.matmul %810, %744, %cst_344 {dimension_numbers = #tpu.dot_dimension_numbers<[1], [1], [0], [0], [0, 0, 1, 0], [], []>} : vector<34x32xbf16>, vector<34x32xbf16>, vector<34x34xf32> -> vector<34x34xf32>
    %815 = arith.addf %814, %12 : vector<34x34xf32>
    %cst_345 = arith.constant dense<0xFF800000> : vector<34xf32>
    %816 = vector.multi_reduction <maximumf>, %815, %cst_345 [1] : vector<34x34xf32> to vector<34xf32>
    %817 = vector.shape_cast %816 : vector<34xf32> to vector<34x1xf32>
    %818 = vector.broadcast %817 : vector<34x1xf32> to vector<34x34xf32>
    %819 = arith.subf %815, %818 : vector<34x34xf32>
    %820 = math.exp %819 : vector<34x34xf32>
    %cst_346 = arith.constant dense<0.000000e+00> : vector<34xf32>
    %821 = vector.multi_reduction <add>, %820, %cst_346 [1] : vector<34x34xf32> to vector<34xf32>
    %822 = vector.shape_cast %821 : vector<34xf32> to vector<34x1xf32>
    %823 = tpu.reciprocal %822 {approx = true} : vector<34x1xf32> -> vector<34x1xf32>
    %824 = vector.broadcast %823 : vector<34x1xf32> to vector<34x34xf32>
    %825 = arith.mulf %820, %824 : vector<34x34xf32>
    %826 = arith.truncf %825 : vector<34x34xf32> to vector<34x34xbf16>
    %cst_347 = arith.constant dense<0.000000e+00> : vector<34x32xf32>
    %827 = tpu.matmul %826, %813, %cst_347 {dimension_numbers = #tpu.dot_dimension_numbers<[1], [0], [0], [1], [0, 0, 1, 1], [], []>} : vector<34x34xbf16>, vector<34x32xbf16>, vector<34x32xf32> -> vector<34x32xf32>
    %828 = arith.addf %807, %827 : vector<34x32xf32>
    %829 = arith.truncf %828 : vector<34x32xf32> to vector<34x32xbf16>
    %c3_348 = arith.constant 3 : index
    %c32_349 = arith.constant 32 : index
    %c0_350 = arith.constant 0 : index
    %830 = vector.load %arg4[%c3_348, %c32_349, %c0_350] : memref<4x96x128xbf16, #tpu.memory_space<vmem>>, vector<1x32x32xbf16>
    %831 = vector.shape_cast %830 : vector<1x32x32xbf16> to vector<32x32xbf16>
    %cst_351 = arith.constant dense<0.000000e+00> : vector<34x32xf32>
    %832 = tpu.matmul %829, %831, %cst_351 {dimension_numbers = #tpu.dot_dimension_numbers<[1], [0], [0], [1], [0, 0, 1, 1], [], []>} : vector<34x32xbf16>, vector<32x32xbf16>, vector<34x32xf32> -> vector<34x32xf32>
    %833 = vector.broadcast %703 : vector<1x32xf32> to vector<34x32xf32>
    %834 = arith.addf %832, %833 : vector<34x32xf32>
    %835 = vector.broadcast %705 : vector<1x32xf32> to vector<34x32xf32>
    %836 = arith.mulf %835, %834 : vector<34x32xf32>
    %837 = arith.addf %697, %836 : vector<34x32xf32>
    %cst_352 = arith.constant dense<0.000000e+00> : vector<34xf32>
    %838 = vector.multi_reduction <add>, %837, %cst_352 [1] : vector<34x32xf32> to vector<34xf32>
    %839 = vector.shape_cast %838 : vector<34xf32> to vector<34x1xf32>
    %cst_353 = arith.constant 3.200000e+01 : f32
    %840 = vector.broadcast %cst_353 : f32 to vector<34x1xf32>
    %841 = arith.divf %839, %840 : vector<34x1xf32>
    %842 = vector.broadcast %841 : vector<34x1xf32> to vector<34x32xf32>
    %843 = arith.subf %837, %842 : vector<34x32xf32>
    %844 = arith.mulf %843, %843 : vector<34x32xf32>
    %cst_354 = arith.constant dense<0.000000e+00> : vector<34xf32>
    %845 = vector.multi_reduction <add>, %844, %cst_354 [1] : vector<34x32xf32> to vector<34xf32>
    %846 = vector.shape_cast %845 : vector<34xf32> to vector<34x1xf32>
    %cst_355 = arith.constant 3.200000e+01 : f32
    %847 = vector.broadcast %cst_355 : f32 to vector<34x1xf32>
    %848 = arith.divf %846, %847 : vector<34x1xf32>
    %cst_356 = arith.constant 9.99999997E-7 : f32
    %849 = vector.broadcast %cst_356 : f32 to vector<34x1xf32>
    %850 = arith.addf %848, %849 : vector<34x1xf32>
    %851 = math.rsqrt %850 : vector<34x1xf32>
    %852 = vector.broadcast %851 : vector<34x1xf32> to vector<34x32xf32>
    %853 = arith.mulf %843, %852 : vector<34x32xf32>
    %854 = vector.broadcast %707 : vector<1x32xf32> to vector<34x32xf32>
    %855 = arith.mulf %853, %854 : vector<34x32xf32>
    %856 = vector.broadcast %709 : vector<1x32xf32> to vector<34x32xf32>
    %857 = arith.addf %855, %856 : vector<34x32xf32>
    %858 = arith.truncf %857 : vector<34x32xf32> to vector<34x32xbf16>
    %c3_357 = arith.constant 3 : index
    %c64_358 = arith.constant 64 : index
    %c0_359 = arith.constant 0 : index
    %859 = vector.load %arg4[%c3_357, %c64_358, %c0_359] : memref<4x96x128xbf16, #tpu.memory_space<vmem>>, vector<1x32x128xbf16>
    %860 = vector.shape_cast %859 : vector<1x32x128xbf16> to vector<32x128xbf16>
    %cst_360 = arith.constant dense<0.000000e+00> : vector<34x128xf32>
    %861 = tpu.matmul %858, %860, %cst_360 {dimension_numbers = #tpu.dot_dimension_numbers<[1], [0], [0], [1], [0, 0, 1, 1], [], []>} : vector<34x32xbf16>, vector<32x128xbf16>, vector<34x128xf32> -> vector<34x128xf32>
    %862 = vector.broadcast %715 : vector<1x128xf32> to vector<34x128xf32>
    %863 = arith.addf %861, %862 : vector<34x128xf32>
    %cst_361 = arith.constant 5.000000e-01 : f32
    %864 = vector.broadcast %cst_361 : f32 to vector<34x128xf32>
    %865 = arith.mulf %864, %863 : vector<34x128xf32>
    %cst_362 = arith.constant 0.707106769 : f32
    %866 = vector.broadcast %cst_362 : f32 to vector<34x128xf32>
    %867 = arith.mulf %863, %866 : vector<34x128xf32>
    %868 = math.absf %867 : vector<34x128xf32>
    %cst_363 = arith.constant 0.327591091 : f32
    %869 = vector.broadcast %cst_363 : f32 to vector<34x128xf32>
    %870 = arith.mulf %869, %868 : vector<34x128xf32>
    %cst_364 = arith.constant 1.000000e+00 : f32
    %871 = vector.broadcast %cst_364 : f32 to vector<34x128xf32>
    %872 = arith.addf %871, %870 : vector<34x128xf32>
    %cst_365 = arith.constant 1.000000e+00 : f32
    %873 = vector.broadcast %cst_365 : f32 to vector<34x128xf32>
    %874 = arith.divf %873, %872 : vector<34x128xf32>
    %cst_366 = arith.constant 1.06140542 : f32
    %875 = vector.broadcast %cst_366 : f32 to vector<34x128xf32>
    %876 = arith.mulf %874, %875 : vector<34x128xf32>
    %cst_367 = arith.constant -1.45315206 : f32
    %877 = vector.broadcast %cst_367 : f32 to vector<34x128xf32>
    %878 = arith.addf %877, %876 : vector<34x128xf32>
    %879 = arith.mulf %874, %878 : vector<34x128xf32>
    %cst_368 = arith.constant 1.42141378 : f32
    %880 = vector.broadcast %cst_368 : f32 to vector<34x128xf32>
    %881 = arith.addf %880, %879 : vector<34x128xf32>
    %882 = arith.mulf %874, %881 : vector<34x128xf32>
    %cst_369 = arith.constant -0.284496725 : f32
    %883 = vector.broadcast %cst_369 : f32 to vector<34x128xf32>
    %884 = arith.addf %883, %882 : vector<34x128xf32>
    %885 = arith.mulf %874, %884 : vector<34x128xf32>
    %cst_370 = arith.constant 0.254829586 : f32
    %886 = vector.broadcast %cst_370 : f32 to vector<34x128xf32>
    %887 = arith.addf %886, %885 : vector<34x128xf32>
    %888 = arith.mulf %874, %887 : vector<34x128xf32>
    %cst_371 = arith.constant 0.000000e+00 : f32
    %889 = vector.broadcast %cst_371 : f32 to vector<34x128xf32>
    %890 = arith.subf %889, %868 : vector<34x128xf32>
    %891 = arith.mulf %890, %868 : vector<34x128xf32>
    %892 = math.exp %891 : vector<34x128xf32>
    %893 = arith.mulf %888, %892 : vector<34x128xf32>
    %cst_372 = arith.constant 1.000000e+00 : f32
    %894 = vector.broadcast %cst_372 : f32 to vector<34x128xf32>
    %895 = arith.subf %894, %893 : vector<34x128xf32>
    %cst_373 = arith.constant 0.000000e+00 : f32
    %896 = vector.broadcast %cst_373 : f32 to vector<34x128xf32>
    %897 = arith.cmpf olt, %867, %896 : vector<34x128xf32>
    %cst_374 = arith.constant 0.000000e+00 : f32
    %898 = vector.broadcast %cst_374 : f32 to vector<34x128xf32>
    %899 = arith.subf %898, %895 : vector<34x128xf32>
    %900 = arith.select %897, %899, %895 : vector<34x128xi1>, vector<34x128xf32>
    %cst_375 = arith.constant 1.000000e+00 : f32
    %901 = vector.broadcast %cst_375 : f32 to vector<34x128xf32>
    %902 = arith.addf %901, %900 : vector<34x128xf32>
    %903 = arith.mulf %865, %902 : vector<34x128xf32>
    %904 = arith.truncf %903 : vector<34x128xf32> to vector<34x128xbf16>
    %c3_376 = arith.constant 3 : index
    %c0_377 = arith.constant 0 : index
    %c0_378 = arith.constant 0 : index
    %905 = vector.load %arg5[%c3_376, %c0_377, %c0_378] : memref<4x128x32xbf16, #tpu.memory_space<vmem>>, vector<1x128x32xbf16>
    %906 = vector.shape_cast %905 : vector<1x128x32xbf16> to vector<128x32xbf16>
    %cst_379 = arith.constant dense<0.000000e+00> : vector<34x32xf32>
    %907 = tpu.matmul %904, %906, %cst_379 {dimension_numbers = #tpu.dot_dimension_numbers<[1], [0], [0], [1], [0, 0, 1, 1], [], []>} : vector<34x128xbf16>, vector<128x32xbf16>, vector<34x32xf32> -> vector<34x32xf32>
    %908 = vector.broadcast %711 : vector<1x32xf32> to vector<34x32xf32>
    %909 = arith.addf %907, %908 : vector<34x32xf32>
    %910 = vector.broadcast %713 : vector<1x32xf32> to vector<34x32xf32>
    %911 = arith.mulf %910, %909 : vector<34x32xf32>
    %912 = arith.addf %837, %911 : vector<34x32xf32>
    %c1_380 = arith.constant 1 : index
    %c0_381 = arith.constant 0 : index
    %913 = vector.load %arg8[%c1_380, %c0_381] : memref<4x32xf32, #tpu.memory_space<vmem>>, vector<1x32xf32>
    %c2_382 = arith.constant 2 : index
    %c0_383 = arith.constant 0 : index
    %914 = vector.load %arg8[%c2_382, %c0_383] : memref<4x32xf32, #tpu.memory_space<vmem>>, vector<1x32xf32>
    %cst_384 = arith.constant dense<0.000000e+00> : vector<34xf32>
    %915 = vector.multi_reduction <add>, %912, %cst_384 [1] : vector<34x32xf32> to vector<34xf32>
    %916 = vector.shape_cast %915 : vector<34xf32> to vector<34x1xf32>
    %cst_385 = arith.constant 3.200000e+01 : f32
    %917 = vector.broadcast %cst_385 : f32 to vector<34x1xf32>
    %918 = arith.divf %916, %917 : vector<34x1xf32>
    %919 = vector.broadcast %918 : vector<34x1xf32> to vector<34x32xf32>
    %920 = arith.subf %912, %919 : vector<34x32xf32>
    %921 = arith.mulf %920, %920 : vector<34x32xf32>
    %cst_386 = arith.constant dense<0.000000e+00> : vector<34xf32>
    %922 = vector.multi_reduction <add>, %921, %cst_386 [1] : vector<34x32xf32> to vector<34xf32>
    %923 = vector.shape_cast %922 : vector<34xf32> to vector<34x1xf32>
    %cst_387 = arith.constant 3.200000e+01 : f32
    %924 = vector.broadcast %cst_387 : f32 to vector<34x1xf32>
    %925 = arith.divf %923, %924 : vector<34x1xf32>
    %cst_388 = arith.constant 9.99999997E-7 : f32
    %926 = vector.broadcast %cst_388 : f32 to vector<34x1xf32>
    %927 = arith.addf %925, %926 : vector<34x1xf32>
    %928 = math.rsqrt %927 : vector<34x1xf32>
    %929 = vector.broadcast %928 : vector<34x1xf32> to vector<34x32xf32>
    %930 = arith.mulf %920, %929 : vector<34x32xf32>
    %931 = vector.broadcast %913 : vector<1x32xf32> to vector<34x32xf32>
    %932 = arith.mulf %930, %931 : vector<34x32xf32>
    %933 = vector.broadcast %914 : vector<1x32xf32> to vector<34x32xf32>
    %934 = arith.addf %932, %933 : vector<34x32xf32>
    %935 = tpu.iota {dimensions = array<i32: 0>} : vector<2x34xi32>
    %936 = tpu.iota {dimensions = array<i32: 1>} : vector<2x34xi32>
    %c17_i32_389 = arith.constant 17 : i32
    %937 = vector.broadcast %c17_i32_389 : i32 to vector<2x34xi32>
    %938 = arith.muli %935, %937 : vector<2x34xi32>
    %939 = arith.cmpi eq, %936, %938 : vector<2x34xi32>
    %940 = arith.extui %939 : vector<2x34xi1> to vector<2x34xi32>
    %941 = arith.sitofp %940 : vector<2x34xi32> to vector<2x34xf32>
    %cst_390 = arith.constant dense<0.000000e+00> : vector<2x32xf32>
    %942 = tpu.matmul %941, %934, %cst_390 {dimension_numbers = #tpu.dot_dimension_numbers<[1], [0], [0], [1], [0, 0, 1, 1], [], []>} : vector<2x34xf32>, vector<34x32xf32>, vector<2x32xf32> -> vector<2x32xf32>
    %943 = arith.truncf %942 : vector<2x32xf32> to vector<2x32xbf16>
    %c48 = arith.constant 48 : index
    %c0_391 = arith.constant 0 : index
    %944 = vector.load %arg7[%c48, %c0_391] : memref<80x32xbf16, #tpu.memory_space<vmem>>, vector<32x10xbf16>
    %cst_392 = arith.constant dense<0.000000e+00> : vector<2x10xf32>
    %945 = tpu.matmul %943, %944, %cst_392 {dimension_numbers = #tpu.dot_dimension_numbers<[1], [0], [0], [1], [0, 0, 1, 1], [], []>} : vector<2x32xbf16>, vector<32x10xbf16>, vector<2x10xf32> -> vector<2x10xf32>
    %c3_393 = arith.constant 3 : index
    %c0_394 = arith.constant 0 : index
    %946 = vector.load %arg8[%c3_393, %c0_394] : memref<4x32xf32, #tpu.memory_space<vmem>>, vector<1x10xf32>
    %947 = vector.broadcast %946 : vector<1x10xf32> to vector<2x10xf32>
    %948 = arith.addf %945, %947 : vector<2x10xf32>
    %c0_395 = arith.constant 0 : index
    %c0_396 = arith.constant 0 : index
    %949 = vector.load %arg9[%c0_395, %c0_396] : memref<2x10xf32, #tpu.memory_space<vmem>>, vector<2x10xf32>
    tpu.vector_store %arg9[%c0_395, %c0_396], %948 {strides = array<i32>} : memref<2x10xf32, #tpu.memory_space<vmem>>, vector<2x10xf32>,
    return
  }
}

</mosaic_0001>

<llo_original>
// kernel: tile.9
$region0: #{tile.9}
  %s0 = inlined_call_operand.vmem [shape: f32[2,17,32], index: 0, kind: input, shape index: {}]
  %s1 = inlined_call_operand.vmem [shape: f32[34,32], index: 1, kind: output, shape index: {}]
  %v2 = vld [vmem:[%s0] sm:$0xff]
  %vm3 = vcmask 261120
  %4 = vst.msk [vmem:[%s1] sm:$0xff] %vm3, %v2
  %s5 = scalar_lea.vmem %s0, 8
  %v6 = vld [vmem:[%s5] sm:$0xff]
  %vm7 = vcmask 261120
  %s8 = scalar_lea.vmem %s1, 8
  %9 = vst.msk [vmem:[%s8] sm:$0xff] %vm7, %v6
  %s10 = scalar_lea.vmem %s0, 16
  %s11 = smov 3
  %v12 = vld [vmem:[%s10] ss:$8 sm:%s11]
  %vm13 = vcmask 261120
  %s14 = scalar_lea.vmem %s1, 16
  %15 = vst.msk [vmem:[%s14] sm:$0x3] %vm13, %v12
  %s16 = scalar_lea.vmem %s0, 25
  %v17 = vld [vmem:[%s16] sm:$0xff]
  %vm18 = vcmask 261120
  %s19 = scalar_lea.vmem %s1, 18
  %20 = vst.msk [vmem:[%s19] sm:$0xff] %vm18, %v17
  %s21 = scalar_lea.vmem %s0, 33
  %v22 = vld [vmem:[%s21] sm:$0xff]
  %vm23 = vcmask 261120
  %s24 = scalar_lea.vmem %s1, 26
  %25 = vst.msk [vmem:[%s24] sm:$0xff] %vm23, %v22

// kernel: forward.1
$region0: #{forward.1}
  #allocation0 [shape = 'u32[]', space=smem, size = 0x4, offset = 0x4, fixed_abs, tag = 'smem constant byte address 0x4 - core index']
  #allocation1 [shape = 'u32[144,128]{1,0:T(1,128)}', space=vmem, size = 0x12000, scoped, tag = 'internal scratch']
  %s0 = inlined_call_operand.vmem [shape: f32[32,48], index: 0, kind: input, shape index: {}]
  %s1 = inlined_call_operand.vmem [shape: s32[34,1], index: 1, kind: input, shape index: {}]
  %s2 = inlined_call_operand.vmem [shape: s32[34,1], index: 2, kind: input, shape index: {}]
  %s3 = inlined_call_operand.vmem [shape: f32[34,32], index: 3, kind: input, shape index: {}]
  %s4 = inlined_call_operand.vmem [shape: bf16[4,96,128], index: 4, kind: input, shape index: {}]
  %s5 = inlined_call_operand.vmem [shape: bf16[4,128,32], index: 5, kind: input, shape index: {}]
  %s6 = inlined_call_operand.vmem [shape: f32[4,9,128], index: 6, kind: input, shape index: {}]
  %s7 = inlined_call_operand.vmem [shape: bf16[80,32], index: 7, kind: input, shape index: {}]
  %s8 = inlined_call_operand.vmem [shape: f32[4,32], index: 8, kind: input, shape index: {}]
  %s9 = inlined_call_operand.hbm [shape: f32[2,10], index: 9, kind: output, shape index: {}]
  %s10 = sld [smem:[#allocation0]]
  $region46: #{forward.1} parent=0
    _
  %s12 = ssub.s32 1, %s10
  %s13 = scalar_select 0, %s12, %s10
  $region1: #{forward.1} parent=0
    #allocation2 [shape = 'u8[1024]{0}', space=vmem, size = 0x400, scoped, tag = 'output window, operand 0, single buffered']
    #allocation3 [shape = 's32[1]{0}', space=sflag, size = 0x4, scoped, tag = 'scoped memory for forward.1']
    %14 = vsyncpa [#allocation3], 0
    // Predicated region
    $region2: #{forward.1} parent=1 // pred_check
      _
    $region3: #{forward.1} parent=1 // pred_check_branch
      %16 = sbr.rel (0) target = $region5
    $region4: #{forward.1} parent=1 // pred_region
      _
    $region5: #{forward.1} parent=1 // pred_fallthru
      _
    // Predicated region
    $region6: #{forward.1} parent=1 // pred_check
      _
    $region7: #{forward.1} parent=1 // pred_check_branch
      %18 = sbr.rel (0) target = $region9
    $region8: #{forward.1} parent=1 // pred_region
      _
    $region9: #{forward.1} parent=1 // pred_fallthru
      _
    // Predicated region
    $region10: #{forward.1} parent=1 // pred_check
      _
    $region11: #{forward.1} parent=1 // pred_check_branch
      %20 = sbr.rel (0) target = $region13
    $region12: #{forward.1} parent=1 // pred_region
      _
    $region13: #{forward.1} parent=1 // pred_fallthru
      _
    // Predicated region
    $region14: #{forward.1} parent=1 // pred_check
      _
    $region15: #{forward.1} parent=1 // pred_check_branch
      %22 = sbr.rel (0) target = $region17
    $region16: #{forward.1} parent=1 // pred_region
      _
    $region17: #{forward.1} parent=1 // pred_fallthru
      _
    // Predicated region
    $region18: #{forward.1} parent=1 // pred_check
      _
    $region19: #{forward.1} parent=1 // pred_check_branch
      %24 = sbr.rel (0) target = $region21
    $region20: #{forward.1} parent=1 // pred_region
      _
    $region21: #{forward.1} parent=1 // pred_fallthru
      _
    // Predicated region
    $region22: #{forward.1} parent=1 // pred_check
      _
    $region23: #{forward.1} parent=1 // pred_check_branch
      %26 = sbr.rel (0) target = $region25
    $region24: #{forward.1} parent=1 // pred_region
      _
    $region25: #{forward.1} parent=1 // pred_fallthru
      _
    // Predicated region
    $region26: #{forward.1} parent=1 // pred_check
      _
    $region27: #{forward.1} parent=1 // pred_check_branch
      %28 = sbr.rel (0) target = $region29
    $region28: #{forward.1} parent=1 // pred_region
      _
    $region29: #{forward.1} parent=1 // pred_fallthru
      _
    // Predicated region
    $region30: #{forward.1} parent=1 // pred_check
      _
    $region31: #{forward.1} parent=1 // pred_check_branch
      %30 = sbr.rel (0) target = $region33
    $region32: #{forward.1} parent=1 // pred_region
      _
    $region33: #{forward.1} parent=1 // pred_fallthru
      _
    // Predicated region
    $region34: #{forward.1} parent=1 // pred_check
      _
    $region35: #{forward.1} parent=1 // pred_check_branch
      %32 = sbr.rel (0) target = $region37
    $region36: #{forward.1} parent=1 // pred_region
      _
    $region37: #{forward.1} parent=1 // pred_fallthru
      _
    %v34 = vld [vmem:[%s1] sm:$0xff]
    %v35 = vld [vmem:[%s1 + $0x8] sm:$0xff]
    %v36 = vld [vmem:[%s1 + $0x10] sm:$0xff]
    %v37 = vld [vmem:[%s1 + $0x18] sm:$0xff]
    %v38 = vld [vmem:[%s1 + $0x20] sm:$0x3]
    %v39 = vld [vmem:[%s2] sm:$0xff]
    %v40 = vld [vmem:[%s2 + $0x8] sm:$0xff]
    %v41 = vld [vmem:[%s2 + $0x10] sm:$0xff]
    %v42 = vld [vmem:[%s2 + $0x18] sm:$0xff]
    %v43 = vld [vmem:[%s2 + $0x20] sm:$0x3]
    %v44 = vlaneseq
    %v45 = vand.u32 %v44, 127
    %46 = vset.pattern.permute.xlu0 0
    %47 = vperm.xlu0 %46, %v34
    %v48 = vpop.permute.xlu0 %47
    %49 = vset.pattern.permute.xlu0 0
    %50 = vperm.xlu0 %49, %v35
    %v51 = vpop.permute.xlu0 %50
    %52 = vset.pattern.permute.xlu0 0
    %53 = vperm.xlu0 %52, %v36
    %v54 = vpop.permute.xlu0 %53
    %55 = vset.pattern.permute.xlu0 0
    %56 = vperm.xlu0 %55, %v37
    %v57 = vpop.permute.xlu0 %56
    %58 = vset.pattern.permute.xlu0 0
    %59 = vperm.xlu0 %58, %v38
    %v60 = vpop.permute.xlu0 %59
    %vm61 = vcmp.ge.s32.totalorder %v45, %v48
    %vm62 = vcmp.ge.s32.totalorder %v45, %v51
    %vm63 = vcmp.ge.s32.totalorder %v45, %v54
    %vm64 = vcmp.ge.s32.totalorder %v45, %v57
    %vm65 = vcmp.ge.s32.totalorder %v45, %v60
    %v66 = vadd.s32 %v34, 17
    %v67 = vadd.s32 %v35, 17
    %v68 = vadd.s32 %v36, 17
    %v69 = vadd.s32 %v37, 17
    %v70 = vadd.s32 %v38, 17
    %71 = vset.pattern.permute.xlu0 0
    %72 = vperm.xlu0 %71, %v66
    %v73 = vpop.permute.xlu0 %72
    %74 = vset.pattern.permute.xlu0 0
    %75 = vperm.xlu0 %74, %v67
    %v76 = vpop.permute.xlu0 %75
    %77 = vset.pattern.permute.xlu0 0
    %78 = vperm.xlu0 %77, %v68
    %v79 = vpop.permute.xlu0 %78
    %80 = vset.pattern.permute.xlu0 0
    %81 = vperm.xlu0 %80, %v69
    %v82 = vpop.permute.xlu0 %81
    %83 = vset.pattern.permute.xlu0 0
    %84 = vperm.xlu0 %83, %v70
    %v85 = vpop.permute.xlu0 %84
    %vm86 = vcmp.lt.s32.totalorder %v45, %v73
    %vm87 = vcmp.lt.s32.totalorder %v45, %v76
    %vm88 = vcmp.lt.s32.totalorder %v45, %v79
    %vm89 = vcmp.lt.s32.totalorder %v45, %v82
    %vm90 = vcmp.lt.s32.totalorder %v45, %v85
    %vm91 = vmand %vm61, %vm86
    %vm92 = vmand %vm62, %vm87
    %vm93 = vmand %vm63, %vm88
    %vm94 = vmand %vm64, %vm89
    %vm95 = vmand %vm65, %vm90
    %v96 = vsel %vm91, 0.0, -1e+30
    %v97 = vsel %vm92, 0.0, -1e+30
    %v98 = vsel %vm93, 0.0, -1e+30
    %v99 = vsel %vm94, 0.0, -1e+30
    %v100 = vsel %vm95, 0.0, -1e+30
    %101 = vset.pattern.permute.xlu0 0
    %102 = vperm.xlu0 %101, %v39
    %v103 = vpop.permute.xlu0 %102
    %104 = vset.pattern.permute.xlu0 0
    %105 = vperm.xlu0 %104, %v40
    %v106 = vpop.permute.xlu0 %105
    %107 = vset.pattern.permute.xlu0 0
    %108 = vperm.xlu0 %107, %v41
    %v109 = vpop.permute.xlu0 %108
    %110 = vset.pattern.permute.xlu0 0
    %111 = vperm.xlu0 %110, %v42
    %v112 = vpop.permute.xlu0 %111
    %113 = vset.pattern.permute.xlu0 0
    %114 = vperm.xlu0 %113, %v43
    %v115 = vpop.permute.xlu0 %114
    %vm116 = vcmp.eq.s32.totalorder %v45, %v103
    %vm117 = vcmp.eq.s32.totalorder %v45, %v106
    %vm118 = vcmp.eq.s32.totalorder %v45, %v109
    %vm119 = vcmp.eq.s32.totalorder %v45, %v112
    %vm120 = vcmp.eq.s32.totalorder %v45, %v115
    %v121 = vsel %vm116, 1, 0
    %v122 = vsel %vm117, 1, 0
    %v123 = vsel %vm118, 1, 0
    %v124 = vsel %vm119, 1, 0
    %v125 = vsel %vm120, 1, 0
    %v126 = vcvt.s32.f32 %v121
    %v127 = vcvt.s32.f32 %v122
    %v128 = vcvt.s32.f32 %v123
    %v129 = vcvt.s32.f32 %v124
    %v130 = vcvt.s32.f32 %v125
    %vm131 = vcmp.ge.s32.totalorder %v45, 0
    %vm132 = vcmp.lt.s32.totalorder %v45, 8
    %vm133 = vmand %vm131, %vm132
    %vm134 = vcmp.ge.s32.totalorder %v45, 8
    %vm135 = vcmp.lt.s32.totalorder %v45, 16
    %vm136 = vmand %vm134, %vm135
    %vm137 = vcmp.ge.s32.totalorder %v45, 16
    %vm138 = vcmp.lt.s32.totalorder %v45, 24
    %vm139 = vmand %vm137, %vm138
    %vm140 = vcmp.ge.s32.totalorder %v45, 24
    %vm141 = vcmp.lt.s32.totalorder %v45, 32
    %vm142 = vmand %vm140, %vm141
    %v143 = vld [vmem:[%s0] sm:$0xff]
    %v144 = vld [vmem:[%s0 + $0x8] sm:$0xff]
    %v145 = vld [vmem:[%s0 + $0x10] sm:$0xff]
    %v146 = vld [vmem:[%s0 + $0x18] sm:$0xff]
    %v147 = vpack.c.bf16 %v144, %v143
    %v148 = vpack.c.bf16 %v146, %v145
    %v149 = vld [vmem:[%s7] sm:$0xf]
    %v150 = vld [vmem:[%s7 + $0x4] sm:$0xf]
    %v151 = vld [vmem:[%s7 + $0x8] sm:$0xf]
    %v152 = vld [vmem:[%s7 + $0xc] sm:$0xf]
    %v153 = vld [vmem:[%s7 + $0x10] sm:$0xf]
    %v154 = vld [vmem:[%s7 + $0x14] sm:$0xf]
    %v155 = vld [vmem:[%s8] sm:$0x1]
    %v156 = vlaneseq
    %v157 = vshrl.u32 %v156, 7
    %v158 = vsub.s32 0, %v157
    %v159 = vrot.slane %v155, %v158
    %v166 = vunpack.c.l.b16 %v149
    %v167 = vunpack.c.l.b16 %v150
    %v168 = vunpack.c.l.b16 %v151
    %v169 = vunpack.c.l.b16 %v152
    %v170 = vunpack.c.l.b16 %v153
    %v171 = vunpack.c.l.b16 %v154
    %v172 = vpack.c.b16 %v167, %v166
    %v173 = vpack.c.b16 %v169, %v168
    %v174 = vpack.c.b16 %v171, %v170
    %vm178 = vcmask 392192
    %v180 = vsel %vm178, %v147, 0
    %v183 = vsel %vm178, %v148, 0
    %185 = vmatprep.subr.bf16.mxu0 0
    %186 = vmatpush1.bf16.msra.mxu0 %v172
    %187 = vmatprep.subr.bf16.mxu0 0
    %188 = vmatpush1.bf16.msra.mxu0 %v173
    %189 = vmatprep.subr.bf16.mxu0 0
    %190 = vmatpush1.bf16.msra.mxu0 %v174
    %191 = vmatprep.subr.bf16.mxu0 0
    %192 = vmatpush1.bf16.msra.mxu0 0
    %193 = vmatprep.subr.bf16.mxu0 0
    %194 = vmatpush1.bf16.msra.mxu0 0
    %195 = vmatprep.subr.bf16.mxu0 0
    %196 = vmatpush1.bf16.msra.mxu0 0
    %197 = vmatprep.subr.bf16.mxu0 0
    %198 = vmatpush1.bf16.msra.mxu0 0
    %199 = vmatprep.subr.bf16.mxu0 0
    %200 = vmatpush1.bf16.msra.mxu0 0
    %201 = vmatprep.subr.bf16.mxu0 0
    %202 = vmatpush1.bf16.msra.mxu0 0
    %203 = vmatprep.subr.bf16.mxu0 0
    %204 = vmatpush1.bf16.msra.mxu0 0
    %205 = vmatprep.subr.bf16.mxu0 0
    %206 = vmatpush1.bf16.msra.mxu0 0
    %207 = vmatprep.subr.bf16.mxu0 0
    %208 = vmatpush1.bf16.msra.mxu0 0
    %209 = vmatprep.subr.bf16.mxu0 0
    %210 = vmatpush1.bf16.msra.mxu0 0
    %211 = vmatprep.subr.bf16.mxu0 0
    %212 = vmatpush1.bf16.msra.mxu0 0
    %213 = vmatprep.subr.bf16.mxu0 0
    %214 = vmatpush1.bf16.msra.mxu0 0
    %215 = vmatprep.subr.bf16.mxu0 0
    %216 = vmatpush1.bf16.msra.mxu0 0
    %217 = vmatprep.mubr.bf16.mxu0 0
    %218 = vmatmul.mubr.bf16.gmra.mrb[0].mxu0 %v180
    %v219 = vpop.f32.mrb[0].mxu0
    %v220 = vadd.f32 %v159, %v219
    %v221 = vpop.f32.mrb[0].mxu0
    %v222 = vpop.f32.mrb[0].mxu0
    %v223 = vadd.f32 %v159, %v222
    %v224 = vpop.f32.mrb[0].mxu0
    %225 = vmatprep.mubr.bf16.mxu0 0
    %226 = vmatmul.mubr.bf16.gmra.mrb[0].mxu0 %v183
    %v227 = vpop.f32.mrb[0].mxu0
    %v228 = vadd.f32 %v159, %v227
    %v229 = vpop.f32.mrb[0].mxu0
    %v230 = vpop.f32.mrb[0].mxu0
    %v231 = vadd.f32 %v159, %v230
    %v232 = vpop.f32.mrb[0].mxu0
    %233 = vdwg.mxu0
    %v234 = vld [vmem:[%s3] sm:$0xff]
    %v235 = vld [vmem:[%s3 + $0x8] sm:$0xff]
    %v236 = vld [vmem:[%s3 + $0x10] sm:$0xff]
    %v237 = vld [vmem:[%s3 + $0x18] sm:$0xff]
    %v238 = vld [vmem:[%s3 + $0x20] sm:$0x3]
    %vm239 = vcmask 261120
    %v241 = vsel %vm239, %v126, 0
    %v244 = vsel %vm239, %v127, 0
    %v247 = vsel %vm239, %v128, 0
    %v250 = vsel %vm239, %v129, 0
    %v253 = vsel %vm239, %v130, 0
    %255 = vmatprep.subr.mxu0 0.0
    %256 = vmatpush1.msra.mxu0 %v220
    %257 = vmatprep.subr.mxu0 0.0
    %258 = vmatpush1.msra.mxu0 %v223
    %259 = vmatprep.subr.mxu0 0.0
    %260 = vmatpush1.msra.mxu0 %v228
    %261 = vmatprep.subr.mxu0 0.0
    %262 = vmatpush1.msra.mxu0 %v231
    %263 = vmatprep.subr.mxu0 0.0
    %264 = vmatpush1.msra.mxu0 0.0
    %265 = vmatprep.subr.mxu0 0.0
    %266 = vmatpush1.msra.mxu0 0.0
    %267 = vmatprep.subr.mxu0 0.0
    %268 = vmatpush1.msra.mxu0 0.0
    %269 = vmatprep.subr.mxu0 0.0
    %270 = vmatpush1.msra.mxu0 0.0
    %271 = vmatprep.subr.mxu0 0.0
    %272 = vmatpush1.msra.mxu0 0.0
    %273 = vmatprep.subr.mxu0 0.0
    %274 = vmatpush1.msra.mxu0 0.0
    %275 = vmatprep.subr.mxu0 0.0
    %276 = vmatpush1.msra.mxu0 0.0
    %277 = vmatprep.subr.mxu0 0.0
    %278 = vmatpush1.msra.mxu0 0.0
    %279 = vmatprep.subr.mxu0 0.0
    %280 = vmatpush1.msra.mxu0 0.0
    %281 = vmatprep.subr.mxu0 0.0
    %282 = vmatpush1.msra.mxu0 0.0
    %283 = vmatprep.subr.mxu0 0.0
    %284 = vmatpush1.msra.mxu0 0.0
    %285 = vmatprep.subr.mxu0 0.0
    %286 = vmatpush1.msra.mxu0 0.0
    %287 = vmatprep.subr.mxu0 0.0
    %288 = vmatpush1.msra.mxu0 0.0
    %289 = vmatprep.subr.mxu0 0.0
    %290 = vmatpush1.msra.mxu0 0.0
    %291 = vmatprep.subr.mxu0 0.0
    %292 = vmatpush1.msra.mxu0 0.0
    %293 = vmatprep.subr.mxu0 0.0
    %294 = vmatpush1.msra.mxu0 0.0
    %295 = vmatprep.subr.mxu0 0.0
    %296 = vmatpush1.msra.mxu0 0.0
    %297 = vmatprep.subr.mxu0 0.0
    %298 = vmatpush1.msra.mxu0 0.0
    %299 = vmatprep.subr.mxu0 0.0
    %300 = vmatpush1.msra.mxu0 0.0
    %301 = vmatprep.subr.mxu0 0.0
    %302 = vmatpush1.msra.mxu0 0.0
    %303 = vmatprep.subr.mxu0 0.0
    %304 = vmatpush1.msra.mxu0 0.0
    %305 = vmatprep.subr.mxu0 0.0
    %306 = vmatpush1.msra.mxu0 0.0
    %307 = vmatprep.subr.mxu0 0.0
    %308 = vmatpush1.msra.mxu0 0.0
    %309 = vmatprep.subr.mxu0 0.0
    %310 = vmatpush1.msra.mxu0 0.0
    %311 = vmatprep.subr.mxu0 0.0
    %312 = vmatpush1.msra.mxu0 0.0
    %313 = vmatprep.subr.mxu0 0.0
    %314 = vmatpush1.msra.mxu0 0.0
    %315 = vmatprep.subr.mxu0 0.0
    %316 = vmatpush1.msra.mxu0 0.0
    %317 = vmatprep.subr.mxu0 0.0
    %318 = vmatpush1.msra.mxu0 0.0
    %319 = vmatprep.mubr.f32.mxu0 0.0
    %320 = vmatmul.mubr.f32.gmra.mrb[0].mxu0 %v241
    %v321 = vpop.f32.mrb[0].mxu0
    %v322 = vadd.f32 %v234, %v321
    %v323 = vpop.f32.mrb[0].mxu0
    %324 = vmatprep.mubr.f32.mxu0 0.0
    %325 = vmatmul.mubr.f32.gmra.mrb[0].mxu0 %v244
    %v326 = vpop.f32.mrb[0].mxu0
    %v327 = vadd.f32 %v235, %v326
    %v328 = vpop.f32.mrb[0].mxu0
    %329 = vmatprep.mubr.f32.mxu0 0.0
    %330 = vmatmul.mubr.f32.gmra.mrb[0].mxu0 %v247
    %v331 = vpop.f32.mrb[0].mxu0
    %v332 = vadd.f32 %v236, %v331
    %v333 = vpop.f32.mrb[0].mxu0
    %334 = vmatprep.mubr.f32.mxu0 0.0
    %335 = vmatmul.mubr.f32.gmra.mrb[0].mxu0 %v250
    %v336 = vpop.f32.mrb[0].mxu0
    %v337 = vadd.f32 %v237, %v336
    %v338 = vpop.f32.mrb[0].mxu0
    %339 = vmatprep.mubr.f32.mxu0 0.0
    %340 = vmatmul.mubr.f32.gmra.mrb[0].mxu0 %v253
    %v341 = vpop.f32.mrb[0].mxu0
    %v342 = vadd.f32 %v238, %v341
    %v343 = vpop.f32.mrb[0].mxu0
    %344 = vdwg.mxu0
    %v345 = vld [vmem:[%s6] sm:$0x1]
    %v346 = vld [vmem:[%s6 + $0x1] sm:$0x1]
    %v347 = vld [vmem:[%s6 + $0x2] sm:$0x1]
    %v348 = vld [vmem:[%s6 + $0x3] sm:$0x1]
    %v349 = vld [vmem:[%s6 + $0x4] sm:$0x1]
    %v350 = vld [vmem:[%s6 + $0x5] sm:$0x1]
    %v351 = vld [vmem:[%s6 + $0x6] sm:$0x1]
    %v352 = vld [vmem:[%s6 + $0x7] sm:$0x1]
    %v353 = vld [vmem:[%s6 + $0x8] sm:$0x1]
    %v354 = vsel %vm239, %v322, 0.0
    %355 = vadd.xlane.f32.xlu0 %v354
    %v356 = vpop.xlane.xlu0 %355
    %v357 = vsel %vm239, %v327, 0.0
    %358 = vadd.xlane.f32.xlu0 %v357
    %v359 = vpop.xlane.xlu0 %358
    %v360 = vsel %vm239, %v332, 0.0
    %361 = vadd.xlane.f32.xlu0 %v360
    %v362 = vpop.xlane.xlu0 %361
    %v363 = vsel %vm239, %v337, 0.0
    %364 = vadd.xlane.f32.xlu0 %v363
    %v365 = vpop.xlane.xlu0 %364
    %vm366 = vcmask 254976
    %v367 = vsel %vm366, %v342, 0.0
    %368 = vadd.xlane.f32.xlu0 %v367
    %v369 = vpop.xlane.xlu0 %368
    %v370 = vrcp.pop 32.0
    %v371 = vmul.f32 %v356, %v370
    %v372 = vmul.f32 %v359, %v370
    %v373 = vmul.f32 %v362, %v370
    %v374 = vmul.f32 %v365, %v370
    %v375 = vmul.f32 %v369, %v370
    %v376 = vsub.f32 %v322, %v371
    %v377 = vsub.f32 %v327, %v372
    %v378 = vsub.f32 %v332, %v373
    %v379 = vsub.f32 %v337, %v374
    %v380 = vsub.f32 %v342, %v375
    %v381 = vmul.f32 %v376, %v376
    %v382 = vmul.f32 %v377, %v377
    %v383 = vmul.f32 %v378, %v378
    %v384 = vmul.f32 %v379, %v379
    %v385 = vmul.f32 %v380, %v380
    %v386 = vsel %vm239, %v381, 0.0
    %387 = vadd.xlane.f32.xlu0 %v386
    %v388 = vpop.xlane.xlu0 %387
    %v389 = vsel %vm239, %v382, 0.0
    %390 = vadd.xlane.f32.xlu0 %v389
    %v391 = vpop.xlane.xlu0 %390
    %v392 = vsel %vm239, %v383, 0.0
    %393 = vadd.xlane.f32.xlu0 %v392
    %v394 = vpop.xlane.xlu0 %393
    %v395 = vsel %vm239, %v384, 0.0
    %396 = vadd.xlane.f32.xlu0 %v395
    %v397 = vpop.xlane.xlu0 %396
    %v398 = vsel %vm366, %v385, 0.0
    %399 = vadd.xlane.f32.xlu0 %v398
    %v400 = vpop.xlane.xlu0 %399
    %v401 = vmul.f32 %v388, %v370
    %v402 = vmul.f32 %v391, %v370
    %v403 = vmul.f32 %v394, %v370
    %v404 = vmul.f32 %v397, %v370
    %v405 = vmul.f32 %v400, %v370
    %v406 = vadd.f32 %v401, 1e-06
    %v407 = vadd.f32 %v402, 1e-06
    %v408 = vadd.f32 %v403, 1e-06
    %v409 = vadd.f32 %v404, 1e-06
    %v410 = vadd.f32 %v405, 1e-06
    %v411 = vrsqrt.pop %v406
    %v412 = vrsqrt.pop %v407
    %v413 = vrsqrt.pop %v408
    %v414 = vrsqrt.pop %v409
    %v415 = vrsqrt.pop %v410
    %v416 = vmul.f32 %v376, %v411
    %v417 = vmul.f32 %v377, %v412
    %v418 = vmul.f32 %v378, %v413
    %v419 = vmul.f32 %v379, %v414
    %v420 = vmul.f32 %v380, %v415
    %v421 = vlaneseq
    %v422 = vshrl.u32 %v421, 7
    %v423 = vsub.s32 0, %v422
    %v424 = vrot.slane %v345, %v423
    %v425 = vmul.f32 %v416, %v424
    %v426 = vmul.f32 %v417, %v424
    %v427 = vmul.f32 %v418, %v424
    %v428 = vmul.f32 %v419, %v424
    %v429 = vmul.f32 %v420, %v424
    %v430 = vlaneseq
    %v431 = vshrl.u32 %v430, 7
    %v432 = vsub.s32 0, %v431
    %v433 = vrot.slane %v346, %v432
    %v434 = vadd.f32 %v425, %v433
    %v435 = vadd.f32 %v426, %v433
    %v436 = vadd.f32 %v427, %v433
    %v437 = vadd.f32 %v428, %v433
    %v438 = vadd.f32 %v429, %v433
    %v439 = vpack.c.bf16 %v435, %v434
    %v440 = vpack.c.bf16 %v437, %v436
    %v441 = vpack.c.bf16 %v438, %v438
    %v442 = vld [vmem:[%s4] sm:$0xf]
    %v443 = vld [vmem:[%s4 + $0x4] sm:$0xf]
    %v444 = vld [vmem:[%s4 + $0x8] sm:$0xf]
    %v445 = vld [vmem:[%s4 + $0xc] sm:$0xf]
    %v450 = vunpack.c.l.b16 %v442
    %v451 = vunpack.c.l.b16 %v443
    %v452 = vunpack.c.l.b16 %v444
    %v453 = vunpack.c.l.b16 %v445
    %v454 = vpack.c.b16 %v451, %v450
    %v455 = vpack.c.b16 %v453, %v452
    %v459 = vsel %vm239, %v439, 0
    %v462 = vsel %vm239, %v440, 0
    %v465 = vsel %vm239, %v441, 0
    %467 = vmatprep.subr.bf16.mxu0 0
    %468 = vmatpush1.bf16.msra.mxu0 %v454
    %469 = vmatprep.subr.bf16.mxu0 0
    %470 = vmatpush1.bf16.msra.mxu0 %v455
    %471 = vmatprep.subr.bf16.mxu0 0
    %472 = vmatpush1.bf16.msra.mxu0 0
    %473 = vmatprep.subr.bf16.mxu0 0
    %474 = vmatpush1.bf16.msra.mxu0 0
    %475 = vmatprep.subr.bf16.mxu0 0
    %476 = vmatpush1.bf16.msra.mxu0 0
    %477 = vmatprep.subr.bf16.mxu0 0
    %478 = vmatpush1.bf16.msra.mxu0 0
    %479 = vmatprep.subr.bf16.mxu0 0
    %480 = vmatpush1.bf16.msra.mxu0 0
    %481 = vmatprep.subr.bf16.mxu0 0
    %482 = vmatpush1.bf16.msra.mxu0 0
    %483 = vmatprep.subr.bf16.mxu0 0
    %484 = vmatpush1.bf16.msra.mxu0 0
    %485 = vmatprep.subr.bf16.mxu0 0
    %486 = vmatpush1.bf16.msra.mxu0 0
    %487 = vmatprep.subr.bf16.mxu0 0
    %488 = vmatpush1.bf16.msra.mxu0 0
    %489 = vmatprep.subr.bf16.mxu0 0
    %490 = vmatpush1.bf16.msra.mxu0 0
    %491 = vmatprep.subr.bf16.mxu0 0
    %492 = vmatpush1.bf16.msra.mxu0 0
    %493 = vmatprep.subr.bf16.mxu0 0
    %494 = vmatpush1.bf16.msra.mxu0 0
    %495 = vmatprep.subr.bf16.mxu0 0
    %496 = vmatpush1.bf16.msra.mxu0 0
    %497 = vmatprep.subr.bf16.mxu0 0
    %498 = vmatpush1.bf16.msra.mxu0 0
    %499 = vmatprep.mubr.bf16.mxu0 0
    %500 = vmatmul.mubr.bf16.gmra.mrb[0].mxu0 %v459
    %v501 = vpop.f32.mrb[0].mxu0
    %v502 = vadd.f32 0.0, %v501
    %v503 = vpop.f32.mrb[0].mxu0
    %v504 = vpop.f32.mrb[0].mxu0
    %v505 = vadd.f32 0.0, %v504
    %v506 = vpop.f32.mrb[0].mxu0
    %507 = vmatprep.mubr.bf16.mxu0 0
    %508 = vmatmul.mubr.bf16.gmra.mrb[0].mxu0 %v462
    %v509 = vpop.f32.mrb[0].mxu0
    %v510 = vadd.f32 0.0, %v509
    %v511 = vpop.f32.mrb[0].mxu0
    %v512 = vpop.f32.mrb[0].mxu0
    %v513 = vadd.f32 0.0, %v512
    %v514 = vpop.f32.mrb[0].mxu0
    %515 = vmatprep.mubr.bf16.mxu0 0
    %516 = vmatmul.mubr.bf16.gmra.mrb[0].mxu0 %v465
    %v517 = vpop.f32.mrb[0].mxu0
    %v518 = vadd.f32 0.0, %v517
    %v519 = vpop.f32.mrb[0].mxu0
    %v520 = vpop.f32.mrb[0].mxu0
    %v521 = vpop.f32.mrb[0].mxu0
    %522 = vdwg.mxu0
    %v523 = vmul.f32 %v502, 0.35355338
    %v524 = vmul.f32 %v505, 0.35355338
    %v525 = vmul.f32 %v510, 0.35355338
    %v526 = vmul.f32 %v513, 0.35355338
    %v527 = vmul.f32 %v518, 0.35355338
    %v528 = vpack.c.bf16 %v505, %v502
    %v529 = vpack.c.bf16 %v513, %v510
    %v530 = vpack.c.bf16 %v518, %v518
    %v531 = vsel %vm133, %v523, 0.0
    %v532 = vsel %vm133, %v524, 0.0
    %v533 = vsel %vm133, %v525, 0.0
    %v534 = vsel %vm133, %v526, 0.0
    %v535 = vsel %vm133, %v527, 0.0
    %v536 = vpack.c.bf16 %v532, %v531
    %v537 = vpack.c.bf16 %v534, %v533
    %v538 = vpack.c.bf16 %v535, %v535
    %544 = vrot.lane.b32.xlu0 %v502, 64
    %v545 = vpop.permute.xlu0 %544
    %546 = vrot.lane.b32.xlu0 %v505, 64
    %v547 = vpop.permute.xlu0 %546
    %548 = vrot.lane.b32.xlu0 %v510, 64
    %v549 = vpop.permute.xlu0 %548
    %550 = vrot.lane.b32.xlu0 %v513, 64
    %v551 = vpop.permute.xlu0 %550
    %552 = vrot.lane.b32.xlu0 %v518, 64
    %v553 = vpop.permute.xlu0 %552
    %v559 = vsel %vm133, %v545, 0.0
    %v560 = vsel %vm133, %v547, 0.0
    %v561 = vsel %vm133, %v549, 0.0
    %v562 = vsel %vm133, %v551, 0.0
    %v563 = vsel %vm133, %v553, 0.0
    %v564 = vpack.c.bf16 %v560, %v559
    %v565 = vpack.c.bf16 %v562, %v561
    %v566 = vpack.c.bf16 %v563, %v563
    %570 = vrot.lane.b32.xlu0 %v528, 96
    %v571 = vpop.permute.xlu0 %570
    %572 = vrot.lane.b32.xlu0 %v529, 96
    %v573 = vpop.permute.xlu0 %572
    %574 = vrot.lane.b32.xlu0 %v530, 96
    %v575 = vpop.permute.xlu0 %574
    %v577 = vsel %vm239, %v536, 0
    %v580 = vsel %vm239, %v537, 0
    %v583 = vsel %vm239, %v538, 0
    %v586 = vsel %vm239, %v571, 0
    %v589 = vsel %vm239, %v573, 0
    %v592 = vsel %vm239, %v575, 0
    %594 = vmatprep.subr.bf16.mxu0 0
    %595 = vmatpush1.bf16.xpose.msra.mxu0 %v586
    %596 = vmatprep.subr.bf16.mxu0 0
    %597 = vmatpush1.bf16.xpose.msra.mxu0 %v589
    %598 = vmatprep.subr.bf16.mxu0 0
    %599 = vmatpush1.bf16.xpose.msra.mxu0 %v592
    %600 = vmatprep.subr.bf16.mxu0 0
    %601 = vmatpush1.bf16.xpose.msra.mxu0 0
    %602 = vmatprep.subr.bf16.mxu0 0
    %603 = vmatpush1.bf16.xpose.msra.mxu0 0
    %604 = vmatprep.subr.bf16.mxu0 0
    %605 = vmatpush1.bf16.xpose.msra.mxu0 0
    %606 = vmatprep.subr.bf16.mxu0 0
    %607 = vmatpush1.bf16.xpose.msra.mxu0 0
    %608 = vmatprep.subr.bf16.mxu0 0
    %609 = vmatpush1.bf16.xpose.msra.mxu0 0
    %610 = vmatprep.subr.bf16.mxu0 0
    %611 = vmatpush1.bf16.xpose.msra.mxu0 0
    %612 = vmatprep.subr.bf16.mxu0 0
    %613 = vmatpush1.bf16.xpose.msra.mxu0 0
    %614 = vmatprep.subr.bf16.mxu0 0
    %615 = vmatpush1.bf16.xpose.msra.mxu0 0
    %616 = vmatprep.subr.bf16.mxu0 0
    %617 = vmatpush1.bf16.xpose.msra.mxu0 0
    %618 = vmatprep.subr.bf16.mxu0 0
    %619 = vmatpush1.bf16.xpose.msra.mxu0 0
    %620 = vmatprep.subr.bf16.mxu0 0
    %621 = vmatpush1.bf16.xpose.msra.mxu0 0
    %622 = vmatprep.subr.bf16.mxu0 0
    %623 = vmatpush1.bf16.xpose.msra.mxu0 0
    %624 = vmatprep.subr.bf16.mxu0 0
    %625 = vmatpush1.bf16.xpose.msra.mxu0 0
    %626 = vmatprep.mubr.bf16.mxu0 0
    %627 = vmatmul.mubr.bf16.gmra.mrb[0].mxu0 %v577
    %v628 = vpop.f32.mrb[0].mxu0
    %v629 = vadd.f32 %v96, %v628
    %v630 = vpop.f32.mrb[0].mxu0
    %v631 = vpop.f32.mrb[0].mxu0
    %v632 = vadd.f32 %v97, %v631
    %v633 = vpop.f32.mrb[0].mxu0
    %634 = vmatprep.mubr.bf16.mxu0 0
    %635 = vmatmul.mubr.bf16.gmra.mrb[0].mxu0 %v580
    %v636 = vpop.f32.mrb[0].mxu0
    %v637 = vadd.f32 %v98, %v636
    %v638 = vpop.f32.mrb[0].mxu0
    %v639 = vpop.f32.mrb[0].mxu0
    %v640 = vadd.f32 %v99, %v639
    %v641 = vpop.f32.mrb[0].mxu0
    %642 = vmatprep.mubr.bf16.mxu0 0
    %643 = vmatmul.mubr.bf16.gmra.mrb[0].mxu0 %v583
    %v644 = vpop.f32.mrb[0].mxu0
    %v645 = vadd.f32 %v100, %v644
    %v646 = vpop.f32.mrb[0].mxu0
    %v647 = vpop.f32.mrb[0].mxu0
    %v648 = vpop.f32.mrb[0].mxu0
    %649 = vdwg.mxu0
    %vm650 = vcmask 277504
    %v651 = vsel %vm650, %v629, -inf
    %652 = vmax.xlane.f32.xlu0 %v651
    %v653 = vpop.xlane.xlu0 %652
    %v654 = vsel %vm650, %v632, -inf
    %655 = vmax.xlane.f32.xlu0 %v654
    %v656 = vpop.xlane.xlu0 %655
    %v657 = vsel %vm650, %v637, -inf
    %658 = vmax.xlane.f32.xlu0 %v657
    %v659 = vpop.xlane.xlu0 %658
    %v660 = vsel %vm650, %v640, -inf
    %661 = vmax.xlane.f32.xlu0 %v660
    %v662 = vpop.xlane.xlu0 %661
    %vm663 = vcmask 271360
    %v664 = vsel %vm663, %v645, -inf
    %665 = vmax.xlane.f32.xlu0 %v664
    %v666 = vpop.xlane.xlu0 %665
    %v667 = vsub.f32 %v629, %v653
    %v668 = vsub.f32 %v632, %v656
    %v669 = vsub.f32 %v637, %v659
    %v670 = vsub.f32 %v640, %v662
    %v671 = vsub.f32 %v645, %v666
    %v672 = vmul.f32 %v667, 1.442695
    %v673 = vpow.pop %v672
    %v674 = vmul.f32 %v668, 1.442695
    %v675 = vpow.pop %v674
    %v676 = vmul.f32 %v669, 1.442695
    %v677 = vpow.pop %v676
    %v678 = vmul.f32 %v670, 1.442695
    %v679 = vpow.pop %v678
    %v680 = vmul.f32 %v671, 1.442695
    %v681 = vpow.pop %v680
    %v682 = vsel %vm650, %v673, 0.0
    %683 = vadd.xlane.f32.xlu0 %v682
    %v684 = vpop.xlane.xlu0 %683
    %v685 = vsel %vm650, %v675, 0.0
    %686 = vadd.xlane.f32.xlu0 %v685
    %v687 = vpop.xlane.xlu0 %686
    %v688 = vsel %vm650, %v677, 0.0
    %689 = vadd.xlane.f32.xlu0 %v688
    %v690 = vpop.xlane.xlu0 %689
    %v691 = vsel %vm650, %v679, 0.0
    %692 = vadd.xlane.f32.xlu0 %v691
    %v693 = vpop.xlane.xlu0 %692
    %v694 = vsel %vm663, %v681, 0.0
    %695 = vadd.xlane.f32.xlu0 %v694
    %v696 = vpop.xlane.xlu0 %695
    %v697 = vrcp.pop %v684
    %v698 = vrcp.pop %v687
    %v699 = vrcp.pop %v690
    %v700 = vrcp.pop %v693
    %v701 = vrcp.pop %v696
    %v702 = vmul.f32 %v673, %v697
    %v703 = vmul.f32 %v675, %v698
    %v704 = vmul.f32 %v677, %v699
    %v705 = vmul.f32 %v679, %v700
    %v706 = vmul.f32 %v681, %v701
    %v707 = vpack.c.bf16 %v703, %v702
    %v708 = vpack.c.bf16 %v705, %v704
    %v709 = vpack.c.bf16 %v706, %v706
    %v710 = vsel %vm136, %v523, 0.0
    %v711 = vsel %vm136, %v524, 0.0
    %v712 = vsel %vm136, %v525, 0.0
    %v713 = vsel %vm136, %v526, 0.0
    %v714 = vsel %vm136, %v527, 0.0
    %v715 = vpack.c.bf16 %v711, %v710
    %v716 = vpack.c.bf16 %v713, %v712
    %v717 = vpack.c.bf16 %v714, %v714
    %v718 = vsel %vm136, %v545, 0.0
    %v719 = vsel %vm136, %v547, 0.0
    %v720 = vsel %vm136, %v549, 0.0
    %v721 = vsel %vm136, %v551, 0.0
    %v722 = vsel %vm136, %v553, 0.0
    %v723 = vpack.c.bf16 %v719, %v718
    %v724 = vpack.c.bf16 %v721, %v720
    %v725 = vpack.c.bf16 %v722, %v722
    %v727 = vsel %vm239, %v715, 0
    %v730 = vsel %vm239, %v716, 0
    %v733 = vsel %vm239, %v717, 0
    %735 = vmatprep.subr.bf16.mxu0 0
    %736 = vmatpush1.bf16.xpose.msra.mxu0 %v586
    %737 = vmatprep.subr.bf16.mxu0 0
    %738 = vmatpush1.bf16.xpose.msra.mxu0 %v589
    %739 = vmatprep.subr.bf16.mxu0 0
    %740 = vmatpush1.bf16.xpose.msra.mxu0 %v592
    %741 = vmatprep.subr.bf16.mxu0 0
    %742 = vmatpush1.bf16.xpose.msra.mxu0 0
    %743 = vmatprep.subr.bf16.mxu0 0
    %744 = vmatpush1.bf16.xpose.msra.mxu0 0
    %745 = vmatprep.subr.bf16.mxu0 0
    %746 = vmatpush1.bf16.xpose.msra.mxu0 0
    %747 = vmatprep.subr.bf16.mxu0 0
    %748 = vmatpush1.bf16.xpose.msra.mxu0 0
    %749 = vmatprep.subr.bf16.mxu0 0
    %750 = vmatpush1.bf16.xpose.msra.mxu0 0
    %751 = vmatprep.subr.bf16.mxu0 0
    %752 = vmatpush1.bf16.xpose.msra.mxu0 0
    %753 = vmatprep.subr.bf16.mxu0 0
    %754 = vmatpush1.bf16.xpose.msra.mxu0 0
    %755 = vmatprep.subr.bf16.mxu0 0
    %756 = vmatpush1.bf16.xpose.msra.mxu0 0
    %757 = vmatprep.subr.bf16.mxu0 0
    %758 = vmatpush1.bf16.xpose.msra.mxu0 0
    %759 = vmatprep.subr.bf16.mxu0 0
    %760 = vmatpush1.bf16.xpose.msra.mxu0 0
    %761 = vmatprep.subr.bf16.mxu0 0
    %762 = vmatpush1.bf16.xpose.msra.mxu0 0
    %763 = vmatprep.subr.bf16.mxu0 0
    %764 = vmatpush1.bf16.xpose.msra.mxu0 0
    %765 = vmatprep.subr.bf16.mxu0 0
    %766 = vmatpush1.bf16.xpose.msra.mxu0 0
    %767 = vmatprep.mubr.bf16.mxu0 0
    %768 = vmatmul.mubr.bf16.gmra.mrb[0].mxu0 %v727
    %v769 = vpop.f32.mrb[0].mxu0
    %v770 = vadd.f32 %v96, %v769
    %v771 = vpop.f32.mrb[0].mxu0
    %v772 = vpop.f32.mrb[0].mxu0
    %v773 = vadd.f32 %v97, %v772
    %v774 = vpop.f32.mrb[0].mxu0
    %775 = vmatprep.mubr.bf16.mxu0 0
    %776 = vmatmul.mubr.bf16.gmra.mrb[0].mxu0 %v730
    %v777 = vpop.f32.mrb[0].mxu0
    %v778 = vadd.f32 %v98, %v777
    %v779 = vpop.f32.mrb[0].mxu0
    %v780 = vpop.f32.mrb[0].mxu0
    %v781 = vadd.f32 %v99, %v780
    %v782 = vpop.f32.mrb[0].mxu0
    %783 = vmatprep.mubr.bf16.mxu0 0
    %784 = vmatmul.mubr.bf16.gmra.mrb[0].mxu0 %v733
    %v785 = vpop.f32.mrb[0].mxu0
    %v786 = vadd.f32 %v100, %v785
    %v787 = vpop.f32.mrb[0].mxu0
    %v788 = vpop.f32.mrb[0].mxu0
    %v789 = vpop.f32.mrb[0].mxu0
    %790 = vdwg.mxu0
    %v791 = vsel %vm650, %v770, -inf
    %792 = vmax.xlane.f32.xlu0 %v791
    %v793 = vpop.xlane.xlu0 %792
    %v794 = vsel %vm650, %v773, -inf
    %795 = vmax.xlane.f32.xlu0 %v794
    %v796 = vpop.xlane.xlu0 %795
    %v797 = vsel %vm650, %v778, -inf
    %798 = vmax.xlane.f32.xlu0 %v797
    %v799 = vpop.xlane.xlu0 %798
    %v800 = vsel %vm650, %v781, -inf
    %801 = vmax.xlane.f32.xlu0 %v800
    %v802 = vpop.xlane.xlu0 %801
    %v803 = vsel %vm663, %v786, -inf
    %804 = vmax.xlane.f32.xlu0 %v803
    %v805 = vpop.xlane.xlu0 %804
    %v806 = vsub.f32 %v770, %v793
    %v807 = vsub.f32 %v773, %v796
    %v808 = vsub.f32 %v778, %v799
    %v809 = vsub.f32 %v781, %v802
    %v810 = vsub.f32 %v786, %v805
    %v811 = vmul.f32 %v806, 1.442695
    %v812 = vpow.pop %v811
    %v813 = vmul.f32 %v807, 1.442695
    %v814 = vpow.pop %v813
    %v815 = vmul.f32 %v808, 1.442695
    %v816 = vpow.pop %v815
    %v817 = vmul.f32 %v809, 1.442695
    %v818 = vpow.pop %v817
    %v819 = vmul.f32 %v810, 1.442695
    %v820 = vpow.pop %v819
    %v821 = vsel %vm650, %v812, 0.0
    %822 = vadd.xlane.f32.xlu0 %v821
    %v823 = vpop.xlane.xlu0 %822
    %v824 = vsel %vm650, %v814, 0.0
    %825 = vadd.xlane.f32.xlu0 %v824
    %v826 = vpop.xlane.xlu0 %825
    %v827 = vsel %vm650, %v816, 0.0
    %828 = vadd.xlane.f32.xlu0 %v827
    %v829 = vpop.xlane.xlu0 %828
    %v830 = vsel %vm650, %v818, 0.0
    %831 = vadd.xlane.f32.xlu0 %v830
    %v832 = vpop.xlane.xlu0 %831
    %v833 = vsel %vm663, %v820, 0.0
    %834 = vadd.xlane.f32.xlu0 %v833
    %v835 = vpop.xlane.xlu0 %834
    %v836 = vrcp.pop %v823
    %v837 = vrcp.pop %v826
    %v838 = vrcp.pop %v829
    %v839 = vrcp.pop %v832
    %v840 = vrcp.pop %v835
    %v841 = vmul.f32 %v812, %v836
    %v842 = vmul.f32 %v814, %v837
    %v843 = vmul.f32 %v816, %v838
    %v844 = vmul.f32 %v818, %v839
    %v845 = vmul.f32 %v820, %v840
    %v846 = vpack.c.bf16 %v842, %v841
    %v847 = vpack.c.bf16 %v844, %v843
    %v848 = vpack.c.bf16 %v845, %v845
    %v850 = vsel %vm650, %v846, 0
    %v853 = vsel %vm650, %v847, 0
    %v856 = vsel %vm650, %v848, 0
    %vm858 = vcmask 1040384
    %v860 = vsel %vm858, %v725, 0
    %862 = vmatprep.subr.bf16.mxu0 0
    %863 = vmatpush1.bf16.msra.mxu0 %v723
    %864 = vmatprep.subr.bf16.mxu0 0
    %865 = vmatpush1.bf16.msra.mxu0 %v724
    %866 = vmatprep.subr.bf16.mxu0 0
    %867 = vmatpush1.bf16.msra.mxu0 %v860
    %868 = vmatprep.subr.bf16.mxu0 0
    %869 = vmatpush1.bf16.msra.mxu0 0
    %870 = vmatprep.subr.bf16.mxu0 0
    %871 = vmatpush1.bf16.msra.mxu0 0
    %872 = vmatprep.subr.bf16.mxu0 0
    %873 = vmatpush1.bf16.msra.mxu0 0
    %874 = vmatprep.subr.bf16.mxu0 0
    %875 = vmatpush1.bf16.msra.mxu0 0
    %876 = vmatprep.subr.bf16.mxu0 0
    %877 = vmatpush1.bf16.msra.mxu0 0
    %878 = vmatprep.subr.bf16.mxu0 0
    %879 = vmatpush1.bf16.msra.mxu0 0
    %880 = vmatprep.subr.bf16.mxu0 0
    %881 = vmatpush1.bf16.msra.mxu0 0
    %882 = vmatprep.subr.bf16.mxu0 0
    %883 = vmatpush1.bf16.msra.mxu0 0
    %884 = vmatprep.subr.bf16.mxu0 0
    %885 = vmatpush1.bf16.msra.mxu0 0
    %886 = vmatprep.subr.bf16.mxu0 0
    %887 = vmatpush1.bf16.msra.mxu0 0
    %888 = vmatprep.subr.bf16.mxu0 0
    %889 = vmatpush1.bf16.msra.mxu0 0
    %890 = vmatprep.subr.bf16.mxu0 0
    %891 = vmatpush1.bf16.msra.mxu0 0
    %892 = vmatprep.subr.bf16.mxu0 0
    %893 = vmatpush1.bf16.msra.mxu0 0
    %894 = vmatprep.mubr.bf16.mxu0 0
    %895 = vmatmul.mubr.bf16.gmra.mrb[0].mxu0 %v850
    %v896 = vpop.f32.mrb[0].mxu0
    %v897 = vadd.f32 0.0, %v896
    %v898 = vpop.f32.mrb[0].mxu0
    %v899 = vpop.f32.mrb[0].mxu0
    %v900 = vadd.f32 0.0, %v899
    %v901 = vpop.f32.mrb[0].mxu0
    %902 = vmatprep.mubr.bf16.mxu0 0
    %903 = vmatmul.mubr.bf16.gmra.mrb[0].mxu0 %v853
    %v904 = vpop.f32.mrb[0].mxu0
    %v905 = vadd.f32 0.0, %v904
    %v906 = vpop.f32.mrb[0].mxu0
    %v907 = vpop.f32.mrb[0].mxu0
    %v908 = vadd.f32 0.0, %v907
    %v909 = vpop.f32.mrb[0].mxu0
    %910 = vmatprep.mubr.bf16.mxu0 0
    %911 = vmatmul.mubr.bf16.gmra.mrb[0].mxu0 %v856
    %v912 = vpop.f32.mrb[0].mxu0
    %v913 = vadd.f32 0.0, %v912
    %v914 = vpop.f32.mrb[0].mxu0
    %v915 = vpop.f32.mrb[0].mxu0
    %v916 = vpop.f32.mrb[0].mxu0
    %917 = vdwg.mxu0
    %v919 = vsel %vm650, %v707, 0
    %v922 = vsel %vm650, %v708, 0
    %v925 = vsel %vm650, %v709, 0
    %v928 = vsel %vm858, %v566, 0
    %930 = vmatprep.subr.bf16.mxu0 0
    %931 = vmatpush1.bf16.msra.mxu0 %v564
    %932 = vmatprep.subr.bf16.mxu0 0
    %933 = vmatpush1.bf16.msra.mxu0 %v565
    %934 = vmatprep.subr.bf16.mxu0 0
    %935 = vmatpush1.bf16.msra.mxu0 %v928
    %936 = vmatprep.subr.bf16.mxu0 0
    %937 = vmatpush1.bf16.msra.mxu0 0
    %938 = vmatprep.subr.bf16.mxu0 0
    %939 = vmatpush1.bf16.msra.mxu0 0
    %940 = vmatprep.subr.bf16.mxu0 0
    %941 = vmatpush1.bf16.msra.mxu0 0
    %942 = vmatprep.subr.bf16.mxu0 0
    %943 = vmatpush1.bf16.msra.mxu0 0
    %944 = vmatprep.subr.bf16.mxu0 0
    %945 = vmatpush1.bf16.msra.mxu0 0
    %946 = vmatprep.subr.bf16.mxu0 0
    %947 = vmatpush1.bf16.msra.mxu0 0
    %948 = vmatprep.subr.bf16.mxu0 0
    %949 = vmatpush1.bf16.msra.mxu0 0
    %950 = vmatprep.subr.bf16.mxu0 0
    %951 = vmatpush1.bf16.msra.mxu0 0
    %952 = vmatprep.subr.bf16.mxu0 0
    %953 = vmatpush1.bf16.msra.mxu0 0
    %954 = vmatprep.subr.bf16.mxu0 0
    %955 = vmatpush1.bf16.msra.mxu0 0
    %956 = vmatprep.subr.bf16.mxu0 0
    %957 = vmatpush1.bf16.msra.mxu0 0
    %958 = vmatprep.subr.bf16.mxu0 0
    %959 = vmatpush1.bf16.msra.mxu0 0
    %960 = vmatprep.subr.bf16.mxu0 0
    %961 = vmatpush1.bf16.msra.mxu0 0
    %962 = vmatprep.mubr.bf16.mxu0 0
    %963 = vmatmul.mubr.bf16.gmra.mrb[0].mxu0 %v919
    %v964 = vpop.f32.mrb[0].mxu0
    %v965 = vadd.f32 %v897, %v964
    %v966 = vpop.f32.mrb[0].mxu0
    %v967 = vpop.f32.mrb[0].mxu0
    %v968 = vadd.f32 %v900, %v967
    %v969 = vpop.f32.mrb[0].mxu0
    %970 = vmatprep.mubr.bf16.mxu0 0
    %971 = vmatmul.mubr.bf16.gmra.mrb[0].mxu0 %v922
    %v972 = vpop.f32.mrb[0].mxu0
    %v973 = vadd.f32 %v905, %v972
    %v974 = vpop.f32.mrb[0].mxu0
    %v975 = vpop.f32.mrb[0].mxu0
    %v976 = vadd.f32 %v908, %v975
    %v977 = vpop.f32.mrb[0].mxu0
    %978 = vmatprep.mubr.bf16.mxu0 0
    %979 = vmatmul.mubr.bf16.gmra.mrb[0].mxu0 %v925
    %v980 = vpop.f32.mrb[0].mxu0
    %v981 = vadd.f32 %v913, %v980
    %v982 = vpop.f32.mrb[0].mxu0
    %v983 = vpop.f32.mrb[0].mxu0
    %v984 = vpop.f32.mrb[0].mxu0
    %985 = vdwg.mxu0
    %v986 = vsel %vm139, %v523, 0.0
    %v987 = vsel %vm139, %v524, 0.0
    %v988 = vsel %vm139, %v525, 0.0
    %v989 = vsel %vm139, %v526, 0.0
    %v990 = vsel %vm139, %v527, 0.0
    %v991 = vpack.c.bf16 %v987, %v986
    %v992 = vpack.c.bf16 %v989, %v988
    %v993 = vpack.c.bf16 %v990, %v990
    %v994 = vsel %vm139, %v545, 0.0
    %v995 = vsel %vm139, %v547, 0.0
    %v996 = vsel %vm139, %v549, 0.0
    %v997 = vsel %vm139, %v551, 0.0
    %v998 = vsel %vm139, %v553, 0.0
    %v999 = vpack.c.bf16 %v995, %v994
    %v1000 = vpack.c.bf16 %v997, %v996
    %v1001 = vpack.c.bf16 %v998, %v998
    %v1003 = vsel %vm239, %v991, 0
    %v1006 = vsel %vm239, %v992, 0
    %v1009 = vsel %vm239, %v993, 0
    %1011 = vmatprep.subr.bf16.mxu0 0
    %1012 = vmatpush1.bf16.xpose.msra.mxu0 %v586
    %1013 = vmatprep.subr.bf16.mxu0 0
    %1014 = vmatpush1.bf16.xpose.msra.mxu0 %v589
    %1015 = vmatprep.subr.bf16.mxu0 0
    %1016 = vmatpush1.bf16.xpose.msra.mxu0 %v592
    %1017 = vmatprep.subr.bf16.mxu0 0
    %1018 = vmatpush1.bf16.xpose.msra.mxu0 0
    %1019 = vmatprep.subr.bf16.mxu0 0
    %1020 = vmatpush1.bf16.xpose.msra.mxu0 0
    %1021 = vmatprep.subr.bf16.mxu0 0
    %1022 = vmatpush1.bf16.xpose.msra.mxu0 0
    %1023 = vmatprep.subr.bf16.mxu0 0
    %1024 = vmatpush1.bf16.xpose.msra.mxu0 0
    %1025 = vmatprep.subr.bf16.mxu0 0
    %1026 = vmatpush1.bf16.xpose.msra.mxu0 0
    %1027 = vmatprep.subr.bf16.mxu0 0
    %1028 = vmatpush1.bf16.xpose.msra.mxu0 0
    %1029 = vmatprep.subr.bf16.mxu0 0
    %1030 = vmatpush1.bf16.xpose.msra.mxu0 0
    %1031 = vmatprep.subr.bf16.mxu0 0
    %1032 = vmatpush1.bf16.xpose.msra.mxu0 0
    %1033 = vmatprep.subr.bf16.mxu0 0
    %1034 = vmatpush1.bf16.xpose.msra.mxu0 0
    %1035 = vmatprep.subr.bf16.mxu0 0
    %1036 = vmatpush1.bf16.xpose.msra.mxu0 0
    %1037 = vmatprep.subr.bf16.mxu0 0
    %1038 = vmatpush1.bf16.xpose.msra.mxu0 0
    %1039 = vmatprep.subr.bf16.mxu0 0
    %1040 = vmatpush1.bf16.xpose.msra.mxu0 0
    %1041 = vmatprep.subr.bf16.mxu0 0
    %1042 = vmatpush1.bf16.xpose.msra.mxu0 0
    %1043 = vmatprep.mubr.bf16.mxu0 0
    %1044 = vmatmul.mubr.bf16.gmra.mrb[0].mxu0 %v1003
    %v1045 = vpop.f32.mrb[0].mxu0
    %v1046 = vadd.f32 %v96, %v1045
    %v1047 = vpop.f32.mrb[0].mxu0
    %v1048 = vpop.f32.mrb[0].mxu0
    %v1049 = vadd.f32 %v97, %v1048
    %v1050 = vpop.f32.mrb[0].mxu0
    %1051 = vmatprep.mubr.bf16.mxu0 0
    %1052 = vmatmul.mubr.bf16.gmra.mrb[0].mxu0 %v1006
    %v1053 = vpop.f32.mrb[0].mxu0
    %v1054 = vadd.f32 %v98, %v1053
    %v1055 = vpop.f32.mrb[0].mxu0
    %v1056 = vpop.f32.mrb[0].mxu0
    %v1057 = vadd.f32 %v99, %v1056
    %v1058 = vpop.f32.mrb[0].mxu0
    %1059 = vmatprep.mubr.bf16.mxu0 0
    %1060 = vmatmul.mubr.bf16.gmra.mrb[0].mxu0 %v1009
    %v1061 = vpop.f32.mrb[0].mxu0
    %v1062 = vadd.f32 %v100, %v1061
    %v1063 = vpop.f32.mrb[0].mxu0
    %v1064 = vpop.f32.mrb[0].mxu0
    %v1065 = vpop.f32.mrb[0].mxu0
    %1066 = vdwg.mxu0
    %v1067 = vsel %vm650, %v1046, -inf
    %1068 = vmax.xlane.f32.xlu0 %v1067
    %v1069 = vpop.xlane.xlu0 %1068
    %v1070 = vsel %vm650, %v1049, -inf
    %1071 = vmax.xlane.f32.xlu0 %v1070
    %v1072 = vpop.xlane.xlu0 %1071
    %v1073 = vsel %vm650, %v1054, -inf
    %1074 = vmax.xlane.f32.xlu0 %v1073
    %v1075 = vpop.xlane.xlu0 %1074
    %v1076 = vsel %vm650, %v1057, -inf
    %1077 = vmax.xlane.f32.xlu0 %v1076
    %v1078 = vpop.xlane.xlu0 %1077
    %v1079 = vsel %vm663, %v1062, -inf
    %1080 = vmax.xlane.f32.xlu0 %v1079
    %v1081 = vpop.xlane.xlu0 %1080
    %v1082 = vsub.f32 %v1046, %v1069
    %v1083 = vsub.f32 %v1049, %v1072
    %v1084 = vsub.f32 %v1054, %v1075
    %v1085 = vsub.f32 %v1057, %v1078
    %v1086 = vsub.f32 %v1062, %v1081
    %v1087 = vmul.f32 %v1082, 1.442695
    %v1088 = vpow.pop %v1087
    %v1089 = vmul.f32 %v1083, 1.442695
    %v1090 = vpow.pop %v1089
    %v1091 = vmul.f32 %v1084, 1.442695
    %v1092 = vpow.pop %v1091
    %v1093 = vmul.f32 %v1085, 1.442695
    %v1094 = vpow.pop %v1093
    %v1095 = vmul.f32 %v1086, 1.442695
    %v1096 = vpow.pop %v1095
    %v1097 = vsel %vm650, %v1088, 0.0
    %1098 = vadd.xlane.f32.xlu0 %v1097
    %v1099 = vpop.xlane.xlu0 %1098
    %v1100 = vsel %vm650, %v1090, 0.0
    %1101 = vadd.xlane.f32.xlu0 %v1100
    %v1102 = vpop.xlane.xlu0 %1101
    %v1103 = vsel %vm650, %v1092, 0.0
    %1104 = vadd.xlane.f32.xlu0 %v1103
    %v1105 = vpop.xlane.xlu0 %1104
    %v1106 = vsel %vm650, %v1094, 0.0
    %1107 = vadd.xlane.f32.xlu0 %v1106
    %v1108 = vpop.xlane.xlu0 %1107
    %v1109 = vsel %vm663, %v1096, 0.0
    %1110 = vadd.xlane.f32.xlu0 %v1109
    %v1111 = vpop.xlane.xlu0 %1110
    %v1112 = vrcp.pop %v1099
    %v1113 = vrcp.pop %v1102
    %v1114 = vrcp.pop %v1105
    %v1115 = vrcp.pop %v1108
    %v1116 = vrcp.pop %v1111
    %v1117 = vmul.f32 %v1088, %v1112
    %v1118 = vmul.f32 %v1090, %v1113
    %v1119 = vmul.f32 %v1092, %v1114
    %v1120 = vmul.f32 %v1094, %v1115
    %v1121 = vmul.f32 %v1096, %v1116
    %v1122 = vpack.c.bf16 %v1118, %v1117
    %v1123 = vpack.c.bf16 %v1120, %v1119
    %v1124 = vpack.c.bf16 %v1121, %v1121
    %v1126 = vsel %vm650, %v1122, 0
    %v1129 = vsel %vm650, %v1123, 0
    %v1132 = vsel %vm650, %v1124, 0
    %v1135 = vsel %vm858, %v1001, 0
    %1137 = vmatprep.subr.bf16.mxu0 0
    %1138 = vmatpush1.bf16.msra.mxu0 %v999
    %1139 = vmatprep.subr.bf16.mxu0 0
    %1140 = vmatpush1.bf16.msra.mxu0 %v1000
    %1141 = vmatprep.subr.bf16.mxu0 0
    %1142 = vmatpush1.bf16.msra.mxu0 %v1135
    %1143 = vmatprep.subr.bf16.mxu0 0
    %1144 = vmatpush1.bf16.msra.mxu0 0
    %1145 = vmatprep.subr.bf16.mxu0 0
    %1146 = vmatpush1.bf16.msra.mxu0 0
    %1147 = vmatprep.subr.bf16.mxu0 0
    %1148 = vmatpush1.bf16.msra.mxu0 0
    %1149 = vmatprep.subr.bf16.mxu0 0
    %1150 = vmatpush1.bf16.msra.mxu0 0
    %1151 = vmatprep.subr.bf16.mxu0 0
    %1152 = vmatpush1.bf16.msra.mxu0 0
    %1153 = vmatprep.subr.bf16.mxu0 0
    %1154 = vmatpush1.bf16.msra.mxu0 0
    %1155 = vmatprep.subr.bf16.mxu0 0
    %1156 = vmatpush1.bf16.msra.mxu0 0
    %1157 = vmatprep.subr.bf16.mxu0 0
    %1158 = vmatpush1.bf16.msra.mxu0 0
    %1159 = vmatprep.subr.bf16.mxu0 0
    %1160 = vmatpush1.bf16.msra.mxu0 0
    %1161 = vmatprep.subr.bf16.mxu0 0
    %1162 = vmatpush1.bf16.msra.mxu0 0
    %1163 = vmatprep.subr.bf16.mxu0 0
    %1164 = vmatpush1.bf16.msra.mxu0 0
    %1165 = vmatprep.subr.bf16.mxu0 0
    %1166 = vmatpush1.bf16.msra.mxu0 0
    %1167 = vmatprep.subr.bf16.mxu0 0
    %1168 = vmatpush1.bf16.msra.mxu0 0
    %1169 = vmatprep.mubr.bf16.mxu0 0
    %1170 = vmatmul.mubr.bf16.gmra.mrb[0].mxu0 %v1126
    %v1171 = vpop.f32.mrb[0].mxu0
    %v1172 = vadd.f32 0.0, %v1171
    %v1173 = vpop.f32.mrb[0].mxu0
    %v1174 = vpop.f32.mrb[0].mxu0
    %v1175 = vadd.f32 0.0, %v1174
    %v1176 = vpop.f32.mrb[0].mxu0
    %1177 = vmatprep.mubr.bf16.mxu0 0
    %1178 = vmatmul.mubr.bf16.gmra.mrb[0].mxu0 %v1129
    %v1179 = vpop.f32.mrb[0].mxu0
    %v1180 = vadd.f32 0.0, %v1179
    %v1181 = vpop.f32.mrb[0].mxu0
    %v1182 = vpop.f32.mrb[0].mxu0
    %v1183 = vadd.f32 0.0, %v1182
    %v1184 = vpop.f32.mrb[0].mxu0
    %1185 = vmatprep.mubr.bf16.mxu0 0
    %1186 = vmatmul.mubr.bf16.gmra.mrb[0].mxu0 %v1132
    %v1187 = vpop.f32.mrb[0].mxu0
    %v1188 = vadd.f32 0.0, %v1187
    %v1189 = vpop.f32.mrb[0].mxu0
    %v1190 = vpop.f32.mrb[0].mxu0
    %v1191 = vpop.f32.mrb[0].mxu0
    %1192 = vdwg.mxu0
    %v1193 = vadd.f32 %v965, %v1172
    %v1194 = vadd.f32 %v968, %v1175
    %v1195 = vadd.f32 %v973, %v1180
    %v1196 = vadd.f32 %v976, %v1183
    %v1197 = vadd.f32 %v981, %v1188
    %v1198 = vsel %vm142, %v523, 0.0
    %v1199 = vsel %vm142, %v524, 0.0
    %v1200 = vsel %vm142, %v525, 0.0
    %v1201 = vsel %vm142, %v526, 0.0
    %v1202 = vsel %vm142, %v527, 0.0
    %v1203 = vpack.c.bf16 %v1199, %v1198
    %v1204 = vpack.c.bf16 %v1201, %v1200
    %v1205 = vpack.c.bf16 %v1202, %v1202
    %v1206 = vsel %vm142, %v545, 0.0
    %v1207 = vsel %vm142, %v547, 0.0
    %v1208 = vsel %vm142, %v549, 0.0
    %v1209 = vsel %vm142, %v551, 0.0
    %v1210 = vsel %vm142, %v553, 0.0
    %v1211 = vpack.c.bf16 %v1207, %v1206
    %v1212 = vpack.c.bf16 %v1209, %v1208
    %v1213 = vpack.c.bf16 %v1210, %v1210
    %v1215 = vsel %vm239, %v1203, 0
    %v1218 = vsel %vm239, %v1204, 0
    %v1221 = vsel %vm239, %v1205, 0
    %1223 = vmatprep.subr.bf16.mxu0 0
    %1224 = vmatpush1.bf16.xpose.msra.mxu0 %v586
    %1225 = vmatprep.subr.bf16.mxu0 0
    %1226 = vmatpush1.bf16.xpose.msra.mxu0 %v589
    %1227 = vmatprep.subr.bf16.mxu0 0
    %1228 = vmatpush1.bf16.xpose.msra.mxu0 %v592
    %1229 = vmatprep.subr.bf16.mxu0 0
    %1230 = vmatpush1.bf16.xpose.msra.mxu0 0
    %1231 = vmatprep.subr.bf16.mxu0 0
    %1232 = vmatpush1.bf16.xpose.msra.mxu0 0
    %1233 = vmatprep.subr.bf16.mxu0 0
    %1234 = vmatpush1.bf16.xpose.msra.mxu0 0
    %1235 = vmatprep.subr.bf16.mxu0 0
    %1236 = vmatpush1.bf16.xpose.msra.mxu0 0
    %1237 = vmatprep.subr.bf16.mxu0 0
    %1238 = vmatpush1.bf16.xpose.msra.mxu0 0
    %1239 = vmatprep.subr.bf16.mxu0 0
    %1240 = vmatpush1.bf16.xpose.msra.mxu0 0
    %1241 = vmatprep.subr.bf16.mxu0 0
    %1242 = vmatpush1.bf16.xpose.msra.mxu0 0
    %1243 = vmatprep.subr.bf16.mxu0 0
    %1244 = vmatpush1.bf16.xpose.msra.mxu0 0
    %1245 = vmatprep.subr.bf16.mxu0 0
    %1246 = vmatpush1.bf16.xpose.msra.mxu0 0
    %1247 = vmatprep.subr.bf16.mxu0 0
    %1248 = vmatpush1.bf16.xpose.msra.mxu0 0
    %1249 = vmatprep.subr.bf16.mxu0 0
    %1250 = vmatpush1.bf16.xpose.msra.mxu0 0
    %1251 = vmatprep.subr.bf16.mxu0 0
    %1252 = vmatpush1.bf16.xpose.msra.mxu0 0
    %1253 = vmatprep.subr.bf16.mxu0 0
    %1254 = vmatpush1.bf16.xpose.msra.mxu0 0
    %1255 = vmatprep.mubr.bf16.mxu0 0
    %1256 = vmatmul.mubr.bf16.gmra.mrb[0].mxu0 %v1215
    %v1257 = vpop.f32.mrb[0].mxu0
    %v1258 = vadd.f32 %v96, %v1257
    %v1259 = vpop.f32.mrb[0].mxu0
    %v1260 = vpop.f32.mrb[0].mxu0
    %v1261 = vadd.f32 %v97, %v1260
    %v1262 = vpop.f32.mrb[0].mxu0
    %1263 = vmatprep.mubr.bf16.mxu0 0
    %1264 = vmatmul.mubr.bf16.gmra.mrb[0].mxu0 %v1218
    %v1265 = vpop.f32.mrb[0].mxu0
    %v1266 = vadd.f32 %v98, %v1265
    %v1267 = vpop.f32.mrb[0].mxu0
    %v1268 = vpop.f32.mrb[0].mxu0
    %v1269 = vadd.f32 %v99, %v1268
    %v1270 = vpop.f32.mrb[0].mxu0
    %1271 = vmatprep.mubr.bf16.mxu0 0
    %1272 = vmatmul.mubr.bf16.gmra.mrb[0].mxu0 %v1221
    %v1273 = vpop.f32.mrb[0].mxu0
    %v1274 = vadd.f32 %v100, %v1273
    %v1275 = vpop.f32.mrb[0].mxu0
    %v1276 = vpop.f32.mrb[0].mxu0
    %v1277 = vpop.f32.mrb[0].mxu0
    %1278 = vdwg.mxu0
    %v1279 = vsel %vm650, %v1258, -inf
    %1280 = vmax.xlane.f32.xlu0 %v1279
    %v1281 = vpop.xlane.xlu0 %1280
    %v1282 = vsel %vm650, %v1261, -inf
    %1283 = vmax.xlane.f32.xlu0 %v1282
    %v1284 = vpop.xlane.xlu0 %1283
    %v1285 = vsel %vm650, %v1266, -inf
    %1286 = vmax.xlane.f32.xlu0 %v1285
    %v1287 = vpop.xlane.xlu0 %1286
    %v1288 = vsel %vm650, %v1269, -inf
    %1289 = vmax.xlane.f32.xlu0 %v1288
    %v1290 = vpop.xlane.xlu0 %1289
    %v1291 = vsel %vm663, %v1274, -inf
    %1292 = vmax.xlane.f32.xlu0 %v1291
    %v1293 = vpop.xlane.xlu0 %1292
    %v1294 = vsub.f32 %v1258, %v1281
    %v1295 = vsub.f32 %v1261, %v1284
    %v1296 = vsub.f32 %v1266, %v1287
    %v1297 = vsub.f32 %v1269, %v1290
    %v1298 = vsub.f32 %v1274, %v1293
    %v1299 = vmul.f32 %v1294, 1.442695
    %v1300 = vpow.pop %v1299
    %v1301 = vmul.f32 %v1295, 1.442695
    %v1302 = vpow.pop %v1301
    %v1303 = vmul.f32 %v1296, 1.442695
    %v1304 = vpow.pop %v1303
    %v1305 = vmul.f32 %v1297, 1.442695
    %v1306 = vpow.pop %v1305
    %v1307 = vmul.f32 %v1298, 1.442695
    %v1308 = vpow.pop %v1307
    %v1309 = vsel %vm650, %v1300, 0.0
    %1310 = vadd.xlane.f32.xlu0 %v1309
    %v1311 = vpop.xlane.xlu0 %1310
    %v1312 = vsel %vm650, %v1302, 0.0
    %1313 = vadd.xlane.f32.xlu0 %v1312
    %v1314 = vpop.xlane.xlu0 %1313
    %v1315 = vsel %vm650, %v1304, 0.0
    %1316 = vadd.xlane.f32.xlu0 %v1315
    %v1317 = vpop.xlane.xlu0 %1316
    %v1318 = vsel %vm650, %v1306, 0.0
    %1319 = vadd.xlane.f32.xlu0 %v1318
    %v1320 = vpop.xlane.xlu0 %1319
    %v1321 = vsel %vm663, %v1308, 0.0
    %1322 = vadd.xlane.f32.xlu0 %v1321
    %v1323 = vpop.xlane.xlu0 %1322
    %v1324 = vrcp.pop %v1311
    %v1325 = vrcp.pop %v1314
    %v1326 = vrcp.pop %v1317
    %v1327 = vrcp.pop %v1320
    %v1328 = vrcp.pop %v1323
    %v1329 = vmul.f32 %v1300, %v1324
    %v1330 = vmul.f32 %v1302, %v1325
    %v1331 = vmul.f32 %v1304, %v1326
    %v1332 = vmul.f32 %v1306, %v1327
    %v1333 = vmul.f32 %v1308, %v1328
    %v1334 = vpack.c.bf16 %v1330, %v1329
    %v1335 = vpack.c.bf16 %v1332, %v1331
    %v1336 = vpack.c.bf16 %v1333, %v1333
    %v1338 = vsel %vm650, %v1334, 0
    %v1341 = vsel %vm650, %v1335, 0
    %v1344 = vsel %vm650, %v1336, 0
    %v1347 = vsel %vm858, %v1213, 0
    %1349 = vmatprep.subr.bf16.mxu0 0
    %1350 = vmatpush1.bf16.msra.mxu0 %v1211
    %1351 = vmatprep.subr.bf16.mxu0 0
    %1352 = vmatpush1.bf16.msra.mxu0 %v1212
    %1353 = vmatprep.subr.bf16.mxu0 0
    %1354 = vmatpush1.bf16.msra.mxu0 %v1347
    %1355 = vmatprep.subr.bf16.mxu0 0
    %1356 = vmatpush1.bf16.msra.mxu0 0
    %1357 = vmatprep.subr.bf16.mxu0 0
    %1358 = vmatpush1.bf16.msra.mxu0 0
    %1359 = vmatprep.subr.bf16.mxu0 0
    %1360 = vmatpush1.bf16.msra.mxu0 0
    %1361 = vmatprep.subr.bf16.mxu0 0
    %1362 = vmatpush1.bf16.msra.mxu0 0
    %1363 = vmatprep.subr.bf16.mxu0 0
    %1364 = vmatpush1.bf16.msra.mxu0 0
    %1365 = vmatprep.subr.bf16.mxu0 0
    %1366 = vmatpush1.bf16.msra.mxu0 0
    %1367 = vmatprep.subr.bf16.mxu0 0
    %1368 = vmatpush1.bf16.msra.mxu0 0
    %1369 = vmatprep.subr.bf16.mxu0 0
    %1370 = vmatpush1.bf16.msra.mxu0 0
    %1371 = vmatprep.subr.bf16.mxu0 0
    %1372 = vmatpush1.bf16.msra.mxu0 0
    %1373 = vmatprep.subr.bf16.mxu0 0
    %1374 = vmatpush1.bf16.msra.mxu0 0
    %1375 = vmatprep.subr.bf16.mxu0 0
    %1376 = vmatpush1.bf16.msra.mxu0 0
    %1377 = vmatprep.subr.bf16.mxu0 0
    %1378 = vmatpush1.bf16.msra.mxu0 0
    %1379 = vmatprep.subr.bf16.mxu0 0
    %1380 = vmatpush1.bf16.msra.mxu0 0
    %1381 = vmatprep.mubr.bf16.mxu0 0
    %1382 = vmatmul.mubr.bf16.gmra.mrb[0].mxu0 %v1338
    %v1383 = vpop.f32.mrb[0].mxu0
    %v1384 = vadd.f32 0.0, %v1383
    %v1385 = vpop.f32.mrb[0].mxu0
    %v1386 = vpop.f32.mrb[0].mxu0
    %v1387 = vadd.f32 0.0, %v1386
    %v1388 = vpop.f32.mrb[0].mxu0
    %1389 = vmatprep.mubr.bf16.mxu0 0
    %1390 = vmatmul.mubr.bf16.gmra.mrb[0].mxu0 %v1341
    %v1391 = vpop.f32.mrb[0].mxu0
    %v1392 = vadd.f32 0.0, %v1391
    %v1393 = vpop.f32.mrb[0].mxu0
    %v1394 = vpop.f32.mrb[0].mxu0
    %v1395 = vadd.f32 0.0, %v1394
    %v1396 = vpop.f32.mrb[0].mxu0
    %1397 = vmatprep.mubr.bf16.mxu0 0
    %1398 = vmatmul.mubr.bf16.gmra.mrb[0].mxu0 %v1344
    %v1399 = vpop.f32.mrb[0].mxu0
    %v1400 = vadd.f32 0.0, %v1399
    %v1401 = vpop.f32.mrb[0].mxu0
    %v1402 = vpop.f32.mrb[0].mxu0
    %v1403 = vpop.f32.mrb[0].mxu0
    %1404 = vdwg.mxu0
    %v1405 = vadd.f32 %v1193, %v1384
    %v1406 = vadd.f32 %v1194, %v1387
    %v1407 = vadd.f32 %v1195, %v1392
    %v1408 = vadd.f32 %v1196, %v1395
    %v1409 = vadd.f32 %v1197, %v1400
    %v1410 = vpack.c.bf16 %v1406, %v1405
    %v1411 = vpack.c.bf16 %v1408, %v1407
    %v1412 = vpack.c.bf16 %v1409, %v1409
    %v1413 = vld [vmem:[%s4 + $0x10] sm:$0xf]
    %v1414 = vld [vmem:[%s4 + $0x14] sm:$0xf]
    %v1415 = vld [vmem:[%s4 + $0x18] sm:$0xf]
    %v1416 = vld [vmem:[%s4 + $0x1c] sm:$0xf]
    %v1417 = vlaneseq
    %v1418 = vshrl.u32 %v1417, 7
    %v1419 = vsub.s32 0, %v1418
    %v1420 = vrot.slane %v347, %v1419
    %v1425 = vunpack.c.l.b16 %v1413
    %v1426 = vunpack.c.l.b16 %v1414
    %v1427 = vunpack.c.l.b16 %v1415
    %v1428 = vunpack.c.l.b16 %v1416
    %v1429 = vpack.c.b16 %v1426, %v1425
    %v1430 = vpack.c.b16 %v1428, %v1427
    %v1434 = vsel %vm239, %v1410, 0
    %v1437 = vsel %vm239, %v1411, 0
    %v1440 = vsel %vm239, %v1412, 0
    %1442 = vmatprep.subr.bf16.mxu0 0
    %1443 = vmatpush1.bf16.msra.mxu0 %v1429
    %1444 = vmatprep.subr.bf16.mxu0 0
    %1445 = vmatpush1.bf16.msra.mxu0 %v1430
    %1446 = vmatprep.subr.bf16.mxu0 0
    %1447 = vmatpush1.bf16.msra.mxu0 0
    %1448 = vmatprep.subr.bf16.mxu0 0
    %1449 = vmatpush1.bf16.msra.mxu0 0
    %1450 = vmatprep.subr.bf16.mxu0 0
    %1451 = vmatpush1.bf16.msra.mxu0 0
    %1452 = vmatprep.subr.bf16.mxu0 0
    %1453 = vmatpush1.bf16.msra.mxu0 0
    %1454 = vmatprep.subr.bf16.mxu0 0
    %1455 = vmatpush1.bf16.msra.mxu0 0
    %1456 = vmatprep.subr.bf16.mxu0 0
    %1457 = vmatpush1.bf16.msra.mxu0 0
    %1458 = vmatprep.subr.bf16.mxu0 0
    %1459 = vmatpush1.bf16.msra.mxu0 0
    %1460 = vmatprep.subr.bf16.mxu0 0
    %1461 = vmatpush1.bf16.msra.mxu0 0
    %1462 = vmatprep.subr.bf16.mxu0 0
    %1463 = vmatpush1.bf16.msra.mxu0 0
    %1464 = vmatprep.subr.bf16.mxu0 0
    %1465 = vmatpush1.bf16.msra.mxu0 0
    %1466 = vmatprep.subr.bf16.mxu0 0
    %1467 = vmatpush1.bf16.msra.mxu0 0
    %1468 = vmatprep.subr.bf16.mxu0 0
    %1469 = vmatpush1.bf16.msra.mxu0 0
    %1470 = vmatprep.subr.bf16.mxu0 0
    %1471 = vmatpush1.bf16.msra.mxu0 0
    %1472 = vmatprep.subr.bf16.mxu0 0
    %1473 = vmatpush1.bf16.msra.mxu0 0
    %1474 = vmatprep.mubr.bf16.mxu0 0
    %1475 = vmatmul.mubr.bf16.gmra.mrb[0].mxu0 %v1434
    %v1476 = vpop.f32.mrb[0].mxu0
    %v1477 = vadd.f32 %v1420, %v1476
    %v1478 = vpop.f32.mrb[0].mxu0
    %v1479 = vpop.f32.mrb[0].mxu0
    %v1480 = vadd.f32 %v1420, %v1479
    %v1481 = vpop.f32.mrb[0].mxu0
    %1482 = vmatprep.mubr.bf16.mxu0 0
    %1483 = vmatmul.mubr.bf16.gmra.mrb[0].mxu0 %v1437
    %v1484 = vpop.f32.mrb[0].mxu0
    %v1485 = vadd.f32 %v1420, %v1484
    %v1486 = vpop.f32.mrb[0].mxu0
    %v1487 = vpop.f32.mrb[0].mxu0
    %v1488 = vadd.f32 %v1420, %v1487
    %v1489 = vpop.f32.mrb[0].mxu0
    %1490 = vmatprep.mubr.bf16.mxu0 0
    %1491 = vmatmul.mubr.bf16.gmra.mrb[0].mxu0 %v1440
    %v1492 = vpop.f32.mrb[0].mxu0
    %v1493 = vadd.f32 %v1420, %v1492
    %v1494 = vpop.f32.mrb[0].mxu0
    %v1495 = vpop.f32.mrb[0].mxu0
    %v1496 = vpop.f32.mrb[0].mxu0
    %1497 = vdwg.mxu0
    %v1498 = vlaneseq
    %v1499 = vshrl.u32 %v1498, 7
    %v1500 = vsub.s32 0, %v1499
    %v1501 = vrot.slane %v348, %v1500
    %v1502 = vmul.f32 %v1501, %v1477
    %v1503 = vmul.f32 %v1501, %v1480
    %v1504 = vmul.f32 %v1501, %v1485
    %v1505 = vmul.f32 %v1501, %v1488
    %v1506 = vmul.f32 %v1501, %v1493
    %v1507 = vadd.f32 %v322, %v1502
    %v1508 = vadd.f32 %v327, %v1503
    %v1509 = vadd.f32 %v332, %v1504
    %v1510 = vadd.f32 %v337, %v1505
    %v1511 = vadd.f32 %v342, %v1506
    %v1512 = vsel %vm239, %v1507, 0.0
    %1513 = vadd.xlane.f32.xlu0 %v1512
    %v1514 = vpop.xlane.xlu0 %1513
    %v1515 = vsel %vm239, %v1508, 0.0
    %1516 = vadd.xlane.f32.xlu0 %v1515
    %v1517 = vpop.xlane.xlu0 %1516
    %v1518 = vsel %vm239, %v1509, 0.0
    %1519 = vadd.xlane.f32.xlu0 %v1518
    %v1520 = vpop.xlane.xlu0 %1519
    %v1521 = vsel %vm239, %v1510, 0.0
    %1522 = vadd.xlane.f32.xlu0 %v1521
    %v1523 = vpop.xlane.xlu0 %1522
    %v1524 = vsel %vm366, %v1511, 0.0
    %1525 = vadd.xlane.f32.xlu0 %v1524
    %v1526 = vpop.xlane.xlu0 %1525
    %v1527 = vmul.f32 %v1514, %v370
    %v1528 = vmul.f32 %v1517, %v370
    %v1529 = vmul.f32 %v1520, %v370
    %v1530 = vmul.f32 %v1523, %v370
    %v1531 = vmul.f32 %v1526, %v370
    %v1532 = vsub.f32 %v1507, %v1527
    %v1533 = vsub.f32 %v1508, %v1528
    %v1534 = vsub.f32 %v1509, %v1529
    %v1535 = vsub.f32 %v1510, %v1530
    %v1536 = vsub.f32 %v1511, %v1531
    %v1537 = vmul.f32 %v1532, %v1532
    %v1538 = vmul.f32 %v1533, %v1533
    %v1539 = vmul.f32 %v1534, %v1534
    %v1540 = vmul.f32 %v1535, %v1535
    %v1541 = vmul.f32 %v1536, %v1536
    %v1542 = vsel %vm239, %v1537, 0.0
    %1543 = vadd.xlane.f32.xlu0 %v1542
    %v1544 = vpop.xlane.xlu0 %1543
    %v1545 = vsel %vm239, %v1538, 0.0
    %1546 = vadd.xlane.f32.xlu0 %v1545
    %v1547 = vpop.xlane.xlu0 %1546
    %v1548 = vsel %vm239, %v1539, 0.0
    %1549 = vadd.xlane.f32.xlu0 %v1548
    %v1550 = vpop.xlane.xlu0 %1549
    %v1551 = vsel %vm239, %v1540, 0.0
    %1552 = vadd.xlane.f32.xlu0 %v1551
    %v1553 = vpop.xlane.xlu0 %1552
    %v1554 = vsel %vm366, %v1541, 0.0
    %1555 = vadd.xlane.f32.xlu0 %v1554
    %v1556 = vpop.xlane.xlu0 %1555
    %v1557 = vmul.f32 %v1544, %v370
    %v1558 = vmul.f32 %v1547, %v370
    %v1559 = vmul.f32 %v1550, %v370
    %v1560 = vmul.f32 %v1553, %v370
    %v1561 = vmul.f32 %v1556, %v370
    %v1562 = vadd.f32 %v1557, 1e-06
    %v1563 = vadd.f32 %v1558, 1e-06
    %v1564 = vadd.f32 %v1559, 1e-06
    %v1565 = vadd.f32 %v1560, 1e-06
    %v1566 = vadd.f32 %v1561, 1e-06
    %v1567 = vrsqrt.pop %v1562
    %v1568 = vrsqrt.pop %v1563
    %v1569 = vrsqrt.pop %v1564
    %v1570 = vrsqrt.pop %v1565
    %v1571 = vrsqrt.pop %v1566
    %v1572 = vmul.f32 %v1532, %v1567
    %v1573 = vmul.f32 %v1533, %v1568
    %v1574 = vmul.f32 %v1534, %v1569
    %v1575 = vmul.f32 %v1535, %v1570
    %v1576 = vmul.f32 %v1536, %v1571
    %v1577 = vlaneseq
    %v1578 = vshrl.u32 %v1577, 7
    %v1579 = vsub.s32 0, %v1578
    %v1580 = vrot.slane %v349, %v1579
    %v1581 = vmul.f32 %v1572, %v1580
    %v1582 = vmul.f32 %v1573, %v1580
    %v1583 = vmul.f32 %v1574, %v1580
    %v1584 = vmul.f32 %v1575, %v1580
    %v1585 = vmul.f32 %v1576, %v1580
    %v1586 = vlaneseq
    %v1587 = vshrl.u32 %v1586, 7
    %v1588 = vsub.s32 0, %v1587
    %v1589 = vrot.slane %v350, %v1588
    %v1590 = vadd.f32 %v1581, %v1589
    %v1591 = vadd.f32 %v1582, %v1589
    %v1592 = vadd.f32 %v1583, %v1589
    %v1593 = vadd.f32 %v1584, %v1589
    %v1594 = vadd.f32 %v1585, %v1589
    %v1595 = vpack.c.bf16 %v1591, %v1590
    %v1596 = vpack.c.bf16 %v1593, %v1592
    %v1597 = vpack.c.bf16 %v1594, %v1594
    %v1598 = vld [vmem:[%s4 + $0x20] sm:$0xf]
    %v1599 = vld [vmem:[%s4 + $0x24] sm:$0xf]
    %v1600 = vld [vmem:[%s4 + $0x28] sm:$0xf]
    %v1601 = vld [vmem:[%s4 + $0x2c] sm:$0xf]
    %v1602 = vlaneseq
    %v1603 = vshrl.u32 %v1602, 7
    %v1604 = vsub.s32 0, %v1603
    %v1605 = vrot.slane %v353, %v1604
    %v1610 = vunpack.c.l.b16 %v1598
    %v1611 = vunpack.c.l.b16 %v1599
    %v1612 = vunpack.c.l.b16 %v1600
    %v1613 = vunpack.c.l.b16 %v1601
    %v1614 = vpack.c.b16 %v1611, %v1610
    %v1615 = vpack.c.b16 %v1613, %v1612
    %v1619 = vsel %vm239, %v1595, 0
    %v1622 = vsel %vm239, %v1596, 0
    %v1625 = vsel %vm239, %v1597, 0
    %1627 = vmatprep.subr.bf16.mxu0 0
    %1628 = vmatpush1.bf16.msra.mxu0 %v1614
    %1629 = vmatprep.subr.bf16.mxu0 0
    %1630 = vmatpush1.bf16.msra.mxu0 %v1615
    %1631 = vmatprep.subr.bf16.mxu0 0
    %1632 = vmatpush1.bf16.msra.mxu0 0
    %1633 = vmatprep.subr.bf16.mxu0 0
    %1634 = vmatpush1.bf16.msra.mxu0 0
    %1635 = vmatprep.subr.bf16.mxu0 0
    %1636 = vmatpush1.bf16.msra.mxu0 0
    %1637 = vmatprep.subr.bf16.mxu0 0
    %1638 = vmatpush1.bf16.msra.mxu0 0
    %1639 = vmatprep.subr.bf16.mxu0 0
    %1640 = vmatpush1.bf16.msra.mxu0 0
    %1641 = vmatprep.subr.bf16.mxu0 0
    %1642 = vmatpush1.bf16.msra.mxu0 0
    %1643 = vmatprep.subr.bf16.mxu0 0
    %1644 = vmatpush1.bf16.msra.mxu0 0
    %1645 = vmatprep.subr.bf16.mxu0 0
    %1646 = vmatpush1.bf16.msra.mxu0 0
    %1647 = vmatprep.subr.bf16.mxu0 0
    %1648 = vmatpush1.bf16.msra.mxu0 0
    %1649 = vmatprep.subr.bf16.mxu0 0
    %1650 = vmatpush1.bf16.msra.mxu0 0
    %1651 = vmatprep.subr.bf16.mxu0 0
    %1652 = vmatpush1.bf16.msra.mxu0 0
    %1653 = vmatprep.subr.bf16.mxu0 0
    %1654 = vmatpush1.bf16.msra.mxu0 0
    %1655 = vmatprep.subr.bf16.mxu0 0
    %1656 = vmatpush1.bf16.msra.mxu0 0
    %1657 = vmatprep.subr.bf16.mxu0 0
    %1658 = vmatpush1.bf16.msra.mxu0 0
    %1659 = vmatprep.mubr.bf16.mxu0 0
    %1660 = vmatmul.mubr.bf16.gmra.mrb[0].mxu0 %v1619
    %v1661 = vpop.f32.mrb[0].mxu0
    %v1662 = vadd.f32 %v1605, %v1661
    %v1663 = vpop.f32.mrb[0].mxu0
    %v1664 = vpop.f32.mrb[0].mxu0
    %v1665 = vadd.f32 %v1605, %v1664
    %v1666 = vpop.f32.mrb[0].mxu0
    %1667 = vmatprep.mubr.bf16.mxu0 0
    %1668 = vmatmul.mubr.bf16.gmra.mrb[0].mxu0 %v1622
    %v1669 = vpop.f32.mrb[0].mxu0
    %v1670 = vadd.f32 %v1605, %v1669
    %v1671 = vpop.f32.mrb[0].mxu0
    %v1672 = vpop.f32.mrb[0].mxu0
    %v1673 = vadd.f32 %v1605, %v1672
    %v1674 = vpop.f32.mrb[0].mxu0
    %1675 = vmatprep.mubr.bf16.mxu0 0
    %1676 = vmatmul.mubr.bf16.gmra.mrb[0].mxu0 %v1625
    %v1677 = vpop.f32.mrb[0].mxu0
    %v1678 = vadd.f32 %v1605, %v1677
    %v1679 = vpop.f32.mrb[0].mxu0
    %v1680 = vpop.f32.mrb[0].mxu0
    %v1681 = vpop.f32.mrb[0].mxu0
    %1682 = vdwg.mxu0
    %v1683 = vmul.f32 %v1662, 0.5
    %v1684 = vmul.f32 %v1665, 0.5
    %v1685 = vmul.f32 %v1670, 0.5
    %v1686 = vmul.f32 %v1673, 0.5
    %v1687 = vmul.f32 %v1678, 0.5
    %v1688 = vmul.f32 %v1662, 0.70710677
    %v1689 = vmul.f32 %v1665, 0.70710677
    %v1690 = vmul.f32 %v1670, 0.70710677
    %v1691 = vmul.f32 %v1673, 0.70710677
    %v1692 = vmul.f32 %v1678, 0.70710677
    %v1693 = vand.u32 2147483647, %v1688
    %v1694 = vand.u32 2147483647, %v1689
    %v1695 = vand.u32 2147483647, %v1690
    %v1696 = vand.u32 2147483647, %v1691
    %v1697 = vand.u32 2147483647, %v1692
    %v1698 = vmul.f32 %v1693, 0.3275911
    %v1699 = vmul.f32 %v1694, 0.3275911
    %v1700 = vmul.f32 %v1695, 0.3275911
    %v1701 = vmul.f32 %v1696, 0.3275911
    %v1702 = vmul.f32 %v1697, 0.3275911
    %v1703 = vadd.f32 %v1698, 1.0
    %v1704 = vadd.f32 %v1699, 1.0
    %v1705 = vadd.f32 %v1700, 1.0
    %v1706 = vadd.f32 %v1701, 1.0
    %v1707 = vadd.f32 %v1702, 1.0
    %v1708 = vrcp.pop %v1703
    %v1709 = vmul.f32 1.0, %v1708
    %v1710 = vrcp.pop %v1704
    %v1711 = vmul.f32 1.0, %v1710
    %v1712 = vrcp.pop %v1705
    %v1713 = vmul.f32 1.0, %v1712
    %v1714 = vrcp.pop %v1706
    %v1715 = vmul.f32 1.0, %v1714
    %v1716 = vrcp.pop %v1707
    %v1717 = vmul.f32 1.0, %v1716
    %v1718 = vmul.f32 %v1709, 1.0614054
    %v1719 = vmul.f32 %v1711, 1.0614054
    %v1720 = vmul.f32 %v1713, 1.0614054
    %v1721 = vmul.f32 %v1715, 1.0614054
    %v1722 = vmul.f32 %v1717, 1.0614054
    %v1723 = vadd.f32 %v1718, -1.4531521
    %v1724 = vadd.f32 %v1719, -1.4531521
    %v1725 = vadd.f32 %v1720, -1.4531521
    %v1726 = vadd.f32 %v1721, -1.4531521
    %v1727 = vadd.f32 %v1722, -1.4531521
    %v1728 = vmul.f32 %v1709, %v1723
    %v1729 = vmul.f32 %v1711, %v1724
    %v1730 = vmul.f32 %v1713, %v1725
    %v1731 = vmul.f32 %v1715, %v1726
    %v1732 = vmul.f32 %v1717, %v1727
    %v1733 = vadd.f32 %v1728, 1.4214138
    %v1734 = vadd.f32 %v1729, 1.4214138
    %v1735 = vadd.f32 %v1730, 1.4214138
    %v1736 = vadd.f32 %v1731, 1.4214138
    %v1737 = vadd.f32 %v1732, 1.4214138
    %v1738 = vmul.f32 %v1709, %v1733
    %v1739 = vmul.f32 %v1711, %v1734
    %v1740 = vmul.f32 %v1713, %v1735
    %v1741 = vmul.f32 %v1715, %v1736
    %v1742 = vmul.f32 %v1717, %v1737
    %v1743 = vadd.f32 %v1738, -0.28449672
    %v1744 = vadd.f32 %v1739, -0.28449672
    %v1745 = vadd.f32 %v1740, -0.28449672
    %v1746 = vadd.f32 %v1741, -0.28449672
    %v1747 = vadd.f32 %v1742, -0.28449672
    %v1748 = vmul.f32 %v1709, %v1743
    %v1749 = vmul.f32 %v1711, %v1744
    %v1750 = vmul.f32 %v1713, %v1745
    %v1751 = vmul.f32 %v1715, %v1746
    %v1752 = vmul.f32 %v1717, %v1747
    %v1753 = vadd.f32 %v1748, 0.2548296
    %v1754 = vadd.f32 %v1749, 0.2548296
    %v1755 = vadd.f32 %v1750, 0.2548296
    %v1756 = vadd.f32 %v1751, 0.2548296
    %v1757 = vadd.f32 %v1752, 0.2548296
    %v1758 = vmul.f32 %v1709, %v1753
    %v1759 = vmul.f32 %v1711, %v1754
    %v1760 = vmul.f32 %v1713, %v1755
    %v1761 = vmul.f32 %v1715, %v1756
    %v1762 = vmul.f32 %v1717, %v1757
    %v1763 = vsub.f32 0.0, %v1693
    %v1764 = vsub.f32 0.0, %v1694
    %v1765 = vsub.f32 0.0, %v1695
    %v1766 = vsub.f32 0.0, %v1696
    %v1767 = vsub.f32 0.0, %v1697
    %v1768 = vmul.f32 %v1763, %v1693
    %v1769 = vmul.f32 %v1764, %v1694
    %v1770 = vmul.f32 %v1765, %v1695
    %v1771 = vmul.f32 %v1766, %v1696
    %v1772 = vmul.f32 %v1767, %v1697
    %v1773 = vmul.f32 %v1768, 1.442695
    %v1774 = vpow.pop %v1773
    %v1775 = vmul.f32 %v1769, 1.442695
    %v1776 = vpow.pop %v1775
    %v1777 = vmul.f32 %v1770, 1.442695
    %v1778 = vpow.pop %v1777
    %v1779 = vmul.f32 %v1771, 1.442695
    %v1780 = vpow.pop %v1779
    %v1781 = vmul.f32 %v1772, 1.442695
    %v1782 = vpow.pop %v1781
    %v1783 = vmul.f32 %v1758, %v1774
    %v1784 = vmul.f32 %v1759, %v1776
    %v1785 = vmul.f32 %v1760, %v1778
    %v1786 = vmul.f32 %v1761, %v1780
    %v1787 = vmul.f32 %v1762, %v1782
    %v1788 = vsub.f32 1.0, %v1783
    %v1789 = vsub.f32 1.0, %v1784
    %v1790 = vsub.f32 1.0, %v1785
    %v1791 = vsub.f32 1.0, %v1786
    %v1792 = vsub.f32 1.0, %v1787
    %vm1793 = vcmp.lt.f32.partialorder %v1688, 0.0
    %vm1794 = vcmp.lt.f32.partialorder %v1689, 0.0
    %vm1795 = vcmp.lt.f32.partialorder %v1690, 0.0
    %vm1796 = vcmp.lt.f32.partialorder %v1691, 0.0
    %vm1797 = vcmp.lt.f32.partialorder %v1692, 0.0
    %v1798 = vsub.f32 0.0, %v1788
    %v1799 = vsub.f32 0.0, %v1789
    %v1800 = vsub.f32 0.0, %v1790
    %v1801 = vsub.f32 0.0, %v1791
    %v1802 = vsub.f32 0.0, %v1792
    %v1803 = vsel %vm1793, %v1798, %v1788
    %v1804 = vsel %vm1794, %v1799, %v1789
    %v1805 = vsel %vm1795, %v1800, %v1790
    %v1806 = vsel %vm1796, %v1801, %v1791
    %v1807 = vsel %vm1797, %v1802, %v1792
    %v1808 = vadd.f32 %v1803, 1.0
    %v1809 = vadd.f32 %v1804, 1.0
    %v1810 = vadd.f32 %v1805, 1.0
    %v1811 = vadd.f32 %v1806, 1.0
    %v1812 = vadd.f32 %v1807, 1.0
    %v1813 = vmul.f32 %v1683, %v1808
    %v1814 = vmul.f32 %v1684, %v1809
    %v1815 = vmul.f32 %v1685, %v1810
    %v1816 = vmul.f32 %v1686, %v1811
    %v1817 = vmul.f32 %v1687, %v1812
    %v1818 = vpack.c.bf16 %v1814, %v1813
    %v1819 = vpack.c.bf16 %v1816, %v1815
    %v1820 = vpack.c.bf16 %v1817, %v1817
    %v1821 = vld [vmem:[%s5] sm:$0xf]
    %v1822 = vld [vmem:[%s5 + $0x4] sm:$0xf]
    %v1823 = vld [vmem:[%s5 + $0x8] sm:$0xf]
    %v1824 = vld [vmem:[%s5 + $0xc] sm:$0xf]
    %v1825 = vld [vmem:[%s5 + $0x10] sm:$0xf]
    %v1826 = vld [vmem:[%s5 + $0x14] sm:$0xf]
    %v1827 = vld [vmem:[%s5 + $0x18] sm:$0xf]
    %v1828 = vld [vmem:[%s5 + $0x1c] sm:$0xf]
    %v1829 = vld [vmem:[%s5 + $0x20] sm:$0xf]
    %v1830 = vld [vmem:[%s5 + $0x24] sm:$0xf]
    %v1831 = vld [vmem:[%s5 + $0x28] sm:$0xf]
    %v1832 = vld [vmem:[%s5 + $0x2c] sm:$0xf]
    %v1833 = vld [vmem:[%s5 + $0x30] sm:$0xf]
    %v1834 = vld [vmem:[%s5 + $0x34] sm:$0xf]
    %v1835 = vld [vmem:[%s5 + $0x38] sm:$0xf]
    %v1836 = vld [vmem:[%s5 + $0x3c] sm:$0xf]
    %v1837 = vlaneseq
    %v1838 = vshrl.u32 %v1837, 7
    %v1839 = vsub.s32 0, %v1838
    %v1840 = vrot.slane %v351, %v1839
    %v1857 = vunpack.c.l.b16 %v1821
    %v1858 = vunpack.c.l.b16 %v1822
    %v1859 = vunpack.c.l.b16 %v1823
    %v1860 = vunpack.c.l.b16 %v1824
    %v1861 = vunpack.c.l.b16 %v1825
    %v1862 = vunpack.c.l.b16 %v1826
    %v1863 = vunpack.c.l.b16 %v1827
    %v1864 = vunpack.c.l.b16 %v1828
    %v1865 = vunpack.c.l.b16 %v1829
    %v1866 = vunpack.c.l.b16 %v1830
    %v1867 = vunpack.c.l.b16 %v1831
    %v1868 = vunpack.c.l.b16 %v1832
    %v1869 = vunpack.c.l.b16 %v1833
    %v1870 = vunpack.c.l.b16 %v1834
    %v1871 = vunpack.c.l.b16 %v1835
    %v1872 = vunpack.c.l.b16 %v1836
    %v1873 = vpack.c.b16 %v1858, %v1857
    %v1874 = vpack.c.b16 %v1860, %v1859
    %v1875 = vpack.c.b16 %v1862, %v1861
    %v1876 = vpack.c.b16 %v1864, %v1863
    %v1877 = vpack.c.b16 %v1866, %v1865
    %v1878 = vpack.c.b16 %v1868, %v1867
    %v1879 = vpack.c.b16 %v1870, %v1869
    %v1880 = vpack.c.b16 %v1872, %v1871
    %1889 = vmatprep.subr.bf16.mxu0 0
    %1890 = vmatpush1.bf16.msra.mxu0 %v1873
    %1891 = vmatprep.subr.bf16.mxu0 0
    %1892 = vmatpush1.bf16.msra.mxu0 %v1874
    %1893 = vmatprep.subr.bf16.mxu0 0
    %1894 = vmatpush1.bf16.msra.mxu0 %v1875
    %1895 = vmatprep.subr.bf16.mxu0 0
    %1896 = vmatpush1.bf16.msra.mxu0 %v1876
    %1897 = vmatprep.subr.bf16.mxu0 0
    %1898 = vmatpush1.bf16.msra.mxu0 %v1877
    %1899 = vmatprep.subr.bf16.mxu0 0
    %1900 = vmatpush1.bf16.msra.mxu0 %v1878
    %1901 = vmatprep.subr.bf16.mxu0 0
    %1902 = vmatpush1.bf16.msra.mxu0 %v1879
    %1903 = vmatprep.subr.bf16.mxu0 0
    %1904 = vmatpush1.bf16.msra.mxu0 %v1880
    %1905 = vmatprep.subr.bf16.mxu0 0
    %1906 = vmatpush1.bf16.msra.mxu0 0
    %1907 = vmatprep.subr.bf16.mxu0 0
    %1908 = vmatpush1.bf16.msra.mxu0 0
    %1909 = vmatprep.subr.bf16.mxu0 0
    %1910 = vmatpush1.bf16.msra.mxu0 0
    %1911 = vmatprep.subr.bf16.mxu0 0
    %1912 = vmatpush1.bf16.msra.mxu0 0
    %1913 = vmatprep.subr.bf16.mxu0 0
    %1914 = vmatpush1.bf16.msra.mxu0 0
    %1915 = vmatprep.subr.bf16.mxu0 0
    %1916 = vmatpush1.bf16.msra.mxu0 0
    %1917 = vmatprep.subr.bf16.mxu0 0
    %1918 = vmatpush1.bf16.msra.mxu0 0
    %1919 = vmatprep.subr.bf16.mxu0 0
    %1920 = vmatpush1.bf16.msra.mxu0 0
    %1921 = vmatprep.mubr.bf16.mxu0 0
    %1922 = vmatmul.mubr.bf16.gmra.mrb[0].mxu0 %v1818
    %v1923 = vpop.f32.mrb[0].mxu0
    %v1924 = vadd.f32 %v1840, %v1923
    %v1925 = vpop.f32.mrb[0].mxu0
    %v1926 = vpop.f32.mrb[0].mxu0
    %v1927 = vadd.f32 %v1840, %v1926
    %v1928 = vpop.f32.mrb[0].mxu0
    %1929 = vmatprep.mubr.bf16.mxu0 0
    %1930 = vmatmul.mubr.bf16.gmra.mrb[0].mxu0 %v1819
    %v1931 = vpop.f32.mrb[0].mxu0
    %v1932 = vadd.f32 %v1840, %v1931
    %v1933 = vpop.f32.mrb[0].mxu0
    %v1934 = vpop.f32.mrb[0].mxu0
    %v1935 = vadd.f32 %v1840, %v1934
    %v1936 = vpop.f32.mrb[0].mxu0
    %1937 = vmatprep.mubr.bf16.mxu0 0
    %1938 = vmatmul.mubr.bf16.gmra.mrb[0].mxu0 %v1820
    %v1939 = vpop.f32.mrb[0].mxu0
    %v1940 = vadd.f32 %v1840, %v1939
    %v1941 = vpop.f32.mrb[0].mxu0
    %v1942 = vpop.f32.mrb[0].mxu0
    %v1943 = vpop.f32.mrb[0].mxu0
    %1944 = vdwg.mxu0
    %v1945 = vlaneseq
    %v1946 = vshrl.u32 %v1945, 7
    %v1947 = vsub.s32 0, %v1946
    %v1948 = vrot.slane %v352, %v1947
    %v1949 = vmul.f32 %v1948, %v1924
    %v1950 = vmul.f32 %v1948, %v1927
    %v1951 = vmul.f32 %v1948, %v1932
    %v1952 = vmul.f32 %v1948, %v1935
    %v1953 = vmul.f32 %v1948, %v1940
    %v1954 = vadd.f32 %v1507, %v1949
    %v1955 = vadd.f32 %v1508, %v1950
    %v1956 = vadd.f32 %v1509, %v1951
    %v1957 = vadd.f32 %v1510, %v1952
    %v1958 = vadd.f32 %v1511, %v1953
    %s1959 = scalar_lea.vmem %s6, 16
    %v1960 = vld [vmem:[%s1959] sm:$0x1]
    %v1961 = vld [vmem:[%s1959 + $0x1] sm:$0x1]
    %v1962 = vld [vmem:[%s1959 + $0x2] sm:$0x1]
    %v1963 = vld [vmem:[%s1959 + $0x3] sm:$0x1]
    %v1964 = vld [vmem:[%s1959 + $0x4] sm:$0x1]
    %v1965 = vld [vmem:[%s1959 + $0x5] sm:$0x1]
    %v1966 = vld [vmem:[%s1959 + $0x6] sm:$0x1]
    %v1967 = vld [vmem:[%s1959 + $0x7] sm:$0x1]
    %v1968 = vld [vmem:[%s1959 + $0x8] sm:$0x1]
    %v1969 = vsel %vm239, %v1954, 0.0
    %1970 = vadd.xlane.f32.xlu0 %v1969
    %v1971 = vpop.xlane.xlu0 %1970
    %v1972 = vsel %vm239, %v1955, 0.0
    %1973 = vadd.xlane.f32.xlu0 %v1972
    %v1974 = vpop.xlane.xlu0 %1973
    %v1975 = vsel %vm239, %v1956, 0.0
    %1976 = vadd.xlane.f32.xlu0 %v1975
    %v1977 = vpop.xlane.xlu0 %1976
    %v1978 = vsel %vm239, %v1957, 0.0
    %1979 = vadd.xlane.f32.xlu0 %v1978
    %v1980 = vpop.xlane.xlu0 %1979
    %v1981 = vsel %vm366, %v1958, 0.0
    %1982 = vadd.xlane.f32.xlu0 %v1981
    %v1983 = vpop.xlane.xlu0 %1982
    %v1984 = vmul.f32 %v1971, %v370
    %v1985 = vmul.f32 %v1974, %v370
    %v1986 = vmul.f32 %v1977, %v370
    %v1987 = vmul.f32 %v1980, %v370
    %v1988 = vmul.f32 %v1983, %v370
    %v1989 = vsub.f32 %v1954, %v1984
    %v1990 = vsub.f32 %v1955, %v1985
    %v1991 = vsub.f32 %v1956, %v1986
    %v1992 = vsub.f32 %v1957, %v1987
    %v1993 = vsub.f32 %v1958, %v1988
    %v1994 = vmul.f32 %v1989, %v1989
    %v1995 = vmul.f32 %v1990, %v1990
    %v1996 = vmul.f32 %v1991, %v1991
    %v1997 = vmul.f32 %v1992, %v1992
    %v1998 = vmul.f32 %v1993, %v1993
    %v1999 = vsel %vm239, %v1994, 0.0
    %2000 = vadd.xlane.f32.xlu0 %v1999
    %v2001 = vpop.xlane.xlu0 %2000
    %v2002 = vsel %vm239, %v1995, 0.0
    %2003 = vadd.xlane.f32.xlu0 %v2002
    %v2004 = vpop.xlane.xlu0 %2003
    %v2005 = vsel %vm239, %v1996, 0.0
    %2006 = vadd.xlane.f32.xlu0 %v2005
    %v2007 = vpop.xlane.xlu0 %2006
    %v2008 = vsel %vm239, %v1997, 0.0
    %2009 = vadd.xlane.f32.xlu0 %v2008
    %v2010 = vpop.xlane.xlu0 %2009
    %v2011 = vsel %vm366, %v1998, 0.0
    %2012 = vadd.xlane.f32.xlu0 %v2011
    %v2013 = vpop.xlane.xlu0 %2012
    %v2014 = vmul.f32 %v2001, %v370
    %v2015 = vmul.f32 %v2004, %v370
    %v2016 = vmul.f32 %v2007, %v370
    %v2017 = vmul.f32 %v2010, %v370
    %v2018 = vmul.f32 %v2013, %v370
    %v2019 = vadd.f32 %v2014, 1e-06
    %v2020 = vadd.f32 %v2015, 1e-06
    %v2021 = vadd.f32 %v2016, 1e-06
    %v2022 = vadd.f32 %v2017, 1e-06
    %v2023 = vadd.f32 %v2018, 1e-06
    %v2024 = vrsqrt.pop %v2019
    %v2025 = vrsqrt.pop %v2020
    %v2026 = vrsqrt.pop %v2021
    %v2027 = vrsqrt.pop %v2022
    %v2028 = vrsqrt.pop %v2023
    %v2029 = vmul.f32 %v1989, %v2024
    %v2030 = vmul.f32 %v1990, %v2025
    %v2031 = vmul.f32 %v1991, %v2026
    %v2032 = vmul.f32 %v1992, %v2027
    %v2033 = vmul.f32 %v1993, %v2028
    %v2034 = vlaneseq
    %v2035 = vshrl.u32 %v2034, 7
    %v2036 = vsub.s32 0, %v2035
    %v2037 = vrot.slane %v1960, %v2036
    %v2038 = vmul.f32 %v2029, %v2037
    %v2039 = vmul.f32 %v2030, %v2037
    %v2040 = vmul.f32 %v2031, %v2037
    %v2041 = vmul.f32 %v2032, %v2037
    %v2042 = vmul.f32 %v2033, %v2037
    %v2043 = vlaneseq
    %v2044 = vshrl.u32 %v2043, 7
    %v2045 = vsub.s32 0, %v2044
    %v2046 = vrot.slane %v1961, %v2045
    %v2047 = vadd.f32 %v2038, %v2046
    %v2048 = vadd.f32 %v2039, %v2046
    %v2049 = vadd.f32 %v2040, %v2046
    %v2050 = vadd.f32 %v2041, %v2046
    %v2051 = vadd.f32 %v2042, %v2046
    %v2052 = vpack.c.bf16 %v2048, %v2047
    %v2053 = vpack.c.bf16 %v2050, %v2049
    %v2054 = vpack.c.bf16 %v2051, %v2051
    %s2055 = scalar_lea.vmem %s4, 48
    %v2056 = vld [vmem:[%s2055] sm:$0xf]
    %v2057 = vld [vmem:[%s2055 + $0x4] sm:$0xf]
    %v2058 = vld [vmem:[%s2055 + $0x8] sm:$0xf]
    %v2059 = vld [vmem:[%s2055 + $0xc] sm:$0xf]
    %v2064 = vunpack.c.l.b16 %v2056
    %v2065 = vunpack.c.l.b16 %v2057
    %v2066 = vunpack.c.l.b16 %v2058
    %v2067 = vunpack.c.l.b16 %v2059
    %v2068 = vpack.c.b16 %v2065, %v2064
    %v2069 = vpack.c.b16 %v2067, %v2066
    %v2073 = vsel %vm239, %v2052, 0
    %v2076 = vsel %vm239, %v2053, 0
    %v2079 = vsel %vm239, %v2054, 0
    %2081 = vmatprep.subr.bf16.mxu0 0
    %2082 = vmatpush1.bf16.msra.mxu0 %v2068
    %2083 = vmatprep.subr.bf16.mxu0 0
    %2084 = vmatpush1.bf16.msra.mxu0 %v2069
    %2085 = vmatprep.subr.bf16.mxu0 0
    %2086 = vmatpush1.bf16.msra.mxu0 0
    %2087 = vmatprep.subr.bf16.mxu0 0
    %2088 = vmatpush1.bf16.msra.mxu0 0
    %2089 = vmatprep.subr.bf16.mxu0 0
    %2090 = vmatpush1.bf16.msra.mxu0 0
    %2091 = vmatprep.subr.bf16.mxu0 0
    %2092 = vmatpush1.bf16.msra.mxu0 0
    %2093 = vmatprep.subr.bf16.mxu0 0
    %2094 = vmatpush1.bf16.msra.mxu0 0
    %2095 = vmatprep.subr.bf16.mxu0 0
    %2096 = vmatpush1.bf16.msra.mxu0 0
    %2097 = vmatprep.subr.bf16.mxu0 0
    %2098 = vmatpush1.bf16.msra.mxu0 0
    %2099 = vmatprep.subr.bf16.mxu0 0
    %2100 = vmatpush1.bf16.msra.mxu0 0
    %2101 = vmatprep.subr.bf16.mxu0 0
    %2102 = vmatpush1.bf16.msra.mxu0 0
    %2103 = vmatprep.subr.bf16.mxu0 0
    %2104 = vmatpush1.bf16.msra.mxu0 0
    %2105 = vmatprep.subr.bf16.mxu0 0
    %2106 = vmatpush1.bf16.msra.mxu0 0
    %2107 = vmatprep.subr.bf16.mxu0 0
    %2108 = vmatpush1.bf16.msra.mxu0 0
    %2109 = vmatprep.subr.bf16.mxu0 0
    %2110 = vmatpush1.bf16.msra.mxu0 0
    %2111 = vmatprep.subr.bf16.mxu0 0
    %2112 = vmatpush1.bf16.msra.mxu0 0
    %2113 = vmatprep.mubr.bf16.mxu0 0
    %2114 = vmatmul.mubr.bf16.gmra.mrb[0].mxu0 %v2073
    %v2115 = vpop.f32.mrb[0].mxu0
    %v2116 = vadd.f32 0.0, %v2115
    %v2117 = vpop.f32.mrb[0].mxu0
    %v2118 = vpop.f32.mrb[0].mxu0
    %v2119 = vadd.f32 0.0, %v2118
    %v2120 = vpop.f32.mrb[0].mxu0
    %2121 = vmatprep.mubr.bf16.mxu0 0
    %2122 = vmatmul.mubr.bf16.gmra.mrb[0].mxu0 %v2076
    %v2123 = vpop.f32.mrb[0].mxu0
    %v2124 = vadd.f32 0.0, %v2123
    %v2125 = vpop.f32.mrb[0].mxu0
    %v2126 = vpop.f32.mrb[0].mxu0
    %v2127 = vadd.f32 0.0, %v2126
    %v2128 = vpop.f32.mrb[0].mxu0
    %2129 = vmatprep.mubr.bf16.mxu0 0
    %2130 = vmatmul.mubr.bf16.gmra.mrb[0].mxu0 %v2079
    %v2131 = vpop.f32.mrb[0].mxu0
    %v2132 = vadd.f32 0.0, %v2131
    %v2133 = vpop.f32.mrb[0].mxu0
    %v2134 = vpop.f32.mrb[0].mxu0
    %v2135 = vpop.f32.mrb[0].mxu0
    %2136 = vdwg.mxu0
    %v2137 = vmul.f32 %v2116, 0.35355338
    %v2138 = vmul.f32 %v2119, 0.35355338
    %v2139 = vmul.f32 %v2124, 0.35355338
    %v2140 = vmul.f32 %v2127, 0.35355338
    %v2141 = vmul.f32 %v2132, 0.35355338
    %v2142 = vpack.c.bf16 %v2119, %v2116
    %v2143 = vpack.c.bf16 %v2127, %v2124
    %v2144 = vpack.c.bf16 %v2132, %v2132
    %v2145 = vsel %vm133, %v2137, 0.0
    %v2146 = vsel %vm133, %v2138, 0.0
    %v2147 = vsel %vm133, %v2139, 0.0
    %v2148 = vsel %vm133, %v2140, 0.0
    %v2149 = vsel %vm133, %v2141, 0.0
    %v2150 = vpack.c.bf16 %v2146, %v2145
    %v2151 = vpack.c.bf16 %v2148, %v2147
    %v2152 = vpack.c.bf16 %v2149, %v2149
    %2158 = vrot.lane.b32.xlu0 %v2116, 64
    %v2159 = vpop.permute.xlu0 %2158
    %2160 = vrot.lane.b32.xlu0 %v2119, 64
    %v2161 = vpop.permute.xlu0 %2160
    %2162 = vrot.lane.b32.xlu0 %v2124, 64
    %v2163 = vpop.permute.xlu0 %2162
    %2164 = vrot.lane.b32.xlu0 %v2127, 64
    %v2165 = vpop.permute.xlu0 %2164
    %2166 = vrot.lane.b32.xlu0 %v2132, 64
    %v2167 = vpop.permute.xlu0 %2166
    %v2173 = vsel %vm133, %v2159, 0.0
    %v2174 = vsel %vm133, %v2161, 0.0
    %v2175 = vsel %vm133, %v2163, 0.0
    %v2176 = vsel %vm133, %v2165, 0.0
    %v2177 = vsel %vm133, %v2167, 0.0
    %v2178 = vpack.c.bf16 %v2174, %v2173
    %v2179 = vpack.c.bf16 %v2176, %v2175
    %v2180 = vpack.c.bf16 %v2177, %v2177
    %2184 = vrot.lane.b32.xlu0 %v2142, 96
    %v2185 = vpop.permute.xlu0 %2184
    %2186 = vrot.lane.b32.xlu0 %v2143, 96
    %v2187 = vpop.permute.xlu0 %2186
    %2188 = vrot.lane.b32.xlu0 %v2144, 96
    %v2189 = vpop.permute.xlu0 %2188
    %v2191 = vsel %vm239, %v2150, 0
    %v2194 = vsel %vm239, %v2151, 0
    %v2197 = vsel %vm239, %v2152, 0
    %v2200 = vsel %vm239, %v2185, 0
    %v2203 = vsel %vm239, %v2187, 0
    %v2206 = vsel %vm239, %v2189, 0
    %2208 = vmatprep.subr.bf16.mxu0 0
    %2209 = vmatpush1.bf16.xpose.msra.mxu0 %v2200
    %2210 = vmatprep.subr.bf16.mxu0 0
    %2211 = vmatpush1.bf16.xpose.msra.mxu0 %v2203
    %2212 = vmatprep.subr.bf16.mxu0 0
    %2213 = vmatpush1.bf16.xpose.msra.mxu0 %v2206
    %2214 = vmatprep.subr.bf16.mxu0 0
    %2215 = vmatpush1.bf16.xpose.msra.mxu0 0
    %2216 = vmatprep.subr.bf16.mxu0 0
    %2217 = vmatpush1.bf16.xpose.msra.mxu0 0
    %2218 = vmatprep.subr.bf16.mxu0 0
    %2219 = vmatpush1.bf16.xpose.msra.mxu0 0
    %2220 = vmatprep.subr.bf16.mxu0 0
    %2221 = vmatpush1.bf16.xpose.msra.mxu0 0
    %2222 = vmatprep.subr.bf16.mxu0 0
    %2223 = vmatpush1.bf16.xpose.msra.mxu0 0
    %2224 = vmatprep.subr.bf16.mxu0 0
    %2225 = vmatpush1.bf16.xpose.msra.mxu0 0
    %2226 = vmatprep.subr.bf16.mxu0 0
    %2227 = vmatpush1.bf16.xpose.msra.mxu0 0
    %2228 = vmatprep.subr.bf16.mxu0 0
    %2229 = vmatpush1.bf16.xpose.msra.mxu0 0
    %2230 = vmatprep.subr.bf16.mxu0 0
    %2231 = vmatpush1.bf16.xpose.msra.mxu0 0
    %2232 = vmatprep.subr.bf16.mxu0 0
    %2233 = vmatpush1.bf16.xpose.msra.mxu0 0
    %2234 = vmatprep.subr.bf16.mxu0 0
    %2235 = vmatpush1.bf16.xpose.msra.mxu0 0
    %2236 = vmatprep.subr.bf16.mxu0 0
    %2237 = vmatpush1.bf16.xpose.msra.mxu0 0
    %2238 = vmatprep.subr.bf16.mxu0 0
    %2239 = vmatpush1.bf16.xpose.msra.mxu0 0
    %2240 = vmatprep.mubr.bf16.mxu0 0
    %2241 = vmatmul.mubr.bf16.gmra.mrb[0].mxu0 %v2191
    %v2242 = vpop.f32.mrb[0].mxu0
    %v2243 = vadd.f32 %v96, %v2242
    %v2244 = vpop.f32.mrb[0].mxu0
    %v2245 = vpop.f32.mrb[0].mxu0
    %v2246 = vadd.f32 %v97, %v2245
    %v2247 = vpop.f32.mrb[0].mxu0
    %2248 = vmatprep.mubr.bf16.mxu0 0
    %2249 = vmatmul.mubr.bf16.gmra.mrb[0].mxu0 %v2194
    %v2250 = vpop.f32.mrb[0].mxu0
    %v2251 = vadd.f32 %v98, %v2250
    %v2252 = vpop.f32.mrb[0].mxu0
    %v2253 = vpop.f32.mrb[0].mxu0
    %v2254 = vadd.f32 %v99, %v2253
    %v2255 = vpop.f32.mrb[0].mxu0
    %2256 = vmatprep.mubr.bf16.mxu0 0
    %2257 = vmatmul.mubr.bf16.gmra.mrb[0].mxu0 %v2197
    %v2258 = vpop.f32.mrb[0].mxu0
    %v2259 = vadd.f32 %v100, %v2258
    %v2260 = vpop.f32.mrb[0].mxu0
    %v2261 = vpop.f32.mrb[0].mxu0
    %v2262 = vpop.f32.mrb[0].mxu0
    %2263 = vdwg.mxu0
    %v2264 = vsel %vm650, %v2243, -inf
    %2265 = vmax.xlane.f32.xlu0 %v2264
    %v2266 = vpop.xlane.xlu0 %2265
    %v2267 = vsel %vm650, %v2246, -inf
    %2268 = vmax.xlane.f32.xlu0 %v2267
    %v2269 = vpop.xlane.xlu0 %2268
    %v2270 = vsel %vm650, %v2251, -inf
    %2271 = vmax.xlane.f32.xlu0 %v2270
    %v2272 = vpop.xlane.xlu0 %2271
    %v2273 = vsel %vm650, %v2254, -inf
    %2274 = vmax.xlane.f32.xlu0 %v2273
    %v2275 = vpop.xlane.xlu0 %2274
    %v2276 = vsel %vm663, %v2259, -inf
    %2277 = vmax.xlane.f32.xlu0 %v2276
    %v2278 = vpop.xlane.xlu0 %2277
    %v2279 = vsub.f32 %v2243, %v2266
    %v2280 = vsub.f32 %v2246, %v2269
    %v2281 = vsub.f32 %v2251, %v2272
    %v2282 = vsub.f32 %v2254, %v2275
    %v2283 = vsub.f32 %v2259, %v2278
    %v2284 = vmul.f32 %v2279, 1.442695
    %v2285 = vpow.pop %v2284
    %v2286 = vmul.f32 %v2280, 1.442695
    %v2287 = vpow.pop %v2286
    %v2288 = vmul.f32 %v2281, 1.442695
    %v2289 = vpow.pop %v2288
    %v2290 = vmul.f32 %v2282, 1.442695
    %v2291 = vpow.pop %v2290
    %v2292 = vmul.f32 %v2283, 1.442695
    %v2293 = vpow.pop %v2292
    %v2294 = vsel %vm650, %v2285, 0.0
    %2295 = vadd.xlane.f32.xlu0 %v2294
    %v2296 = vpop.xlane.xlu0 %2295
    %v2297 = vsel %vm650, %v2287, 0.0
    %2298 = vadd.xlane.f32.xlu0 %v2297
    %v2299 = vpop.xlane.xlu0 %2298
    %v2300 = vsel %vm650, %v2289, 0.0
    %2301 = vadd.xlane.f32.xlu0 %v2300
    %v2302 = vpop.xlane.xlu0 %2301
    %v2303 = vsel %vm650, %v2291, 0.0
    %2304 = vadd.xlane.f32.xlu0 %v2303
    %v2305 = vpop.xlane.xlu0 %2304
    %v2306 = vsel %vm663, %v2293, 0.0
    %2307 = vadd.xlane.f32.xlu0 %v2306
    %v2308 = vpop.xlane.xlu0 %2307
    %v2309 = vrcp.pop %v2296
    %v2310 = vrcp.pop %v2299
    %v2311 = vrcp.pop %v2302
    %v2312 = vrcp.pop %v2305
    %v2313 = vrcp.pop %v2308
    %v2314 = vmul.f32 %v2285, %v2309
    %v2315 = vmul.f32 %v2287, %v2310
    %v2316 = vmul.f32 %v2289, %v2311
    %v2317 = vmul.f32 %v2291, %v2312
    %v2318 = vmul.f32 %v2293, %v2313
    %v2319 = vpack.c.bf16 %v2315, %v2314
    %v2320 = vpack.c.bf16 %v2317, %v2316
    %v2321 = vpack.c.bf16 %v2318, %v2318
    %v2322 = vsel %vm136, %v2137, 0.0
    %v2323 = vsel %vm136, %v2138, 0.0
    %v2324 = vsel %vm136, %v2139, 0.0
    %v2325 = vsel %vm136, %v2140, 0.0
    %v2326 = vsel %vm136, %v2141, 0.0
    %v2327 = vpack.c.bf16 %v2323, %v2322
    %v2328 = vpack.c.bf16 %v2325, %v2324
    %v2329 = vpack.c.bf16 %v2326, %v2326
    %v2330 = vsel %vm136, %v2159, 0.0
    %v2331 = vsel %vm136, %v2161, 0.0
    %v2332 = vsel %vm136, %v2163, 0.0
    %v2333 = vsel %vm136, %v2165, 0.0
    %v2334 = vsel %vm136, %v2167, 0.0
    %v2335 = vpack.c.bf16 %v2331, %v2330
    %v2336 = vpack.c.bf16 %v2333, %v2332
    %v2337 = vpack.c.bf16 %v2334, %v2334
    %v2339 = vsel %vm239, %v2327, 0
    %v2342 = vsel %vm239, %v2328, 0
    %v2345 = vsel %vm239, %v2329, 0
    %2347 = vmatprep.subr.bf16.mxu0 0
    %2348 = vmatpush1.bf16.xpose.msra.mxu0 %v2200
    %2349 = vmatprep.subr.bf16.mxu0 0
    %2350 = vmatpush1.bf16.xpose.msra.mxu0 %v2203
    %2351 = vmatprep.subr.bf16.mxu0 0
    %2352 = vmatpush1.bf16.xpose.msra.mxu0 %v2206
    %2353 = vmatprep.subr.bf16.mxu0 0
    %2354 = vmatpush1.bf16.xpose.msra.mxu0 0
    %2355 = vmatprep.subr.bf16.mxu0 0
    %2356 = vmatpush1.bf16.xpose.msra.mxu0 0
    %2357 = vmatprep.subr.bf16.mxu0 0
    %2358 = vmatpush1.bf16.xpose.msra.mxu0 0
    %2359 = vmatprep.subr.bf16.mxu0 0
    %2360 = vmatpush1.bf16.xpose.msra.mxu0 0
    %2361 = vmatprep.subr.bf16.mxu0 0
    %2362 = vmatpush1.bf16.xpose.msra.mxu0 0
    %2363 = vmatprep.subr.bf16.mxu0 0
    %2364 = vmatpush1.bf16.xpose.msra.mxu0 0
    %2365 = vmatprep.subr.bf16.mxu0 0
    %2366 = vmatpush1.bf16.xpose.msra.mxu0 0
    %2367 = vmatprep.subr.bf16.mxu0 0
    %2368 = vmatpush1.bf16.xpose.msra.mxu0 0
    %2369 = vmatprep.subr.bf16.mxu0 0
    %2370 = vmatpush1.bf16.xpose.msra.mxu0 0
    %2371 = vmatprep.subr.bf16.mxu0 0
    %2372 = vmatpush1.bf16.xpose.msra.mxu0 0
    %2373 = vmatprep.subr.bf16.mxu0 0
    %2374 = vmatpush1.bf16.xpose.msra.mxu0 0
    %2375 = vmatprep.subr.bf16.mxu0 0
    %2376 = vmatpush1.bf16.xpose.msra.mxu0 0
    %2377 = vmatprep.subr.bf16.mxu0 0
    %2378 = vmatpush1.bf16.xpose.msra.mxu0 0
    %2379 = vmatprep.mubr.bf16.mxu0 0
    %2380 = vmatmul.mubr.bf16.gmra.mrb[0].mxu0 %v2339
    %v2381 = vpop.f32.mrb[0].mxu0
    %v2382 = vadd.f32 %v96, %v2381
    %v2383 = vpop.f32.mrb[0].mxu0
    %v2384 = vpop.f32.mrb[0].mxu0
    %v2385 = vadd.f32 %v97, %v2384
    %v2386 = vpop.f32.mrb[0].mxu0
    %2387 = vmatprep.mubr.bf16.mxu0 0
    %2388 = vmatmul.mubr.bf16.gmra.mrb[0].mxu0 %v2342
    %v2389 = vpop.f32.mrb[0].mxu0
    %v2390 = vadd.f32 %v98, %v2389
    %v2391 = vpop.f32.mrb[0].mxu0
    %v2392 = vpop.f32.mrb[0].mxu0
    %v2393 = vadd.f32 %v99, %v2392
    %v2394 = vpop.f32.mrb[0].mxu0
    %2395 = vmatprep.mubr.bf16.mxu0 0
    %2396 = vmatmul.mubr.bf16.gmra.mrb[0].mxu0 %v2345
    %v2397 = vpop.f32.mrb[0].mxu0
    %v2398 = vadd.f32 %v100, %v2397
    %v2399 = vpop.f32.mrb[0].mxu0
    %v2400 = vpop.f32.mrb[0].mxu0
    %v2401 = vpop.f32.mrb[0].mxu0
    %2402 = vdwg.mxu0
    %v2403 = vsel %vm650, %v2382, -inf
    %2404 = vmax.xlane.f32.xlu0 %v2403
    %v2405 = vpop.xlane.xlu0 %2404
    %v2406 = vsel %vm650, %v2385, -inf
    %2407 = vmax.xlane.f32.xlu0 %v2406
    %v2408 = vpop.xlane.xlu0 %2407
    %v2409 = vsel %vm650, %v2390, -inf
    %2410 = vmax.xlane.f32.xlu0 %v2409
    %v2411 = vpop.xlane.xlu0 %2410
    %v2412 = vsel %vm650, %v2393, -inf
    %2413 = vmax.xlane.f32.xlu0 %v2412
    %v2414 = vpop.xlane.xlu0 %2413
    %v2415 = vsel %vm663, %v2398, -inf
    %2416 = vmax.xlane.f32.xlu0 %v2415
    %v2417 = vpop.xlane.xlu0 %2416
    %v2418 = vsub.f32 %v2382, %v2405
    %v2419 = vsub.f32 %v2385, %v2408
    %v2420 = vsub.f32 %v2390, %v2411
    %v2421 = vsub.f32 %v2393, %v2414
    %v2422 = vsub.f32 %v2398, %v2417
    %v2423 = vmul.f32 %v2418, 1.442695
    %v2424 = vpow.pop %v2423
    %v2425 = vmul.f32 %v2419, 1.442695
    %v2426 = vpow.pop %v2425
    %v2427 = vmul.f32 %v2420, 1.442695
    %v2428 = vpow.pop %v2427
    %v2429 = vmul.f32 %v2421, 1.442695
    %v2430 = vpow.pop %v2429
    %v2431 = vmul.f32 %v2422, 1.442695
    %v2432 = vpow.pop %v2431
    %v2433 = vsel %vm650, %v2424, 0.0
    %2434 = vadd.xlane.f32.xlu0 %v2433
    %v2435 = vpop.xlane.xlu0 %2434
    %v2436 = vsel %vm650, %v2426, 0.0
    %2437 = vadd.xlane.f32.xlu0 %v2436
    %v2438 = vpop.xlane.xlu0 %2437
    %v2439 = vsel %vm650, %v2428, 0.0
    %2440 = vadd.xlane.f32.xlu0 %v2439
    %v2441 = vpop.xlane.xlu0 %2440
    %v2442 = vsel %vm650, %v2430, 0.0
    %2443 = vadd.xlane.f32.xlu0 %v2442
    %v2444 = vpop.xlane.xlu0 %2443
    %v2445 = vsel %vm663, %v2432, 0.0
    %2446 = vadd.xlane.f32.xlu0 %v2445
    %v2447 = vpop.xlane.xlu0 %2446
    %v2448 = vrcp.pop %v2435
    %v2449 = vrcp.pop %v2438
    %v2450 = vrcp.pop %v2441
    %v2451 = vrcp.pop %v2444
    %v2452 = vrcp.pop %v2447
    %v2453 = vmul.f32 %v2424, %v2448
    %v2454 = vmul.f32 %v2426, %v2449
    %v2455 = vmul.f32 %v2428, %v2450
    %v2456 = vmul.f32 %v2430, %v2451
    %v2457 = vmul.f32 %v2432, %v2452
    %v2458 = vpack.c.bf16 %v2454, %v2453
    %v2459 = vpack.c.bf16 %v2456, %v2455
    %v2460 = vpack.c.bf16 %v2457, %v2457
    %v2462 = vsel %vm650, %v2458, 0
    %v2465 = vsel %vm650, %v2459, 0
    %v2468 = vsel %vm650, %v2460, 0
    %v2471 = vsel %vm858, %v2337, 0
    %2473 = vmatprep.subr.bf16.mxu0 0
    %2474 = vmatpush1.bf16.msra.mxu0 %v2335
    %2475 = vmatprep.subr.bf16.mxu0 0
    %2476 = vmatpush1.bf16.msra.mxu0 %v2336
    %2477 = vmatprep.subr.bf16.mxu0 0
    %2478 = vmatpush1.bf16.msra.mxu0 %v2471
    %2479 = vmatprep.subr.bf16.mxu0 0
    %2480 = vmatpush1.bf16.msra.mxu0 0
    %2481 = vmatprep.subr.bf16.mxu0 0
    %2482 = vmatpush1.bf16.msra.mxu0 0
    %2483 = vmatprep.subr.bf16.mxu0 0
    %2484 = vmatpush1.bf16.msra.mxu0 0
    %2485 = vmatprep.subr.bf16.mxu0 0
    %2486 = vmatpush1.bf16.msra.mxu0 0
    %2487 = vmatprep.subr.bf16.mxu0 0
    %2488 = vmatpush1.bf16.msra.mxu0 0
    %2489 = vmatprep.subr.bf16.mxu0 0
    %2490 = vmatpush1.bf16.msra.mxu0 0
    %2491 = vmatprep.subr.bf16.mxu0 0
    %2492 = vmatpush1.bf16.msra.mxu0 0
    %2493 = vmatprep.subr.bf16.mxu0 0
    %2494 = vmatpush1.bf16.msra.mxu0 0
    %2495 = vmatprep.subr.bf16.mxu0 0
    %2496 = vmatpush1.bf16.msra.mxu0 0
    %2497 = vmatprep.subr.bf16.mxu0 0
    %2498 = vmatpush1.bf16.msra.mxu0 0
    %2499 = vmatprep.subr.bf16.mxu0 0
    %2500 = vmatpush1.bf16.msra.mxu0 0
    %2501 = vmatprep.subr.bf16.mxu0 0
    %2502 = vmatpush1.bf16.msra.mxu0 0
    %2503 = vmatprep.subr.bf16.mxu0 0
    %2504 = vmatpush1.bf16.msra.mxu0 0
    %2505 = vmatprep.mubr.bf16.mxu0 0
    %2506 = vmatmul.mubr.bf16.gmra.mrb[0].mxu0 %v2462
    %v2507 = vpop.f32.mrb[0].mxu0
    %v2508 = vadd.f32 0.0, %v2507
    %v2509 = vpop.f32.mrb[0].mxu0
    %v2510 = vpop.f32.mrb[0].mxu0
    %v2511 = vadd.f32 0.0, %v2510
    %v2512 = vpop.f32.mrb[0].mxu0
    %2513 = vmatprep.mubr.bf16.mxu0 0
    %2514 = vmatmul.mubr.bf16.gmra.mrb[0].mxu0 %v2465
    %v2515 = vpop.f32.mrb[0].mxu0
    %v2516 = vadd.f32 0.0, %v2515
    %v2517 = vpop.f32.mrb[0].mxu0
    %v2518 = vpop.f32.mrb[0].mxu0
    %v2519 = vadd.f32 0.0, %v2518
    %v2520 = vpop.f32.mrb[0].mxu0
    %2521 = vmatprep.mubr.bf16.mxu0 0
    %2522 = vmatmul.mubr.bf16.gmra.mrb[0].mxu0 %v2468
    %v2523 = vpop.f32.mrb[0].mxu0
    %v2524 = vadd.f32 0.0, %v2523
    %v2525 = vpop.f32.mrb[0].mxu0
    %v2526 = vpop.f32.mrb[0].mxu0
    %v2527 = vpop.f32.mrb[0].mxu0
    %2528 = vdwg.mxu0
    %v2530 = vsel %vm650, %v2319, 0
    %v2533 = vsel %vm650, %v2320, 0
    %v2536 = vsel %vm650, %v2321, 0
    %v2539 = vsel %vm858, %v2180, 0
    %2541 = vmatprep.subr.bf16.mxu0 0
    %2542 = vmatpush1.bf16.msra.mxu0 %v2178
    %2543 = vmatprep.subr.bf16.mxu0 0
    %2544 = vmatpush1.bf16.msra.mxu0 %v2179
    %2545 = vmatprep.subr.bf16.mxu0 0
    %2546 = vmatpush1.bf16.msra.mxu0 %v2539
    %2547 = vmatprep.subr.bf16.mxu0 0
    %2548 = vmatpush1.bf16.msra.mxu0 0
    %2549 = vmatprep.subr.bf16.mxu0 0
    %2550 = vmatpush1.bf16.msra.mxu0 0
    %2551 = vmatprep.subr.bf16.mxu0 0
    %2552 = vmatpush1.bf16.msra.mxu0 0
    %2553 = vmatprep.subr.bf16.mxu0 0
    %2554 = vmatpush1.bf16.msra.mxu0 0
    %2555 = vmatprep.subr.bf16.mxu0 0
    %2556 = vmatpush1.bf16.msra.mxu0 0
    %2557 = vmatprep.subr.bf16.mxu0 0
    %2558 = vmatpush1.bf16.msra.mxu0 0
    %2559 = vmatprep.subr.bf16.mxu0 0
    %2560 = vmatpush1.bf16.msra.mxu0 0
    %2561 = vmatprep.subr.bf16.mxu0 0
    %2562 = vmatpush1.bf16.msra.mxu0 0
    %2563 = vmatprep.subr.bf16.mxu0 0
    %2564 = vmatpush1.bf16.msra.mxu0 0
    %2565 = vmatprep.subr.bf16.mxu0 0
    %2566 = vmatpush1.bf16.msra.mxu0 0
    %2567 = vmatprep.subr.bf16.mxu0 0
    %2568 = vmatpush1.bf16.msra.mxu0 0
    %2569 = vmatprep.subr.bf16.mxu0 0
    %2570 = vmatpush1.bf16.msra.mxu0 0
    %2571 = vmatprep.subr.bf16.mxu0 0
    %2572 = vmatpush1.bf16.msra.mxu0 0
    %2573 = vmatprep.mubr.bf16.mxu0 0
    %2574 = vmatmul.mubr.bf16.gmra.mrb[0].mxu0 %v2530
    %v2575 = vpop.f32.mrb[0].mxu0
    %v2576 = vadd.f32 %v2508, %v2575
    %v2577 = vpop.f32.mrb[0].mxu0
    %v2578 = vpop.f32.mrb[0].mxu0
    %v2579 = vadd.f32 %v2511, %v2578
    %v2580 = vpop.f32.mrb[0].mxu0
    %2581 = vmatprep.mubr.bf16.mxu0 0
    %2582 = vmatmul.mubr.bf16.gmra.mrb[0].mxu0 %v2533
    %v2583 = vpop.f32.mrb[0].mxu0
    %v2584 = vadd.f32 %v2516, %v2583
    %v2585 = vpop.f32.mrb[0].mxu0
    %v2586 = vpop.f32.mrb[0].mxu0
    %v2587 = vadd.f32 %v2519, %v2586
    %v2588 = vpop.f32.mrb[0].mxu0
    %2589 = vmatprep.mubr.bf16.mxu0 0
    %2590 = vmatmul.mubr.bf16.gmra.mrb[0].mxu0 %v2536
    %v2591 = vpop.f32.mrb[0].mxu0
    %v2592 = vadd.f32 %v2524, %v2591
    %v2593 = vpop.f32.mrb[0].mxu0
    %v2594 = vpop.f32.mrb[0].mxu0
    %v2595 = vpop.f32.mrb[0].mxu0
    %2596 = vdwg.mxu0
    %v2597 = vsel %vm139, %v2137, 0.0
    %v2598 = vsel %vm139, %v2138, 0.0
    %v2599 = vsel %vm139, %v2139, 0.0
    %v2600 = vsel %vm139, %v2140, 0.0
    %v2601 = vsel %vm139, %v2141, 0.0
    %v2602 = vpack.c.bf16 %v2598, %v2597
    %v2603 = vpack.c.bf16 %v2600, %v2599
    %v2604 = vpack.c.bf16 %v2601, %v2601
    %v2605 = vsel %vm139, %v2159, 0.0
    %v2606 = vsel %vm139, %v2161, 0.0
    %v2607 = vsel %vm139, %v2163, 0.0
    %v2608 = vsel %vm139, %v2165, 0.0
    %v2609 = vsel %vm139, %v2167, 0.0
    %v2610 = vpack.c.bf16 %v2606, %v2605
    %v2611 = vpack.c.bf16 %v2608, %v2607
    %v2612 = vpack.c.bf16 %v2609, %v2609
    %v2614 = vsel %vm239, %v2602, 0
    %v2617 = vsel %vm239, %v2603, 0
    %v2620 = vsel %vm239, %v2604, 0
    %2622 = vmatprep.subr.bf16.mxu0 0
    %2623 = vmatpush1.bf16.xpose.msra.mxu0 %v2200
    %2624 = vmatprep.subr.bf16.mxu0 0
    %2625 = vmatpush1.bf16.xpose.msra.mxu0 %v2203
    %2626 = vmatprep.subr.bf16.mxu0 0
    %2627 = vmatpush1.bf16.xpose.msra.mxu0 %v2206
    %2628 = vmatprep.subr.bf16.mxu0 0
    %2629 = vmatpush1.bf16.xpose.msra.mxu0 0
    %2630 = vmatprep.subr.bf16.mxu0 0
    %2631 = vmatpush1.bf16.xpose.msra.mxu0 0
    %2632 = vmatprep.subr.bf16.mxu0 0
    %2633 = vmatpush1.bf16.xpose.msra.mxu0 0
    %2634 = vmatprep.subr.bf16.mxu0 0
    %2635 = vmatpush1.bf16.xpose.msra.mxu0 0
    %2636 = vmatprep.subr.bf16.mxu0 0
    %2637 = vmatpush1.bf16.xpose.msra.mxu0 0
    %2638 = vmatprep.subr.bf16.mxu0 0
    %2639 = vmatpush1.bf16.xpose.msra.mxu0 0
    %2640 = vmatprep.subr.bf16.mxu0 0
    %2641 = vmatpush1.bf16.xpose.msra.mxu0 0
    %2642 = vmatprep.subr.bf16.mxu0 0
    %2643 = vmatpush1.bf16.xpose.msra.mxu0 0
    %2644 = vmatprep.subr.bf16.mxu0 0
    %2645 = vmatpush1.bf16.xpose.msra.mxu0 0
    %2646 = vmatprep.subr.bf16.mxu0 0
    %2647 = vmatpush1.bf16.xpose.msra.mxu0 0
    %2648 = vmatprep.subr.bf16.mxu0 0
    %2649 = vmatpush1.bf16.xpose.msra.mxu0 0
    %2650 = vmatprep.subr.bf16.mxu0 0
    %2651 = vmatpush1.bf16.xpose.msra.mxu0 0
    %2652 = vmatprep.subr.bf16.mxu0 0
    %2653 = vmatpush1.bf16.xpose.msra.mxu0 0
    %2654 = vmatprep.mubr.bf16.mxu0 0
    %2655 = vmatmul.mubr.bf16.gmra.mrb[0].mxu0 %v2614
    %v2656 = vpop.f32.mrb[0].mxu0
    %v2657 = vadd.f32 %v96, %v2656
    %v2658 = vpop.f32.mrb[0].mxu0
    %v2659 = vpop.f32.mrb[0].mxu0
    %v2660 = vadd.f32 %v97, %v2659
    %v2661 = vpop.f32.mrb[0].mxu0
    %2662 = vmatprep.mubr.bf16.mxu0 0
    %2663 = vmatmul.mubr.bf16.gmra.mrb[0].mxu0 %v2617
    %v2664 = vpop.f32.mrb[0].mxu0
    %v2665 = vadd.f32 %v98, %v2664
    %v2666 = vpop.f32.mrb[0].mxu0
    %v2667 = vpop.f32.mrb[0].mxu0
    %v2668 = vadd.f32 %v99, %v2667
    %v2669 = vpop.f32.mrb[0].mxu0
    %2670 = vmatprep.mubr.bf16.mxu0 0
    %2671 = vmatmul.mubr.bf16.gmra.mrb[0].mxu0 %v2620
    %v2672 = vpop.f32.mrb[0].mxu0
    %v2673 = vadd.f32 %v100, %v2672
    %v2674 = vpop.f32.mrb[0].mxu0
    %v2675 = vpop.f32.mrb[0].mxu0
    %v2676 = vpop.f32.mrb[0].mxu0
    %2677 = vdwg.mxu0
    %v2678 = vsel %vm650, %v2657, -inf
    %2679 = vmax.xlane.f32.xlu0 %v2678
    %v2680 = vpop.xlane.xlu0 %2679
    %v2681 = vsel %vm650, %v2660, -inf
    %2682 = vmax.xlane.f32.xlu0 %v2681
    %v2683 = vpop.xlane.xlu0 %2682
    %v2684 = vsel %vm650, %v2665, -inf
    %2685 = vmax.xlane.f32.xlu0 %v2684
    %v2686 = vpop.xlane.xlu0 %2685
    %v2687 = vsel %vm650, %v2668, -inf
    %2688 = vmax.xlane.f32.xlu0 %v2687
    %v2689 = vpop.xlane.xlu0 %2688
    %v2690 = vsel %vm663, %v2673, -inf
    %2691 = vmax.xlane.f32.xlu0 %v2690
    %v2692 = vpop.xlane.xlu0 %2691
    %v2693 = vsub.f32 %v2657, %v2680
    %v2694 = vsub.f32 %v2660, %v2683
    %v2695 = vsub.f32 %v2665, %v2686
    %v2696 = vsub.f32 %v2668, %v2689
    %v2697 = vsub.f32 %v2673, %v2692
    %v2698 = vmul.f32 %v2693, 1.442695
    %v2699 = vpow.pop %v2698
    %v2700 = vmul.f32 %v2694, 1.442695
    %v2701 = vpow.pop %v2700
    %v2702 = vmul.f32 %v2695, 1.442695
    %v2703 = vpow.pop %v2702
    %v2704 = vmul.f32 %v2696, 1.442695
    %v2705 = vpow.pop %v2704
    %v2706 = vmul.f32 %v2697, 1.442695
    %v2707 = vpow.pop %v2706
    %v2708 = vsel %vm650, %v2699, 0.0
    %2709 = vadd.xlane.f32.xlu0 %v2708
    %v2710 = vpop.xlane.xlu0 %2709
    %v2711 = vsel %vm650, %v2701, 0.0
    %2712 = vadd.xlane.f32.xlu0 %v2711
    %v2713 = vpop.xlane.xlu0 %2712
    %v2714 = vsel %vm650, %v2703, 0.0
    %2715 = vadd.xlane.f32.xlu0 %v2714
    %v2716 = vpop.xlane.xlu0 %2715
    %v2717 = vsel %vm650, %v2705, 0.0
    %2718 = vadd.xlane.f32.xlu0 %v2717
    %v2719 = vpop.xlane.xlu0 %2718
    %v2720 = vsel %vm663, %v2707, 0.0
    %2721 = vadd.xlane.f32.xlu0 %v2720
    %v2722 = vpop.xlane.xlu0 %2721
    %v2723 = vrcp.pop %v2710
    %v2724 = vrcp.pop %v2713
    %v2725 = vrcp.pop %v2716
    %v2726 = vrcp.pop %v2719
    %v2727 = vrcp.pop %v2722
    %v2728 = vmul.f32 %v2699, %v2723
    %v2729 = vmul.f32 %v2701, %v2724
    %v2730 = vmul.f32 %v2703, %v2725
    %v2731 = vmul.f32 %v2705, %v2726
    %v2732 = vmul.f32 %v2707, %v2727
    %v2733 = vpack.c.bf16 %v2729, %v2728
    %v2734 = vpack.c.bf16 %v2731, %v2730
    %v2735 = vpack.c.bf16 %v2732, %v2732
    %v2737 = vsel %vm650, %v2733, 0
    %v2740 = vsel %vm650, %v2734, 0
    %v2743 = vsel %vm650, %v2735, 0
    %v2746 = vsel %vm858, %v2612, 0
    %2748 = vmatprep.subr.bf16.mxu0 0
    %2749 = vmatpush1.bf16.msra.mxu0 %v2610
    %2750 = vmatprep.subr.bf16.mxu0 0
    %2751 = vmatpush1.bf16.msra.mxu0 %v2611
    %2752 = vmatprep.subr.bf16.mxu0 0
    %2753 = vmatpush1.bf16.msra.mxu0 %v2746
    %2754 = vmatprep.subr.bf16.mxu0 0
    %2755 = vmatpush1.bf16.msra.mxu0 0
    %2756 = vmatprep.subr.bf16.mxu0 0
    %2757 = vmatpush1.bf16.msra.mxu0 0
    %2758 = vmatprep.subr.bf16.mxu0 0
    %2759 = vmatpush1.bf16.msra.mxu0 0
    %2760 = vmatprep.subr.bf16.mxu0 0
    %2761 = vmatpush1.bf16.msra.mxu0 0
    %2762 = vmatprep.subr.bf16.mxu0 0
    %2763 = vmatpush1.bf16.msra.mxu0 0
    %2764 = vmatprep.subr.bf16.mxu0 0
    %2765 = vmatpush1.bf16.msra.mxu0 0
    %2766 = vmatprep.subr.bf16.mxu0 0
    %2767 = vmatpush1.bf16.msra.mxu0 0
    %2768 = vmatprep.subr.bf16.mxu0 0
    %2769 = vmatpush1.bf16.msra.mxu0 0
    %2770 = vmatprep.subr.bf16.mxu0 0
    %2771 = vmatpush1.bf16.msra.mxu0 0
    %2772 = vmatprep.subr.bf16.mxu0 0
    %2773 = vmatpush1.bf16.msra.mxu0 0
    %2774 = vmatprep.subr.bf16.mxu0 0
    %2775 = vmatpush1.bf16.msra.mxu0 0
    %2776 = vmatprep.subr.bf16.mxu0 0
    %2777 = vmatpush1.bf16.msra.mxu0 0
    %2778 = vmatprep.subr.bf16.mxu0 0
    %2779 = vmatpush1.bf16.msra.mxu0 0
    %2780 = vmatprep.mubr.bf16.mxu0 0
    %2781 = vmatmul.mubr.bf16.gmra.mrb[0].mxu0 %v2737
    %v2782 = vpop.f32.mrb[0].mxu0
    %v2783 = vadd.f32 0.0, %v2782
    %v2784 = vpop.f32.mrb[0].mxu0
    %v2785 = vpop.f32.mrb[0].mxu0
    %v2786 = vadd.f32 0.0, %v2785
    %v2787 = vpop.f32.mrb[0].mxu0
    %2788 = vmatprep.mubr.bf16.mxu0 0
    %2789 = vmatmul.mubr.bf16.gmra.mrb[0].mxu0 %v2740
    %v2790 = vpop.f32.mrb[0].mxu0
    %v2791 = vadd.f32 0.0, %v2790
    %v2792 = vpop.f32.mrb[0].mxu0
    %v2793 = vpop.f32.mrb[0].mxu0
    %v2794 = vadd.f32 0.0, %v2793
    %v2795 = vpop.f32.mrb[0].mxu0
    %2796 = vmatprep.mubr.bf16.mxu0 0
    %2797 = vmatmul.mubr.bf16.gmra.mrb[0].mxu0 %v2743
    %v2798 = vpop.f32.mrb[0].mxu0
    %v2799 = vadd.f32 0.0, %v2798
    %v2800 = vpop.f32.mrb[0].mxu0
    %v2801 = vpop.f32.mrb[0].mxu0
    %v2802 = vpop.f32.mrb[0].mxu0
    %2803 = vdwg.mxu0
    %v2804 = vadd.f32 %v2576, %v2783
    %v2805 = vadd.f32 %v2579, %v2786
    %v2806 = vadd.f32 %v2584, %v2791
    %v2807 = vadd.f32 %v2587, %v2794
    %v2808 = vadd.f32 %v2592, %v2799
    %v2809 = vsel %vm142, %v2137, 0.0
    %v2810 = vsel %vm142, %v2138, 0.0
    %v2811 = vsel %vm142, %v2139, 0.0
    %v2812 = vsel %vm142, %v2140, 0.0
    %v2813 = vsel %vm142, %v2141, 0.0
    %v2814 = vpack.c.bf16 %v2810, %v2809
    %v2815 = vpack.c.bf16 %v2812, %v2811
    %v2816 = vpack.c.bf16 %v2813, %v2813
    %v2817 = vsel %vm142, %v2159, 0.0
    %v2818 = vsel %vm142, %v2161, 0.0
    %v2819 = vsel %vm142, %v2163, 0.0
    %v2820 = vsel %vm142, %v2165, 0.0
    %v2821 = vsel %vm142, %v2167, 0.0
    %v2822 = vpack.c.bf16 %v2818, %v2817
    %v2823 = vpack.c.bf16 %v2820, %v2819
    %v2824 = vpack.c.bf16 %v2821, %v2821
    %v2826 = vsel %vm239, %v2814, 0
    %v2829 = vsel %vm239, %v2815, 0
    %v2832 = vsel %vm239, %v2816, 0
    %2834 = vmatprep.subr.bf16.mxu0 0
    %2835 = vmatpush1.bf16.xpose.msra.mxu0 %v2200
    %2836 = vmatprep.subr.bf16.mxu0 0
    %2837 = vmatpush1.bf16.xpose.msra.mxu0 %v2203
    %2838 = vmatprep.subr.bf16.mxu0 0
    %2839 = vmatpush1.bf16.xpose.msra.mxu0 %v2206
    %2840 = vmatprep.subr.bf16.mxu0 0
    %2841 = vmatpush1.bf16.xpose.msra.mxu0 0
    %2842 = vmatprep.subr.bf16.mxu0 0
    %2843 = vmatpush1.bf16.xpose.msra.mxu0 0
    %2844 = vmatprep.subr.bf16.mxu0 0
    %2845 = vmatpush1.bf16.xpose.msra.mxu0 0
    %2846 = vmatprep.subr.bf16.mxu0 0
    %2847 = vmatpush1.bf16.xpose.msra.mxu0 0
    %2848 = vmatprep.subr.bf16.mxu0 0
    %2849 = vmatpush1.bf16.xpose.msra.mxu0 0
    %2850 = vmatprep.subr.bf16.mxu0 0
    %2851 = vmatpush1.bf16.xpose.msra.mxu0 0
    %2852 = vmatprep.subr.bf16.mxu0 0
    %2853 = vmatpush1.bf16.xpose.msra.mxu0 0
    %2854 = vmatprep.subr.bf16.mxu0 0
    %2855 = vmatpush1.bf16.xpose.msra.mxu0 0
    %2856 = vmatprep.subr.bf16.mxu0 0
    %2857 = vmatpush1.bf16.xpose.msra.mxu0 0
    %2858 = vmatprep.subr.bf16.mxu0 0
    %2859 = vmatpush1.bf16.xpose.msra.mxu0 0
    %2860 = vmatprep.subr.bf16.mxu0 0
    %2861 = vmatpush1.bf16.xpose.msra.mxu0 0
    %2862 = vmatprep.subr.bf16.mxu0 0
    %2863 = vmatpush1.bf16.xpose.msra.mxu0 0
    %2864 = vmatprep.subr.bf16.mxu0 0
    %2865 = vmatpush1.bf16.xpose.msra.mxu0 0
    %2866 = vmatprep.mubr.bf16.mxu0 0
    %2867 = vmatmul.mubr.bf16.gmra.mrb[0].mxu0 %v2826
    %v2868 = vpop.f32.mrb[0].mxu0
    %v2869 = vadd.f32 %v96, %v2868
    %v2870 = vpop.f32.mrb[0].mxu0
    %v2871 = vpop.f32.mrb[0].mxu0
    %v2872 = vadd.f32 %v97, %v2871
    %v2873 = vpop.f32.mrb[0].mxu0
    %2874 = vmatprep.mubr.bf16.mxu0 0
    %2875 = vmatmul.mubr.bf16.gmra.mrb[0].mxu0 %v2829
    %v2876 = vpop.f32.mrb[0].mxu0
    %v2877 = vadd.f32 %v98, %v2876
    %v2878 = vpop.f32.mrb[0].mxu0
    %v2879 = vpop.f32.mrb[0].mxu0
    %v2880 = vadd.f32 %v99, %v2879
    %v2881 = vpop.f32.mrb[0].mxu0
    %2882 = vmatprep.mubr.bf16.mxu0 0
    %2883 = vmatmul.mubr.bf16.gmra.mrb[0].mxu0 %v2832
    %v2884 = vpop.f32.mrb[0].mxu0
    %v2885 = vadd.f32 %v100, %v2884
    %v2886 = vpop.f32.mrb[0].mxu0
    %v2887 = vpop.f32.mrb[0].mxu0
    %v2888 = vpop.f32.mrb[0].mxu0
    %2889 = vdwg.mxu0
    %v2890 = vsel %vm650, %v2869, -inf
    %2891 = vmax.xlane.f32.xlu0 %v2890
    %v2892 = vpop.xlane.xlu0 %2891
    %v2893 = vsel %vm650, %v2872, -inf
    %2894 = vmax.xlane.f32.xlu0 %v2893
    %v2895 = vpop.xlane.xlu0 %2894
    %v2896 = vsel %vm650, %v2877, -inf
    %2897 = vmax.xlane.f32.xlu0 %v2896
    %v2898 = vpop.xlane.xlu0 %2897
    %v2899 = vsel %vm650, %v2880, -inf
    %2900 = vmax.xlane.f32.xlu0 %v2899
    %v2901 = vpop.xlane.xlu0 %2900
    %v2902 = vsel %vm663, %v2885, -inf
    %2903 = vmax.xlane.f32.xlu0 %v2902
    %v2904 = vpop.xlane.xlu0 %2903
    %v2905 = vsub.f32 %v2869, %v2892
    %v2906 = vsub.f32 %v2872, %v2895
    %v2907 = vsub.f32 %v2877, %v2898
    %v2908 = vsub.f32 %v2880, %v2901
    %v2909 = vsub.f32 %v2885, %v2904
    %v2910 = vmul.f32 %v2905, 1.442695
    %v2911 = vpow.pop %v2910
    %v2912 = vmul.f32 %v2906, 1.442695
    %v2913 = vpow.pop %v2912
    %v2914 = vmul.f32 %v2907, 1.442695
    %v2915 = vpow.pop %v2914
    %v2916 = vmul.f32 %v2908, 1.442695
    %v2917 = vpow.pop %v2916
    %v2918 = vmul.f32 %v2909, 1.442695
    %v2919 = vpow.pop %v2918
    %v2920 = vsel %vm650, %v2911, 0.0
    %2921 = vadd.xlane.f32.xlu0 %v2920
    %v2922 = vpop.xlane.xlu0 %2921
    %v2923 = vsel %vm650, %v2913, 0.0
    %2924 = vadd.xlane.f32.xlu0 %v2923
    %v2925 = vpop.xlane.xlu0 %2924
    %v2926 = vsel %vm650, %v2915, 0.0
    %2927 = vadd.xlane.f32.xlu0 %v2926
    %v2928 = vpop.xlane.xlu0 %2927
    %v2929 = vsel %vm650, %v2917, 0.0
    %2930 = vadd.xlane.f32.xlu0 %v2929
    %v2931 = vpop.xlane.xlu0 %2930
    %v2932 = vsel %vm663, %v2919, 0.0
    %2933 = vadd.xlane.f32.xlu0 %v2932
    %v2934 = vpop.xlane.xlu0 %2933
    %v2935 = vrcp.pop %v2922
    %v2936 = vrcp.pop %v2925
    %v2937 = vrcp.pop %v2928
    %v2938 = vrcp.pop %v2931
    %v2939 = vrcp.pop %v2934
    %v2940 = vmul.f32 %v2911, %v2935
    %v2941 = vmul.f32 %v2913, %v2936
    %v2942 = vmul.f32 %v2915, %v2937
    %v2943 = vmul.f32 %v2917, %v2938
    %v2944 = vmul.f32 %v2919, %v2939
    %v2945 = vpack.c.bf16 %v2941, %v2940
    %v2946 = vpack.c.bf16 %v2943, %v2942
    %v2947 = vpack.c.bf16 %v2944, %v2944
    %v2949 = vsel %vm650, %v2945, 0
    %v2952 = vsel %vm650, %v2946, 0
    %v2955 = vsel %vm650, %v2947, 0
    %v2958 = vsel %vm858, %v2824, 0
    %2960 = vmatprep.subr.bf16.mxu0 0
    %2961 = vmatpush1.bf16.msra.mxu0 %v2822
    %2962 = vmatprep.subr.bf16.mxu0 0
    %2963 = vmatpush1.bf16.msra.mxu0 %v2823
    %2964 = vmatprep.subr.bf16.mxu0 0
    %2965 = vmatpush1.bf16.msra.mxu0 %v2958
    %2966 = vmatprep.subr.bf16.mxu0 0
    %2967 = vmatpush1.bf16.msra.mxu0 0
    %2968 = vmatprep.subr.bf16.mxu0 0
    %2969 = vmatpush1.bf16.msra.mxu0 0
    %2970 = vmatprep.subr.bf16.mxu0 0
    %2971 = vmatpush1.bf16.msra.mxu0 0
    %2972 = vmatprep.subr.bf16.mxu0 0
    %2973 = vmatpush1.bf16.msra.mxu0 0
    %2974 = vmatprep.subr.bf16.mxu0 0
    %2975 = vmatpush1.bf16.msra.mxu0 0
    %2976 = vmatprep.subr.bf16.mxu0 0
    %2977 = vmatpush1.bf16.msra.mxu0 0
    %2978 = vmatprep.subr.bf16.mxu0 0
    %2979 = vmatpush1.bf16.msra.mxu0 0
    %2980 = vmatprep.subr.bf16.mxu0 0
    %2981 = vmatpush1.bf16.msra.mxu0 0
    %2982 = vmatprep.subr.bf16.mxu0 0
    %2983 = vmatpush1.bf16.msra.mxu0 0
    %2984 = vmatprep.subr.bf16.mxu0 0
    %2985 = vmatpush1.bf16.msra.mxu0 0
    %2986 = vmatprep.subr.bf16.mxu0 0
    %2987 = vmatpush1.bf16.msra.mxu0 0
    %2988 = vmatprep.subr.bf16.mxu0 0
    %2989 = vmatpush1.bf16.msra.mxu0 0
    %2990 = vmatprep.subr.bf16.mxu0 0
    %2991 = vmatpush1.bf16.msra.mxu0 0
    %2992 = vmatprep.mubr.bf16.mxu0 0
    %2993 = vmatmul.mubr.bf16.gmra.mrb[0].mxu0 %v2949
    %v2994 = vpop.f32.mrb[0].mxu0
    %v2995 = vadd.f32 0.0, %v2994
    %v2996 = vpop.f32.mrb[0].mxu0
    %v2997 = vpop.f32.mrb[0].mxu0
    %v2998 = vadd.f32 0.0, %v2997
    %v2999 = vpop.f32.mrb[0].mxu0
    %3000 = vmatprep.mubr.bf16.mxu0 0
    %3001 = vmatmul.mubr.bf16.gmra.mrb[0].mxu0 %v2952
    %v3002 = vpop.f32.mrb[0].mxu0
    %v3003 = vadd.f32 0.0, %v3002
    %v3004 = vpop.f32.mrb[0].mxu0
    %v3005 = vpop.f32.mrb[0].mxu0
    %v3006 = vadd.f32 0.0, %v3005
    %v3007 = vpop.f32.mrb[0].mxu0
    %3008 = vmatprep.mubr.bf16.mxu0 0
    %3009 = vmatmul.mubr.bf16.gmra.mrb[0].mxu0 %v2955
    %v3010 = vpop.f32.mrb[0].mxu0
    %v3011 = vadd.f32 0.0, %v3010
    %v3012 = vpop.f32.mrb[0].mxu0
    %v3013 = vpop.f32.mrb[0].mxu0
    %v3014 = vpop.f32.mrb[0].mxu0
    %3015 = vdwg.mxu0
    %v3016 = vadd.f32 %v2804, %v2995
    %v3017 = vadd.f32 %v2805, %v2998
    %v3018 = vadd.f32 %v2806, %v3003
    %v3019 = vadd.f32 %v2807, %v3006
    %v3020 = vadd.f32 %v2808, %v3011
    %v3021 = vpack.c.bf16 %v3017, %v3016
    %v3022 = vpack.c.bf16 %v3019, %v3018
    %v3023 = vpack.c.bf16 %v3020, %v3020
    %v3024 = vld [vmem:[%s2055 + $0x10] sm:$0xf]
    %v3025 = vld [vmem:[%s2055 + $0x14] sm:$0xf]
    %v3026 = vld [vmem:[%s2055 + $0x18] sm:$0xf]
    %v3027 = vld [vmem:[%s2055 + $0x1c] sm:$0xf]
    %v3028 = vlaneseq
    %v3029 = vshrl.u32 %v3028, 7
    %v3030 = vsub.s32 0, %v3029
    %v3031 = vrot.slane %v1962, %v3030
    %v3036 = vunpack.c.l.b16 %v3024
    %v3037 = vunpack.c.l.b16 %v3025
    %v3038 = vunpack.c.l.b16 %v3026
    %v3039 = vunpack.c.l.b16 %v3027
    %v3040 = vpack.c.b16 %v3037, %v3036
    %v3041 = vpack.c.b16 %v3039, %v3038
    %v3045 = vsel %vm239, %v3021, 0
    %v3048 = vsel %vm239, %v3022, 0
    %v3051 = vsel %vm239, %v3023, 0
    %3053 = vmatprep.subr.bf16.mxu0 0
    %3054 = vmatpush1.bf16.msra.mxu0 %v3040
    %3055 = vmatprep.subr.bf16.mxu0 0
    %3056 = vmatpush1.bf16.msra.mxu0 %v3041
    %3057 = vmatprep.subr.bf16.mxu0 0
    %3058 = vmatpush1.bf16.msra.mxu0 0
    %3059 = vmatprep.subr.bf16.mxu0 0
    %3060 = vmatpush1.bf16.msra.mxu0 0
    %3061 = vmatprep.subr.bf16.mxu0 0
    %3062 = vmatpush1.bf16.msra.mxu0 0
    %3063 = vmatprep.subr.bf16.mxu0 0
    %3064 = vmatpush1.bf16.msra.mxu0 0
    %3065 = vmatprep.subr.bf16.mxu0 0
    %3066 = vmatpush1.bf16.msra.mxu0 0
    %3067 = vmatprep.subr.bf16.mxu0 0
    %3068 = vmatpush1.bf16.msra.mxu0 0
    %3069 = vmatprep.subr.bf16.mxu0 0
    %3070 = vmatpush1.bf16.msra.mxu0 0
    %3071 = vmatprep.subr.bf16.mxu0 0
    %3072 = vmatpush1.bf16.msra.mxu0 0
    %3073 = vmatprep.subr.bf16.mxu0 0
    %3074 = vmatpush1.bf16.msra.mxu0 0
    %3075 = vmatprep.subr.bf16.mxu0 0
    %3076 = vmatpush1.bf16.msra.mxu0 0
    %3077 = vmatprep.subr.bf16.mxu0 0
    %3078 = vmatpush1.bf16.msra.mxu0 0
    %3079 = vmatprep.subr.bf16.mxu0 0
    %3080 = vmatpush1.bf16.msra.mxu0 0
    %3081 = vmatprep.subr.bf16.mxu0 0
    %3082 = vmatpush1.bf16.msra.mxu0 0
    %3083 = vmatprep.subr.bf16.mxu0 0
    %3084 = vmatpush1.bf16.msra.mxu0 0
    %3085 = vmatprep.mubr.bf16.mxu0 0
    %3086 = vmatmul.mubr.bf16.gmra.mrb[0].mxu0 %v3045
    %v3087 = vpop.f32.mrb[0].mxu0
    %v3088 = vadd.f32 %v3031, %v3087
    %v3089 = vpop.f32.mrb[0].mxu0
    %v3090 = vpop.f32.mrb[0].mxu0
    %v3091 = vadd.f32 %v3031, %v3090
    %v3092 = vpop.f32.mrb[0].mxu0
    %3093 = vmatprep.mubr.bf16.mxu0 0
    %3094 = vmatmul.mubr.bf16.gmra.mrb[0].mxu0 %v3048
    %v3095 = vpop.f32.mrb[0].mxu0
    %v3096 = vadd.f32 %v3031, %v3095
    %v3097 = vpop.f32.mrb[0].mxu0
    %v3098 = vpop.f32.mrb[0].mxu0
    %v3099 = vadd.f32 %v3031, %v3098
    %v3100 = vpop.f32.mrb[0].mxu0
    %3101 = vmatprep.mubr.bf16.mxu0 0
    %3102 = vmatmul.mubr.bf16.gmra.mrb[0].mxu0 %v3051
    %v3103 = vpop.f32.mrb[0].mxu0
    %v3104 = vadd.f32 %v3031, %v3103
    %v3105 = vpop.f32.mrb[0].mxu0
    %v3106 = vpop.f32.mrb[0].mxu0
    %v3107 = vpop.f32.mrb[0].mxu0
    %3108 = vdwg.mxu0
    %v3109 = vlaneseq
    %v3110 = vshrl.u32 %v3109, 7
    %v3111 = vsub.s32 0, %v3110
    %v3112 = vrot.slane %v1963, %v3111
    %v3113 = vmul.f32 %v3112, %v3088
    %v3114 = vmul.f32 %v3112, %v3091
    %v3115 = vmul.f32 %v3112, %v3096
    %v3116 = vmul.f32 %v3112, %v3099
    %v3117 = vmul.f32 %v3112, %v3104
    %v3118 = vadd.f32 %v1954, %v3113
    %v3119 = vadd.f32 %v1955, %v3114
    %v3120 = vadd.f32 %v1956, %v3115
    %v3121 = vadd.f32 %v1957, %v3116
    %v3122 = vadd.f32 %v1958, %v3117
    %v3123 = vsel %vm239, %v3118, 0.0
    %3124 = vadd.xlane.f32.xlu0 %v3123
    %v3125 = vpop.xlane.xlu0 %3124
    %v3126 = vsel %vm239, %v3119, 0.0
    %3127 = vadd.xlane.f32.xlu0 %v3126
    %v3128 = vpop.xlane.xlu0 %3127
    %v3129 = vsel %vm239, %v3120, 0.0
    %3130 = vadd.xlane.f32.xlu0 %v3129
    %v3131 = vpop.xlane.xlu0 %3130
    %v3132 = vsel %vm239, %v3121, 0.0
    %3133 = vadd.xlane.f32.xlu0 %v3132
    %v3134 = vpop.xlane.xlu0 %3133
    %v3135 = vsel %vm366, %v3122, 0.0
    %3136 = vadd.xlane.f32.xlu0 %v3135
    %v3137 = vpop.xlane.xlu0 %3136
    %v3138 = vmul.f32 %v3125, %v370
    %v3139 = vmul.f32 %v3128, %v370
    %v3140 = vmul.f32 %v3131, %v370
    %v3141 = vmul.f32 %v3134, %v370
    %v3142 = vmul.f32 %v3137, %v370
    %v3143 = vsub.f32 %v3118, %v3138
    %v3144 = vsub.f32 %v3119, %v3139
    %v3145 = vsub.f32 %v3120, %v3140
    %v3146 = vsub.f32 %v3121, %v3141
    %v3147 = vsub.f32 %v3122, %v3142
    %v3148 = vmul.f32 %v3143, %v3143
    %v3149 = vmul.f32 %v3144, %v3144
    %v3150 = vmul.f32 %v3145, %v3145
    %v3151 = vmul.f32 %v3146, %v3146
    %v3152 = vmul.f32 %v3147, %v3147
    %v3153 = vsel %vm239, %v3148, 0.0
    %3154 = vadd.xlane.f32.xlu0 %v3153
    %v3155 = vpop.xlane.xlu0 %3154
    %v3156 = vsel %vm239, %v3149, 0.0
    %3157 = vadd.xlane.f32.xlu0 %v3156
    %v3158 = vpop.xlane.xlu0 %3157
    %v3159 = vsel %vm239, %v3150, 0.0
    %3160 = vadd.xlane.f32.xlu0 %v3159
    %v3161 = vpop.xlane.xlu0 %3160
    %v3162 = vsel %vm239, %v3151, 0.0
    %3163 = vadd.xlane.f32.xlu0 %v3162
    %v3164 = vpop.xlane.xlu0 %3163
    %v3165 = vsel %vm366, %v3152, 0.0
    %3166 = vadd.xlane.f32.xlu0 %v3165
    %v3167 = vpop.xlane.xlu0 %3166
    %v3168 = vmul.f32 %v3155, %v370
    %v3169 = vmul.f32 %v3158, %v370
    %v3170 = vmul.f32 %v3161, %v370
    %v3171 = vmul.f32 %v3164, %v370
    %v3172 = vmul.f32 %v3167, %v370
    %v3173 = vadd.f32 %v3168, 1e-06
    %v3174 = vadd.f32 %v3169, 1e-06
    %v3175 = vadd.f32 %v3170, 1e-06
    %v3176 = vadd.f32 %v3171, 1e-06
    %v3177 = vadd.f32 %v3172, 1e-06
    %v3178 = vrsqrt.pop %v3173
    %v3179 = vrsqrt.pop %v3174
    %v3180 = vrsqrt.pop %v3175
    %v3181 = vrsqrt.pop %v3176
    %v3182 = vrsqrt.pop %v3177
    %v3183 = vmul.f32 %v3143, %v3178
    %v3184 = vmul.f32 %v3144, %v3179
    %v3185 = vmul.f32 %v3145, %v3180
    %v3186 = vmul.f32 %v3146, %v3181
    %v3187 = vmul.f32 %v3147, %v3182
    %v3188 = vlaneseq
    %v3189 = vshrl.u32 %v3188, 7
    %v3190 = vsub.s32 0, %v3189
    %v3191 = vrot.slane %v1964, %v3190
    %v3192 = vmul.f32 %v3183, %v3191
    %v3193 = vmul.f32 %v3184, %v3191
    %v3194 = vmul.f32 %v3185, %v3191
    %v3195 = vmul.f32 %v3186, %v3191
    %v3196 = vmul.f32 %v3187, %v3191
    %v3197 = vlaneseq
    %v3198 = vshrl.u32 %v3197, 7
    %v3199 = vsub.s32 0, %v3198
    %v3200 = vrot.slane %v1965, %v3199
    %v3201 = vadd.f32 %v3192, %v3200
    %v3202 = vadd.f32 %v3193, %v3200
    %v3203 = vadd.f32 %v3194, %v3200
    %v3204 = vadd.f32 %v3195, %v3200
    %v3205 = vadd.f32 %v3196, %v3200
    %v3206 = vpack.c.bf16 %v3202, %v3201
    %v3207 = vpack.c.bf16 %v3204, %v3203
    %v3208 = vpack.c.bf16 %v3205, %v3205
    %v3209 = vld [vmem:[%s2055 + $0x20] sm:$0xf]
    %v3210 = vld [vmem:[%s2055 + $0x24] sm:$0xf]
    %v3211 = vld [vmem:[%s2055 + $0x28] sm:$0xf]
    %v3212 = vld [vmem:[%s2055 + $0x2c] sm:$0xf]
    %v3213 = vlaneseq
    %v3214 = vshrl.u32 %v3213, 7
    %v3215 = vsub.s32 0, %v3214
    %v3216 = vrot.slane %v1968, %v3215
    %v3221 = vunpack.c.l.b16 %v3209
    %v3222 = vunpack.c.l.b16 %v3210
    %v3223 = vunpack.c.l.b16 %v3211
    %v3224 = vunpack.c.l.b16 %v3212
    %v3225 = vpack.c.b16 %v3222, %v3221
    %v3226 = vpack.c.b16 %v3224, %v3223
    %v3230 = vsel %vm239, %v3206, 0
    %v3233 = vsel %vm239, %v3207, 0
    %v3236 = vsel %vm239, %v3208, 0
    %3238 = vmatprep.subr.bf16.mxu0 0
    %3239 = vmatpush1.bf16.msra.mxu0 %v3225
    %3240 = vmatprep.subr.bf16.mxu0 0
    %3241 = vmatpush1.bf16.msra.mxu0 %v3226
    %3242 = vmatprep.subr.bf16.mxu0 0
    %3243 = vmatpush1.bf16.msra.mxu0 0
    %3244 = vmatprep.subr.bf16.mxu0 0
    %3245 = vmatpush1.bf16.msra.mxu0 0
    %3246 = vmatprep.subr.bf16.mxu0 0
    %3247 = vmatpush1.bf16.msra.mxu0 0
    %3248 = vmatprep.subr.bf16.mxu0 0
    %3249 = vmatpush1.bf16.msra.mxu0 0
    %3250 = vmatprep.subr.bf16.mxu0 0
    %3251 = vmatpush1.bf16.msra.mxu0 0
    %3252 = vmatprep.subr.bf16.mxu0 0
    %3253 = vmatpush1.bf16.msra.mxu0 0
    %3254 = vmatprep.subr.bf16.mxu0 0
    %3255 = vmatpush1.bf16.msra.mxu0 0
    %3256 = vmatprep.subr.bf16.mxu0 0
    %3257 = vmatpush1.bf16.msra.mxu0 0
    %3258 = vmatprep.subr.bf16.mxu0 0
    %3259 = vmatpush1.bf16.msra.mxu0 0
    %3260 = vmatprep.subr.bf16.mxu0 0
    %3261 = vmatpush1.bf16.msra.mxu0 0
    %3262 = vmatprep.subr.bf16.mxu0 0
    %3263 = vmatpush1.bf16.msra.mxu0 0
    %3264 = vmatprep.subr.bf16.mxu0 0
    %3265 = vmatpush1.bf16.msra.mxu0 0
    %3266 = vmatprep.subr.bf16.mxu0 0
    %3267 = vmatpush1.bf16.msra.mxu0 0
    %3268 = vmatprep.subr.bf16.mxu0 0
    %3269 = vmatpush1.bf16.msra.mxu0 0
    %3270 = vmatprep.mubr.bf16.mxu0 0
    %3271 = vmatmul.mubr.bf16.gmra.mrb[0].mxu0 %v3230
    %v3272 = vpop.f32.mrb[0].mxu0
    %v3273 = vadd.f32 %v3216, %v3272
    %v3274 = vpop.f32.mrb[0].mxu0
    %v3275 = vpop.f32.mrb[0].mxu0
    %v3276 = vadd.f32 %v3216, %v3275
    %v3277 = vpop.f32.mrb[0].mxu0
    %3278 = vmatprep.mubr.bf16.mxu0 0
    %3279 = vmatmul.mubr.bf16.gmra.mrb[0].mxu0 %v3233
    %v3280 = vpop.f32.mrb[0].mxu0
    %v3281 = vadd.f32 %v3216, %v3280
    %v3282 = vpop.f32.mrb[0].mxu0
    %v3283 = vpop.f32.mrb[0].mxu0
    %v3284 = vadd.f32 %v3216, %v3283
    %v3285 = vpop.f32.mrb[0].mxu0
    %3286 = vmatprep.mubr.bf16.mxu0 0
    %3287 = vmatmul.mubr.bf16.gmra.mrb[0].mxu0 %v3236
    %v3288 = vpop.f32.mrb[0].mxu0
    %v3289 = vadd.f32 %v3216, %v3288
    %v3290 = vpop.f32.mrb[0].mxu0
    %v3291 = vpop.f32.mrb[0].mxu0
    %v3292 = vpop.f32.mrb[0].mxu0
    %3293 = vdwg.mxu0
    %v3294 = vmul.f32 %v3273, 0.5
    %v3295 = vmul.f32 %v3276, 0.5
    %v3296 = vmul.f32 %v3281, 0.5
    %v3297 = vmul.f32 %v3284, 0.5
    %v3298 = vmul.f32 %v3289, 0.5
    %v3299 = vmul.f32 %v3273, 0.70710677
    %v3300 = vmul.f32 %v3276, 0.70710677
    %v3301 = vmul.f32 %v3281, 0.70710677
    %v3302 = vmul.f32 %v3284, 0.70710677
    %v3303 = vmul.f32 %v3289, 0.70710677
    %v3304 = vand.u32 2147483647, %v3299
    %v3305 = vand.u32 2147483647, %v3300
    %v3306 = vand.u32 2147483647, %v3301
    %v3307 = vand.u32 2147483647, %v3302
    %v3308 = vand.u32 2147483647, %v3303
    %v3309 = vmul.f32 %v3304, 0.3275911
    %v3310 = vmul.f32 %v3305, 0.3275911
    %v3311 = vmul.f32 %v3306, 0.3275911
    %v3312 = vmul.f32 %v3307, 0.3275911
    %v3313 = vmul.f32 %v3308, 0.3275911
    %v3314 = vadd.f32 %v3309, 1.0
    %v3315 = vadd.f32 %v3310, 1.0
    %v3316 = vadd.f32 %v3311, 1.0
    %v3317 = vadd.f32 %v3312, 1.0
    %v3318 = vadd.f32 %v3313, 1.0
    %v3319 = vrcp.pop %v3314
    %v3320 = vmul.f32 1.0, %v3319
    %v3321 = vrcp.pop %v3315
    %v3322 = vmul.f32 1.0, %v3321
    %v3323 = vrcp.pop %v3316
    %v3324 = vmul.f32 1.0, %v3323
    %v3325 = vrcp.pop %v3317
    %v3326 = vmul.f32 1.0, %v3325
    %v3327 = vrcp.pop %v3318
    %v3328 = vmul.f32 1.0, %v3327
    %v3329 = vmul.f32 %v3320, 1.0614054
    %v3330 = vmul.f32 %v3322, 1.0614054
    %v3331 = vmul.f32 %v3324, 1.0614054
    %v3332 = vmul.f32 %v3326, 1.0614054
    %v3333 = vmul.f32 %v3328, 1.0614054
    %v3334 = vadd.f32 %v3329, -1.4531521
    %v3335 = vadd.f32 %v3330, -1.4531521
    %v3336 = vadd.f32 %v3331, -1.4531521
    %v3337 = vadd.f32 %v3332, -1.4531521
    %v3338 = vadd.f32 %v3333, -1.4531521
    %v3339 = vmul.f32 %v3320, %v3334
    %v3340 = vmul.f32 %v3322, %v3335
    %v3341 = vmul.f32 %v3324, %v3336
    %v3342 = vmul.f32 %v3326, %v3337
    %v3343 = vmul.f32 %v3328, %v3338
    %v3344 = vadd.f32 %v3339, 1.4214138
    %v3345 = vadd.f32 %v3340, 1.4214138
    %v3346 = vadd.f32 %v3341, 1.4214138
    %v3347 = vadd.f32 %v3342, 1.4214138
    %v3348 = vadd.f32 %v3343, 1.4214138
    %v3349 = vmul.f32 %v3320, %v3344
    %v3350 = vmul.f32 %v3322, %v3345
    %v3351 = vmul.f32 %v3324, %v3346
    %v3352 = vmul.f32 %v3326, %v3347
    %v3353 = vmul.f32 %v3328, %v3348
    %v3354 = vadd.f32 %v3349, -0.28449672
    %v3355 = vadd.f32 %v3350, -0.28449672
    %v3356 = vadd.f32 %v3351, -0.28449672
    %v3357 = vadd.f32 %v3352, -0.28449672
    %v3358 = vadd.f32 %v3353, -0.28449672
    %v3359 = vmul.f32 %v3320, %v3354
    %v3360 = vmul.f32 %v3322, %v3355
    %v3361 = vmul.f32 %v3324, %v3356
    %v3362 = vmul.f32 %v3326, %v3357
    %v3363 = vmul.f32 %v3328, %v3358
    %v3364 = vadd.f32 %v3359, 0.2548296
    %v3365 = vadd.f32 %v3360, 0.2548296
    %v3366 = vadd.f32 %v3361, 0.2548296
    %v3367 = vadd.f32 %v3362, 0.2548296
    %v3368 = vadd.f32 %v3363, 0.2548296
    %v3369 = vmul.f32 %v3320, %v3364
    %v3370 = vmul.f32 %v3322, %v3365
    %v3371 = vmul.f32 %v3324, %v3366
    %v3372 = vmul.f32 %v3326, %v3367
    %v3373 = vmul.f32 %v3328, %v3368
    %v3374 = vsub.f32 0.0, %v3304
    %v3375 = vsub.f32 0.0, %v3305
    %v3376 = vsub.f32 0.0, %v3306
    %v3377 = vsub.f32 0.0, %v3307
    %v3378 = vsub.f32 0.0, %v3308
    %v3379 = vmul.f32 %v3374, %v3304
    %v3380 = vmul.f32 %v3375, %v3305
    %v3381 = vmul.f32 %v3376, %v3306
    %v3382 = vmul.f32 %v3377, %v3307
    %v3383 = vmul.f32 %v3378, %v3308
    %v3384 = vmul.f32 %v3379, 1.442695
    %v3385 = vpow.pop %v3384
    %v3386 = vmul.f32 %v3380, 1.442695
    %v3387 = vpow.pop %v3386
    %v3388 = vmul.f32 %v3381, 1.442695
    %v3389 = vpow.pop %v3388
    %v3390 = vmul.f32 %v3382, 1.442695
    %v3391 = vpow.pop %v3390
    %v3392 = vmul.f32 %v3383, 1.442695
    %v3393 = vpow.pop %v3392
    %v3394 = vmul.f32 %v3369, %v3385
    %v3395 = vmul.f32 %v3370, %v3387
    %v3396 = vmul.f32 %v3371, %v3389
    %v3397 = vmul.f32 %v3372, %v3391
    %v3398 = vmul.f32 %v3373, %v3393
    %v3399 = vsub.f32 1.0, %v3394
    %v3400 = vsub.f32 1.0, %v3395
    %v3401 = vsub.f32 1.0, %v3396
    %v3402 = vsub.f32 1.0, %v3397
    %v3403 = vsub.f32 1.0, %v3398
    %vm3404 = vcmp.lt.f32.partialorder %v3299, 0.0
    %vm3405 = vcmp.lt.f32.partialorder %v3300, 0.0
    %vm3406 = vcmp.lt.f32.partialorder %v3301, 0.0
    %vm3407 = vcmp.lt.f32.partialorder %v3302, 0.0
    %vm3408 = vcmp.lt.f32.partialorder %v3303, 0.0
    %v3409 = vsub.f32 0.0, %v3399
    %v3410 = vsub.f32 0.0, %v3400
    %v3411 = vsub.f32 0.0, %v3401
    %v3412 = vsub.f32 0.0, %v3402
    %v3413 = vsub.f32 0.0, %v3403
    %v3414 = vsel %vm3404, %v3409, %v3399
    %v3415 = vsel %vm3405, %v3410, %v3400
    %v3416 = vsel %vm3406, %v3411, %v3401
    %v3417 = vsel %vm3407, %v3412, %v3402
    %v3418 = vsel %vm3408, %v3413, %v3403
    %v3419 = vadd.f32 %v3414, 1.0
    %v3420 = vadd.f32 %v3415, 1.0
    %v3421 = vadd.f32 %v3416, 1.0
    %v3422 = vadd.f32 %v3417, 1.0
    %v3423 = vadd.f32 %v3418, 1.0
    %v3424 = vmul.f32 %v3294, %v3419
    %v3425 = vmul.f32 %v3295, %v3420
    %v3426 = vmul.f32 %v3296, %v3421
    %v3427 = vmul.f32 %v3297, %v3422
    %v3428 = vmul.f32 %v3298, %v3423
    %v3429 = vpack.c.bf16 %v3425, %v3424
    %v3430 = vpack.c.bf16 %v3427, %v3426
    %v3431 = vpack.c.bf16 %v3428, %v3428
    %s3432 = scalar_lea.vmem %s5, 64
    %v3433 = vld [vmem:[%s3432] sm:$0xf]
    %v3434 = vld [vmem:[%s3432 + $0x4] sm:$0xf]
    %v3435 = vld [vmem:[%s3432 + $0x8] sm:$0xf]
    %v3436 = vld [vmem:[%s3432 + $0xc] sm:$0xf]
    %v3437 = vld [vmem:[%s3432 + $0x10] sm:$0xf]
    %v3438 = vld [vmem:[%s3432 + $0x14] sm:$0xf]
    %v3439 = vld [vmem:[%s3432 + $0x18] sm:$0xf]
    %v3440 = vld [vmem:[%s3432 + $0x1c] sm:$0xf]
    %v3441 = vld [vmem:[%s3432 + $0x20] sm:$0xf]
    %v3442 = vld [vmem:[%s3432 + $0x24] sm:$0xf]
    %v3443 = vld [vmem:[%s3432 + $0x28] sm:$0xf]
    %v3444 = vld [vmem:[%s3432 + $0x2c] sm:$0xf]
    %v3445 = vld [vmem:[%s3432 + $0x30] sm:$0xf]
    %v3446 = vld [vmem:[%s3432 + $0x34] sm:$0xf]
    %v3447 = vld [vmem:[%s3432 + $0x38] sm:$0xf]
    %v3448 = vld [vmem:[%s3432 + $0x3c] sm:$0xf]
    %v3449 = vlaneseq
    %v3450 = vshrl.u32 %v3449, 7
    %v3451 = vsub.s32 0, %v3450
    %v3452 = vrot.slane %v1966, %v3451
    %v3469 = vunpack.c.l.b16 %v3433
    %v3470 = vunpack.c.l.b16 %v3434
    %v3471 = vunpack.c.l.b16 %v3435
    %v3472 = vunpack.c.l.b16 %v3436
    %v3473 = vunpack.c.l.b16 %v3437
    %v3474 = vunpack.c.l.b16 %v3438
    %v3475 = vunpack.c.l.b16 %v3439
    %v3476 = vunpack.c.l.b16 %v3440
    %v3477 = vunpack.c.l.b16 %v3441
    %v3478 = vunpack.c.l.b16 %v3442
    %v3479 = vunpack.c.l.b16 %v3443
    %v3480 = vunpack.c.l.b16 %v3444
    %v3481 = vunpack.c.l.b16 %v3445
    %v3482 = vunpack.c.l.b16 %v3446
    %v3483 = vunpack.c.l.b16 %v3447
    %v3484 = vunpack.c.l.b16 %v3448
    %v3485 = vpack.c.b16 %v3470, %v3469
    %v3486 = vpack.c.b16 %v3472, %v3471
    %v3487 = vpack.c.b16 %v3474, %v3473
    %v3488 = vpack.c.b16 %v3476, %v3475
    %v3489 = vpack.c.b16 %v3478, %v3477
    %v3490 = vpack.c.b16 %v3480, %v3479
    %v3491 = vpack.c.b16 %v3482, %v3481
    %v3492 = vpack.c.b16 %v3484, %v3483
    %3501 = vmatprep.subr.bf16.mxu0 0
    %3502 = vmatpush1.bf16.msra.mxu0 %v3485
    %3503 = vmatprep.subr.bf16.mxu0 0
    %3504 = vmatpush1.bf16.msra.mxu0 %v3486
    %3505 = vmatprep.subr.bf16.mxu0 0
    %3506 = vmatpush1.bf16.msra.mxu0 %v3487
    %3507 = vmatprep.subr.bf16.mxu0 0
    %3508 = vmatpush1.bf16.msra.mxu0 %v3488
    %3509 = vmatprep.subr.bf16.mxu0 0
    %3510 = vmatpush1.bf16.msra.mxu0 %v3489
    %3511 = vmatprep.subr.bf16.mxu0 0
    %3512 = vmatpush1.bf16.msra.mxu0 %v3490
    %3513 = vmatprep.subr.bf16.mxu0 0
    %3514 = vmatpush1.bf16.msra.mxu0 %v3491
    %3515 = vmatprep.subr.bf16.mxu0 0
    %3516 = vmatpush1.bf16.msra.mxu0 %v3492
    %3517 = vmatprep.subr.bf16.mxu0 0
    %3518 = vmatpush1.bf16.msra.mxu0 0
    %3519 = vmatprep.subr.bf16.mxu0 0
    %3520 = vmatpush1.bf16.msra.mxu0 0
    %3521 = vmatprep.subr.bf16.mxu0 0
    %3522 = vmatpush1.bf16.msra.mxu0 0
    %3523 = vmatprep.subr.bf16.mxu0 0
    %3524 = vmatpush1.bf16.msra.mxu0 0
    %3525 = vmatprep.subr.bf16.mxu0 0
    %3526 = vmatpush1.bf16.msra.mxu0 0
    %3527 = vmatprep.subr.bf16.mxu0 0
    %3528 = vmatpush1.bf16.msra.mxu0 0
    %3529 = vmatprep.subr.bf16.mxu0 0
    %3530 = vmatpush1.bf16.msra.mxu0 0
    %3531 = vmatprep.subr.bf16.mxu0 0
    %3532 = vmatpush1.bf16.msra.mxu0 0
    %3533 = vmatprep.mubr.bf16.mxu0 0
    %3534 = vmatmul.mubr.bf16.gmra.mrb[0].mxu0 %v3429
    %v3535 = vpop.f32.mrb[0].mxu0
    %v3536 = vadd.f32 %v3452, %v3535
    %v3537 = vpop.f32.mrb[0].mxu0
    %v3538 = vpop.f32.mrb[0].mxu0
    %v3539 = vadd.f32 %v3452, %v3538
    %v3540 = vpop.f32.mrb[0].mxu0
    %3541 = vmatprep.mubr.bf16.mxu0 0
    %3542 = vmatmul.mubr.bf16.gmra.mrb[0].mxu0 %v3430
    %v3543 = vpop.f32.mrb[0].mxu0
    %v3544 = vadd.f32 %v3452, %v3543
    %v3545 = vpop.f32.mrb[0].mxu0
    %v3546 = vpop.f32.mrb[0].mxu0
    %v3547 = vadd.f32 %v3452, %v3546
    %v3548 = vpop.f32.mrb[0].mxu0
    %3549 = vmatprep.mubr.bf16.mxu0 0
    %3550 = vmatmul.mubr.bf16.gmra.mrb[0].mxu0 %v3431
    %v3551 = vpop.f32.mrb[0].mxu0
    %v3552 = vadd.f32 %v3452, %v3551
    %v3553 = vpop.f32.mrb[0].mxu0
    %v3554 = vpop.f32.mrb[0].mxu0
    %v3555 = vpop.f32.mrb[0].mxu0
    %3556 = vdwg.mxu0
    %v3557 = vlaneseq
    %v3558 = vshrl.u32 %v3557, 7
    %v3559 = vsub.s32 0, %v3558
    %v3560 = vrot.slane %v1967, %v3559
    %v3561 = vmul.f32 %v3560, %v3536
    %v3562 = vmul.f32 %v3560, %v3539
    %v3563 = vmul.f32 %v3560, %v3544
    %v3564 = vmul.f32 %v3560, %v3547
    %v3565 = vmul.f32 %v3560, %v3552
    %v3566 = vadd.f32 %v3118, %v3561
    %v3567 = vadd.f32 %v3119, %v3562
    %v3568 = vadd.f32 %v3120, %v3563
    %v3569 = vadd.f32 %v3121, %v3564
    %v3570 = vadd.f32 %v3122, %v3565
    %v3571 = vand.u32 2147483647, %v3566
    %v3572 = vand.u32 2147483647, %v3567
    %v3573 = vand.u32 2147483647, %v3568
    %v3574 = vand.u32 2147483647, %v3569
    %v3575 = vand.u32 2147483647, %v3570
    %v3576 = vsel %vm135, %v3566, %v3571
    %v3577 = vsel %vm135, %v3567, %v3572
    %v3578 = vsel %vm135, %v3568, %v3573
    %v3579 = vsel %vm135, %v3569, %v3574
    %v3580 = vsel %vm135, %v3570, %v3575
    %s3581 = scalar_lea.vmem %s6, 32
    %v3582 = vld [vmem:[%s3581] sm:$0x1]
    %v3583 = vld [vmem:[%s3581 + $0x1] sm:$0x1]
    %v3584 = vld [vmem:[%s3581 + $0x2] sm:$0x1]
    %v3585 = vld [vmem:[%s3581 + $0x3] sm:$0x1]
    %v3586 = vld [vmem:[%s3581 + $0x4] sm:$0x1]
    %v3587 = vld [vmem:[%s3581 + $0x5] sm:$0x1]
    %v3588 = vld [vmem:[%s3581 + $0x6] sm:$0x1]
    %v3589 = vld [vmem:[%s3581 + $0x7] sm:$0x1]
    %v3590 = vld [vmem:[%s3581 + $0x8] sm:$0x1]
    %v3591 = vsel %vm239, %v3576, 0.0
    %3592 = vadd.xlane.f32.xlu0 %v3591
    %v3593 = vpop.xlane.xlu0 %3592
    %v3594 = vsel %vm239, %v3577, 0.0
    %3595 = vadd.xlane.f32.xlu0 %v3594
    %v3596 = vpop.xlane.xlu0 %3595
    %v3597 = vsel %vm239, %v3578, 0.0
    %3598 = vadd.xlane.f32.xlu0 %v3597
    %v3599 = vpop.xlane.xlu0 %3598
    %v3600 = vsel %vm239, %v3579, 0.0
    %3601 = vadd.xlane.f32.xlu0 %v3600
    %v3602 = vpop.xlane.xlu0 %3601
    %v3603 = vsel %vm366, %v3580, 0.0
    %3604 = vadd.xlane.f32.xlu0 %v3603
    %v3605 = vpop.xlane.xlu0 %3604
    %v3606 = vmul.f32 %v3593, %v370
    %v3607 = vmul.f32 %v3596, %v370
    %v3608 = vmul.f32 %v3599, %v370
    %v3609 = vmul.f32 %v3602, %v370
    %v3610 = vmul.f32 %v3605, %v370
    %v3611 = vsub.f32 %v3576, %v3606
    %v3612 = vsub.f32 %v3577, %v3607
    %v3613 = vsub.f32 %v3578, %v3608
    %v3614 = vsub.f32 %v3579, %v3609
    %v3615 = vsub.f32 %v3580, %v3610
    %v3616 = vmul.f32 %v3611, %v3611
    %v3617 = vmul.f32 %v3612, %v3612
    %v3618 = vmul.f32 %v3613, %v3613
    %v3619 = vmul.f32 %v3614, %v3614
    %v3620 = vmul.f32 %v3615, %v3615
    %v3621 = vsel %vm239, %v3616, 0.0
    %3622 = vadd.xlane.f32.xlu0 %v3621
    %v3623 = vpop.xlane.xlu0 %3622
    %v3624 = vsel %vm239, %v3617, 0.0
    %3625 = vadd.xlane.f32.xlu0 %v3624
    %v3626 = vpop.xlane.xlu0 %3625
    %v3627 = vsel %vm239, %v3618, 0.0
    %3628 = vadd.xlane.f32.xlu0 %v3627
    %v3629 = vpop.xlane.xlu0 %3628
    %v3630 = vsel %vm239, %v3619, 0.0
    %3631 = vadd.xlane.f32.xlu0 %v3630
    %v3632 = vpop.xlane.xlu0 %3631
    %v3633 = vsel %vm366, %v3620, 0.0
    %3634 = vadd.xlane.f32.xlu0 %v3633
    %v3635 = vpop.xlane.xlu0 %3634
    %v3636 = vmul.f32 %v3623, %v370
    %v3637 = vmul.f32 %v3626, %v370
    %v3638 = vmul.f32 %v3629, %v370
    %v3639 = vmul.f32 %v3632, %v370
    %v3640 = vmul.f32 %v3635, %v370
    %v3641 = vadd.f32 %v3636, 1e-06
    %v3642 = vadd.f32 %v3637, 1e-06
    %v3643 = vadd.f32 %v3638, 1e-06
    %v3644 = vadd.f32 %v3639, 1e-06
    %v3645 = vadd.f32 %v3640, 1e-06
    %v3646 = vrsqrt.pop %v3641
    %v3647 = vrsqrt.pop %v3642
    %v3648 = vrsqrt.pop %v3643
    %v3649 = vrsqrt.pop %v3644
    %v3650 = vrsqrt.pop %v3645
    %v3651 = vmul.f32 %v3611, %v3646
    %v3652 = vmul.f32 %v3612, %v3647
    %v3653 = vmul.f32 %v3613, %v3648
    %v3654 = vmul.f32 %v3614, %v3649
    %v3655 = vmul.f32 %v3615, %v3650
    %v3656 = vlaneseq
    %v3657 = vshrl.u32 %v3656, 7
    %v3658 = vsub.s32 0, %v3657
    %v3659 = vrot.slane %v3582, %v3658
    %v3660 = vmul.f32 %v3651, %v3659
    %v3661 = vmul.f32 %v3652, %v3659
    %v3662 = vmul.f32 %v3653, %v3659
    %v3663 = vmul.f32 %v3654, %v3659
    %v3664 = vmul.f32 %v3655, %v3659
    %v3665 = vlaneseq
    %v3666 = vshrl.u32 %v3665, 7
    %v3667 = vsub.s32 0, %v3666
    %v3668 = vrot.slane %v3583, %v3667
    %v3669 = vadd.f32 %v3660, %v3668
    %v3670 = vadd.f32 %v3661, %v3668
    %v3671 = vadd.f32 %v3662, %v3668
    %v3672 = vadd.f32 %v3663, %v3668
    %v3673 = vadd.f32 %v3664, %v3668
    %v3674 = vpack.c.bf16 %v3670, %v3669
    %v3675 = vpack.c.bf16 %v3672, %v3671
    %v3676 = vpack.c.bf16 %v3673, %v3673
    %s3677 = scalar_lea.vmem %s4, 96
    %v3678 = vld [vmem:[%s3677] sm:$0xf]
    %v3679 = vld [vmem:[%s3677 + $0x4] sm:$0xf]
    %v3680 = vld [vmem:[%s3677 + $0x8] sm:$0xf]
    %v3681 = vld [vmem:[%s3677 + $0xc] sm:$0xf]
    %v3686 = vunpack.c.l.b16 %v3678
    %v3687 = vunpack.c.l.b16 %v3679
    %v3688 = vunpack.c.l.b16 %v3680
    %v3689 = vunpack.c.l.b16 %v3681
    %v3690 = vpack.c.b16 %v3687, %v3686
    %v3691 = vpack.c.b16 %v3689, %v3688
    %v3695 = vsel %vm239, %v3674, 0
    %v3698 = vsel %vm239, %v3675, 0
    %v3701 = vsel %vm239, %v3676, 0
    %3703 = vmatprep.subr.bf16.mxu0 0
    %3704 = vmatpush1.bf16.msra.mxu0 %v3690
    %3705 = vmatprep.subr.bf16.mxu0 0
    %3706 = vmatpush1.bf16.msra.mxu0 %v3691
    %3707 = vmatprep.subr.bf16.mxu0 0
    %3708 = vmatpush1.bf16.msra.mxu0 0
    %3709 = vmatprep.subr.bf16.mxu0 0
    %3710 = vmatpush1.bf16.msra.mxu0 0
    %3711 = vmatprep.subr.bf16.mxu0 0
    %3712 = vmatpush1.bf16.msra.mxu0 0
    %3713 = vmatprep.subr.bf16.mxu0 0
    %3714 = vmatpush1.bf16.msra.mxu0 0
    %3715 = vmatprep.subr.bf16.mxu0 0
    %3716 = vmatpush1.bf16.msra.mxu0 0
    %3717 = vmatprep.subr.bf16.mxu0 0
    %3718 = vmatpush1.bf16.msra.mxu0 0
    %3719 = vmatprep.subr.bf16.mxu0 0
    %3720 = vmatpush1.bf16.msra.mxu0 0
    %3721 = vmatprep.subr.bf16.mxu0 0
    %3722 = vmatpush1.bf16.msra.mxu0 0
    %3723 = vmatprep.subr.bf16.mxu0 0
    %3724 = vmatpush1.bf16.msra.mxu0 0
    %3725 = vmatprep.subr.bf16.mxu0 0
    %3726 = vmatpush1.bf16.msra.mxu0 0
    %3727 = vmatprep.subr.bf16.mxu0 0
    %3728 = vmatpush1.bf16.msra.mxu0 0
    %3729 = vmatprep.subr.bf16.mxu0 0
    %3730 = vmatpush1.bf16.msra.mxu0 0
    %3731 = vmatprep.subr.bf16.mxu0 0
    %3732 = vmatpush1.bf16.msra.mxu0 0
    %3733 = vmatprep.subr.bf16.mxu0 0
    %3734 = vmatpush1.bf16.msra.mxu0 0
    %3735 = vmatprep.mubr.bf16.mxu0 0
    %3736 = vmatmul.mubr.bf16.gmra.mrb[0].mxu0 %v3695
    %v3737 = vpop.f32.mrb[0].mxu0
    %v3738 = vadd.f32 0.0, %v3737
    %v3739 = vpop.f32.mrb[0].mxu0
    %v3740 = vpop.f32.mrb[0].mxu0
    %v3741 = vadd.f32 0.0, %v3740
    %v3742 = vpop.f32.mrb[0].mxu0
    %3743 = vmatprep.mubr.bf16.mxu0 0
    %3744 = vmatmul.mubr.bf16.gmra.mrb[0].mxu0 %v3698
    %v3745 = vpop.f32.mrb[0].mxu0
    %v3746 = vadd.f32 0.0, %v3745
    %v3747 = vpop.f32.mrb[0].mxu0
    %v3748 = vpop.f32.mrb[0].mxu0
    %v3749 = vadd.f32 0.0, %v3748
    %v3750 = vpop.f32.mrb[0].mxu0
    %3751 = vmatprep.mubr.bf16.mxu0 0
    %3752 = vmatmul.mubr.bf16.gmra.mrb[0].mxu0 %v3701
    %v3753 = vpop.f32.mrb[0].mxu0
    %v3754 = vadd.f32 0.0, %v3753
    %v3755 = vpop.f32.mrb[0].mxu0
    %v3756 = vpop.f32.mrb[0].mxu0
    %v3757 = vpop.f32.mrb[0].mxu0
    %3758 = vdwg.mxu0
    %v3759 = vmul.f32 %v3738, 0.35355338
    %v3760 = vmul.f32 %v3741, 0.35355338
    %v3761 = vmul.f32 %v3746, 0.35355338
    %v3762 = vmul.f32 %v3749, 0.35355338
    %v3763 = vmul.f32 %v3754, 0.35355338
    %v3764 = vpack.c.bf16 %v3741, %v3738
    %v3765 = vpack.c.bf16 %v3749, %v3746
    %v3766 = vpack.c.bf16 %v3754, %v3754
    %v3767 = vsel %vm133, %v3759, 0.0
    %v3768 = vsel %vm133, %v3760, 0.0
    %v3769 = vsel %vm133, %v3761, 0.0
    %v3770 = vsel %vm133, %v3762, 0.0
    %v3771 = vsel %vm133, %v3763, 0.0
    %v3772 = vpack.c.bf16 %v3768, %v3767
    %v3773 = vpack.c.bf16 %v3770, %v3769
    %v3774 = vpack.c.bf16 %v3771, %v3771
    %3780 = vrot.lane.b32.xlu0 %v3738, 64
    %v3781 = vpop.permute.xlu0 %3780
    %3782 = vrot.lane.b32.xlu0 %v3741, 64
    %v3783 = vpop.permute.xlu0 %3782
    %3784 = vrot.lane.b32.xlu0 %v3746, 64
    %v3785 = vpop.permute.xlu0 %3784
    %3786 = vrot.lane.b32.xlu0 %v3749, 64
    %v3787 = vpop.permute.xlu0 %3786
    %3788 = vrot.lane.b32.xlu0 %v3754, 64
    %v3789 = vpop.permute.xlu0 %3788
    %v3795 = vsel %vm133, %v3781, 0.0
    %v3796 = vsel %vm133, %v3783, 0.0
    %v3797 = vsel %vm133, %v3785, 0.0
    %v3798 = vsel %vm133, %v3787, 0.0
    %v3799 = vsel %vm133, %v3789, 0.0
    %v3800 = vpack.c.bf16 %v3796, %v3795
    %v3801 = vpack.c.bf16 %v3798, %v3797
    %v3802 = vpack.c.bf16 %v3799, %v3799
    %3806 = vrot.lane.b32.xlu0 %v3764, 96
    %v3807 = vpop.permute.xlu0 %3806
    %3808 = vrot.lane.b32.xlu0 %v3765, 96
    %v3809 = vpop.permute.xlu0 %3808
    %3810 = vrot.lane.b32.xlu0 %v3766, 96
    %v3811 = vpop.permute.xlu0 %3810
    %v3813 = vsel %vm239, %v3772, 0
    %v3816 = vsel %vm239, %v3773, 0
    %v3819 = vsel %vm239, %v3774, 0
    %v3822 = vsel %vm239, %v3807, 0
    %v3825 = vsel %vm239, %v3809, 0
    %v3828 = vsel %vm239, %v3811, 0
    %3830 = vmatprep.subr.bf16.mxu0 0
    %3831 = vmatpush1.bf16.xpose.msra.mxu0 %v3822
    %3832 = vmatprep.subr.bf16.mxu0 0
    %3833 = vmatpush1.bf16.xpose.msra.mxu0 %v3825
    %3834 = vmatprep.subr.bf16.mxu0 0
    %3835 = vmatpush1.bf16.xpose.msra.mxu0 %v3828
    %3836 = vmatprep.subr.bf16.mxu0 0
    %3837 = vmatpush1.bf16.xpose.msra.mxu0 0
    %3838 = vmatprep.subr.bf16.mxu0 0
    %3839 = vmatpush1.bf16.xpose.msra.mxu0 0
    %3840 = vmatprep.subr.bf16.mxu0 0
    %3841 = vmatpush1.bf16.xpose.msra.mxu0 0
    %3842 = vmatprep.subr.bf16.mxu0 0
    %3843 = vmatpush1.bf16.xpose.msra.mxu0 0
    %3844 = vmatprep.subr.bf16.mxu0 0
    %3845 = vmatpush1.bf16.xpose.msra.mxu0 0
    %3846 = vmatprep.subr.bf16.mxu0 0
    %3847 = vmatpush1.bf16.xpose.msra.mxu0 0
    %3848 = vmatprep.subr.bf16.mxu0 0
    %3849 = vmatpush1.bf16.xpose.msra.mxu0 0
    %3850 = vmatprep.subr.bf16.mxu0 0
    %3851 = vmatpush1.bf16.xpose.msra.mxu0 0
    %3852 = vmatprep.subr.bf16.mxu0 0
    %3853 = vmatpush1.bf16.xpose.msra.mxu0 0
    %3854 = vmatprep.subr.bf16.mxu0 0
    %3855 = vmatpush1.bf16.xpose.msra.mxu0 0
    %3856 = vmatprep.subr.bf16.mxu0 0
    %3857 = vmatpush1.bf16.xpose.msra.mxu0 0
    %3858 = vmatprep.subr.bf16.mxu0 0
    %3859 = vmatpush1.bf16.xpose.msra.mxu0 0
    %3860 = vmatprep.subr.bf16.mxu0 0
    %3861 = vmatpush1.bf16.xpose.msra.mxu0 0
    %3862 = vmatprep.mubr.bf16.mxu0 0
    %3863 = vmatmul.mubr.bf16.gmra.mrb[0].mxu0 %v3813
    %v3864 = vpop.f32.mrb[0].mxu0
    %v3865 = vadd.f32 %v96, %v3864
    %v3866 = vpop.f32.mrb[0].mxu0
    %v3867 = vpop.f32.mrb[0].mxu0
    %v3868 = vadd.f32 %v97, %v3867
    %v3869 = vpop.f32.mrb[0].mxu0
    %3870 = vmatprep.mubr.bf16.mxu0 0
    %3871 = vmatmul.mubr.bf16.gmra.mrb[0].mxu0 %v3816
    %v3872 = vpop.f32.mrb[0].mxu0
    %v3873 = vadd.f32 %v98, %v3872
    %v3874 = vpop.f32.mrb[0].mxu0
    %v3875 = vpop.f32.mrb[0].mxu0
    %v3876 = vadd.f32 %v99, %v3875
    %v3877 = vpop.f32.mrb[0].mxu0
    %3878 = vmatprep.mubr.bf16.mxu0 0
    %3879 = vmatmul.mubr.bf16.gmra.mrb[0].mxu0 %v3819
    %v3880 = vpop.f32.mrb[0].mxu0
    %v3881 = vadd.f32 %v100, %v3880
    %v3882 = vpop.f32.mrb[0].mxu0
    %v3883 = vpop.f32.mrb[0].mxu0
    %v3884 = vpop.f32.mrb[0].mxu0
    %3885 = vdwg.mxu0
    %v3886 = vsel %vm650, %v3865, -inf
    %3887 = vmax.xlane.f32.xlu0 %v3886
    %v3888 = vpop.xlane.xlu0 %3887
    %v3889 = vsel %vm650, %v3868, -inf
    %3890 = vmax.xlane.f32.xlu0 %v3889
    %v3891 = vpop.xlane.xlu0 %3890
    %v3892 = vsel %vm650, %v3873, -inf
    %3893 = vmax.xlane.f32.xlu0 %v3892
    %v3894 = vpop.xlane.xlu0 %3893
    %v3895 = vsel %vm650, %v3876, -inf
    %3896 = vmax.xlane.f32.xlu0 %v3895
    %v3897 = vpop.xlane.xlu0 %3896
    %v3898 = vsel %vm663, %v3881, -inf
    %3899 = vmax.xlane.f32.xlu0 %v3898
    %v3900 = vpop.xlane.xlu0 %3899
    %v3901 = vsub.f32 %v3865, %v3888
    %v3902 = vsub.f32 %v3868, %v3891
    %v3903 = vsub.f32 %v3873, %v3894
    %v3904 = vsub.f32 %v3876, %v3897
    %v3905 = vsub.f32 %v3881, %v3900
    %v3906 = vmul.f32 %v3901, 1.442695
    %v3907 = vpow.pop %v3906
    %v3908 = vmul.f32 %v3902, 1.442695
    %v3909 = vpow.pop %v3908
    %v3910 = vmul.f32 %v3903, 1.442695
    %v3911 = vpow.pop %v3910
    %v3912 = vmul.f32 %v3904, 1.442695
    %v3913 = vpow.pop %v3912
    %v3914 = vmul.f32 %v3905, 1.442695
    %v3915 = vpow.pop %v3914
    %v3916 = vsel %vm650, %v3907, 0.0
    %3917 = vadd.xlane.f32.xlu0 %v3916
    %v3918 = vpop.xlane.xlu0 %3917
    %v3919 = vsel %vm650, %v3909, 0.0
    %3920 = vadd.xlane.f32.xlu0 %v3919
    %v3921 = vpop.xlane.xlu0 %3920
    %v3922 = vsel %vm650, %v3911, 0.0
    %3923 = vadd.xlane.f32.xlu0 %v3922
    %v3924 = vpop.xlane.xlu0 %3923
    %v3925 = vsel %vm650, %v3913, 0.0
    %3926 = vadd.xlane.f32.xlu0 %v3925
    %v3927 = vpop.xlane.xlu0 %3926
    %v3928 = vsel %vm663, %v3915, 0.0
    %3929 = vadd.xlane.f32.xlu0 %v3928
    %v3930 = vpop.xlane.xlu0 %3929
    %v3931 = vrcp.pop %v3918
    %v3932 = vrcp.pop %v3921
    %v3933 = vrcp.pop %v3924
    %v3934 = vrcp.pop %v3927
    %v3935 = vrcp.pop %v3930
    %v3936 = vmul.f32 %v3907, %v3931
    %v3937 = vmul.f32 %v3909, %v3932
    %v3938 = vmul.f32 %v3911, %v3933
    %v3939 = vmul.f32 %v3913, %v3934
    %v3940 = vmul.f32 %v3915, %v3935
    %v3941 = vpack.c.bf16 %v3937, %v3936
    %v3942 = vpack.c.bf16 %v3939, %v3938
    %v3943 = vpack.c.bf16 %v3940, %v3940
    %v3944 = vsel %vm136, %v3759, 0.0
    %v3945 = vsel %vm136, %v3760, 0.0
    %v3946 = vsel %vm136, %v3761, 0.0
    %v3947 = vsel %vm136, %v3762, 0.0
    %v3948 = vsel %vm136, %v3763, 0.0
    %v3949 = vpack.c.bf16 %v3945, %v3944
    %v3950 = vpack.c.bf16 %v3947, %v3946
    %v3951 = vpack.c.bf16 %v3948, %v3948
    %v3952 = vsel %vm136, %v3781, 0.0
    %v3953 = vsel %vm136, %v3783, 0.0
    %v3954 = vsel %vm136, %v3785, 0.0
    %v3955 = vsel %vm136, %v3787, 0.0
    %v3956 = vsel %vm136, %v3789, 0.0
    %v3957 = vpack.c.bf16 %v3953, %v3952
    %v3958 = vpack.c.bf16 %v3955, %v3954
    %v3959 = vpack.c.bf16 %v3956, %v3956
    %v3961 = vsel %vm239, %v3949, 0
    %v3964 = vsel %vm239, %v3950, 0
    %v3967 = vsel %vm239, %v3951, 0
    %3969 = vmatprep.subr.bf16.mxu0 0
    %3970 = vmatpush1.bf16.xpose.msra.mxu0 %v3822
    %3971 = vmatprep.subr.bf16.mxu0 0
    %3972 = vmatpush1.bf16.xpose.msra.mxu0 %v3825
    %3973 = vmatprep.subr.bf16.mxu0 0
    %3974 = vmatpush1.bf16.xpose.msra.mxu0 %v3828
    %3975 = vmatprep.subr.bf16.mxu0 0
    %3976 = vmatpush1.bf16.xpose.msra.mxu0 0
    %3977 = vmatprep.subr.bf16.mxu0 0
    %3978 = vmatpush1.bf16.xpose.msra.mxu0 0
    %3979 = vmatprep.subr.bf16.mxu0 0
    %3980 = vmatpush1.bf16.xpose.msra.mxu0 0
    %3981 = vmatprep.subr.bf16.mxu0 0
    %3982 = vmatpush1.bf16.xpose.msra.mxu0 0
    %3983 = vmatprep.subr.bf16.mxu0 0
    %3984 = vmatpush1.bf16.xpose.msra.mxu0 0
    %3985 = vmatprep.subr.bf16.mxu0 0
    %3986 = vmatpush1.bf16.xpose.msra.mxu0 0
    %3987 = vmatprep.subr.bf16.mxu0 0
    %3988 = vmatpush1.bf16.xpose.msra.mxu0 0
    %3989 = vmatprep.subr.bf16.mxu0 0
    %3990 = vmatpush1.bf16.xpose.msra.mxu0 0
    %3991 = vmatprep.subr.bf16.mxu0 0
    %3992 = vmatpush1.bf16.xpose.msra.mxu0 0
    %3993 = vmatprep.subr.bf16.mxu0 0
    %3994 = vmatpush1.bf16.xpose.msra.mxu0 0
    %3995 = vmatprep.subr.bf16.mxu0 0
    %3996 = vmatpush1.bf16.xpose.msra.mxu0 0
    %3997 = vmatprep.subr.bf16.mxu0 0
    %3998 = vmatpush1.bf16.xpose.msra.mxu0 0
    %3999 = vmatprep.subr.bf16.mxu0 0
    %4000 = vmatpush1.bf16.xpose.msra.mxu0 0
    %4001 = vmatprep.mubr.bf16.mxu0 0
    %4002 = vmatmul.mubr.bf16.gmra.mrb[0].mxu0 %v3961
    %v4003 = vpop.f32.mrb[0].mxu0
    %v4004 = vadd.f32 %v96, %v4003
    %v4005 = vpop.f32.mrb[0].mxu0
    %v4006 = vpop.f32.mrb[0].mxu0
    %v4007 = vadd.f32 %v97, %v4006
    %v4008 = vpop.f32.mrb[0].mxu0
    %4009 = vmatprep.mubr.bf16.mxu0 0
    %4010 = vmatmul.mubr.bf16.gmra.mrb[0].mxu0 %v3964
    %v4011 = vpop.f32.mrb[0].mxu0
    %v4012 = vadd.f32 %v98, %v4011
    %v4013 = vpop.f32.mrb[0].mxu0
    %v4014 = vpop.f32.mrb[0].mxu0
    %v4015 = vadd.f32 %v99, %v4014
    %v4016 = vpop.f32.mrb[0].mxu0
    %4017 = vmatprep.mubr.bf16.mxu0 0
    %4018 = vmatmul.mubr.bf16.gmra.mrb[0].mxu0 %v3967
    %v4019 = vpop.f32.mrb[0].mxu0
    %v4020 = vadd.f32 %v100, %v4019
    %v4021 = vpop.f32.mrb[0].mxu0
    %v4022 = vpop.f32.mrb[0].mxu0
    %v4023 = vpop.f32.mrb[0].mxu0
    %4024 = vdwg.mxu0
    %v4025 = vsel %vm650, %v4004, -inf
    %4026 = vmax.xlane.f32.xlu0 %v4025
    %v4027 = vpop.xlane.xlu0 %4026
    %v4028 = vsel %vm650, %v4007, -inf
    %4029 = vmax.xlane.f32.xlu0 %v4028
    %v4030 = vpop.xlane.xlu0 %4029
    %v4031 = vsel %vm650, %v4012, -inf
    %4032 = vmax.xlane.f32.xlu0 %v4031
    %v4033 = vpop.xlane.xlu0 %4032
    %v4034 = vsel %vm650, %v4015, -inf
    %4035 = vmax.xlane.f32.xlu0 %v4034
    %v4036 = vpop.xlane.xlu0 %4035
    %v4037 = vsel %vm663, %v4020, -inf
    %4038 = vmax.xlane.f32.xlu0 %v4037
    %v4039 = vpop.xlane.xlu0 %4038
    %v4040 = vsub.f32 %v4004, %v4027
    %v4041 = vsub.f32 %v4007, %v4030
    %v4042 = vsub.f32 %v4012, %v4033
    %v4043 = vsub.f32 %v4015, %v4036
    %v4044 = vsub.f32 %v4020, %v4039
    %v4045 = vmul.f32 %v4040, 1.442695
    %v4046 = vpow.pop %v4045
    %v4047 = vmul.f32 %v4041, 1.442695
    %v4048 = vpow.pop %v4047
    %v4049 = vmul.f32 %v4042, 1.442695
    %v4050 = vpow.pop %v4049
    %v4051 = vmul.f32 %v4043, 1.442695
    %v4052 = vpow.pop %v4051
    %v4053 = vmul.f32 %v4044, 1.442695
    %v4054 = vpow.pop %v4053
    %v4055 = vsel %vm650, %v4046, 0.0
    %4056 = vadd.xlane.f32.xlu0 %v4055
    %v4057 = vpop.xlane.xlu0 %4056
    %v4058 = vsel %vm650, %v4048, 0.0
    %4059 = vadd.xlane.f32.xlu0 %v4058
    %v4060 = vpop.xlane.xlu0 %4059
    %v4061 = vsel %vm650, %v4050, 0.0
    %4062 = vadd.xlane.f32.xlu0 %v4061
    %v4063 = vpop.xlane.xlu0 %4062
    %v4064 = vsel %vm650, %v4052, 0.0
    %4065 = vadd.xlane.f32.xlu0 %v4064
    %v4066 = vpop.xlane.xlu0 %4065
    %v4067 = vsel %vm663, %v4054, 0.0
    %4068 = vadd.xlane.f32.xlu0 %v4067
    %v4069 = vpop.xlane.xlu0 %4068
    %v4070 = vrcp.pop %v4057
    %v4071 = vrcp.pop %v4060
    %v4072 = vrcp.pop %v4063
    %v4073 = vrcp.pop %v4066
    %v4074 = vrcp.pop %v4069
    %v4075 = vmul.f32 %v4046, %v4070
    %v4076 = vmul.f32 %v4048, %v4071
    %v4077 = vmul.f32 %v4050, %v4072
    %v4078 = vmul.f32 %v4052, %v4073
    %v4079 = vmul.f32 %v4054, %v4074
    %v4080 = vpack.c.bf16 %v4076, %v4075
    %v4081 = vpack.c.bf16 %v4078, %v4077
    %v4082 = vpack.c.bf16 %v4079, %v4079
    %v4084 = vsel %vm650, %v4080, 0
    %v4087 = vsel %vm650, %v4081, 0
    %v4090 = vsel %vm650, %v4082, 0
    %v4093 = vsel %vm858, %v3959, 0
    %4095 = vmatprep.subr.bf16.mxu0 0
    %4096 = vmatpush1.bf16.msra.mxu0 %v3957
    %4097 = vmatprep.subr.bf16.mxu0 0
    %4098 = vmatpush1.bf16.msra.mxu0 %v3958
    %4099 = vmatprep.subr.bf16.mxu0 0
    %4100 = vmatpush1.bf16.msra.mxu0 %v4093
    %4101 = vmatprep.subr.bf16.mxu0 0
    %4102 = vmatpush1.bf16.msra.mxu0 0
    %4103 = vmatprep.subr.bf16.mxu0 0
    %4104 = vmatpush1.bf16.msra.mxu0 0
    %4105 = vmatprep.subr.bf16.mxu0 0
    %4106 = vmatpush1.bf16.msra.mxu0 0
    %4107 = vmatprep.subr.bf16.mxu0 0
    %4108 = vmatpush1.bf16.msra.mxu0 0
    %4109 = vmatprep.subr.bf16.mxu0 0
    %4110 = vmatpush1.bf16.msra.mxu0 0
    %4111 = vmatprep.subr.bf16.mxu0 0
    %4112 = vmatpush1.bf16.msra.mxu0 0
    %4113 = vmatprep.subr.bf16.mxu0 0
    %4114 = vmatpush1.bf16.msra.mxu0 0
    %4115 = vmatprep.subr.bf16.mxu0 0
    %4116 = vmatpush1.bf16.msra.mxu0 0
    %4117 = vmatprep.subr.bf16.mxu0 0
    %4118 = vmatpush1.bf16.msra.mxu0 0
    %4119 = vmatprep.subr.bf16.mxu0 0
    %4120 = vmatpush1.bf16.msra.mxu0 0
    %4121 = vmatprep.subr.bf16.mxu0 0
    %4122 = vmatpush1.bf16.msra.mxu0 0
    %4123 = vmatprep.subr.bf16.mxu0 0
    %4124 = vmatpush1.bf16.msra.mxu0 0
    %4125 = vmatprep.subr.bf16.mxu0 0
    %4126 = vmatpush1.bf16.msra.mxu0 0
    %4127 = vmatprep.mubr.bf16.mxu0 0
    %4128 = vmatmul.mubr.bf16.gmra.mrb[0].mxu0 %v4084
    %v4129 = vpop.f32.mrb[0].mxu0
    %v4130 = vadd.f32 0.0, %v4129
    %v4131 = vpop.f32.mrb[0].mxu0
    %v4132 = vpop.f32.mrb[0].mxu0
    %v4133 = vadd.f32 0.0, %v4132
    %v4134 = vpop.f32.mrb[0].mxu0
    %4135 = vmatprep.mubr.bf16.mxu0 0
    %4136 = vmatmul.mubr.bf16.gmra.mrb[0].mxu0 %v4087
    %v4137 = vpop.f32.mrb[0].mxu0
    %v4138 = vadd.f32 0.0, %v4137
    %v4139 = vpop.f32.mrb[0].mxu0
    %v4140 = vpop.f32.mrb[0].mxu0
    %v4141 = vadd.f32 0.0, %v4140
    %v4142 = vpop.f32.mrb[0].mxu0
    %4143 = vmatprep.mubr.bf16.mxu0 0
    %4144 = vmatmul.mubr.bf16.gmra.mrb[0].mxu0 %v4090
    %v4145 = vpop.f32.mrb[0].mxu0
    %v4146 = vadd.f32 0.0, %v4145
    %v4147 = vpop.f32.mrb[0].mxu0
    %v4148 = vpop.f32.mrb[0].mxu0
    %v4149 = vpop.f32.mrb[0].mxu0
    %4150 = vdwg.mxu0
    %v4152 = vsel %vm650, %v3941, 0
    %v4155 = vsel %vm650, %v3942, 0
    %v4158 = vsel %vm650, %v3943, 0
    %v4161 = vsel %vm858, %v3802, 0
    %4163 = vmatprep.subr.bf16.mxu0 0
    %4164 = vmatpush1.bf16.msra.mxu0 %v3800
    %4165 = vmatprep.subr.bf16.mxu0 0
    %4166 = vmatpush1.bf16.msra.mxu0 %v3801
    %4167 = vmatprep.subr.bf16.mxu0 0
    %4168 = vmatpush1.bf16.msra.mxu0 %v4161
    %4169 = vmatprep.subr.bf16.mxu0 0
    %4170 = vmatpush1.bf16.msra.mxu0 0
    %4171 = vmatprep.subr.bf16.mxu0 0
    %4172 = vmatpush1.bf16.msra.mxu0 0
    %4173 = vmatprep.subr.bf16.mxu0 0
    %4174 = vmatpush1.bf16.msra.mxu0 0
    %4175 = vmatprep.subr.bf16.mxu0 0
    %4176 = vmatpush1.bf16.msra.mxu0 0
    %4177 = vmatprep.subr.bf16.mxu0 0
    %4178 = vmatpush1.bf16.msra.mxu0 0
    %4179 = vmatprep.subr.bf16.mxu0 0
    %4180 = vmatpush1.bf16.msra.mxu0 0
    %4181 = vmatprep.subr.bf16.mxu0 0
    %4182 = vmatpush1.bf16.msra.mxu0 0
    %4183 = vmatprep.subr.bf16.mxu0 0
    %4184 = vmatpush1.bf16.msra.mxu0 0
    %4185 = vmatprep.subr.bf16.mxu0 0
    %4186 = vmatpush1.bf16.msra.mxu0 0
    %4187 = vmatprep.subr.bf16.mxu0 0
    %4188 = vmatpush1.bf16.msra.mxu0 0
    %4189 = vmatprep.subr.bf16.mxu0 0
    %4190 = vmatpush1.bf16.msra.mxu0 0
    %4191 = vmatprep.subr.bf16.mxu0 0
    %4192 = vmatpush1.bf16.msra.mxu0 0
    %4193 = vmatprep.subr.bf16.mxu0 0
    %4194 = vmatpush1.bf16.msra.mxu0 0
    %4195 = vmatprep.mubr.bf16.mxu0 0
    %4196 = vmatmul.mubr.bf16.gmra.mrb[0].mxu0 %v4152
    %v4197 = vpop.f32.mrb[0].mxu0
    %v4198 = vadd.f32 %v4130, %v4197
    %v4199 = vpop.f32.mrb[0].mxu0
    %v4200 = vpop.f32.mrb[0].mxu0
    %v4201 = vadd.f32 %v4133, %v4200
    %v4202 = vpop.f32.mrb[0].mxu0
    %4203 = vmatprep.mubr.bf16.mxu0 0
    %4204 = vmatmul.mubr.bf16.gmra.mrb[0].mxu0 %v4155
    %v4205 = vpop.f32.mrb[0].mxu0
    %v4206 = vadd.f32 %v4138, %v4205
    %v4207 = vpop.f32.mrb[0].mxu0
    %v4208 = vpop.f32.mrb[0].mxu0
    %v4209 = vadd.f32 %v4141, %v4208
    %v4210 = vpop.f32.mrb[0].mxu0
    %4211 = vmatprep.mubr.bf16.mxu0 0
    %4212 = vmatmul.mubr.bf16.gmra.mrb[0].mxu0 %v4158
    %v4213 = vpop.f32.mrb[0].mxu0
    %v4214 = vadd.f32 %v4146, %v4213
    %v4215 = vpop.f32.mrb[0].mxu0
    %v4216 = vpop.f32.mrb[0].mxu0
    %v4217 = vpop.f32.mrb[0].mxu0
    %4218 = vdwg.mxu0
    %v4219 = vsel %vm139, %v3759, 0.0
    %v4220 = vsel %vm139, %v3760, 0.0
    %v4221 = vsel %vm139, %v3761, 0.0
    %v4222 = vsel %vm139, %v3762, 0.0
    %v4223 = vsel %vm139, %v3763, 0.0
    %v4224 = vpack.c.bf16 %v4220, %v4219
    %v4225 = vpack.c.bf16 %v4222, %v4221
    %v4226 = vpack.c.bf16 %v4223, %v4223
    %v4227 = vsel %vm139, %v3781, 0.0
    %v4228 = vsel %vm139, %v3783, 0.0
    %v4229 = vsel %vm139, %v3785, 0.0
    %v4230 = vsel %vm139, %v3787, 0.0
    %v4231 = vsel %vm139, %v3789, 0.0
    %v4232 = vpack.c.bf16 %v4228, %v4227
    %v4233 = vpack.c.bf16 %v4230, %v4229
    %v4234 = vpack.c.bf16 %v4231, %v4231
    %v4236 = vsel %vm239, %v4224, 0
    %v4239 = vsel %vm239, %v4225, 0
    %v4242 = vsel %vm239, %v4226, 0
    %4244 = vmatprep.subr.bf16.mxu0 0
    %4245 = vmatpush1.bf16.xpose.msra.mxu0 %v3822
    %4246 = vmatprep.subr.bf16.mxu0 0
    %4247 = vmatpush1.bf16.xpose.msra.mxu0 %v3825
    %4248 = vmatprep.subr.bf16.mxu0 0
    %4249 = vmatpush1.bf16.xpose.msra.mxu0 %v3828
    %4250 = vmatprep.subr.bf16.mxu0 0
    %4251 = vmatpush1.bf16.xpose.msra.mxu0 0
    %4252 = vmatprep.subr.bf16.mxu0 0
    %4253 = vmatpush1.bf16.xpose.msra.mxu0 0
    %4254 = vmatprep.subr.bf16.mxu0 0
    %4255 = vmatpush1.bf16.xpose.msra.mxu0 0
    %4256 = vmatprep.subr.bf16.mxu0 0
    %4257 = vmatpush1.bf16.xpose.msra.mxu0 0
    %4258 = vmatprep.subr.bf16.mxu0 0
    %4259 = vmatpush1.bf16.xpose.msra.mxu0 0
    %4260 = vmatprep.subr.bf16.mxu0 0
    %4261 = vmatpush1.bf16.xpose.msra.mxu0 0
    %4262 = vmatprep.subr.bf16.mxu0 0
    %4263 = vmatpush1.bf16.xpose.msra.mxu0 0
    %4264 = vmatprep.subr.bf16.mxu0 0
    %4265 = vmatpush1.bf16.xpose.msra.mxu0 0
    %4266 = vmatprep.subr.bf16.mxu0 0
    %4267 = vmatpush1.bf16.xpose.msra.mxu0 0
    %4268 = vmatprep.subr.bf16.mxu0 0
    %4269 = vmatpush1.bf16.xpose.msra.mxu0 0
    %4270 = vmatprep.subr.bf16.mxu0 0
    %4271 = vmatpush1.bf16.xpose.msra.mxu0 0
    %4272 = vmatprep.subr.bf16.mxu0 0
    %4273 = vmatpush1.bf16.xpose.msra.mxu0 0
    %4274 = vmatprep.subr.bf16.mxu0 0
    %4275 = vmatpush1.bf16.xpose.msra.mxu0 0
    %4276 = vmatprep.mubr.bf16.mxu0 0
    %4277 = vmatmul.mubr.bf16.gmra.mrb[0].mxu0 %v4236
    %v4278 = vpop.f32.mrb[0].mxu0
    %v4279 = vadd.f32 %v96, %v4278
    %v4280 = vpop.f32.mrb[0].mxu0
    %v4281 = vpop.f32.mrb[0].mxu0
    %v4282 = vadd.f32 %v97, %v4281
    %v4283 = vpop.f32.mrb[0].mxu0
    %4284 = vmatprep.mubr.bf16.mxu0 0
    %4285 = vmatmul.mubr.bf16.gmra.mrb[0].mxu0 %v4239
    %v4286 = vpop.f32.mrb[0].mxu0
    %v4287 = vadd.f32 %v98, %v4286
    %v4288 = vpop.f32.mrb[0].mxu0
    %v4289 = vpop.f32.mrb[0].mxu0
    %v4290 = vadd.f32 %v99, %v4289
    %v4291 = vpop.f32.mrb[0].mxu0
    %4292 = vmatprep.mubr.bf16.mxu0 0
    %4293 = vmatmul.mubr.bf16.gmra.mrb[0].mxu0 %v4242
    %v4294 = vpop.f32.mrb[0].mxu0
    %v4295 = vadd.f32 %v100, %v4294
    %v4296 = vpop.f32.mrb[0].mxu0
    %v4297 = vpop.f32.mrb[0].mxu0
    %v4298 = vpop.f32.mrb[0].mxu0
    %4299 = vdwg.mxu0
    %v4300 = vsel %vm650, %v4279, -inf
    %4301 = vmax.xlane.f32.xlu0 %v4300
    %v4302 = vpop.xlane.xlu0 %4301
    %v4303 = vsel %vm650, %v4282, -inf
    %4304 = vmax.xlane.f32.xlu0 %v4303
    %v4305 = vpop.xlane.xlu0 %4304
    %v4306 = vsel %vm650, %v4287, -inf
    %4307 = vmax.xlane.f32.xlu0 %v4306
    %v4308 = vpop.xlane.xlu0 %4307
    %v4309 = vsel %vm650, %v4290, -inf
    %4310 = vmax.xlane.f32.xlu0 %v4309
    %v4311 = vpop.xlane.xlu0 %4310
    %v4312 = vsel %vm663, %v4295, -inf
    %4313 = vmax.xlane.f32.xlu0 %v4312
    %v4314 = vpop.xlane.xlu0 %4313
    %v4315 = vsub.f32 %v4279, %v4302
    %v4316 = vsub.f32 %v4282, %v4305
    %v4317 = vsub.f32 %v4287, %v4308
    %v4318 = vsub.f32 %v4290, %v4311
    %v4319 = vsub.f32 %v4295, %v4314
    %v4320 = vmul.f32 %v4315, 1.442695
    %v4321 = vpow.pop %v4320
    %v4322 = vmul.f32 %v4316, 1.442695
    %v4323 = vpow.pop %v4322
    %v4324 = vmul.f32 %v4317, 1.442695
    %v4325 = vpow.pop %v4324
    %v4326 = vmul.f32 %v4318, 1.442695
    %v4327 = vpow.pop %v4326
    %v4328 = vmul.f32 %v4319, 1.442695
    %v4329 = vpow.pop %v4328
    %v4330 = vsel %vm650, %v4321, 0.0
    %4331 = vadd.xlane.f32.xlu0 %v4330
    %v4332 = vpop.xlane.xlu0 %4331
    %v4333 = vsel %vm650, %v4323, 0.0
    %4334 = vadd.xlane.f32.xlu0 %v4333
    %v4335 = vpop.xlane.xlu0 %4334
    %v4336 = vsel %vm650, %v4325, 0.0
    %4337 = vadd.xlane.f32.xlu0 %v4336
    %v4338 = vpop.xlane.xlu0 %4337
    %v4339 = vsel %vm650, %v4327, 0.0
    %4340 = vadd.xlane.f32.xlu0 %v4339
    %v4341 = vpop.xlane.xlu0 %4340
    %v4342 = vsel %vm663, %v4329, 0.0
    %4343 = vadd.xlane.f32.xlu0 %v4342
    %v4344 = vpop.xlane.xlu0 %4343
    %v4345 = vrcp.pop %v4332
    %v4346 = vrcp.pop %v4335
    %v4347 = vrcp.pop %v4338
    %v4348 = vrcp.pop %v4341
    %v4349 = vrcp.pop %v4344
    %v4350 = vmul.f32 %v4321, %v4345
    %v4351 = vmul.f32 %v4323, %v4346
    %v4352 = vmul.f32 %v4325, %v4347
    %v4353 = vmul.f32 %v4327, %v4348
    %v4354 = vmul.f32 %v4329, %v4349
    %v4355 = vpack.c.bf16 %v4351, %v4350
    %v4356 = vpack.c.bf16 %v4353, %v4352
    %v4357 = vpack.c.bf16 %v4354, %v4354
    %v4359 = vsel %vm650, %v4355, 0
    %v4362 = vsel %vm650, %v4356, 0
    %v4365 = vsel %vm650, %v4357, 0
    %v4368 = vsel %vm858, %v4234, 0
    %4370 = vmatprep.subr.bf16.mxu0 0
    %4371 = vmatpush1.bf16.msra.mxu0 %v4232
    %4372 = vmatprep.subr.bf16.mxu0 0
    %4373 = vmatpush1.bf16.msra.mxu0 %v4233
    %4374 = vmatprep.subr.bf16.mxu0 0
    %4375 = vmatpush1.bf16.msra.mxu0 %v4368
    %4376 = vmatprep.subr.bf16.mxu0 0
    %4377 = vmatpush1.bf16.msra.mxu0 0
    %4378 = vmatprep.subr.bf16.mxu0 0
    %4379 = vmatpush1.bf16.msra.mxu0 0
    %4380 = vmatprep.subr.bf16.mxu0 0
    %4381 = vmatpush1.bf16.msra.mxu0 0
    %4382 = vmatprep.subr.bf16.mxu0 0
    %4383 = vmatpush1.bf16.msra.mxu0 0
    %4384 = vmatprep.subr.bf16.mxu0 0
    %4385 = vmatpush1.bf16.msra.mxu0 0
    %4386 = vmatprep.subr.bf16.mxu0 0
    %4387 = vmatpush1.bf16.msra.mxu0 0
    %4388 = vmatprep.subr.bf16.mxu0 0
    %4389 = vmatpush1.bf16.msra.mxu0 0
    %4390 = vmatprep.subr.bf16.mxu0 0
    %4391 = vmatpush1.bf16.msra.mxu0 0
    %4392 = vmatprep.subr.bf16.mxu0 0
    %4393 = vmatpush1.bf16.msra.mxu0 0
    %4394 = vmatprep.subr.bf16.mxu0 0
    %4395 = vmatpush1.bf16.msra.mxu0 0
    %4396 = vmatprep.subr.bf16.mxu0 0
    %4397 = vmatpush1.bf16.msra.mxu0 0
    %4398 = vmatprep.subr.bf16.mxu0 0
    %4399 = vmatpush1.bf16.msra.mxu0 0
    %4400 = vmatprep.subr.bf16.mxu0 0
    %4401 = vmatpush1.bf16.msra.mxu0 0
    %4402 = vmatprep.mubr.bf16.mxu0 0
    %4403 = vmatmul.mubr.bf16.gmra.mrb[0].mxu0 %v4359
    %v4404 = vpop.f32.mrb[0].mxu0
    %v4405 = vadd.f32 0.0, %v4404
    %v4406 = vpop.f32.mrb[0].mxu0
    %v4407 = vpop.f32.mrb[0].mxu0
    %v4408 = vadd.f32 0.0, %v4407
    %v4409 = vpop.f32.mrb[0].mxu0
    %4410 = vmatprep.mubr.bf16.mxu0 0
    %4411 = vmatmul.mubr.bf16.gmra.mrb[0].mxu0 %v4362
    %v4412 = vpop.f32.mrb[0].mxu0
    %v4413 = vadd.f32 0.0, %v4412
    %v4414 = vpop.f32.mrb[0].mxu0
    %v4415 = vpop.f32.mrb[0].mxu0
    %v4416 = vadd.f32 0.0, %v4415
    %v4417 = vpop.f32.mrb[0].mxu0
    %4418 = vmatprep.mubr.bf16.mxu0 0
    %4419 = vmatmul.mubr.bf16.gmra.mrb[0].mxu0 %v4365
    %v4420 = vpop.f32.mrb[0].mxu0
    %v4421 = vadd.f32 0.0, %v4420
    %v4422 = vpop.f32.mrb[0].mxu0
    %v4423 = vpop.f32.mrb[0].mxu0
    %v4424 = vpop.f32.mrb[0].mxu0
    %4425 = vdwg.mxu0
    %v4426 = vadd.f32 %v4198, %v4405
    %v4427 = vadd.f32 %v4201, %v4408
    %v4428 = vadd.f32 %v4206, %v4413
    %v4429 = vadd.f32 %v4209, %v4416
    %v4430 = vadd.f32 %v4214, %v4421
    %v4431 = vsel %vm142, %v3759, 0.0
    %v4432 = vsel %vm142, %v3760, 0.0
    %v4433 = vsel %vm142, %v3761, 0.0
    %v4434 = vsel %vm142, %v3762, 0.0
    %v4435 = vsel %vm142, %v3763, 0.0
    %v4436 = vpack.c.bf16 %v4432, %v4431
    %v4437 = vpack.c.bf16 %v4434, %v4433
    %v4438 = vpack.c.bf16 %v4435, %v4435
    %v4439 = vsel %vm142, %v3781, 0.0
    %v4440 = vsel %vm142, %v3783, 0.0
    %v4441 = vsel %vm142, %v3785, 0.0
    %v4442 = vsel %vm142, %v3787, 0.0
    %v4443 = vsel %vm142, %v3789, 0.0
    %v4444 = vpack.c.bf16 %v4440, %v4439
    %v4445 = vpack.c.bf16 %v4442, %v4441
    %v4446 = vpack.c.bf16 %v4443, %v4443
    %v4448 = vsel %vm239, %v4436, 0
    %v4451 = vsel %vm239, %v4437, 0
    %v4454 = vsel %vm239, %v4438, 0
    %4456 = vmatprep.subr.bf16.mxu0 0
    %4457 = vmatpush1.bf16.xpose.msra.mxu0 %v3822
    %4458 = vmatprep.subr.bf16.mxu0 0
    %4459 = vmatpush1.bf16.xpose.msra.mxu0 %v3825
    %4460 = vmatprep.subr.bf16.mxu0 0
    %4461 = vmatpush1.bf16.xpose.msra.mxu0 %v3828
    %4462 = vmatprep.subr.bf16.mxu0 0
    %4463 = vmatpush1.bf16.xpose.msra.mxu0 0
    %4464 = vmatprep.subr.bf16.mxu0 0
    %4465 = vmatpush1.bf16.xpose.msra.mxu0 0
    %4466 = vmatprep.subr.bf16.mxu0 0
    %4467 = vmatpush1.bf16.xpose.msra.mxu0 0
    %4468 = vmatprep.subr.bf16.mxu0 0
    %4469 = vmatpush1.bf16.xpose.msra.mxu0 0
    %4470 = vmatprep.subr.bf16.mxu0 0
    %4471 = vmatpush1.bf16.xpose.msra.mxu0 0
    %4472 = vmatprep.subr.bf16.mxu0 0
    %4473 = vmatpush1.bf16.xpose.msra.mxu0 0
    %4474 = vmatprep.subr.bf16.mxu0 0
    %4475 = vmatpush1.bf16.xpose.msra.mxu0 0
    %4476 = vmatprep.subr.bf16.mxu0 0
    %4477 = vmatpush1.bf16.xpose.msra.mxu0 0
    %4478 = vmatprep.subr.bf16.mxu0 0
    %4479 = vmatpush1.bf16.xpose.msra.mxu0 0
    %4480 = vmatprep.subr.bf16.mxu0 0
    %4481 = vmatpush1.bf16.xpose.msra.mxu0 0
    %4482 = vmatprep.subr.bf16.mxu0 0
    %4483 = vmatpush1.bf16.xpose.msra.mxu0 0
    %4484 = vmatprep.subr.bf16.mxu0 0
    %4485 = vmatpush1.bf16.xpose.msra.mxu0 0
    %4486 = vmatprep.subr.bf16.mxu0 0
    %4487 = vmatpush1.bf16.xpose.msra.mxu0 0
    %4488 = vmatprep.mubr.bf16.mxu0 0
    %4489 = vmatmul.mubr.bf16.gmra.mrb[0].mxu0 %v4448
    %v4490 = vpop.f32.mrb[0].mxu0
    %v4491 = vadd.f32 %v96, %v4490
    %v4492 = vpop.f32.mrb[0].mxu0
    %v4493 = vpop.f32.mrb[0].mxu0
    %v4494 = vadd.f32 %v97, %v4493
    %v4495 = vpop.f32.mrb[0].mxu0
    %4496 = vmatprep.mubr.bf16.mxu0 0
    %4497 = vmatmul.mubr.bf16.gmra.mrb[0].mxu0 %v4451
    %v4498 = vpop.f32.mrb[0].mxu0
    %v4499 = vadd.f32 %v98, %v4498
    %v4500 = vpop.f32.mrb[0].mxu0
    %v4501 = vpop.f32.mrb[0].mxu0
    %v4502 = vadd.f32 %v99, %v4501
    %v4503 = vpop.f32.mrb[0].mxu0
    %4504 = vmatprep.mubr.bf16.mxu0 0
    %4505 = vmatmul.mubr.bf16.gmra.mrb[0].mxu0 %v4454
    %v4506 = vpop.f32.mrb[0].mxu0
    %v4507 = vadd.f32 %v100, %v4506
    %v4508 = vpop.f32.mrb[0].mxu0
    %v4509 = vpop.f32.mrb[0].mxu0
    %v4510 = vpop.f32.mrb[0].mxu0
    %4511 = vdwg.mxu0
    %v4512 = vsel %vm650, %v4491, -inf
    %4513 = vmax.xlane.f32.xlu0 %v4512
    %v4514 = vpop.xlane.xlu0 %4513
    %v4515 = vsel %vm650, %v4494, -inf
    %4516 = vmax.xlane.f32.xlu0 %v4515
    %v4517 = vpop.xlane.xlu0 %4516
    %v4518 = vsel %vm650, %v4499, -inf
    %4519 = vmax.xlane.f32.xlu0 %v4518
    %v4520 = vpop.xlane.xlu0 %4519
    %v4521 = vsel %vm650, %v4502, -inf
    %4522 = vmax.xlane.f32.xlu0 %v4521
    %v4523 = vpop.xlane.xlu0 %4522
    %v4524 = vsel %vm663, %v4507, -inf
    %4525 = vmax.xlane.f32.xlu0 %v4524
    %v4526 = vpop.xlane.xlu0 %4525
    %v4527 = vsub.f32 %v4491, %v4514
    %v4528 = vsub.f32 %v4494, %v4517
    %v4529 = vsub.f32 %v4499, %v4520
    %v4530 = vsub.f32 %v4502, %v4523
    %v4531 = vsub.f32 %v4507, %v4526
    %v4532 = vmul.f32 %v4527, 1.442695
    %v4533 = vpow.pop %v4532
    %v4534 = vmul.f32 %v4528, 1.442695
    %v4535 = vpow.pop %v4534
    %v4536 = vmul.f32 %v4529, 1.442695
    %v4537 = vpow.pop %v4536
    %v4538 = vmul.f32 %v4530, 1.442695
    %v4539 = vpow.pop %v4538
    %v4540 = vmul.f32 %v4531, 1.442695
    %v4541 = vpow.pop %v4540
    %v4542 = vsel %vm650, %v4533, 0.0
    %4543 = vadd.xlane.f32.xlu0 %v4542
    %v4544 = vpop.xlane.xlu0 %4543
    %v4545 = vsel %vm650, %v4535, 0.0
    %4546 = vadd.xlane.f32.xlu0 %v4545
    %v4547 = vpop.xlane.xlu0 %4546
    %v4548 = vsel %vm650, %v4537, 0.0
    %4549 = vadd.xlane.f32.xlu0 %v4548
    %v4550 = vpop.xlane.xlu0 %4549
    %v4551 = vsel %vm650, %v4539, 0.0
    %4552 = vadd.xlane.f32.xlu0 %v4551
    %v4553 = vpop.xlane.xlu0 %4552
    %v4554 = vsel %vm663, %v4541, 0.0
    %4555 = vadd.xlane.f32.xlu0 %v4554
    %v4556 = vpop.xlane.xlu0 %4555
    %v4557 = vrcp.pop %v4544
    %v4558 = vrcp.pop %v4547
    %v4559 = vrcp.pop %v4550
    %v4560 = vrcp.pop %v4553
    %v4561 = vrcp.pop %v4556
    %v4562 = vmul.f32 %v4533, %v4557
    %v4563 = vmul.f32 %v4535, %v4558
    %v4564 = vmul.f32 %v4537, %v4559
    %v4565 = vmul.f32 %v4539, %v4560
    %v4566 = vmul.f32 %v4541, %v4561
    %v4567 = vpack.c.bf16 %v4563, %v4562
    %v4568 = vpack.c.bf16 %v4565, %v4564
    %v4569 = vpack.c.bf16 %v4566, %v4566
    %v4571 = vsel %vm650, %v4567, 0
    %v4574 = vsel %vm650, %v4568, 0
    %v4577 = vsel %vm650, %v4569, 0
    %v4580 = vsel %vm858, %v4446, 0
    %4582 = vmatprep.subr.bf16.mxu0 0
    %4583 = vmatpush1.bf16.msra.mxu0 %v4444
    %4584 = vmatprep.subr.bf16.mxu0 0
    %4585 = vmatpush1.bf16.msra.mxu0 %v4445
    %4586 = vmatprep.subr.bf16.mxu0 0
    %4587 = vmatpush1.bf16.msra.mxu0 %v4580
    %4588 = vmatprep.subr.bf16.mxu0 0
    %4589 = vmatpush1.bf16.msra.mxu0 0
    %4590 = vmatprep.subr.bf16.mxu0 0
    %4591 = vmatpush1.bf16.msra.mxu0 0
    %4592 = vmatprep.subr.bf16.mxu0 0
    %4593 = vmatpush1.bf16.msra.mxu0 0
    %4594 = vmatprep.subr.bf16.mxu0 0
    %4595 = vmatpush1.bf16.msra.mxu0 0
    %4596 = vmatprep.subr.bf16.mxu0 0
    %4597 = vmatpush1.bf16.msra.mxu0 0
    %4598 = vmatprep.subr.bf16.mxu0 0
    %4599 = vmatpush1.bf16.msra.mxu0 0
    %4600 = vmatprep.subr.bf16.mxu0 0
    %4601 = vmatpush1.bf16.msra.mxu0 0
    %4602 = vmatprep.subr.bf16.mxu0 0
    %4603 = vmatpush1.bf16.msra.mxu0 0
    %4604 = vmatprep.subr.bf16.mxu0 0
    %4605 = vmatpush1.bf16.msra.mxu0 0
    %4606 = vmatprep.subr.bf16.mxu0 0
    %4607 = vmatpush1.bf16.msra.mxu0 0
    %4608 = vmatprep.subr.bf16.mxu0 0
    %4609 = vmatpush1.bf16.msra.mxu0 0
    %4610 = vmatprep.subr.bf16.mxu0 0
    %4611 = vmatpush1.bf16.msra.mxu0 0
    %4612 = vmatprep.subr.bf16.mxu0 0
    %4613 = vmatpush1.bf16.msra.mxu0 0
    %4614 = vmatprep.mubr.bf16.mxu0 0
    %4615 = vmatmul.mubr.bf16.gmra.mrb[0].mxu0 %v4571
    %v4616 = vpop.f32.mrb[0].mxu0
    %v4617 = vadd.f32 0.0, %v4616
    %v4618 = vpop.f32.mrb[0].mxu0
    %v4619 = vpop.f32.mrb[0].mxu0
    %v4620 = vadd.f32 0.0, %v4619
    %v4621 = vpop.f32.mrb[0].mxu0
    %4622 = vmatprep.mubr.bf16.mxu0 0
    %4623 = vmatmul.mubr.bf16.gmra.mrb[0].mxu0 %v4574
    %v4624 = vpop.f32.mrb[0].mxu0
    %v4625 = vadd.f32 0.0, %v4624
    %v4626 = vpop.f32.mrb[0].mxu0
    %v4627 = vpop.f32.mrb[0].mxu0
    %v4628 = vadd.f32 0.0, %v4627
    %v4629 = vpop.f32.mrb[0].mxu0
    %4630 = vmatprep.mubr.bf16.mxu0 0
    %4631 = vmatmul.mubr.bf16.gmra.mrb[0].mxu0 %v4577
    %v4632 = vpop.f32.mrb[0].mxu0
    %v4633 = vadd.f32 0.0, %v4632
    %v4634 = vpop.f32.mrb[0].mxu0
    %v4635 = vpop.f32.mrb[0].mxu0
    %v4636 = vpop.f32.mrb[0].mxu0
    %4637 = vdwg.mxu0
    %v4638 = vadd.f32 %v4426, %v4617
    %v4639 = vadd.f32 %v4427, %v4620
    %v4640 = vadd.f32 %v4428, %v4625
    %v4641 = vadd.f32 %v4429, %v4628
    %v4642 = vadd.f32 %v4430, %v4633
    %v4643 = vpack.c.bf16 %v4639, %v4638
    %v4644 = vpack.c.bf16 %v4641, %v4640
    %v4645 = vpack.c.bf16 %v4642, %v4642
    %v4646 = vld [vmem:[%s3677 + $0x10] sm:$0xf]
    %v4647 = vld [vmem:[%s3677 + $0x14] sm:$0xf]
    %v4648 = vld [vmem:[%s3677 + $0x18] sm:$0xf]
    %v4649 = vld [vmem:[%s3677 + $0x1c] sm:$0xf]
    %v4650 = vlaneseq
    %v4651 = vshrl.u32 %v4650, 7
    %v4652 = vsub.s32 0, %v4651
    %v4653 = vrot.slane %v3584, %v4652
    %v4658 = vunpack.c.l.b16 %v4646
    %v4659 = vunpack.c.l.b16 %v4647
    %v4660 = vunpack.c.l.b16 %v4648
    %v4661 = vunpack.c.l.b16 %v4649
    %v4662 = vpack.c.b16 %v4659, %v4658
    %v4663 = vpack.c.b16 %v4661, %v4660
    %v4667 = vsel %vm239, %v4643, 0
    %v4670 = vsel %vm239, %v4644, 0
    %v4673 = vsel %vm239, %v4645, 0
    %4675 = vmatprep.subr.bf16.mxu0 0
    %4676 = vmatpush1.bf16.msra.mxu0 %v4662
    %4677 = vmatprep.subr.bf16.mxu0 0
    %4678 = vmatpush1.bf16.msra.mxu0 %v4663
    %4679 = vmatprep.subr.bf16.mxu0 0
    %4680 = vmatpush1.bf16.msra.mxu0 0
    %4681 = vmatprep.subr.bf16.mxu0 0
    %4682 = vmatpush1.bf16.msra.mxu0 0
    %4683 = vmatprep.subr.bf16.mxu0 0
    %4684 = vmatpush1.bf16.msra.mxu0 0
    %4685 = vmatprep.subr.bf16.mxu0 0
    %4686 = vmatpush1.bf16.msra.mxu0 0
    %4687 = vmatprep.subr.bf16.mxu0 0
    %4688 = vmatpush1.bf16.msra.mxu0 0
    %4689 = vmatprep.subr.bf16.mxu0 0
    %4690 = vmatpush1.bf16.msra.mxu0 0
    %4691 = vmatprep.subr.bf16.mxu0 0
    %4692 = vmatpush1.bf16.msra.mxu0 0
    %4693 = vmatprep.subr.bf16.mxu0 0
    %4694 = vmatpush1.bf16.msra.mxu0 0
    %4695 = vmatprep.subr.bf16.mxu0 0
    %4696 = vmatpush1.bf16.msra.mxu0 0
    %4697 = vmatprep.subr.bf16.mxu0 0
    %4698 = vmatpush1.bf16.msra.mxu0 0
    %4699 = vmatprep.subr.bf16.mxu0 0
    %4700 = vmatpush1.bf16.msra.mxu0 0
    %4701 = vmatprep.subr.bf16.mxu0 0
    %4702 = vmatpush1.bf16.msra.mxu0 0
    %4703 = vmatprep.subr.bf16.mxu0 0
    %4704 = vmatpush1.bf16.msra.mxu0 0
    %4705 = vmatprep.subr.bf16.mxu0 0
    %4706 = vmatpush1.bf16.msra.mxu0 0
    %4707 = vmatprep.mubr.bf16.mxu0 0
    %4708 = vmatmul.mubr.bf16.gmra.mrb[0].mxu0 %v4667
    %v4709 = vpop.f32.mrb[0].mxu0
    %v4710 = vadd.f32 %v4653, %v4709
    %v4711 = vpop.f32.mrb[0].mxu0
    %v4712 = vpop.f32.mrb[0].mxu0
    %v4713 = vadd.f32 %v4653, %v4712
    %v4714 = vpop.f32.mrb[0].mxu0
    %4715 = vmatprep.mubr.bf16.mxu0 0
    %4716 = vmatmul.mubr.bf16.gmra.mrb[0].mxu0 %v4670
    %v4717 = vpop.f32.mrb[0].mxu0
    %v4718 = vadd.f32 %v4653, %v4717
    %v4719 = vpop.f32.mrb[0].mxu0
    %v4720 = vpop.f32.mrb[0].mxu0
    %v4721 = vadd.f32 %v4653, %v4720
    %v4722 = vpop.f32.mrb[0].mxu0
    %4723 = vmatprep.mubr.bf16.mxu0 0
    %4724 = vmatmul.mubr.bf16.gmra.mrb[0].mxu0 %v4673
    %v4725 = vpop.f32.mrb[0].mxu0
    %v4726 = vadd.f32 %v4653, %v4725
    %v4727 = vpop.f32.mrb[0].mxu0
    %v4728 = vpop.f32.mrb[0].mxu0
    %v4729 = vpop.f32.mrb[0].mxu0
    %4730 = vdwg.mxu0
    %v4731 = vlaneseq
    %v4732 = vshrl.u32 %v4731, 7
    %v4733 = vsub.s32 0, %v4732
    %v4734 = vrot.slane %v3585, %v4733
    %v4735 = vmul.f32 %v4734, %v4710
    %v4736 = vmul.f32 %v4734, %v4713
    %v4737 = vmul.f32 %v4734, %v4718
    %v4738 = vmul.f32 %v4734, %v4721
    %v4739 = vmul.f32 %v4734, %v4726
    %v4740 = vadd.f32 %v3576, %v4735
    %v4741 = vadd.f32 %v3577, %v4736
    %v4742 = vadd.f32 %v3578, %v4737
    %v4743 = vadd.f32 %v3579, %v4738
    %v4744 = vadd.f32 %v3580, %v4739
    %v4745 = vsel %vm239, %v4740, 0.0
    %4746 = vadd.xlane.f32.xlu0 %v4745
    %v4747 = vpop.xlane.xlu0 %4746
    %v4748 = vsel %vm239, %v4741, 0.0
    %4749 = vadd.xlane.f32.xlu0 %v4748
    %v4750 = vpop.xlane.xlu0 %4749
    %v4751 = vsel %vm239, %v4742, 0.0
    %4752 = vadd.xlane.f32.xlu0 %v4751
    %v4753 = vpop.xlane.xlu0 %4752
    %v4754 = vsel %vm239, %v4743, 0.0
    %4755 = vadd.xlane.f32.xlu0 %v4754
    %v4756 = vpop.xlane.xlu0 %4755
    %v4757 = vsel %vm366, %v4744, 0.0
    %4758 = vadd.xlane.f32.xlu0 %v4757
    %v4759 = vpop.xlane.xlu0 %4758
    %v4760 = vmul.f32 %v4747, %v370
    %v4761 = vmul.f32 %v4750, %v370
    %v4762 = vmul.f32 %v4753, %v370
    %v4763 = vmul.f32 %v4756, %v370
    %v4764 = vmul.f32 %v4759, %v370
    %v4765 = vsub.f32 %v4740, %v4760
    %v4766 = vsub.f32 %v4741, %v4761
    %v4767 = vsub.f32 %v4742, %v4762
    %v4768 = vsub.f32 %v4743, %v4763
    %v4769 = vsub.f32 %v4744, %v4764
    %v4770 = vmul.f32 %v4765, %v4765
    %v4771 = vmul.f32 %v4766, %v4766
    %v4772 = vmul.f32 %v4767, %v4767
    %v4773 = vmul.f32 %v4768, %v4768
    %v4774 = vmul.f32 %v4769, %v4769
    %v4775 = vsel %vm239, %v4770, 0.0
    %4776 = vadd.xlane.f32.xlu0 %v4775
    %v4777 = vpop.xlane.xlu0 %4776
    %v4778 = vsel %vm239, %v4771, 0.0
    %4779 = vadd.xlane.f32.xlu0 %v4778
    %v4780 = vpop.xlane.xlu0 %4779
    %v4781 = vsel %vm239, %v4772, 0.0
    %4782 = vadd.xlane.f32.xlu0 %v4781
    %v4783 = vpop.xlane.xlu0 %4782
    %v4784 = vsel %vm239, %v4773, 0.0
    %4785 = vadd.xlane.f32.xlu0 %v4784
    %v4786 = vpop.xlane.xlu0 %4785
    %v4787 = vsel %vm366, %v4774, 0.0
    %4788 = vadd.xlane.f32.xlu0 %v4787
    %v4789 = vpop.xlane.xlu0 %4788
    %v4790 = vmul.f32 %v4777, %v370
    %v4791 = vmul.f32 %v4780, %v370
    %v4792 = vmul.f32 %v4783, %v370
    %v4793 = vmul.f32 %v4786, %v370
    %v4794 = vmul.f32 %v4789, %v370
    %v4795 = vadd.f32 %v4790, 1e-06
    %v4796 = vadd.f32 %v4791, 1e-06
    %v4797 = vadd.f32 %v4792, 1e-06
    %v4798 = vadd.f32 %v4793, 1e-06
    %v4799 = vadd.f32 %v4794, 1e-06
    %v4800 = vrsqrt.pop %v4795
    %v4801 = vrsqrt.pop %v4796
    %v4802 = vrsqrt.pop %v4797
    %v4803 = vrsqrt.pop %v4798
    %v4804 = vrsqrt.pop %v4799
    %v4805 = vmul.f32 %v4765, %v4800
    %v4806 = vmul.f32 %v4766, %v4801
    %v4807 = vmul.f32 %v4767, %v4802
    %v4808 = vmul.f32 %v4768, %v4803
    %v4809 = vmul.f32 %v4769, %v4804
    %v4810 = vlaneseq
    %v4811 = vshrl.u32 %v4810, 7
    %v4812 = vsub.s32 0, %v4811
    %v4813 = vrot.slane %v3586, %v4812
    %v4814 = vmul.f32 %v4805, %v4813
    %v4815 = vmul.f32 %v4806, %v4813
    %v4816 = vmul.f32 %v4807, %v4813
    %v4817 = vmul.f32 %v4808, %v4813
    %v4818 = vmul.f32 %v4809, %v4813
    %v4819 = vlaneseq
    %v4820 = vshrl.u32 %v4819, 7
    %v4821 = vsub.s32 0, %v4820
    %v4822 = vrot.slane %v3587, %v4821
    %v4823 = vadd.f32 %v4814, %v4822
    %v4824 = vadd.f32 %v4815, %v4822
    %v4825 = vadd.f32 %v4816, %v4822
    %v4826 = vadd.f32 %v4817, %v4822
    %v4827 = vadd.f32 %v4818, %v4822
    %v4828 = vpack.c.bf16 %v4824, %v4823
    %v4829 = vpack.c.bf16 %v4826, %v4825
    %v4830 = vpack.c.bf16 %v4827, %v4827
    %v4831 = vld [vmem:[%s3677 + $0x20] sm:$0xf]
    %v4832 = vld [vmem:[%s3677 + $0x24] sm:$0xf]
    %v4833 = vld [vmem:[%s3677 + $0x28] sm:$0xf]
    %v4834 = vld [vmem:[%s3677 + $0x2c] sm:$0xf]
    %v4835 = vlaneseq
    %v4836 = vshrl.u32 %v4835, 7
    %v4837 = vsub.s32 0, %v4836
    %v4838 = vrot.slane %v3590, %v4837
    %v4843 = vunpack.c.l.b16 %v4831
    %v4844 = vunpack.c.l.b16 %v4832
    %v4845 = vunpack.c.l.b16 %v4833
    %v4846 = vunpack.c.l.b16 %v4834
    %v4847 = vpack.c.b16 %v4844, %v4843
    %v4848 = vpack.c.b16 %v4846, %v4845
    %v4852 = vsel %vm239, %v4828, 0
    %v4855 = vsel %vm239, %v4829, 0
    %v4858 = vsel %vm239, %v4830, 0
    %4860 = vmatprep.subr.bf16.mxu0 0
    %4861 = vmatpush1.bf16.msra.mxu0 %v4847
    %4862 = vmatprep.subr.bf16.mxu0 0
    %4863 = vmatpush1.bf16.msra.mxu0 %v4848
    %4864 = vmatprep.subr.bf16.mxu0 0
    %4865 = vmatpush1.bf16.msra.mxu0 0
    %4866 = vmatprep.subr.bf16.mxu0 0
    %4867 = vmatpush1.bf16.msra.mxu0 0
    %4868 = vmatprep.subr.bf16.mxu0 0
    %4869 = vmatpush1.bf16.msra.mxu0 0
    %4870 = vmatprep.subr.bf16.mxu0 0
    %4871 = vmatpush1.bf16.msra.mxu0 0
    %4872 = vmatprep.subr.bf16.mxu0 0
    %4873 = vmatpush1.bf16.msra.mxu0 0
    %4874 = vmatprep.subr.bf16.mxu0 0
    %4875 = vmatpush1.bf16.msra.mxu0 0
    %4876 = vmatprep.subr.bf16.mxu0 0
    %4877 = vmatpush1.bf16.msra.mxu0 0
    %4878 = vmatprep.subr.bf16.mxu0 0
    %4879 = vmatpush1.bf16.msra.mxu0 0
    %4880 = vmatprep.subr.bf16.mxu0 0
    %4881 = vmatpush1.bf16.msra.mxu0 0
    %4882 = vmatprep.subr.bf16.mxu0 0
    %4883 = vmatpush1.bf16.msra.mxu0 0
    %4884 = vmatprep.subr.bf16.mxu0 0
    %4885 = vmatpush1.bf16.msra.mxu0 0
    %4886 = vmatprep.subr.bf16.mxu0 0
    %4887 = vmatpush1.bf16.msra.mxu0 0
    %4888 = vmatprep.subr.bf16.mxu0 0
    %4889 = vmatpush1.bf16.msra.mxu0 0
    %4890 = vmatprep.subr.bf16.mxu0 0
    %4891 = vmatpush1.bf16.msra.mxu0 0
    %4892 = vmatprep.mubr.bf16.mxu0 0
    %4893 = vmatmul.mubr.bf16.gmra.mrb[0].mxu0 %v4852
    %v4894 = vpop.f32.mrb[0].mxu0
    %v4895 = vadd.f32 %v4838, %v4894
    %v4896 = vpop.f32.mrb[0].mxu0
    %v4897 = vpop.f32.mrb[0].mxu0
    %v4898 = vadd.f32 %v4838, %v4897
    %v4899 = vpop.f32.mrb[0].mxu0
    %4900 = vmatprep.mubr.bf16.mxu0 0
    %4901 = vmatmul.mubr.bf16.gmra.mrb[0].mxu0 %v4855
    %v4902 = vpop.f32.mrb[0].mxu0
    %v4903 = vadd.f32 %v4838, %v4902
    %v4904 = vpop.f32.mrb[0].mxu0
    %v4905 = vpop.f32.mrb[0].mxu0
    %v4906 = vadd.f32 %v4838, %v4905
    %v4907 = vpop.f32.mrb[0].mxu0
    %4908 = vmatprep.mubr.bf16.mxu0 0
    %4909 = vmatmul.mubr.bf16.gmra.mrb[0].mxu0 %v4858
    %v4910 = vpop.f32.mrb[0].mxu0
    %v4911 = vadd.f32 %v4838, %v4910
    %v4912 = vpop.f32.mrb[0].mxu0
    %v4913 = vpop.f32.mrb[0].mxu0
    %v4914 = vpop.f32.mrb[0].mxu0
    %4915 = vdwg.mxu0
    %v4916 = vmul.f32 %v4895, 0.5
    %v4917 = vmul.f32 %v4898, 0.5
    %v4918 = vmul.f32 %v4903, 0.5
    %v4919 = vmul.f32 %v4906, 0.5
    %v4920 = vmul.f32 %v4911, 0.5
    %v4921 = vmul.f32 %v4895, 0.70710677
    %v4922 = vmul.f32 %v4898, 0.70710677
    %v4923 = vmul.f32 %v4903, 0.70710677
    %v4924 = vmul.f32 %v4906, 0.70710677
    %v4925 = vmul.f32 %v4911, 0.70710677
    %v4926 = vand.u32 2147483647, %v4921
    %v4927 = vand.u32 2147483647, %v4922
    %v4928 = vand.u32 2147483647, %v4923
    %v4929 = vand.u32 2147483647, %v4924
    %v4930 = vand.u32 2147483647, %v4925
    %v4931 = vmul.f32 %v4926, 0.3275911
    %v4932 = vmul.f32 %v4927, 0.3275911
    %v4933 = vmul.f32 %v4928, 0.3275911
    %v4934 = vmul.f32 %v4929, 0.3275911
    %v4935 = vmul.f32 %v4930, 0.3275911
    %v4936 = vadd.f32 %v4931, 1.0
    %v4937 = vadd.f32 %v4932, 1.0
    %v4938 = vadd.f32 %v4933, 1.0
    %v4939 = vadd.f32 %v4934, 1.0
    %v4940 = vadd.f32 %v4935, 1.0
    %v4941 = vrcp.pop %v4936
    %v4942 = vmul.f32 1.0, %v4941
    %v4943 = vrcp.pop %v4937
    %v4944 = vmul.f32 1.0, %v4943
    %v4945 = vrcp.pop %v4938
    %v4946 = vmul.f32 1.0, %v4945
    %v4947 = vrcp.pop %v4939
    %v4948 = vmul.f32 1.0, %v4947
    %v4949 = vrcp.pop %v4940
    %v4950 = vmul.f32 1.0, %v4949
    %v4951 = vmul.f32 %v4942, 1.0614054
    %v4952 = vmul.f32 %v4944, 1.0614054
    %v4953 = vmul.f32 %v4946, 1.0614054
    %v4954 = vmul.f32 %v4948, 1.0614054
    %v4955 = vmul.f32 %v4950, 1.0614054
    %v4956 = vadd.f32 %v4951, -1.4531521
    %v4957 = vadd.f32 %v4952, -1.4531521
    %v4958 = vadd.f32 %v4953, -1.4531521
    %v4959 = vadd.f32 %v4954, -1.4531521
    %v4960 = vadd.f32 %v4955, -1.4531521
    %v4961 = vmul.f32 %v4942, %v4956
    %v4962 = vmul.f32 %v4944, %v4957
    %v4963 = vmul.f32 %v4946, %v4958
    %v4964 = vmul.f32 %v4948, %v4959
    %v4965 = vmul.f32 %v4950, %v4960
    %v4966 = vadd.f32 %v4961, 1.4214138
    %v4967 = vadd.f32 %v4962, 1.4214138
    %v4968 = vadd.f32 %v4963, 1.4214138
    %v4969 = vadd.f32 %v4964, 1.4214138
    %v4970 = vadd.f32 %v4965, 1.4214138
    %v4971 = vmul.f32 %v4942, %v4966
    %v4972 = vmul.f32 %v4944, %v4967
    %v4973 = vmul.f32 %v4946, %v4968
    %v4974 = vmul.f32 %v4948, %v4969
    %v4975 = vmul.f32 %v4950, %v4970
    %v4976 = vadd.f32 %v4971, -0.28449672
    %v4977 = vadd.f32 %v4972, -0.28449672
    %v4978 = vadd.f32 %v4973, -0.28449672
    %v4979 = vadd.f32 %v4974, -0.28449672
    %v4980 = vadd.f32 %v4975, -0.28449672
    %v4981 = vmul.f32 %v4942, %v4976
    %v4982 = vmul.f32 %v4944, %v4977
    %v4983 = vmul.f32 %v4946, %v4978
    %v4984 = vmul.f32 %v4948, %v4979
    %v4985 = vmul.f32 %v4950, %v4980
    %v4986 = vadd.f32 %v4981, 0.2548296
    %v4987 = vadd.f32 %v4982, 0.2548296
    %v4988 = vadd.f32 %v4983, 0.2548296
    %v4989 = vadd.f32 %v4984, 0.2548296
    %v4990 = vadd.f32 %v4985, 0.2548296
    %v4991 = vmul.f32 %v4942, %v4986
    %v4992 = vmul.f32 %v4944, %v4987
    %v4993 = vmul.f32 %v4946, %v4988
    %v4994 = vmul.f32 %v4948, %v4989
    %v4995 = vmul.f32 %v4950, %v4990
    %v4996 = vsub.f32 0.0, %v4926
    %v4997 = vsub.f32 0.0, %v4927
    %v4998 = vsub.f32 0.0, %v4928
    %v4999 = vsub.f32 0.0, %v4929
    %v5000 = vsub.f32 0.0, %v4930
    %v5001 = vmul.f32 %v4996, %v4926
    %v5002 = vmul.f32 %v4997, %v4927
    %v5003 = vmul.f32 %v4998, %v4928
    %v5004 = vmul.f32 %v4999, %v4929
    %v5005 = vmul.f32 %v5000, %v4930
    %v5006 = vmul.f32 %v5001, 1.442695
    %v5007 = vpow.pop %v5006
    %v5008 = vmul.f32 %v5002, 1.442695
    %v5009 = vpow.pop %v5008
    %v5010 = vmul.f32 %v5003, 1.442695
    %v5011 = vpow.pop %v5010
    %v5012 = vmul.f32 %v5004, 1.442695
    %v5013 = vpow.pop %v5012
    %v5014 = vmul.f32 %v5005, 1.442695
    %v5015 = vpow.pop %v5014
    %v5016 = vmul.f32 %v4991, %v5007
    %v5017 = vmul.f32 %v4992, %v5009
    %v5018 = vmul.f32 %v4993, %v5011
    %v5019 = vmul.f32 %v4994, %v5013
    %v5020 = vmul.f32 %v4995, %v5015
    %v5021 = vsub.f32 1.0, %v5016
    %v5022 = vsub.f32 1.0, %v5017
    %v5023 = vsub.f32 1.0, %v5018
    %v5024 = vsub.f32 1.0, %v5019
    %v5025 = vsub.f32 1.0, %v5020
    %vm5026 = vcmp.lt.f32.partialorder %v4921, 0.0
    %vm5027 = vcmp.lt.f32.partialorder %v4922, 0.0
    %vm5028 = vcmp.lt.f32.partialorder %v4923, 0.0
    %vm5029 = vcmp.lt.f32.partialorder %v4924, 0.0
    %vm5030 = vcmp.lt.f32.partialorder %v4925, 0.0
    %v5031 = vsub.f32 0.0, %v5021
    %v5032 = vsub.f32 0.0, %v5022
    %v5033 = vsub.f32 0.0, %v5023
    %v5034 = vsub.f32 0.0, %v5024
    %v5035 = vsub.f32 0.0, %v5025
    %v5036 = vsel %vm5026, %v5031, %v5021
    %v5037 = vsel %vm5027, %v5032, %v5022
    %v5038 = vsel %vm5028, %v5033, %v5023
    %v5039 = vsel %vm5029, %v5034, %v5024
    %v5040 = vsel %vm5030, %v5035, %v5025
    %v5041 = vadd.f32 %v5036, 1.0
    %v5042 = vadd.f32 %v5037, 1.0
    %v5043 = vadd.f32 %v5038, 1.0
    %v5044 = vadd.f32 %v5039, 1.0
    %v5045 = vadd.f32 %v5040, 1.0
    %v5046 = vmul.f32 %v4916, %v5041
    %v5047 = vmul.f32 %v4917, %v5042
    %v5048 = vmul.f32 %v4918, %v5043
    %v5049 = vmul.f32 %v4919, %v5044
    %v5050 = vmul.f32 %v4920, %v5045
    %v5051 = vpack.c.bf16 %v5047, %v5046
    %v5052 = vpack.c.bf16 %v5049, %v5048
    %v5053 = vpack.c.bf16 %v5050, %v5050
    %s5054 = scalar_lea.vmem %s5, 128
    %v5055 = vld [vmem:[%s5054] sm:$0xf]
    %v5056 = vld [vmem:[%s5054 + $0x4] sm:$0xf]
    %v5057 = vld [vmem:[%s5054 + $0x8] sm:$0xf]
    %v5058 = vld [vmem:[%s5054 + $0xc] sm:$0xf]
    %v5059 = vld [vmem:[%s5054 + $0x10] sm:$0xf]
    %v5060 = vld [vmem:[%s5054 + $0x14] sm:$0xf]
    %v5061 = vld [vmem:[%s5054 + $0x18] sm:$0xf]
    %v5062 = vld [vmem:[%s5054 + $0x1c] sm:$0xf]
    %v5063 = vld [vmem:[%s5054 + $0x20] sm:$0xf]
    %v5064 = vld [vmem:[%s5054 + $0x24] sm:$0xf]
    %v5065 = vld [vmem:[%s5054 + $0x28] sm:$0xf]
    %v5066 = vld [vmem:[%s5054 + $0x2c] sm:$0xf]
    %v5067 = vld [vmem:[%s5054 + $0x30] sm:$0xf]
    %v5068 = vld [vmem:[%s5054 + $0x34] sm:$0xf]
    %v5069 = vld [vmem:[%s5054 + $0x38] sm:$0xf]
    %v5070 = vld [vmem:[%s5054 + $0x3c] sm:$0xf]
    %v5071 = vlaneseq
    %v5072 = vshrl.u32 %v5071, 7
    %v5073 = vsub.s32 0, %v5072
    %v5074 = vrot.slane %v3588, %v5073
    %v5091 = vunpack.c.l.b16 %v5055
    %v5092 = vunpack.c.l.b16 %v5056
    %v5093 = vunpack.c.l.b16 %v5057
    %v5094 = vunpack.c.l.b16 %v5058
    %v5095 = vunpack.c.l.b16 %v5059
    %v5096 = vunpack.c.l.b16 %v5060
    %v5097 = vunpack.c.l.b16 %v5061
    %v5098 = vunpack.c.l.b16 %v5062
    %v5099 = vunpack.c.l.b16 %v5063
    %v5100 = vunpack.c.l.b16 %v5064
    %v5101 = vunpack.c.l.b16 %v5065
    %v5102 = vunpack.c.l.b16 %v5066
    %v5103 = vunpack.c.l.b16 %v5067
    %v5104 = vunpack.c.l.b16 %v5068
    %v5105 = vunpack.c.l.b16 %v5069
    %v5106 = vunpack.c.l.b16 %v5070
    %v5107 = vpack.c.b16 %v5092, %v5091
    %v5108 = vpack.c.b16 %v5094, %v5093
    %v5109 = vpack.c.b16 %v5096, %v5095
    %v5110 = vpack.c.b16 %v5098, %v5097
    %v5111 = vpack.c.b16 %v5100, %v5099
    %v5112 = vpack.c.b16 %v5102, %v5101
    %v5113 = vpack.c.b16 %v5104, %v5103
    %v5114 = vpack.c.b16 %v5106, %v5105
    %5123 = vmatprep.subr.bf16.mxu0 0
    %5124 = vmatpush1.bf16.msra.mxu0 %v5107
    %5125 = vmatprep.subr.bf16.mxu0 0
    %5126 = vmatpush1.bf16.msra.mxu0 %v5108
    %5127 = vmatprep.subr.bf16.mxu0 0
    %5128 = vmatpush1.bf16.msra.mxu0 %v5109
    %5129 = vmatprep.subr.bf16.mxu0 0
    %5130 = vmatpush1.bf16.msra.mxu0 %v5110
    %5131 = vmatprep.subr.bf16.mxu0 0
    %5132 = vmatpush1.bf16.msra.mxu0 %v5111
    %5133 = vmatprep.subr.bf16.mxu0 0
    %5134 = vmatpush1.bf16.msra.mxu0 %v5112
    %5135 = vmatprep.subr.bf16.mxu0 0
    %5136 = vmatpush1.bf16.msra.mxu0 %v5113
    %5137 = vmatprep.subr.bf16.mxu0 0
    %5138 = vmatpush1.bf16.msra.mxu0 %v5114
    %5139 = vmatprep.subr.bf16.mxu0 0
    %5140 = vmatpush1.bf16.msra.mxu0 0
    %5141 = vmatprep.subr.bf16.mxu0 0
    %5142 = vmatpush1.bf16.msra.mxu0 0
    %5143 = vmatprep.subr.bf16.mxu0 0
    %5144 = vmatpush1.bf16.msra.mxu0 0
    %5145 = vmatprep.subr.bf16.mxu0 0
    %5146 = vmatpush1.bf16.msra.mxu0 0
    %5147 = vmatprep.subr.bf16.mxu0 0
    %5148 = vmatpush1.bf16.msra.mxu0 0
    %5149 = vmatprep.subr.bf16.mxu0 0
    %5150 = vmatpush1.bf16.msra.mxu0 0
    %5151 = vmatprep.subr.bf16.mxu0 0
    %5152 = vmatpush1.bf16.msra.mxu0 0
    %5153 = vmatprep.subr.bf16.mxu0 0
    %5154 = vmatpush1.bf16.msra.mxu0 0
    %5155 = vmatprep.mubr.bf16.mxu0 0
    %5156 = vmatmul.mubr.bf16.gmra.mrb[0].mxu0 %v5051
    %v5157 = vpop.f32.mrb[0].mxu0
    %v5158 = vadd.f32 %v5074, %v5157
    %v5159 = vpop.f32.mrb[0].mxu0
    %v5160 = vpop.f32.mrb[0].mxu0
    %v5161 = vadd.f32 %v5074, %v5160
    %v5162 = vpop.f32.mrb[0].mxu0
    %5163 = vmatprep.mubr.bf16.mxu0 0
    %5164 = vmatmul.mubr.bf16.gmra.mrb[0].mxu0 %v5052
    %v5165 = vpop.f32.mrb[0].mxu0
    %v5166 = vadd.f32 %v5074, %v5165
    %v5167 = vpop.f32.mrb[0].mxu0
    %v5168 = vpop.f32.mrb[0].mxu0
    %v5169 = vadd.f32 %v5074, %v5168
    %v5170 = vpop.f32.mrb[0].mxu0
    %5171 = vmatprep.mubr.bf16.mxu0 0
    %5172 = vmatmul.mubr.bf16.gmra.mrb[0].mxu0 %v5053
    %v5173 = vpop.f32.mrb[0].mxu0
    %v5174 = vadd.f32 %v5074, %v5173
    %v5175 = vpop.f32.mrb[0].mxu0
    %v5176 = vpop.f32.mrb[0].mxu0
    %v5177 = vpop.f32.mrb[0].mxu0
    %5178 = vdwg.mxu0
    %v5179 = vlaneseq
    %v5180 = vshrl.u32 %v5179, 7
    %v5181 = vsub.s32 0, %v5180
    %v5182 = vrot.slane %v3589, %v5181
    %v5183 = vmul.f32 %v5182, %v5158
    %v5184 = vmul.f32 %v5182, %v5161
    %v5185 = vmul.f32 %v5182, %v5166
    %v5186 = vmul.f32 %v5182, %v5169
    %v5187 = vmul.f32 %v5182, %v5174
    %v5188 = vadd.f32 %v4740, %v5183
    %v5189 = vadd.f32 %v4741, %v5184
    %v5190 = vadd.f32 %v4742, %v5185
    %v5191 = vadd.f32 %v4743, %v5186
    %v5192 = vadd.f32 %v4744, %v5187
    %s5193 = scalar_lea.vmem %s6, 48
    %v5194 = vld [vmem:[%s5193] sm:$0x1]
    %v5195 = vld [vmem:[%s5193 + $0x1] sm:$0x1]
    %v5196 = vld [vmem:[%s5193 + $0x2] sm:$0x1]
    %v5197 = vld [vmem:[%s5193 + $0x3] sm:$0x1]
    %v5198 = vld [vmem:[%s5193 + $0x4] sm:$0x1]
    %v5199 = vld [vmem:[%s5193 + $0x5] sm:$0x1]
    %v5200 = vld [vmem:[%s5193 + $0x6] sm:$0x1]
    %v5201 = vld [vmem:[%s5193 + $0x7] sm:$0x1]
    %v5202 = vld [vmem:[%s5193 + $0x8] sm:$0x1]
    %v5203 = vsel %vm239, %v5188, 0.0
    %5204 = vadd.xlane.f32.xlu0 %v5203
    %v5205 = vpop.xlane.xlu0 %5204
    %v5206 = vsel %vm239, %v5189, 0.0
    %5207 = vadd.xlane.f32.xlu0 %v5206
    %v5208 = vpop.xlane.xlu0 %5207
    %v5209 = vsel %vm239, %v5190, 0.0
    %5210 = vadd.xlane.f32.xlu0 %v5209
    %v5211 = vpop.xlane.xlu0 %5210
    %v5212 = vsel %vm239, %v5191, 0.0
    %5213 = vadd.xlane.f32.xlu0 %v5212
    %v5214 = vpop.xlane.xlu0 %5213
    %v5215 = vsel %vm366, %v5192, 0.0
    %5216 = vadd.xlane.f32.xlu0 %v5215
    %v5217 = vpop.xlane.xlu0 %5216
    %v5218 = vmul.f32 %v5205, %v370
    %v5219 = vmul.f32 %v5208, %v370
    %v5220 = vmul.f32 %v5211, %v370
    %v5221 = vmul.f32 %v5214, %v370
    %v5222 = vmul.f32 %v5217, %v370
    %v5223 = vsub.f32 %v5188, %v5218
    %v5224 = vsub.f32 %v5189, %v5219
    %v5225 = vsub.f32 %v5190, %v5220
    %v5226 = vsub.f32 %v5191, %v5221
    %v5227 = vsub.f32 %v5192, %v5222
    %v5228 = vmul.f32 %v5223, %v5223
    %v5229 = vmul.f32 %v5224, %v5224
    %v5230 = vmul.f32 %v5225, %v5225
    %v5231 = vmul.f32 %v5226, %v5226
    %v5232 = vmul.f32 %v5227, %v5227
    %v5233 = vsel %vm239, %v5228, 0.0
    %5234 = vadd.xlane.f32.xlu0 %v5233
    %v5235 = vpop.xlane.xlu0 %5234
    %v5236 = vsel %vm239, %v5229, 0.0
    %5237 = vadd.xlane.f32.xlu0 %v5236
    %v5238 = vpop.xlane.xlu0 %5237
    %v5239 = vsel %vm239, %v5230, 0.0
    %5240 = vadd.xlane.f32.xlu0 %v5239
    %v5241 = vpop.xlane.xlu0 %5240
    %v5242 = vsel %vm239, %v5231, 0.0
    %5243 = vadd.xlane.f32.xlu0 %v5242
    %v5244 = vpop.xlane.xlu0 %5243
    %v5245 = vsel %vm366, %v5232, 0.0
    %5246 = vadd.xlane.f32.xlu0 %v5245
    %v5247 = vpop.xlane.xlu0 %5246
    %v5248 = vmul.f32 %v5235, %v370
    %v5249 = vmul.f32 %v5238, %v370
    %v5250 = vmul.f32 %v5241, %v370
    %v5251 = vmul.f32 %v5244, %v370
    %v5252 = vmul.f32 %v5247, %v370
    %v5253 = vadd.f32 %v5248, 1e-06
    %v5254 = vadd.f32 %v5249, 1e-06
    %v5255 = vadd.f32 %v5250, 1e-06
    %v5256 = vadd.f32 %v5251, 1e-06
    %v5257 = vadd.f32 %v5252, 1e-06
    %v5258 = vrsqrt.pop %v5253
    %v5259 = vrsqrt.pop %v5254
    %v5260 = vrsqrt.pop %v5255
    %v5261 = vrsqrt.pop %v5256
    %v5262 = vrsqrt.pop %v5257
    %v5263 = vmul.f32 %v5223, %v5258
    %v5264 = vmul.f32 %v5224, %v5259
    %v5265 = vmul.f32 %v5225, %v5260
    %v5266 = vmul.f32 %v5226, %v5261
    %v5267 = vmul.f32 %v5227, %v5262
    %v5268 = vlaneseq
    %v5269 = vshrl.u32 %v5268, 7
    %v5270 = vsub.s32 0, %v5269
    %v5271 = vrot.slane %v5194, %v5270
    %v5272 = vmul.f32 %v5263, %v5271
    %v5273 = vmul.f32 %v5264, %v5271
    %v5274 = vmul.f32 %v5265, %v5271
    %v5275 = vmul.f32 %v5266, %v5271
    %v5276 = vmul.f32 %v5267, %v5271
    %v5277 = vlaneseq
    %v5278 = vshrl.u32 %v5277, 7
    %v5279 = vsub.s32 0, %v5278
    %v5280 = vrot.slane %v5195, %v5279
    %v5281 = vadd.f32 %v5272, %v5280
    %v5282 = vadd.f32 %v5273, %v5280
    %v5283 = vadd.f32 %v5274, %v5280
    %v5284 = vadd.f32 %v5275, %v5280
    %v5285 = vadd.f32 %v5276, %v5280
    %v5286 = vpack.c.bf16 %v5282, %v5281
    %v5287 = vpack.c.bf16 %v5284, %v5283
    %v5288 = vpack.c.bf16 %v5285, %v5285
    %s5289 = scalar_lea.vmem %s4, 144
    %v5290 = vld [vmem:[%s5289] sm:$0xf]
    %v5291 = vld [vmem:[%s5289 + $0x4] sm:$0xf]
    %v5292 = vld [vmem:[%s5289 + $0x8] sm:$0xf]
    %v5293 = vld [vmem:[%s5289 + $0xc] sm:$0xf]
    %v5298 = vunpack.c.l.b16 %v5290
    %v5299 = vunpack.c.l.b16 %v5291
    %v5300 = vunpack.c.l.b16 %v5292
    %v5301 = vunpack.c.l.b16 %v5293
    %v5302 = vpack.c.b16 %v5299, %v5298
    %v5303 = vpack.c.b16 %v5301, %v5300
    %v5307 = vsel %vm239, %v5286, 0
    %v5310 = vsel %vm239, %v5287, 0
    %v5313 = vsel %vm239, %v5288, 0
    %5315 = vmatprep.subr.bf16.mxu0 0
    %5316 = vmatpush1.bf16.msra.mxu0 %v5302
    %5317 = vmatprep.subr.bf16.mxu0 0
    %5318 = vmatpush1.bf16.msra.mxu0 %v5303
    %5319 = vmatprep.subr.bf16.mxu0 0
    %5320 = vmatpush1.bf16.msra.mxu0 0
    %5321 = vmatprep.subr.bf16.mxu0 0
    %5322 = vmatpush1.bf16.msra.mxu0 0
    %5323 = vmatprep.subr.bf16.mxu0 0
    %5324 = vmatpush1.bf16.msra.mxu0 0
    %5325 = vmatprep.subr.bf16.mxu0 0
    %5326 = vmatpush1.bf16.msra.mxu0 0
    %5327 = vmatprep.subr.bf16.mxu0 0
    %5328 = vmatpush1.bf16.msra.mxu0 0
    %5329 = vmatprep.subr.bf16.mxu0 0
    %5330 = vmatpush1.bf16.msra.mxu0 0
    %5331 = vmatprep.subr.bf16.mxu0 0
    %5332 = vmatpush1.bf16.msra.mxu0 0
    %5333 = vmatprep.subr.bf16.mxu0 0
    %5334 = vmatpush1.bf16.msra.mxu0 0
    %5335 = vmatprep.subr.bf16.mxu0 0
    %5336 = vmatpush1.bf16.msra.mxu0 0
    %5337 = vmatprep.subr.bf16.mxu0 0
    %5338 = vmatpush1.bf16.msra.mxu0 0
    %5339 = vmatprep.subr.bf16.mxu0 0
    %5340 = vmatpush1.bf16.msra.mxu0 0
    %5341 = vmatprep.subr.bf16.mxu0 0
    %5342 = vmatpush1.bf16.msra.mxu0 0
    %5343 = vmatprep.subr.bf16.mxu0 0
    %5344 = vmatpush1.bf16.msra.mxu0 0
    %5345 = vmatprep.subr.bf16.mxu0 0
    %5346 = vmatpush1.bf16.msra.mxu0 0
    %5347 = vmatprep.mubr.bf16.mxu0 0
    %5348 = vmatmul.mubr.bf16.gmra.mrb[0].mxu0 %v5307
    %v5349 = vpop.f32.mrb[0].mxu0
    %v5350 = vadd.f32 0.0, %v5349
    %v5351 = vpop.f32.mrb[0].mxu0
    %v5352 = vpop.f32.mrb[0].mxu0
    %v5353 = vadd.f32 0.0, %v5352
    %v5354 = vpop.f32.mrb[0].mxu0
    %5355 = vmatprep.mubr.bf16.mxu0 0
    %5356 = vmatmul.mubr.bf16.gmra.mrb[0].mxu0 %v5310
    %v5357 = vpop.f32.mrb[0].mxu0
    %v5358 = vadd.f32 0.0, %v5357
    %v5359 = vpop.f32.mrb[0].mxu0
    %v5360 = vpop.f32.mrb[0].mxu0
    %v5361 = vadd.f32 0.0, %v5360
    %v5362 = vpop.f32.mrb[0].mxu0
    %5363 = vmatprep.mubr.bf16.mxu0 0
    %5364 = vmatmul.mubr.bf16.gmra.mrb[0].mxu0 %v5313
    %v5365 = vpop.f32.mrb[0].mxu0
    %v5366 = vadd.f32 0.0, %v5365
    %v5367 = vpop.f32.mrb[0].mxu0
    %v5368 = vpop.f32.mrb[0].mxu0
    %v5369 = vpop.f32.mrb[0].mxu0
    %5370 = vdwg.mxu0
    %v5371 = vmul.f32 %v5350, 0.35355338
    %v5372 = vmul.f32 %v5353, 0.35355338
    %v5373 = vmul.f32 %v5358, 0.35355338
    %v5374 = vmul.f32 %v5361, 0.35355338
    %v5375 = vmul.f32 %v5366, 0.35355338
    %v5376 = vpack.c.bf16 %v5353, %v5350
    %v5377 = vpack.c.bf16 %v5361, %v5358
    %v5378 = vpack.c.bf16 %v5366, %v5366
    %v5379 = vsel %vm133, %v5371, 0.0
    %v5380 = vsel %vm133, %v5372, 0.0
    %v5381 = vsel %vm133, %v5373, 0.0
    %v5382 = vsel %vm133, %v5374, 0.0
    %v5383 = vsel %vm133, %v5375, 0.0
    %v5384 = vpack.c.bf16 %v5380, %v5379
    %v5385 = vpack.c.bf16 %v5382, %v5381
    %v5386 = vpack.c.bf16 %v5383, %v5383
    %5392 = vrot.lane.b32.xlu0 %v5350, 64
    %v5393 = vpop.permute.xlu0 %5392
    %5394 = vrot.lane.b32.xlu0 %v5353, 64
    %v5395 = vpop.permute.xlu0 %5394
    %5396 = vrot.lane.b32.xlu0 %v5358, 64
    %v5397 = vpop.permute.xlu0 %5396
    %5398 = vrot.lane.b32.xlu0 %v5361, 64
    %v5399 = vpop.permute.xlu0 %5398
    %5400 = vrot.lane.b32.xlu0 %v5366, 64
    %v5401 = vpop.permute.xlu0 %5400
    %v5407 = vsel %vm133, %v5393, 0.0
    %v5408 = vsel %vm133, %v5395, 0.0
    %v5409 = vsel %vm133, %v5397, 0.0
    %v5410 = vsel %vm133, %v5399, 0.0
    %v5411 = vsel %vm133, %v5401, 0.0
    %v5412 = vpack.c.bf16 %v5408, %v5407
    %v5413 = vpack.c.bf16 %v5410, %v5409
    %v5414 = vpack.c.bf16 %v5411, %v5411
    %5418 = vrot.lane.b32.xlu0 %v5376, 96
    %v5419 = vpop.permute.xlu0 %5418
    %5420 = vrot.lane.b32.xlu0 %v5377, 96
    %v5421 = vpop.permute.xlu0 %5420
    %5422 = vrot.lane.b32.xlu0 %v5378, 96
    %v5423 = vpop.permute.xlu0 %5422
    %v5425 = vsel %vm239, %v5384, 0
    %v5428 = vsel %vm239, %v5385, 0
    %v5431 = vsel %vm239, %v5386, 0
    %v5434 = vsel %vm239, %v5419, 0
    %v5437 = vsel %vm239, %v5421, 0
    %v5440 = vsel %vm239, %v5423, 0
    %5442 = vmatprep.subr.bf16.mxu0 0
    %5443 = vmatpush1.bf16.xpose.msra.mxu0 %v5434
    %5444 = vmatprep.subr.bf16.mxu0 0
    %5445 = vmatpush1.bf16.xpose.msra.mxu0 %v5437
    %5446 = vmatprep.subr.bf16.mxu0 0
    %5447 = vmatpush1.bf16.xpose.msra.mxu0 %v5440
    %5448 = vmatprep.subr.bf16.mxu0 0
    %5449 = vmatpush1.bf16.xpose.msra.mxu0 0
    %5450 = vmatprep.subr.bf16.mxu0 0
    %5451 = vmatpush1.bf16.xpose.msra.mxu0 0
    %5452 = vmatprep.subr.bf16.mxu0 0
    %5453 = vmatpush1.bf16.xpose.msra.mxu0 0
    %5454 = vmatprep.subr.bf16.mxu0 0
    %5455 = vmatpush1.bf16.xpose.msra.mxu0 0
    %5456 = vmatprep.subr.bf16.mxu0 0
    %5457 = vmatpush1.bf16.xpose.msra.mxu0 0
    %5458 = vmatprep.subr.bf16.mxu0 0
    %5459 = vmatpush1.bf16.xpose.msra.mxu0 0
    %5460 = vmatprep.subr.bf16.mxu0 0
    %5461 = vmatpush1.bf16.xpose.msra.mxu0 0
    %5462 = vmatprep.subr.bf16.mxu0 0
    %5463 = vmatpush1.bf16.xpose.msra.mxu0 0
    %5464 = vmatprep.subr.bf16.mxu0 0
    %5465 = vmatpush1.bf16.xpose.msra.mxu0 0
    %5466 = vmatprep.subr.bf16.mxu0 0
    %5467 = vmatpush1.bf16.xpose.msra.mxu0 0
    %5468 = vmatprep.subr.bf16.mxu0 0
    %5469 = vmatpush1.bf16.xpose.msra.mxu0 0
    %5470 = vmatprep.subr.bf16.mxu0 0
    %5471 = vmatpush1.bf16.xpose.msra.mxu0 0
    %5472 = vmatprep.subr.bf16.mxu0 0
    %5473 = vmatpush1.bf16.xpose.msra.mxu0 0
    %5474 = vmatprep.mubr.bf16.mxu0 0
    %5475 = vmatmul.mubr.bf16.gmra.mrb[0].mxu0 %v5425
    %v5476 = vpop.f32.mrb[0].mxu0
    %v5477 = vadd.f32 %v96, %v5476
    %v5478 = vpop.f32.mrb[0].mxu0
    %v5479 = vpop.f32.mrb[0].mxu0
    %v5480 = vadd.f32 %v97, %v5479
    %v5481 = vpop.f32.mrb[0].mxu0
    %5482 = vmatprep.mubr.bf16.mxu0 0
    %5483 = vmatmul.mubr.bf16.gmra.mrb[0].mxu0 %v5428
    %v5484 = vpop.f32.mrb[0].mxu0
    %v5485 = vadd.f32 %v98, %v5484
    %v5486 = vpop.f32.mrb[0].mxu0
    %v5487 = vpop.f32.mrb[0].mxu0
    %v5488 = vadd.f32 %v99, %v5487
    %v5489 = vpop.f32.mrb[0].mxu0
    %5490 = vmatprep.mubr.bf16.mxu0 0
    %5491 = vmatmul.mubr.bf16.gmra.mrb[0].mxu0 %v5431
    %v5492 = vpop.f32.mrb[0].mxu0
    %v5493 = vadd.f32 %v100, %v5492
    %v5494 = vpop.f32.mrb[0].mxu0
    %v5495 = vpop.f32.mrb[0].mxu0
    %v5496 = vpop.f32.mrb[0].mxu0
    %5497 = vdwg.mxu0
    %v5498 = vsel %vm650, %v5477, -inf
    %5499 = vmax.xlane.f32.xlu0 %v5498
    %v5500 = vpop.xlane.xlu0 %5499
    %v5501 = vsel %vm650, %v5480, -inf
    %5502 = vmax.xlane.f32.xlu0 %v5501
    %v5503 = vpop.xlane.xlu0 %5502
    %v5504 = vsel %vm650, %v5485, -inf
    %5505 = vmax.xlane.f32.xlu0 %v5504
    %v5506 = vpop.xlane.xlu0 %5505
    %v5507 = vsel %vm650, %v5488, -inf
    %5508 = vmax.xlane.f32.xlu0 %v5507
    %v5509 = vpop.xlane.xlu0 %5508
    %v5510 = vsel %vm663, %v5493, -inf
    %5511 = vmax.xlane.f32.xlu0 %v5510
    %v5512 = vpop.xlane.xlu0 %5511
    %v5513 = vsub.f32 %v5477, %v5500
    %v5514 = vsub.f32 %v5480, %v5503
    %v5515 = vsub.f32 %v5485, %v5506
    %v5516 = vsub.f32 %v5488, %v5509
    %v5517 = vsub.f32 %v5493, %v5512
    %v5518 = vmul.f32 %v5513, 1.442695
    %v5519 = vpow.pop %v5518
    %v5520 = vmul.f32 %v5514, 1.442695
    %v5521 = vpow.pop %v5520
    %v5522 = vmul.f32 %v5515, 1.442695
    %v5523 = vpow.pop %v5522
    %v5524 = vmul.f32 %v5516, 1.442695
    %v5525 = vpow.pop %v5524
    %v5526 = vmul.f32 %v5517, 1.442695
    %v5527 = vpow.pop %v5526
    %v5528 = vsel %vm650, %v5519, 0.0
    %5529 = vadd.xlane.f32.xlu0 %v5528
    %v5530 = vpop.xlane.xlu0 %5529
    %v5531 = vsel %vm650, %v5521, 0.0
    %5532 = vadd.xlane.f32.xlu0 %v5531
    %v5533 = vpop.xlane.xlu0 %5532
    %v5534 = vsel %vm650, %v5523, 0.0
    %5535 = vadd.xlane.f32.xlu0 %v5534
    %v5536 = vpop.xlane.xlu0 %5535
    %v5537 = vsel %vm650, %v5525, 0.0
    %5538 = vadd.xlane.f32.xlu0 %v5537
    %v5539 = vpop.xlane.xlu0 %5538
    %v5540 = vsel %vm663, %v5527, 0.0
    %5541 = vadd.xlane.f32.xlu0 %v5540
    %v5542 = vpop.xlane.xlu0 %5541
    %v5543 = vrcp.pop %v5530
    %v5544 = vrcp.pop %v5533
    %v5545 = vrcp.pop %v5536
    %v5546 = vrcp.pop %v5539
    %v5547 = vrcp.pop %v5542
    %v5548 = vmul.f32 %v5519, %v5543
    %v5549 = vmul.f32 %v5521, %v5544
    %v5550 = vmul.f32 %v5523, %v5545
    %v5551 = vmul.f32 %v5525, %v5546
    %v5552 = vmul.f32 %v5527, %v5547
    %v5553 = vpack.c.bf16 %v5549, %v5548
    %v5554 = vpack.c.bf16 %v5551, %v5550
    %v5555 = vpack.c.bf16 %v5552, %v5552
    %v5556 = vsel %vm136, %v5371, 0.0
    %v5557 = vsel %vm136, %v5372, 0.0
    %v5558 = vsel %vm136, %v5373, 0.0
    %v5559 = vsel %vm136, %v5374, 0.0
    %v5560 = vsel %vm136, %v5375, 0.0
    %v5561 = vpack.c.bf16 %v5557, %v5556
    %v5562 = vpack.c.bf16 %v5559, %v5558
    %v5563 = vpack.c.bf16 %v5560, %v5560
    %v5564 = vsel %vm136, %v5393, 0.0
    %v5565 = vsel %vm136, %v5395, 0.0
    %v5566 = vsel %vm136, %v5397, 0.0
    %v5567 = vsel %vm136, %v5399, 0.0
    %v5568 = vsel %vm136, %v5401, 0.0
    %v5569 = vpack.c.bf16 %v5565, %v5564
    %v5570 = vpack.c.bf16 %v5567, %v5566
    %v5571 = vpack.c.bf16 %v5568, %v5568
    %v5573 = vsel %vm239, %v5561, 0
    %v5576 = vsel %vm239, %v5562, 0
    %v5579 = vsel %vm239, %v5563, 0
    %5581 = vmatprep.subr.bf16.mxu0 0
    %5582 = vmatpush1.bf16.xpose.msra.mxu0 %v5434
    %5583 = vmatprep.subr.bf16.mxu0 0
    %5584 = vmatpush1.bf16.xpose.msra.mxu0 %v5437
    %5585 = vmatprep.subr.bf16.mxu0 0
    %5586 = vmatpush1.bf16.xpose.msra.mxu0 %v5440
    %5587 = vmatprep.subr.bf16.mxu0 0
    %5588 = vmatpush1.bf16.xpose.msra.mxu0 0
    %5589 = vmatprep.subr.bf16.mxu0 0
    %5590 = vmatpush1.bf16.xpose.msra.mxu0 0
    %5591 = vmatprep.subr.bf16.mxu0 0
    %5592 = vmatpush1.bf16.xpose.msra.mxu0 0
    %5593 = vmatprep.subr.bf16.mxu0 0
    %5594 = vmatpush1.bf16.xpose.msra.mxu0 0
    %5595 = vmatprep.subr.bf16.mxu0 0
    %5596 = vmatpush1.bf16.xpose.msra.mxu0 0
    %5597 = vmatprep.subr.bf16.mxu0 0
    %5598 = vmatpush1.bf16.xpose.msra.mxu0 0
    %5599 = vmatprep.subr.bf16.mxu0 0
    %5600 = vmatpush1.bf16.xpose.msra.mxu0 0
    %5601 = vmatprep.subr.bf16.mxu0 0
    %5602 = vmatpush1.bf16.xpose.msra.mxu0 0
    %5603 = vmatprep.subr.bf16.mxu0 0
    %5604 = vmatpush1.bf16.xpose.msra.mxu0 0
    %5605 = vmatprep.subr.bf16.mxu0 0
    %5606 = vmatpush1.bf16.xpose.msra.mxu0 0
    %5607 = vmatprep.subr.bf16.mxu0 0
    %5608 = vmatpush1.bf16.xpose.msra.mxu0 0
    %5609 = vmatprep.subr.bf16.mxu0 0
    %5610 = vmatpush1.bf16.xpose.msra.mxu0 0
    %5611 = vmatprep.subr.bf16.mxu0 0
    %5612 = vmatpush1.bf16.xpose.msra.mxu0 0
    %5613 = vmatprep.mubr.bf16.mxu0 0
    %5614 = vmatmul.mubr.bf16.gmra.mrb[0].mxu0 %v5573
    %v5615 = vpop.f32.mrb[0].mxu0
    %v5616 = vadd.f32 %v96, %v5615
    %v5617 = vpop.f32.mrb[0].mxu0
    %v5618 = vpop.f32.mrb[0].mxu0
    %v5619 = vadd.f32 %v97, %v5618
    %v5620 = vpop.f32.mrb[0].mxu0
    %5621 = vmatprep.mubr.bf16.mxu0 0
    %5622 = vmatmul.mubr.bf16.gmra.mrb[0].mxu0 %v5576
    %v5623 = vpop.f32.mrb[0].mxu0
    %v5624 = vadd.f32 %v98, %v5623
    %v5625 = vpop.f32.mrb[0].mxu0
    %v5626 = vpop.f32.mrb[0].mxu0
    %v5627 = vadd.f32 %v99, %v5626
    %v5628 = vpop.f32.mrb[0].mxu0
    %5629 = vmatprep.mubr.bf16.mxu0 0
    %5630 = vmatmul.mubr.bf16.gmra.mrb[0].mxu0 %v5579
    %v5631 = vpop.f32.mrb[0].mxu0
    %v5632 = vadd.f32 %v100, %v5631
    %v5633 = vpop.f32.mrb[0].mxu0
    %v5634 = vpop.f32.mrb[0].mxu0
    %v5635 = vpop.f32.mrb[0].mxu0
    %5636 = vdwg.mxu0
    %v5637 = vsel %vm650, %v5616, -inf
    %5638 = vmax.xlane.f32.xlu0 %v5637
    %v5639 = vpop.xlane.xlu0 %5638
    %v5640 = vsel %vm650, %v5619, -inf
    %5641 = vmax.xlane.f32.xlu0 %v5640
    %v5642 = vpop.xlane.xlu0 %5641
    %v5643 = vsel %vm650, %v5624, -inf
    %5644 = vmax.xlane.f32.xlu0 %v5643
    %v5645 = vpop.xlane.xlu0 %5644
    %v5646 = vsel %vm650, %v5627, -inf
    %5647 = vmax.xlane.f32.xlu0 %v5646
    %v5648 = vpop.xlane.xlu0 %5647
    %v5649 = vsel %vm663, %v5632, -inf
    %5650 = vmax.xlane.f32.xlu0 %v5649
    %v5651 = vpop.xlane.xlu0 %5650
    %v5652 = vsub.f32 %v5616, %v5639
    %v5653 = vsub.f32 %v5619, %v5642
    %v5654 = vsub.f32 %v5624, %v5645
    %v5655 = vsub.f32 %v5627, %v5648
    %v5656 = vsub.f32 %v5632, %v5651
    %v5657 = vmul.f32 %v5652, 1.442695
    %v5658 = vpow.pop %v5657
    %v5659 = vmul.f32 %v5653, 1.442695
    %v5660 = vpow.pop %v5659
    %v5661 = vmul.f32 %v5654, 1.442695
    %v5662 = vpow.pop %v5661
    %v5663 = vmul.f32 %v5655, 1.442695
    %v5664 = vpow.pop %v5663
    %v5665 = vmul.f32 %v5656, 1.442695
    %v5666 = vpow.pop %v5665
    %v5667 = vsel %vm650, %v5658, 0.0
    %5668 = vadd.xlane.f32.xlu0 %v5667
    %v5669 = vpop.xlane.xlu0 %5668
    %v5670 = vsel %vm650, %v5660, 0.0
    %5671 = vadd.xlane.f32.xlu0 %v5670
    %v5672 = vpop.xlane.xlu0 %5671
    %v5673 = vsel %vm650, %v5662, 0.0
    %5674 = vadd.xlane.f32.xlu0 %v5673
    %v5675 = vpop.xlane.xlu0 %5674
    %v5676 = vsel %vm650, %v5664, 0.0
    %5677 = vadd.xlane.f32.xlu0 %v5676
    %v5678 = vpop.xlane.xlu0 %5677
    %v5679 = vsel %vm663, %v5666, 0.0
    %5680 = vadd.xlane.f32.xlu0 %v5679
    %v5681 = vpop.xlane.xlu0 %5680
    %v5682 = vrcp.pop %v5669
    %v5683 = vrcp.pop %v5672
    %v5684 = vrcp.pop %v5675
    %v5685 = vrcp.pop %v5678
    %v5686 = vrcp.pop %v5681
    %v5687 = vmul.f32 %v5658, %v5682
    %v5688 = vmul.f32 %v5660, %v5683
    %v5689 = vmul.f32 %v5662, %v5684
    %v5690 = vmul.f32 %v5664, %v5685
    %v5691 = vmul.f32 %v5666, %v5686
    %v5692 = vpack.c.bf16 %v5688, %v5687
    %v5693 = vpack.c.bf16 %v5690, %v5689
    %v5694 = vpack.c.bf16 %v5691, %v5691
    %v5696 = vsel %vm650, %v5692, 0
    %v5699 = vsel %vm650, %v5693, 0
    %v5702 = vsel %vm650, %v5694, 0
    %v5705 = vsel %vm858, %v5571, 0
    %5707 = vmatprep.subr.bf16.mxu0 0
    %5708 = vmatpush1.bf16.msra.mxu0 %v5569
    %5709 = vmatprep.subr.bf16.mxu0 0
    %5710 = vmatpush1.bf16.msra.mxu0 %v5570
    %5711 = vmatprep.subr.bf16.mxu0 0
    %5712 = vmatpush1.bf16.msra.mxu0 %v5705
    %5713 = vmatprep.subr.bf16.mxu0 0
    %5714 = vmatpush1.bf16.msra.mxu0 0
    %5715 = vmatprep.subr.bf16.mxu0 0
    %5716 = vmatpush1.bf16.msra.mxu0 0
    %5717 = vmatprep.subr.bf16.mxu0 0
    %5718 = vmatpush1.bf16.msra.mxu0 0
    %5719 = vmatprep.subr.bf16.mxu0 0
    %5720 = vmatpush1.bf16.msra.mxu0 0
    %5721 = vmatprep.subr.bf16.mxu0 0
    %5722 = vmatpush1.bf16.msra.mxu0 0
    %5723 = vmatprep.subr.bf16.mxu0 0
    %5724 = vmatpush1.bf16.msra.mxu0 0
    %5725 = vmatprep.subr.bf16.mxu0 0
    %5726 = vmatpush1.bf16.msra.mxu0 0
    %5727 = vmatprep.subr.bf16.mxu0 0
    %5728 = vmatpush1.bf16.msra.mxu0 0
    %5729 = vmatprep.subr.bf16.mxu0 0
    %5730 = vmatpush1.bf16.msra.mxu0 0
    %5731 = vmatprep.subr.bf16.mxu0 0
    %5732 = vmatpush1.bf16.msra.mxu0 0
    %5733 = vmatprep.subr.bf16.mxu0 0
    %5734 = vmatpush1.bf16.msra.mxu0 0
    %5735 = vmatprep.subr.bf16.mxu0 0
    %5736 = vmatpush1.bf16.msra.mxu0 0
    %5737 = vmatprep.subr.bf16.mxu0 0
    %5738 = vmatpush1.bf16.msra.mxu0 0
    %5739 = vmatprep.mubr.bf16.mxu0 0
    %5740 = vmatmul.mubr.bf16.gmra.mrb[0].mxu0 %v5696
    %v5741 = vpop.f32.mrb[0].mxu0
    %v5742 = vadd.f32 0.0, %v5741
    %v5743 = vpop.f32.mrb[0].mxu0
    %v5744 = vpop.f32.mrb[0].mxu0
    %v5745 = vadd.f32 0.0, %v5744
    %v5746 = vpop.f32.mrb[0].mxu0
    %5747 = vmatprep.mubr.bf16.mxu0 0
    %5748 = vmatmul.mubr.bf16.gmra.mrb[0].mxu0 %v5699
    %v5749 = vpop.f32.mrb[0].mxu0
    %v5750 = vadd.f32 0.0, %v5749
    %v5751 = vpop.f32.mrb[0].mxu0
    %v5752 = vpop.f32.mrb[0].mxu0
    %v5753 = vadd.f32 0.0, %v5752
    %v5754 = vpop.f32.mrb[0].mxu0
    %5755 = vmatprep.mubr.bf16.mxu0 0
    %5756 = vmatmul.mubr.bf16.gmra.mrb[0].mxu0 %v5702
    %v5757 = vpop.f32.mrb[0].mxu0
    %v5758 = vadd.f32 0.0, %v5757
    %v5759 = vpop.f32.mrb[0].mxu0
    %v5760 = vpop.f32.mrb[0].mxu0
    %v5761 = vpop.f32.mrb[0].mxu0
    %5762 = vdwg.mxu0
    %v5764 = vsel %vm650, %v5553, 0
    %v5767 = vsel %vm650, %v5554, 0
    %v5770 = vsel %vm650, %v5555, 0
    %v5773 = vsel %vm858, %v5414, 0
    %5775 = vmatprep.subr.bf16.mxu0 0
    %5776 = vmatpush1.bf16.msra.mxu0 %v5412
    %5777 = vmatprep.subr.bf16.mxu0 0
    %5778 = vmatpush1.bf16.msra.mxu0 %v5413
    %5779 = vmatprep.subr.bf16.mxu0 0
    %5780 = vmatpush1.bf16.msra.mxu0 %v5773
    %5781 = vmatprep.subr.bf16.mxu0 0
    %5782 = vmatpush1.bf16.msra.mxu0 0
    %5783 = vmatprep.subr.bf16.mxu0 0
    %5784 = vmatpush1.bf16.msra.mxu0 0
    %5785 = vmatprep.subr.bf16.mxu0 0
    %5786 = vmatpush1.bf16.msra.mxu0 0
    %5787 = vmatprep.subr.bf16.mxu0 0
    %5788 = vmatpush1.bf16.msra.mxu0 0
    %5789 = vmatprep.subr.bf16.mxu0 0
    %5790 = vmatpush1.bf16.msra.mxu0 0
    %5791 = vmatprep.subr.bf16.mxu0 0
    %5792 = vmatpush1.bf16.msra.mxu0 0
    %5793 = vmatprep.subr.bf16.mxu0 0
    %5794 = vmatpush1.bf16.msra.mxu0 0
    %5795 = vmatprep.subr.bf16.mxu0 0
    %5796 = vmatpush1.bf16.msra.mxu0 0
    %5797 = vmatprep.subr.bf16.mxu0 0
    %5798 = vmatpush1.bf16.msra.mxu0 0
    %5799 = vmatprep.subr.bf16.mxu0 0
    %5800 = vmatpush1.bf16.msra.mxu0 0
    %5801 = vmatprep.subr.bf16.mxu0 0
    %5802 = vmatpush1.bf16.msra.mxu0 0
    %5803 = vmatprep.subr.bf16.mxu0 0
    %5804 = vmatpush1.bf16.msra.mxu0 0
    %5805 = vmatprep.subr.bf16.mxu0 0
    %5806 = vmatpush1.bf16.msra.mxu0 0
    %5807 = vmatprep.mubr.bf16.mxu0 0
    %5808 = vmatmul.mubr.bf16.gmra.mrb[0].mxu0 %v5764
    %v5809 = vpop.f32.mrb[0].mxu0
    %v5810 = vadd.f32 %v5742, %v5809
    %v5811 = vpop.f32.mrb[0].mxu0
    %v5812 = vpop.f32.mrb[0].mxu0
    %v5813 = vadd.f32 %v5745, %v5812
    %v5814 = vpop.f32.mrb[0].mxu0
    %5815 = vmatprep.mubr.bf16.mxu0 0
    %5816 = vmatmul.mubr.bf16.gmra.mrb[0].mxu0 %v5767
    %v5817 = vpop.f32.mrb[0].mxu0
    %v5818 = vadd.f32 %v5750, %v5817
    %v5819 = vpop.f32.mrb[0].mxu0
    %v5820 = vpop.f32.mrb[0].mxu0
    %v5821 = vadd.f32 %v5753, %v5820
    %v5822 = vpop.f32.mrb[0].mxu0
    %5823 = vmatprep.mubr.bf16.mxu0 0
    %5824 = vmatmul.mubr.bf16.gmra.mrb[0].mxu0 %v5770
    %v5825 = vpop.f32.mrb[0].mxu0
    %v5826 = vadd.f32 %v5758, %v5825
    %v5827 = vpop.f32.mrb[0].mxu0
    %v5828 = vpop.f32.mrb[0].mxu0
    %v5829 = vpop.f32.mrb[0].mxu0
    %5830 = vdwg.mxu0
    %v5831 = vsel %vm139, %v5371, 0.0
    %v5832 = vsel %vm139, %v5372, 0.0
    %v5833 = vsel %vm139, %v5373, 0.0
    %v5834 = vsel %vm139, %v5374, 0.0
    %v5835 = vsel %vm139, %v5375, 0.0
    %v5836 = vpack.c.bf16 %v5832, %v5831
    %v5837 = vpack.c.bf16 %v5834, %v5833
    %v5838 = vpack.c.bf16 %v5835, %v5835
    %v5839 = vsel %vm139, %v5393, 0.0
    %v5840 = vsel %vm139, %v5395, 0.0
    %v5841 = vsel %vm139, %v5397, 0.0
    %v5842 = vsel %vm139, %v5399, 0.0
    %v5843 = vsel %vm139, %v5401, 0.0
    %v5844 = vpack.c.bf16 %v5840, %v5839
    %v5845 = vpack.c.bf16 %v5842, %v5841
    %v5846 = vpack.c.bf16 %v5843, %v5843
    %v5848 = vsel %vm239, %v5836, 0
    %v5851 = vsel %vm239, %v5837, 0
    %v5854 = vsel %vm239, %v5838, 0
    %5856 = vmatprep.subr.bf16.mxu0 0
    %5857 = vmatpush1.bf16.xpose.msra.mxu0 %v5434
    %5858 = vmatprep.subr.bf16.mxu0 0
    %5859 = vmatpush1.bf16.xpose.msra.mxu0 %v5437
    %5860 = vmatprep.subr.bf16.mxu0 0
    %5861 = vmatpush1.bf16.xpose.msra.mxu0 %v5440
    %5862 = vmatprep.subr.bf16.mxu0 0
    %5863 = vmatpush1.bf16.xpose.msra.mxu0 0
    %5864 = vmatprep.subr.bf16.mxu0 0
    %5865 = vmatpush1.bf16.xpose.msra.mxu0 0
    %5866 = vmatprep.subr.bf16.mxu0 0
    %5867 = vmatpush1.bf16.xpose.msra.mxu0 0
    %5868 = vmatprep.subr.bf16.mxu0 0
    %5869 = vmatpush1.bf16.xpose.msra.mxu0 0
    %5870 = vmatprep.subr.bf16.mxu0 0
    %5871 = vmatpush1.bf16.xpose.msra.mxu0 0
    %5872 = vmatprep.subr.bf16.mxu0 0
    %5873 = vmatpush1.bf16.xpose.msra.mxu0 0
    %5874 = vmatprep.subr.bf16.mxu0 0
    %5875 = vmatpush1.bf16.xpose.msra.mxu0 0
    %5876 = vmatprep.subr.bf16.mxu0 0
    %5877 = vmatpush1.bf16.xpose.msra.mxu0 0
    %5878 = vmatprep.subr.bf16.mxu0 0
    %5879 = vmatpush1.bf16.xpose.msra.mxu0 0
    %5880 = vmatprep.subr.bf16.mxu0 0
    %5881 = vmatpush1.bf16.xpose.msra.mxu0 0
    %5882 = vmatprep.subr.bf16.mxu0 0
    %5883 = vmatpush1.bf16.xpose.msra.mxu0 0
    %5884 = vmatprep.subr.bf16.mxu0 0
    %5885 = vmatpush1.bf16.xpose.msra.mxu0 0
    %5886 = vmatprep.subr.bf16.mxu0 0
    %5887 = vmatpush1.bf16.xpose.msra.mxu0 0
    %5888 = vmatprep.mubr.bf16.mxu0 0
    %5889 = vmatmul.mubr.bf16.gmra.mrb[0].mxu0 %v5848
    %v5890 = vpop.f32.mrb[0].mxu0
    %v5891 = vadd.f32 %v96, %v5890
    %v5892 = vpop.f32.mrb[0].mxu0
    %v5893 = vpop.f32.mrb[0].mxu0
    %v5894 = vadd.f32 %v97, %v5893
    %v5895 = vpop.f32.mrb[0].mxu0
    %5896 = vmatprep.mubr.bf16.mxu0 0
    %5897 = vmatmul.mubr.bf16.gmra.mrb[0].mxu0 %v5851
    %v5898 = vpop.f32.mrb[0].mxu0
    %v5899 = vadd.f32 %v98, %v5898
    %v5900 = vpop.f32.mrb[0].mxu0
    %v5901 = vpop.f32.mrb[0].mxu0
    %v5902 = vadd.f32 %v99, %v5901
    %v5903 = vpop.f32.mrb[0].mxu0
    %5904 = vmatprep.mubr.bf16.mxu0 0
    %5905 = vmatmul.mubr.bf16.gmra.mrb[0].mxu0 %v5854
    %v5906 = vpop.f32.mrb[0].mxu0
    %v5907 = vadd.f32 %v100, %v5906
    %v5908 = vpop.f32.mrb[0].mxu0
    %v5909 = vpop.f32.mrb[0].mxu0
    %v5910 = vpop.f32.mrb[0].mxu0
    %5911 = vdwg.mxu0
    %v5912 = vsel %vm650, %v5891, -inf
    %5913 = vmax.xlane.f32.xlu0 %v5912
    %v5914 = vpop.xlane.xlu0 %5913
    %v5915 = vsel %vm650, %v5894, -inf
    %5916 = vmax.xlane.f32.xlu0 %v5915
    %v5917 = vpop.xlane.xlu0 %5916
    %v5918 = vsel %vm650, %v5899, -inf
    %5919 = vmax.xlane.f32.xlu0 %v5918
    %v5920 = vpop.xlane.xlu0 %5919
    %v5921 = vsel %vm650, %v5902, -inf
    %5922 = vmax.xlane.f32.xlu0 %v5921
    %v5923 = vpop.xlane.xlu0 %5922
    %v5924 = vsel %vm663, %v5907, -inf
    %5925 = vmax.xlane.f32.xlu0 %v5924
    %v5926 = vpop.xlane.xlu0 %5925
    %v5927 = vsub.f32 %v5891, %v5914
    %v5928 = vsub.f32 %v5894, %v5917
    %v5929 = vsub.f32 %v5899, %v5920
    %v5930 = vsub.f32 %v5902, %v5923
    %v5931 = vsub.f32 %v5907, %v5926
    %v5932 = vmul.f32 %v5927, 1.442695
    %v5933 = vpow.pop %v5932
    %v5934 = vmul.f32 %v5928, 1.442695
    %v5935 = vpow.pop %v5934
    %v5936 = vmul.f32 %v5929, 1.442695
    %v5937 = vpow.pop %v5936
    %v5938 = vmul.f32 %v5930, 1.442695
    %v5939 = vpow.pop %v5938
    %v5940 = vmul.f32 %v5931, 1.442695
    %v5941 = vpow.pop %v5940
    %v5942 = vsel %vm650, %v5933, 0.0
    %5943 = vadd.xlane.f32.xlu0 %v5942
    %v5944 = vpop.xlane.xlu0 %5943
    %v5945 = vsel %vm650, %v5935, 0.0
    %5946 = vadd.xlane.f32.xlu0 %v5945
    %v5947 = vpop.xlane.xlu0 %5946
    %v5948 = vsel %vm650, %v5937, 0.0
    %5949 = vadd.xlane.f32.xlu0 %v5948
    %v5950 = vpop.xlane.xlu0 %5949
    %v5951 = vsel %vm650, %v5939, 0.0
    %5952 = vadd.xlane.f32.xlu0 %v5951
    %v5953 = vpop.xlane.xlu0 %5952
    %v5954 = vsel %vm663, %v5941, 0.0
    %5955 = vadd.xlane.f32.xlu0 %v5954
    %v5956 = vpop.xlane.xlu0 %5955
    %v5957 = vrcp.pop %v5944
    %v5958 = vrcp.pop %v5947
    %v5959 = vrcp.pop %v5950
    %v5960 = vrcp.pop %v5953
    %v5961 = vrcp.pop %v5956
    %v5962 = vmul.f32 %v5933, %v5957
    %v5963 = vmul.f32 %v5935, %v5958
    %v5964 = vmul.f32 %v5937, %v5959
    %v5965 = vmul.f32 %v5939, %v5960
    %v5966 = vmul.f32 %v5941, %v5961
    %v5967 = vpack.c.bf16 %v5963, %v5962
    %v5968 = vpack.c.bf16 %v5965, %v5964
    %v5969 = vpack.c.bf16 %v5966, %v5966
    %v5971 = vsel %vm650, %v5967, 0
    %v5974 = vsel %vm650, %v5968, 0
    %v5977 = vsel %vm650, %v5969, 0
    %v5980 = vsel %vm858, %v5846, 0
    %5982 = vmatprep.subr.bf16.mxu0 0
    %5983 = vmatpush1.bf16.msra.mxu0 %v5844
    %5984 = vmatprep.subr.bf16.mxu0 0
    %5985 = vmatpush1.bf16.msra.mxu0 %v5845
    %5986 = vmatprep.subr.bf16.mxu0 0
    %5987 = vmatpush1.bf16.msra.mxu0 %v5980
    %5988 = vmatprep.subr.bf16.mxu0 0
    %5989 = vmatpush1.bf16.msra.mxu0 0
    %5990 = vmatprep.subr.bf16.mxu0 0
    %5991 = vmatpush1.bf16.msra.mxu0 0
    %5992 = vmatprep.subr.bf16.mxu0 0
    %5993 = vmatpush1.bf16.msra.mxu0 0
    %5994 = vmatprep.subr.bf16.mxu0 0
    %5995 = vmatpush1.bf16.msra.mxu0 0
    %5996 = vmatprep.subr.bf16.mxu0 0
    %5997 = vmatpush1.bf16.msra.mxu0 0
    %5998 = vmatprep.subr.bf16.mxu0 0
    %5999 = vmatpush1.bf16.msra.mxu0 0
    %6000 = vmatprep.subr.bf16.mxu0 0
    %6001 = vmatpush1.bf16.msra.mxu0 0
    %6002 = vmatprep.subr.bf16.mxu0 0
    %6003 = vmatpush1.bf16.msra.mxu0 0
    %6004 = vmatprep.subr.bf16.mxu0 0
    %6005 = vmatpush1.bf16.msra.mxu0 0
    %6006 = vmatprep.subr.bf16.mxu0 0
    %6007 = vmatpush1.bf16.msra.mxu0 0
    %6008 = vmatprep.subr.bf16.mxu0 0
    %6009 = vmatpush1.bf16.msra.mxu0 0
    %6010 = vmatprep.subr.bf16.mxu0 0
    %6011 = vmatpush1.bf16.msra.mxu0 0
    %6012 = vmatprep.subr.bf16.mxu0 0
    %6013 = vmatpush1.bf16.msra.mxu0 0
    %6014 = vmatprep.mubr.bf16.mxu0 0
    %6015 = vmatmul.mubr.bf16.gmra.mrb[0].mxu0 %v5971
    %v6016 = vpop.f32.mrb[0].mxu0
    %v6017 = vadd.f32 0.0, %v6016
    %v6018 = vpop.f32.mrb[0].mxu0
    %v6019 = vpop.f32.mrb[0].mxu0
    %v6020 = vadd.f32 0.0, %v6019
    %v6021 = vpop.f32.mrb[0].mxu0
    %6022 = vmatprep.mubr.bf16.mxu0 0
    %6023 = vmatmul.mubr.bf16.gmra.mrb[0].mxu0 %v5974
    %v6024 = vpop.f32.mrb[0].mxu0
    %v6025 = vadd.f32 0.0, %v6024
    %v6026 = vpop.f32.mrb[0].mxu0
    %v6027 = vpop.f32.mrb[0].mxu0
    %v6028 = vadd.f32 0.0, %v6027
    %v6029 = vpop.f32.mrb[0].mxu0
    %6030 = vmatprep.mubr.bf16.mxu0 0
    %6031 = vmatmul.mubr.bf16.gmra.mrb[0].mxu0 %v5977
    %v6032 = vpop.f32.mrb[0].mxu0
    %v6033 = vadd.f32 0.0, %v6032
    %v6034 = vpop.f32.mrb[0].mxu0
    %v6035 = vpop.f32.mrb[0].mxu0
    %v6036 = vpop.f32.mrb[0].mxu0
    %6037 = vdwg.mxu0
    %v6038 = vadd.f32 %v5810, %v6017
    %v6039 = vadd.f32 %v5813, %v6020
    %v6040 = vadd.f32 %v5818, %v6025
    %v6041 = vadd.f32 %v5821, %v6028
    %v6042 = vadd.f32 %v5826, %v6033
    %v6043 = vsel %vm142, %v5371, 0.0
    %v6044 = vsel %vm142, %v5372, 0.0
    %v6045 = vsel %vm142, %v5373, 0.0
    %v6046 = vsel %vm142, %v5374, 0.0
    %v6047 = vsel %vm142, %v5375, 0.0
    %v6048 = vpack.c.bf16 %v6044, %v6043
    %v6049 = vpack.c.bf16 %v6046, %v6045
    %v6050 = vpack.c.bf16 %v6047, %v6047
    %v6051 = vsel %vm142, %v5393, 0.0
    %v6052 = vsel %vm142, %v5395, 0.0
    %v6053 = vsel %vm142, %v5397, 0.0
    %v6054 = vsel %vm142, %v5399, 0.0
    %v6055 = vsel %vm142, %v5401, 0.0
    %v6056 = vpack.c.bf16 %v6052, %v6051
    %v6057 = vpack.c.bf16 %v6054, %v6053
    %v6058 = vpack.c.bf16 %v6055, %v6055
    %v6060 = vsel %vm239, %v6048, 0
    %v6063 = vsel %vm239, %v6049, 0
    %v6066 = vsel %vm239, %v6050, 0
    %6068 = vmatprep.subr.bf16.mxu0 0
    %6069 = vmatpush1.bf16.xpose.msra.mxu0 %v5434
    %6070 = vmatprep.subr.bf16.mxu0 0
    %6071 = vmatpush1.bf16.xpose.msra.mxu0 %v5437
    %6072 = vmatprep.subr.bf16.mxu0 0
    %6073 = vmatpush1.bf16.xpose.msra.mxu0 %v5440
    %6074 = vmatprep.subr.bf16.mxu0 0
    %6075 = vmatpush1.bf16.xpose.msra.mxu0 0
    %6076 = vmatprep.subr.bf16.mxu0 0
    %6077 = vmatpush1.bf16.xpose.msra.mxu0 0
    %6078 = vmatprep.subr.bf16.mxu0 0
    %6079 = vmatpush1.bf16.xpose.msra.mxu0 0
    %6080 = vmatprep.subr.bf16.mxu0 0
    %6081 = vmatpush1.bf16.xpose.msra.mxu0 0
    %6082 = vmatprep.subr.bf16.mxu0 0
    %6083 = vmatpush1.bf16.xpose.msra.mxu0 0
    %6084 = vmatprep.subr.bf16.mxu0 0
    %6085 = vmatpush1.bf16.xpose.msra.mxu0 0
    %6086 = vmatprep.subr.bf16.mxu0 0
    %6087 = vmatpush1.bf16.xpose.msra.mxu0 0
    %6088 = vmatprep.subr.bf16.mxu0 0
    %6089 = vmatpush1.bf16.xpose.msra.mxu0 0
    %6090 = vmatprep.subr.bf16.mxu0 0
    %6091 = vmatpush1.bf16.xpose.msra.mxu0 0
    %6092 = vmatprep.subr.bf16.mxu0 0
    %6093 = vmatpush1.bf16.xpose.msra.mxu0 0
    %6094 = vmatprep.subr.bf16.mxu0 0
    %6095 = vmatpush1.bf16.xpose.msra.mxu0 0
    %6096 = vmatprep.subr.bf16.mxu0 0
    %6097 = vmatpush1.bf16.xpose.msra.mxu0 0
    %6098 = vmatprep.subr.bf16.mxu0 0
    %6099 = vmatpush1.bf16.xpose.msra.mxu0 0
    %6100 = vmatprep.mubr.bf16.mxu0 0
    %6101 = vmatmul.mubr.bf16.gmra.mrb[0].mxu0 %v6060
    %v6102 = vpop.f32.mrb[0].mxu0
    %v6103 = vadd.f32 %v96, %v6102
    %v6104 = vpop.f32.mrb[0].mxu0
    %v6105 = vpop.f32.mrb[0].mxu0
    %v6106 = vadd.f32 %v97, %v6105
    %v6107 = vpop.f32.mrb[0].mxu0
    %6108 = vmatprep.mubr.bf16.mxu0 0
    %6109 = vmatmul.mubr.bf16.gmra.mrb[0].mxu0 %v6063
    %v6110 = vpop.f32.mrb[0].mxu0
    %v6111 = vadd.f32 %v98, %v6110
    %v6112 = vpop.f32.mrb[0].mxu0
    %v6113 = vpop.f32.mrb[0].mxu0
    %v6114 = vadd.f32 %v99, %v6113
    %v6115 = vpop.f32.mrb[0].mxu0
    %6116 = vmatprep.mubr.bf16.mxu0 0
    %6117 = vmatmul.mubr.bf16.gmra.mrb[0].mxu0 %v6066
    %v6118 = vpop.f32.mrb[0].mxu0
    %v6119 = vadd.f32 %v100, %v6118
    %v6120 = vpop.f32.mrb[0].mxu0
    %v6121 = vpop.f32.mrb[0].mxu0
    %v6122 = vpop.f32.mrb[0].mxu0
    %6123 = vdwg.mxu0
    %v6124 = vsel %vm650, %v6103, -inf
    %6125 = vmax.xlane.f32.xlu0 %v6124
    %v6126 = vpop.xlane.xlu0 %6125
    %v6127 = vsel %vm650, %v6106, -inf
    %6128 = vmax.xlane.f32.xlu0 %v6127
    %v6129 = vpop.xlane.xlu0 %6128
    %v6130 = vsel %vm650, %v6111, -inf
    %6131 = vmax.xlane.f32.xlu0 %v6130
    %v6132 = vpop.xlane.xlu0 %6131
    %v6133 = vsel %vm650, %v6114, -inf
    %6134 = vmax.xlane.f32.xlu0 %v6133
    %v6135 = vpop.xlane.xlu0 %6134
    %v6136 = vsel %vm663, %v6119, -inf
    %6137 = vmax.xlane.f32.xlu0 %v6136
    %v6138 = vpop.xlane.xlu0 %6137
    %v6139 = vsub.f32 %v6103, %v6126
    %v6140 = vsub.f32 %v6106, %v6129
    %v6141 = vsub.f32 %v6111, %v6132
    %v6142 = vsub.f32 %v6114, %v6135
    %v6143 = vsub.f32 %v6119, %v6138
    %v6144 = vmul.f32 %v6139, 1.442695
    %v6145 = vpow.pop %v6144
    %v6146 = vmul.f32 %v6140, 1.442695
    %v6147 = vpow.pop %v6146
    %v6148 = vmul.f32 %v6141, 1.442695
    %v6149 = vpow.pop %v6148
    %v6150 = vmul.f32 %v6142, 1.442695
    %v6151 = vpow.pop %v6150
    %v6152 = vmul.f32 %v6143, 1.442695
    %v6153 = vpow.pop %v6152
    %v6154 = vsel %vm650, %v6145, 0.0
    %6155 = vadd.xlane.f32.xlu0 %v6154
    %v6156 = vpop.xlane.xlu0 %6155
    %v6157 = vsel %vm650, %v6147, 0.0
    %6158 = vadd.xlane.f32.xlu0 %v6157
    %v6159 = vpop.xlane.xlu0 %6158
    %v6160 = vsel %vm650, %v6149, 0.0
    %6161 = vadd.xlane.f32.xlu0 %v6160
    %v6162 = vpop.xlane.xlu0 %6161
    %v6163 = vsel %vm650, %v6151, 0.0
    %6164 = vadd.xlane.f32.xlu0 %v6163
    %v6165 = vpop.xlane.xlu0 %6164
    %v6166 = vsel %vm663, %v6153, 0.0
    %6167 = vadd.xlane.f32.xlu0 %v6166
    %v6168 = vpop.xlane.xlu0 %6167
    %v6169 = vrcp.pop %v6156
    %v6170 = vrcp.pop %v6159
    %v6171 = vrcp.pop %v6162
    %v6172 = vrcp.pop %v6165
    %v6173 = vrcp.pop %v6168
    %v6174 = vmul.f32 %v6145, %v6169
    %v6175 = vmul.f32 %v6147, %v6170
    %v6176 = vmul.f32 %v6149, %v6171
    %v6177 = vmul.f32 %v6151, %v6172
    %v6178 = vmul.f32 %v6153, %v6173
    %v6179 = vpack.c.bf16 %v6175, %v6174
    %v6180 = vpack.c.bf16 %v6177, %v6176
    %v6181 = vpack.c.bf16 %v6178, %v6178
    %v6183 = vsel %vm650, %v6179, 0
    %v6186 = vsel %vm650, %v6180, 0
    %v6189 = vsel %vm650, %v6181, 0
    %v6192 = vsel %vm858, %v6058, 0
    %6194 = vmatprep.subr.bf16.mxu0 0
    %6195 = vmatpush1.bf16.msra.mxu0 %v6056
    %6196 = vmatprep.subr.bf16.mxu0 0
    %6197 = vmatpush1.bf16.msra.mxu0 %v6057
    %6198 = vmatprep.subr.bf16.mxu0 0
    %6199 = vmatpush1.bf16.msra.mxu0 %v6192
    %6200 = vmatprep.subr.bf16.mxu0 0
    %6201 = vmatpush1.bf16.msra.mxu0 0
    %6202 = vmatprep.subr.bf16.mxu0 0
    %6203 = vmatpush1.bf16.msra.mxu0 0
    %6204 = vmatprep.subr.bf16.mxu0 0
    %6205 = vmatpush1.bf16.msra.mxu0 0
    %6206 = vmatprep.subr.bf16.mxu0 0
    %6207 = vmatpush1.bf16.msra.mxu0 0
    %6208 = vmatprep.subr.bf16.mxu0 0
    %6209 = vmatpush1.bf16.msra.mxu0 0
    %6210 = vmatprep.subr.bf16.mxu0 0
    %6211 = vmatpush1.bf16.msra.mxu0 0
    %6212 = vmatprep.subr.bf16.mxu0 0
    %6213 = vmatpush1.bf16.msra.mxu0 0
    %6214 = vmatprep.subr.bf16.mxu0 0
    %6215 = vmatpush1.bf16.msra.mxu0 0
    %6216 = vmatprep.subr.bf16.mxu0 0
    %6217 = vmatpush1.bf16.msra.mxu0 0
    %6218 = vmatprep.subr.bf16.mxu0 0
    %6219 = vmatpush1.bf16.msra.mxu0 0
    %6220 = vmatprep.subr.bf16.mxu0 0
    %6221 = vmatpush1.bf16.msra.mxu0 0
    %6222 = vmatprep.subr.bf16.mxu0 0
    %6223 = vmatpush1.bf16.msra.mxu0 0
    %6224 = vmatprep.subr.bf16.mxu0 0
    %6225 = vmatpush1.bf16.msra.mxu0 0
    %6226 = vmatprep.mubr.bf16.mxu0 0
    %6227 = vmatmul.mubr.bf16.gmra.mrb[0].mxu0 %v6183
    %v6228 = vpop.f32.mrb[0].mxu0
    %v6229 = vadd.f32 0.0, %v6228
    %v6230 = vpop.f32.mrb[0].mxu0
    %v6231 = vpop.f32.mrb[0].mxu0
    %v6232 = vadd.f32 0.0, %v6231
    %v6233 = vpop.f32.mrb[0].mxu0
    %6234 = vmatprep.mubr.bf16.mxu0 0
    %6235 = vmatmul.mubr.bf16.gmra.mrb[0].mxu0 %v6186
    %v6236 = vpop.f32.mrb[0].mxu0
    %v6237 = vadd.f32 0.0, %v6236
    %v6238 = vpop.f32.mrb[0].mxu0
    %v6239 = vpop.f32.mrb[0].mxu0
    %v6240 = vadd.f32 0.0, %v6239
    %v6241 = vpop.f32.mrb[0].mxu0
    %6242 = vmatprep.mubr.bf16.mxu0 0
    %6243 = vmatmul.mubr.bf16.gmra.mrb[0].mxu0 %v6189
    %v6244 = vpop.f32.mrb[0].mxu0
    %v6245 = vadd.f32 0.0, %v6244
    %v6246 = vpop.f32.mrb[0].mxu0
    %v6247 = vpop.f32.mrb[0].mxu0
    %v6248 = vpop.f32.mrb[0].mxu0
    %6249 = vdwg.mxu0
    %v6250 = vadd.f32 %v6038, %v6229
    %v6251 = vadd.f32 %v6039, %v6232
    %v6252 = vadd.f32 %v6040, %v6237
    %v6253 = vadd.f32 %v6041, %v6240
    %v6254 = vadd.f32 %v6042, %v6245
    %v6255 = vpack.c.bf16 %v6251, %v6250
    %v6256 = vpack.c.bf16 %v6253, %v6252
    %v6257 = vpack.c.bf16 %v6254, %v6254
    %v6258 = vld [vmem:[%s5289 + $0x10] sm:$0xf]
    %v6259 = vld [vmem:[%s5289 + $0x14] sm:$0xf]
    %v6260 = vld [vmem:[%s5289 + $0x18] sm:$0xf]
    %v6261 = vld [vmem:[%s5289 + $0x1c] sm:$0xf]
    %v6262 = vlaneseq
    %v6263 = vshrl.u32 %v6262, 7
    %v6264 = vsub.s32 0, %v6263
    %v6265 = vrot.slane %v5196, %v6264
    %v6270 = vunpack.c.l.b16 %v6258
    %v6271 = vunpack.c.l.b16 %v6259
    %v6272 = vunpack.c.l.b16 %v6260
    %v6273 = vunpack.c.l.b16 %v6261
    %v6274 = vpack.c.b16 %v6271, %v6270
    %v6275 = vpack.c.b16 %v6273, %v6272
    %v6279 = vsel %vm239, %v6255, 0
    %v6282 = vsel %vm239, %v6256, 0
    %v6285 = vsel %vm239, %v6257, 0
    %6287 = vmatprep.subr.bf16.mxu0 0
    %6288 = vmatpush1.bf16.msra.mxu0 %v6274
    %6289 = vmatprep.subr.bf16.mxu0 0
    %6290 = vmatpush1.bf16.msra.mxu0 %v6275
    %6291 = vmatprep.subr.bf16.mxu0 0
    %6292 = vmatpush1.bf16.msra.mxu0 0
    %6293 = vmatprep.subr.bf16.mxu0 0
    %6294 = vmatpush1.bf16.msra.mxu0 0
    %6295 = vmatprep.subr.bf16.mxu0 0
    %6296 = vmatpush1.bf16.msra.mxu0 0
    %6297 = vmatprep.subr.bf16.mxu0 0
    %6298 = vmatpush1.bf16.msra.mxu0 0
    %6299 = vmatprep.subr.bf16.mxu0 0
    %6300 = vmatpush1.bf16.msra.mxu0 0
    %6301 = vmatprep.subr.bf16.mxu0 0
    %6302 = vmatpush1.bf16.msra.mxu0 0
    %6303 = vmatprep.subr.bf16.mxu0 0
    %6304 = vmatpush1.bf16.msra.mxu0 0
    %6305 = vmatprep.subr.bf16.mxu0 0
    %6306 = vmatpush1.bf16.msra.mxu0 0
    %6307 = vmatprep.subr.bf16.mxu0 0
    %6308 = vmatpush1.bf16.msra.mxu0 0
    %6309 = vmatprep.subr.bf16.mxu0 0
    %6310 = vmatpush1.bf16.msra.mxu0 0
    %6311 = vmatprep.subr.bf16.mxu0 0
    %6312 = vmatpush1.bf16.msra.mxu0 0
    %6313 = vmatprep.subr.bf16.mxu0 0
    %6314 = vmatpush1.bf16.msra.mxu0 0
    %6315 = vmatprep.subr.bf16.mxu0 0
    %6316 = vmatpush1.bf16.msra.mxu0 0
    %6317 = vmatprep.subr.bf16.mxu0 0
    %6318 = vmatpush1.bf16.msra.mxu0 0
    %6319 = vmatprep.mubr.bf16.mxu0 0
    %6320 = vmatmul.mubr.bf16.gmra.mrb[0].mxu0 %v6279
    %v6321 = vpop.f32.mrb[0].mxu0
    %v6322 = vadd.f32 %v6265, %v6321
    %v6323 = vpop.f32.mrb[0].mxu0
    %v6324 = vpop.f32.mrb[0].mxu0
    %v6325 = vadd.f32 %v6265, %v6324
    %v6326 = vpop.f32.mrb[0].mxu0
    %6327 = vmatprep.mubr.bf16.mxu0 0
    %6328 = vmatmul.mubr.bf16.gmra.mrb[0].mxu0 %v6282
    %v6329 = vpop.f32.mrb[0].mxu0
    %v6330 = vadd.f32 %v6265, %v6329
    %v6331 = vpop.f32.mrb[0].mxu0
    %v6332 = vpop.f32.mrb[0].mxu0
    %v6333 = vadd.f32 %v6265, %v6332
    %v6334 = vpop.f32.mrb[0].mxu0
    %6335 = vmatprep.mubr.bf16.mxu0 0
    %6336 = vmatmul.mubr.bf16.gmra.mrb[0].mxu0 %v6285
    %v6337 = vpop.f32.mrb[0].mxu0
    %v6338 = vadd.f32 %v6265, %v6337
    %v6339 = vpop.f32.mrb[0].mxu0
    %v6340 = vpop.f32.mrb[0].mxu0
    %v6341 = vpop.f32.mrb[0].mxu0
    %6342 = vdwg.mxu0
    %v6343 = vlaneseq
    %v6344 = vshrl.u32 %v6343, 7
    %v6345 = vsub.s32 0, %v6344
    %v6346 = vrot.slane %v5197, %v6345
    %v6347 = vmul.f32 %v6346, %v6322
    %v6348 = vmul.f32 %v6346, %v6325
    %v6349 = vmul.f32 %v6346, %v6330
    %v6350 = vmul.f32 %v6346, %v6333
    %v6351 = vmul.f32 %v6346, %v6338
    %v6352 = vadd.f32 %v5188, %v6347
    %v6353 = vadd.f32 %v5189, %v6348
    %v6354 = vadd.f32 %v5190, %v6349
    %v6355 = vadd.f32 %v5191, %v6350
    %v6356 = vadd.f32 %v5192, %v6351
    %v6357 = vsel %vm239, %v6352, 0.0
    %6358 = vadd.xlane.f32.xlu0 %v6357
    %v6359 = vpop.xlane.xlu0 %6358
    %v6360 = vsel %vm239, %v6353, 0.0
    %6361 = vadd.xlane.f32.xlu0 %v6360
    %v6362 = vpop.xlane.xlu0 %6361
    %v6363 = vsel %vm239, %v6354, 0.0
    %6364 = vadd.xlane.f32.xlu0 %v6363
    %v6365 = vpop.xlane.xlu0 %6364
    %v6366 = vsel %vm239, %v6355, 0.0
    %6367 = vadd.xlane.f32.xlu0 %v6366
    %v6368 = vpop.xlane.xlu0 %6367
    %v6369 = vsel %vm366, %v6356, 0.0
    %6370 = vadd.xlane.f32.xlu0 %v6369
    %v6371 = vpop.xlane.xlu0 %6370
    %v6372 = vmul.f32 %v6359, %v370
    %v6373 = vmul.f32 %v6362, %v370
    %v6374 = vmul.f32 %v6365, %v370
    %v6375 = vmul.f32 %v6368, %v370
    %v6376 = vmul.f32 %v6371, %v370
    %v6377 = vsub.f32 %v6352, %v6372
    %v6378 = vsub.f32 %v6353, %v6373
    %v6379 = vsub.f32 %v6354, %v6374
    %v6380 = vsub.f32 %v6355, %v6375
    %v6381 = vsub.f32 %v6356, %v6376
    %v6382 = vmul.f32 %v6377, %v6377
    %v6383 = vmul.f32 %v6378, %v6378
    %v6384 = vmul.f32 %v6379, %v6379
    %v6385 = vmul.f32 %v6380, %v6380
    %v6386 = vmul.f32 %v6381, %v6381
    %v6387 = vsel %vm239, %v6382, 0.0
    %6388 = vadd.xlane.f32.xlu0 %v6387
    %v6389 = vpop.xlane.xlu0 %6388
    %v6390 = vsel %vm239, %v6383, 0.0
    %6391 = vadd.xlane.f32.xlu0 %v6390
    %v6392 = vpop.xlane.xlu0 %6391
    %v6393 = vsel %vm239, %v6384, 0.0
    %6394 = vadd.xlane.f32.xlu0 %v6393
    %v6395 = vpop.xlane.xlu0 %6394
    %v6396 = vsel %vm239, %v6385, 0.0
    %6397 = vadd.xlane.f32.xlu0 %v6396
    %v6398 = vpop.xlane.xlu0 %6397
    %v6399 = vsel %vm366, %v6386, 0.0
    %6400 = vadd.xlane.f32.xlu0 %v6399
    %v6401 = vpop.xlane.xlu0 %6400
    %v6402 = vmul.f32 %v6389, %v370
    %v6403 = vmul.f32 %v6392, %v370
    %v6404 = vmul.f32 %v6395, %v370
    %v6405 = vmul.f32 %v6398, %v370
    %v6406 = vmul.f32 %v6401, %v370
    %v6407 = vadd.f32 %v6402, 1e-06
    %v6408 = vadd.f32 %v6403, 1e-06
    %v6409 = vadd.f32 %v6404, 1e-06
    %v6410 = vadd.f32 %v6405, 1e-06
    %v6411 = vadd.f32 %v6406, 1e-06
    %v6412 = vrsqrt.pop %v6407
    %v6413 = vrsqrt.pop %v6408
    %v6414 = vrsqrt.pop %v6409
    %v6415 = vrsqrt.pop %v6410
    %v6416 = vrsqrt.pop %v6411
    %v6417 = vmul.f32 %v6377, %v6412
    %v6418 = vmul.f32 %v6378, %v6413
    %v6419 = vmul.f32 %v6379, %v6414
    %v6420 = vmul.f32 %v6380, %v6415
    %v6421 = vmul.f32 %v6381, %v6416
    %v6422 = vlaneseq
    %v6423 = vshrl.u32 %v6422, 7
    %v6424 = vsub.s32 0, %v6423
    %v6425 = vrot.slane %v5198, %v6424
    %v6426 = vmul.f32 %v6417, %v6425
    %v6427 = vmul.f32 %v6418, %v6425
    %v6428 = vmul.f32 %v6419, %v6425
    %v6429 = vmul.f32 %v6420, %v6425
    %v6430 = vmul.f32 %v6421, %v6425
    %v6431 = vlaneseq
    %v6432 = vshrl.u32 %v6431, 7
    %v6433 = vsub.s32 0, %v6432
    %v6434 = vrot.slane %v5199, %v6433
    %v6435 = vadd.f32 %v6426, %v6434
    %v6436 = vadd.f32 %v6427, %v6434
    %v6437 = vadd.f32 %v6428, %v6434
    %v6438 = vadd.f32 %v6429, %v6434
    %v6439 = vadd.f32 %v6430, %v6434
    %v6440 = vpack.c.bf16 %v6436, %v6435
    %v6441 = vpack.c.bf16 %v6438, %v6437
    %v6442 = vpack.c.bf16 %v6439, %v6439
    %v6443 = vld [vmem:[%s5289 + $0x20] sm:$0xf]
    %v6444 = vld [vmem:[%s5289 + $0x24] sm:$0xf]
    %v6445 = vld [vmem:[%s5289 + $0x28] sm:$0xf]
    %v6446 = vld [vmem:[%s5289 + $0x2c] sm:$0xf]
    %v6447 = vlaneseq
    %v6448 = vshrl.u32 %v6447, 7
    %v6449 = vsub.s32 0, %v6448
    %v6450 = vrot.slane %v5202, %v6449
    %v6455 = vunpack.c.l.b16 %v6443
    %v6456 = vunpack.c.l.b16 %v6444
    %v6457 = vunpack.c.l.b16 %v6445
    %v6458 = vunpack.c.l.b16 %v6446
    %v6459 = vpack.c.b16 %v6456, %v6455
    %v6460 = vpack.c.b16 %v6458, %v6457
    %v6464 = vsel %vm239, %v6440, 0
    %v6467 = vsel %vm239, %v6441, 0
    %v6470 = vsel %vm239, %v6442, 0
    %6472 = vmatprep.subr.bf16.mxu0 0
    %6473 = vmatpush1.bf16.msra.mxu0 %v6459
    %6474 = vmatprep.subr.bf16.mxu0 0
    %6475 = vmatpush1.bf16.msra.mxu0 %v6460
    %6476 = vmatprep.subr.bf16.mxu0 0
    %6477 = vmatpush1.bf16.msra.mxu0 0
    %6478 = vmatprep.subr.bf16.mxu0 0
    %6479 = vmatpush1.bf16.msra.mxu0 0
    %6480 = vmatprep.subr.bf16.mxu0 0
    %6481 = vmatpush1.bf16.msra.mxu0 0
    %6482 = vmatprep.subr.bf16.mxu0 0
    %6483 = vmatpush1.bf16.msra.mxu0 0
    %6484 = vmatprep.subr.bf16.mxu0 0
    %6485 = vmatpush1.bf16.msra.mxu0 0
    %6486 = vmatprep.subr.bf16.mxu0 0
    %6487 = vmatpush1.bf16.msra.mxu0 0
    %6488 = vmatprep.subr.bf16.mxu0 0
    %6489 = vmatpush1.bf16.msra.mxu0 0
    %6490 = vmatprep.subr.bf16.mxu0 0
    %6491 = vmatpush1.bf16.msra.mxu0 0
    %6492 = vmatprep.subr.bf16.mxu0 0
    %6493 = vmatpush1.bf16.msra.mxu0 0
    %6494 = vmatprep.subr.bf16.mxu0 0
    %6495 = vmatpush1.bf16.msra.mxu0 0
    %6496 = vmatprep.subr.bf16.mxu0 0
    %6497 = vmatpush1.bf16.msra.mxu0 0
    %6498 = vmatprep.subr.bf16.mxu0 0
    %6499 = vmatpush1.bf16.msra.mxu0 0
    %6500 = vmatprep.subr.bf16.mxu0 0
    %6501 = vmatpush1.bf16.msra.mxu0 0
    %6502 = vmatprep.subr.bf16.mxu0 0
    %6503 = vmatpush1.bf16.msra.mxu0 0
    %6504 = vmatprep.mubr.bf16.mxu0 0
    %6505 = vmatmul.mubr.bf16.gmra.mrb[0].mxu0 %v6464
    %v6506 = vpop.f32.mrb[0].mxu0
    %v6507 = vadd.f32 %v6450, %v6506
    %v6508 = vpop.f32.mrb[0].mxu0
    %v6509 = vpop.f32.mrb[0].mxu0
    %v6510 = vadd.f32 %v6450, %v6509
    %v6511 = vpop.f32.mrb[0].mxu0
    %6512 = vmatprep.mubr.bf16.mxu0 0
    %6513 = vmatmul.mubr.bf16.gmra.mrb[0].mxu0 %v6467
    %v6514 = vpop.f32.mrb[0].mxu0
    %v6515 = vadd.f32 %v6450, %v6514
    %v6516 = vpop.f32.mrb[0].mxu0
    %v6517 = vpop.f32.mrb[0].mxu0
    %v6518 = vadd.f32 %v6450, %v6517
    %v6519 = vpop.f32.mrb[0].mxu0
    %6520 = vmatprep.mubr.bf16.mxu0 0
    %6521 = vmatmul.mubr.bf16.gmra.mrb[0].mxu0 %v6470
    %v6522 = vpop.f32.mrb[0].mxu0
    %v6523 = vadd.f32 %v6450, %v6522
    %v6524 = vpop.f32.mrb[0].mxu0
    %v6525 = vpop.f32.mrb[0].mxu0
    %v6526 = vpop.f32.mrb[0].mxu0
    %6527 = vdwg.mxu0
    %v6528 = vmul.f32 %v6507, 0.5
    %v6529 = vmul.f32 %v6510, 0.5
    %v6530 = vmul.f32 %v6515, 0.5
    %v6531 = vmul.f32 %v6518, 0.5
    %v6532 = vmul.f32 %v6523, 0.5
    %v6533 = vmul.f32 %v6507, 0.70710677
    %v6534 = vmul.f32 %v6510, 0.70710677
    %v6535 = vmul.f32 %v6515, 0.70710677
    %v6536 = vmul.f32 %v6518, 0.70710677
    %v6537 = vmul.f32 %v6523, 0.70710677
    %v6538 = vand.u32 2147483647, %v6533
    %v6539 = vand.u32 2147483647, %v6534
    %v6540 = vand.u32 2147483647, %v6535
    %v6541 = vand.u32 2147483647, %v6536
    %v6542 = vand.u32 2147483647, %v6537
    %v6543 = vmul.f32 %v6538, 0.3275911
    %v6544 = vmul.f32 %v6539, 0.3275911
    %v6545 = vmul.f32 %v6540, 0.3275911
    %v6546 = vmul.f32 %v6541, 0.3275911
    %v6547 = vmul.f32 %v6542, 0.3275911
    %v6548 = vadd.f32 %v6543, 1.0
    %v6549 = vadd.f32 %v6544, 1.0
    %v6550 = vadd.f32 %v6545, 1.0
    %v6551 = vadd.f32 %v6546, 1.0
    %v6552 = vadd.f32 %v6547, 1.0
    %v6553 = vrcp.pop %v6548
    %v6554 = vmul.f32 1.0, %v6553
    %v6555 = vrcp.pop %v6549
    %v6556 = vmul.f32 1.0, %v6555
    %v6557 = vrcp.pop %v6550
    %v6558 = vmul.f32 1.0, %v6557
    %v6559 = vrcp.pop %v6551
    %v6560 = vmul.f32 1.0, %v6559
    %v6561 = vrcp.pop %v6552
    %v6562 = vmul.f32 1.0, %v6561
    %v6563 = vmul.f32 %v6554, 1.0614054
    %v6564 = vmul.f32 %v6556, 1.0614054
    %v6565 = vmul.f32 %v6558, 1.0614054
    %v6566 = vmul.f32 %v6560, 1.0614054
    %v6567 = vmul.f32 %v6562, 1.0614054
    %v6568 = vadd.f32 %v6563, -1.4531521
    %v6569 = vadd.f32 %v6564, -1.4531521
    %v6570 = vadd.f32 %v6565, -1.4531521
    %v6571 = vadd.f32 %v6566, -1.4531521
    %v6572 = vadd.f32 %v6567, -1.4531521
    %v6573 = vmul.f32 %v6554, %v6568
    %v6574 = vmul.f32 %v6556, %v6569
    %v6575 = vmul.f32 %v6558, %v6570
    %v6576 = vmul.f32 %v6560, %v6571
    %v6577 = vmul.f32 %v6562, %v6572
    %v6578 = vadd.f32 %v6573, 1.4214138
    %v6579 = vadd.f32 %v6574, 1.4214138
    %v6580 = vadd.f32 %v6575, 1.4214138
    %v6581 = vadd.f32 %v6576, 1.4214138
    %v6582 = vadd.f32 %v6577, 1.4214138
    %v6583 = vmul.f32 %v6554, %v6578
    %v6584 = vmul.f32 %v6556, %v6579
    %v6585 = vmul.f32 %v6558, %v6580
    %v6586 = vmul.f32 %v6560, %v6581
    %v6587 = vmul.f32 %v6562, %v6582
    %v6588 = vadd.f32 %v6583, -0.28449672
    %v6589 = vadd.f32 %v6584, -0.28449672
    %v6590 = vadd.f32 %v6585, -0.28449672
    %v6591 = vadd.f32 %v6586, -0.28449672
    %v6592 = vadd.f32 %v6587, -0.28449672
    %v6593 = vmul.f32 %v6554, %v6588
    %v6594 = vmul.f32 %v6556, %v6589
    %v6595 = vmul.f32 %v6558, %v6590
    %v6596 = vmul.f32 %v6560, %v6591
    %v6597 = vmul.f32 %v6562, %v6592
    %v6598 = vadd.f32 %v6593, 0.2548296
    %v6599 = vadd.f32 %v6594, 0.2548296
    %v6600 = vadd.f32 %v6595, 0.2548296
    %v6601 = vadd.f32 %v6596, 0.2548296
    %v6602 = vadd.f32 %v6597, 0.2548296
    %v6603 = vmul.f32 %v6554, %v6598
    %v6604 = vmul.f32 %v6556, %v6599
    %v6605 = vmul.f32 %v6558, %v6600
    %v6606 = vmul.f32 %v6560, %v6601
    %v6607 = vmul.f32 %v6562, %v6602
    %v6608 = vsub.f32 0.0, %v6538
    %v6609 = vsub.f32 0.0, %v6539
    %v6610 = vsub.f32 0.0, %v6540
    %v6611 = vsub.f32 0.0, %v6541
    %v6612 = vsub.f32 0.0, %v6542
    %v6613 = vmul.f32 %v6608, %v6538
    %v6614 = vmul.f32 %v6609, %v6539
    %v6615 = vmul.f32 %v6610, %v6540
    %v6616 = vmul.f32 %v6611, %v6541
    %v6617 = vmul.f32 %v6612, %v6542
    %v6618 = vmul.f32 %v6613, 1.442695
    %v6619 = vpow.pop %v6618
    %v6620 = vmul.f32 %v6614, 1.442695
    %v6621 = vpow.pop %v6620
    %v6622 = vmul.f32 %v6615, 1.442695
    %v6623 = vpow.pop %v6622
    %v6624 = vmul.f32 %v6616, 1.442695
    %v6625 = vpow.pop %v6624
    %v6626 = vmul.f32 %v6617, 1.442695
    %v6627 = vpow.pop %v6626
    %v6628 = vmul.f32 %v6603, %v6619
    %v6629 = vmul.f32 %v6604, %v6621
    %v6630 = vmul.f32 %v6605, %v6623
    %v6631 = vmul.f32 %v6606, %v6625
    %v6632 = vmul.f32 %v6607, %v6627
    %v6633 = vsub.f32 1.0, %v6628
    %v6634 = vsub.f32 1.0, %v6629
    %v6635 = vsub.f32 1.0, %v6630
    %v6636 = vsub.f32 1.0, %v6631
    %v6637 = vsub.f32 1.0, %v6632
    %vm6638 = vcmp.lt.f32.partialorder %v6533, 0.0
    %vm6639 = vcmp.lt.f32.partialorder %v6534, 0.0
    %vm6640 = vcmp.lt.f32.partialorder %v6535, 0.0
    %vm6641 = vcmp.lt.f32.partialorder %v6536, 0.0
    %vm6642 = vcmp.lt.f32.partialorder %v6537, 0.0
    %v6643 = vsub.f32 0.0, %v6633
    %v6644 = vsub.f32 0.0, %v6634
    %v6645 = vsub.f32 0.0, %v6635
    %v6646 = vsub.f32 0.0, %v6636
    %v6647 = vsub.f32 0.0, %v6637
    %v6648 = vsel %vm6638, %v6643, %v6633
    %v6649 = vsel %vm6639, %v6644, %v6634
    %v6650 = vsel %vm6640, %v6645, %v6635
    %v6651 = vsel %vm6641, %v6646, %v6636
    %v6652 = vsel %vm6642, %v6647, %v6637
    %v6653 = vadd.f32 %v6648, 1.0
    %v6654 = vadd.f32 %v6649, 1.0
    %v6655 = vadd.f32 %v6650, 1.0
    %v6656 = vadd.f32 %v6651, 1.0
    %v6657 = vadd.f32 %v6652, 1.0
    %v6658 = vmul.f32 %v6528, %v6653
    %v6659 = vmul.f32 %v6529, %v6654
    %v6660 = vmul.f32 %v6530, %v6655
    %v6661 = vmul.f32 %v6531, %v6656
    %v6662 = vmul.f32 %v6532, %v6657
    %v6663 = vpack.c.bf16 %v6659, %v6658
    %v6664 = vpack.c.bf16 %v6661, %v6660
    %v6665 = vpack.c.bf16 %v6662, %v6662
    %s6666 = scalar_lea.vmem %s5, 192
    %v6667 = vld [vmem:[%s6666] sm:$0xf]
    %v6668 = vld [vmem:[%s6666 + $0x4] sm:$0xf]
    %v6669 = vld [vmem:[%s6666 + $0x8] sm:$0xf]
    %v6670 = vld [vmem:[%s6666 + $0xc] sm:$0xf]
    %v6671 = vld [vmem:[%s6666 + $0x10] sm:$0xf]
    %v6672 = vld [vmem:[%s6666 + $0x14] sm:$0xf]
    %v6673 = vld [vmem:[%s6666 + $0x18] sm:$0xf]
    %v6674 = vld [vmem:[%s6666 + $0x1c] sm:$0xf]
    %v6675 = vld [vmem:[%s6666 + $0x20] sm:$0xf]
    %v6676 = vld [vmem:[%s6666 + $0x24] sm:$0xf]
    %v6677 = vld [vmem:[%s6666 + $0x28] sm:$0xf]
    %v6678 = vld [vmem:[%s6666 + $0x2c] sm:$0xf]
    %v6679 = vld [vmem:[%s6666 + $0x30] sm:$0xf]
    %v6680 = vld [vmem:[%s6666 + $0x34] sm:$0xf]
    %v6681 = vld [vmem:[%s6666 + $0x38] sm:$0xf]
    %v6682 = vld [vmem:[%s6666 + $0x3c] sm:$0xf]
    %v6683 = vlaneseq
    %v6684 = vshrl.u32 %v6683, 7
    %v6685 = vsub.s32 0, %v6684
    %v6686 = vrot.slane %v5200, %v6685
    %v6703 = vunpack.c.l.b16 %v6667
    %v6704 = vunpack.c.l.b16 %v6668
    %v6705 = vunpack.c.l.b16 %v6669
    %v6706 = vunpack.c.l.b16 %v6670
    %v6707 = vunpack.c.l.b16 %v6671
    %v6708 = vunpack.c.l.b16 %v6672
    %v6709 = vunpack.c.l.b16 %v6673
    %v6710 = vunpack.c.l.b16 %v6674
    %v6711 = vunpack.c.l.b16 %v6675
    %v6712 = vunpack.c.l.b16 %v6676
    %v6713 = vunpack.c.l.b16 %v6677
    %v6714 = vunpack.c.l.b16 %v6678
    %v6715 = vunpack.c.l.b16 %v6679
    %v6716 = vunpack.c.l.b16 %v6680
    %v6717 = vunpack.c.l.b16 %v6681
    %v6718 = vunpack.c.l.b16 %v6682
    %v6719 = vpack.c.b16 %v6704, %v6703
    %v6720 = vpack.c.b16 %v6706, %v6705
    %v6721 = vpack.c.b16 %v6708, %v6707
    %v6722 = vpack.c.b16 %v6710, %v6709
    %v6723 = vpack.c.b16 %v6712, %v6711
    %v6724 = vpack.c.b16 %v6714, %v6713
    %v6725 = vpack.c.b16 %v6716, %v6715
    %v6726 = vpack.c.b16 %v6718, %v6717
    %6735 = vmatprep.subr.bf16.mxu0 0
    %6736 = vmatpush1.bf16.msra.mxu0 %v6719
    %6737 = vmatprep.subr.bf16.mxu0 0
    %6738 = vmatpush1.bf16.msra.mxu0 %v6720
    %6739 = vmatprep.subr.bf16.mxu0 0
    %6740 = vmatpush1.bf16.msra.mxu0 %v6721
    %6741 = vmatprep.subr.bf16.mxu0 0
    %6742 = vmatpush1.bf16.msra.mxu0 %v6722
    %6743 = vmatprep.subr.bf16.mxu0 0
    %6744 = vmatpush1.bf16.msra.mxu0 %v6723
    %6745 = vmatprep.subr.bf16.mxu0 0
    %6746 = vmatpush1.bf16.msra.mxu0 %v6724
    %6747 = vmatprep.subr.bf16.mxu0 0
    %6748 = vmatpush1.bf16.msra.mxu0 %v6725
    %6749 = vmatprep.subr.bf16.mxu0 0
    %6750 = vmatpush1.bf16.msra.mxu0 %v6726
    %6751 = vmatprep.subr.bf16.mxu0 0
    %6752 = vmatpush1.bf16.msra.mxu0 0
    %6753 = vmatprep.subr.bf16.mxu0 0
    %6754 = vmatpush1.bf16.msra.mxu0 0
    %6755 = vmatprep.subr.bf16.mxu0 0
    %6756 = vmatpush1.bf16.msra.mxu0 0
    %6757 = vmatprep.subr.bf16.mxu0 0
    %6758 = vmatpush1.bf16.msra.mxu0 0
    %6759 = vmatprep.subr.bf16.mxu0 0
    %6760 = vmatpush1.bf16.msra.mxu0 0
    %6761 = vmatprep.subr.bf16.mxu0 0
    %6762 = vmatpush1.bf16.msra.mxu0 0
    %6763 = vmatprep.subr.bf16.mxu0 0
    %6764 = vmatpush1.bf16.msra.mxu0 0
    %6765 = vmatprep.subr.bf16.mxu0 0
    %6766 = vmatpush1.bf16.msra.mxu0 0
    %6767 = vmatprep.mubr.bf16.mxu0 0
    %6768 = vmatmul.mubr.bf16.gmra.mrb[0].mxu0 %v6663
    %v6769 = vpop.f32.mrb[0].mxu0
    %v6770 = vadd.f32 %v6686, %v6769
    %v6771 = vpop.f32.mrb[0].mxu0
    %v6772 = vpop.f32.mrb[0].mxu0
    %v6773 = vadd.f32 %v6686, %v6772
    %v6774 = vpop.f32.mrb[0].mxu0
    %6775 = vmatprep.mubr.bf16.mxu0 0
    %6776 = vmatmul.mubr.bf16.gmra.mrb[0].mxu0 %v6664
    %v6777 = vpop.f32.mrb[0].mxu0
    %v6778 = vadd.f32 %v6686, %v6777
    %v6779 = vpop.f32.mrb[0].mxu0
    %v6780 = vpop.f32.mrb[0].mxu0
    %v6781 = vadd.f32 %v6686, %v6780
    %v6782 = vpop.f32.mrb[0].mxu0
    %6783 = vmatprep.mubr.bf16.mxu0 0
    %6784 = vmatmul.mubr.bf16.gmra.mrb[0].mxu0 %v6665
    %v6785 = vpop.f32.mrb[0].mxu0
    %v6786 = vadd.f32 %v6686, %v6785
    %v6787 = vpop.f32.mrb[0].mxu0
    %v6788 = vpop.f32.mrb[0].mxu0
    %v6789 = vpop.f32.mrb[0].mxu0
    %6790 = vdwg.mxu0
    %v6791 = vlaneseq
    %v6792 = vshrl.u32 %v6791, 7
    %v6793 = vsub.s32 0, %v6792
    %v6794 = vrot.slane %v5201, %v6793
    %v6795 = vmul.f32 %v6794, %v6770
    %v6796 = vmul.f32 %v6794, %v6773
    %v6797 = vmul.f32 %v6794, %v6778
    %v6798 = vmul.f32 %v6794, %v6781
    %v6799 = vmul.f32 %v6794, %v6786
    %v6800 = vadd.f32 %v6352, %v6795
    %v6801 = vadd.f32 %v6353, %v6796
    %v6802 = vadd.f32 %v6354, %v6797
    %v6803 = vadd.f32 %v6355, %v6798
    %v6804 = vadd.f32 %v6356, %v6799
    %v6805 = vld [vmem:[%s8 + $0x1] sm:$0x1]
    %v6806 = vld [vmem:[%s8 + $0x2] sm:$0x1]
    %v6807 = vsel %vm239, %v6800, 0.0
    %6808 = vadd.xlane.f32.xlu0 %v6807
    %v6809 = vpop.xlane.xlu0 %6808
    %v6810 = vsel %vm239, %v6801, 0.0
    %6811 = vadd.xlane.f32.xlu0 %v6810
    %v6812 = vpop.xlane.xlu0 %6811
    %v6813 = vsel %vm239, %v6802, 0.0
    %6814 = vadd.xlane.f32.xlu0 %v6813
    %v6815 = vpop.xlane.xlu0 %6814
    %v6816 = vsel %vm239, %v6803, 0.0
    %6817 = vadd.xlane.f32.xlu0 %v6816
    %v6818 = vpop.xlane.xlu0 %6817
    %v6819 = vsel %vm366, %v6804, 0.0
    %6820 = vadd.xlane.f32.xlu0 %v6819
    %v6821 = vpop.xlane.xlu0 %6820
    %v6822 = vmul.f32 %v6809, %v370
    %v6823 = vmul.f32 %v6812, %v370
    %v6824 = vmul.f32 %v6815, %v370
    %v6825 = vmul.f32 %v6818, %v370
    %v6826 = vmul.f32 %v6821, %v370
    %v6827 = vsub.f32 %v6800, %v6822
    %v6828 = vsub.f32 %v6801, %v6823
    %v6829 = vsub.f32 %v6802, %v6824
    %v6830 = vsub.f32 %v6803, %v6825
    %v6831 = vsub.f32 %v6804, %v6826
    %v6832 = vmul.f32 %v6827, %v6827
    %v6833 = vmul.f32 %v6828, %v6828
    %v6834 = vmul.f32 %v6829, %v6829
    %v6835 = vmul.f32 %v6830, %v6830
    %v6836 = vmul.f32 %v6831, %v6831
    %v6837 = vsel %vm239, %v6832, 0.0
    %6838 = vadd.xlane.f32.xlu0 %v6837
    %v6839 = vpop.xlane.xlu0 %6838
    %v6840 = vsel %vm239, %v6833, 0.0
    %6841 = vadd.xlane.f32.xlu0 %v6840
    %v6842 = vpop.xlane.xlu0 %6841
    %v6843 = vsel %vm239, %v6834, 0.0
    %6844 = vadd.xlane.f32.xlu0 %v6843
    %v6845 = vpop.xlane.xlu0 %6844
    %v6846 = vsel %vm239, %v6835, 0.0
    %6847 = vadd.xlane.f32.xlu0 %v6846
    %v6848 = vpop.xlane.xlu0 %6847
    %v6849 = vsel %vm366, %v6836, 0.0
    %6850 = vadd.xlane.f32.xlu0 %v6849
    %v6851 = vpop.xlane.xlu0 %6850
    %v6852 = vmul.f32 %v6839, %v370
    %v6853 = vmul.f32 %v6842, %v370
    %v6854 = vmul.f32 %v6845, %v370
    %v6855 = vmul.f32 %v6848, %v370
    %v6856 = vmul.f32 %v6851, %v370
    %v6857 = vadd.f32 %v6852, 1e-06
    %v6858 = vadd.f32 %v6853, 1e-06
    %v6859 = vadd.f32 %v6854, 1e-06
    %v6860 = vadd.f32 %v6855, 1e-06
    %v6861 = vadd.f32 %v6856, 1e-06
    %v6862 = vrsqrt.pop %v6857
    %v6863 = vrsqrt.pop %v6858
    %v6864 = vrsqrt.pop %v6859
    %v6865 = vrsqrt.pop %v6860
    %v6866 = vrsqrt.pop %v6861
    %v6867 = vmul.f32 %v6827, %v6862
    %v6868 = vmul.f32 %v6828, %v6863
    %v6869 = vmul.f32 %v6829, %v6864
    %v6870 = vmul.f32 %v6830, %v6865
    %v6871 = vmul.f32 %v6831, %v6866
    %v6872 = vlaneseq
    %v6873 = vshrl.u32 %v6872, 7
    %v6874 = vsub.s32 0, %v6873
    %v6875 = vrot.slane %v6805, %v6874
    %v6876 = vmul.f32 %v6867, %v6875
    %v6877 = vmul.f32 %v6868, %v6875
    %v6878 = vmul.f32 %v6869, %v6875
    %v6879 = vmul.f32 %v6870, %v6875
    %v6880 = vmul.f32 %v6871, %v6875
    %v6881 = vlaneseq
    %v6882 = vshrl.u32 %v6881, 7
    %v6883 = vsub.s32 0, %v6882
    %v6884 = vrot.slane %v6806, %v6883
    %v6885 = vadd.f32 %v6876, %v6884
    %v6886 = vadd.f32 %v6877, %v6884
    %v6887 = vadd.f32 %v6878, %v6884
    %v6888 = vadd.f32 %v6879, %v6884
    %v6889 = vadd.f32 %v6880, %v6884
    %v6890 = vlaneseq
    %v6891 = vshrl.u32 %v6890, 7
    %v6892 = vmul.u32 %v6891, 17
    %vm6893 = vcmp.eq.s32.totalorder %v45, %v6892
    %v6894 = vsel %vm6893, 1, 0
    %v6895 = vcvt.s32.f32 %v6894
    %v6897 = vsel %vm650, %v6895, 0
    %vm6899 = vcmask 1041408
    %v6901 = vsel %vm6899, %v6889, 0
    %6903 = vmatprep.subr.mxu0 0.0
    %6904 = vmatpush1.msra.mxu0 %v6885
    %6905 = vmatprep.subr.mxu0 0.0
    %6906 = vmatpush1.msra.mxu0 %v6886
    %6907 = vmatprep.subr.mxu0 0.0
    %6908 = vmatpush1.msra.mxu0 %v6887
    %6909 = vmatprep.subr.mxu0 0.0
    %6910 = vmatpush1.msra.mxu0 %v6888
    %6911 = vmatprep.subr.mxu0 0.0
    %6912 = vmatpush1.msra.mxu0 %v6901
    %6913 = vmatprep.subr.mxu0 0.0
    %6914 = vmatpush1.msra.mxu0 0.0
    %6915 = vmatprep.subr.mxu0 0.0
    %6916 = vmatpush1.msra.mxu0 0.0
    %6917 = vmatprep.subr.mxu0 0.0
    %6918 = vmatpush1.msra.mxu0 0.0
    %6919 = vmatprep.subr.mxu0 0.0
    %6920 = vmatpush1.msra.mxu0 0.0
    %6921 = vmatprep.subr.mxu0 0.0
    %6922 = vmatpush1.msra.mxu0 0.0
    %6923 = vmatprep.subr.mxu0 0.0
    %6924 = vmatpush1.msra.mxu0 0.0
    %6925 = vmatprep.subr.mxu0 0.0
    %6926 = vmatpush1.msra.mxu0 0.0
    %6927 = vmatprep.subr.mxu0 0.0
    %6928 = vmatpush1.msra.mxu0 0.0
    %6929 = vmatprep.subr.mxu0 0.0
    %6930 = vmatpush1.msra.mxu0 0.0
    %6931 = vmatprep.subr.mxu0 0.0
    %6932 = vmatpush1.msra.mxu0 0.0
    %6933 = vmatprep.subr.mxu0 0.0
    %6934 = vmatpush1.msra.mxu0 0.0
    %6935 = vmatprep.subr.mxu0 0.0
    %6936 = vmatpush1.msra.mxu0 0.0
    %6937 = vmatprep.subr.mxu0 0.0
    %6938 = vmatpush1.msra.mxu0 0.0
    %6939 = vmatprep.subr.mxu0 0.0
    %6940 = vmatpush1.msra.mxu0 0.0
    %6941 = vmatprep.subr.mxu0 0.0
    %6942 = vmatpush1.msra.mxu0 0.0
    %6943 = vmatprep.subr.mxu0 0.0
    %6944 = vmatpush1.msra.mxu0 0.0
    %6945 = vmatprep.subr.mxu0 0.0
    %6946 = vmatpush1.msra.mxu0 0.0
    %6947 = vmatprep.subr.mxu0 0.0
    %6948 = vmatpush1.msra.mxu0 0.0
    %6949 = vmatprep.subr.mxu0 0.0
    %6950 = vmatpush1.msra.mxu0 0.0
    %6951 = vmatprep.subr.mxu0 0.0
    %6952 = vmatpush1.msra.mxu0 0.0
    %6953 = vmatprep.subr.mxu0 0.0
    %6954 = vmatpush1.msra.mxu0 0.0
    %6955 = vmatprep.subr.mxu0 0.0
    %6956 = vmatpush1.msra.mxu0 0.0
    %6957 = vmatprep.subr.mxu0 0.0
    %6958 = vmatpush1.msra.mxu0 0.0
    %6959 = vmatprep.subr.mxu0 0.0
    %6960 = vmatpush1.msra.mxu0 0.0
    %6961 = vmatprep.subr.mxu0 0.0
    %6962 = vmatpush1.msra.mxu0 0.0
    %6963 = vmatprep.subr.mxu0 0.0
    %6964 = vmatpush1.msra.mxu0 0.0
    %6965 = vmatprep.subr.mxu0 0.0
    %6966 = vmatpush1.msra.mxu0 0.0
    %6967 = vmatprep.mubr.f32.mxu0 0.0
    %6968 = vmatmul.mubr.f32.gmra.mrb[0].mxu0 %v6897
    %v6969 = vpop.f32.mrb[0].mxu0
    %v6970 = vadd.f32 0.0, %v6969
    %v6971 = vpop.f32.mrb[0].mxu0
    %6972 = vdwg.mxu0
    %v6973 = vpack.c.bf16 %v6970, %v6970
    %v6974 = vld [vmem:[%s7 + $0x18] sm:$0xf]
    %v6975 = vld [vmem:[%s7 + $0x1c] sm:$0xf]
    %v6976 = vld [vmem:[%s7 + $0x20] sm:$0xf]
    %v6977 = vld [vmem:[%s7 + $0x24] sm:$0xf]
    %v6978 = vld [vmem:[%s8 + $0x3] sm:$0x1]
    %v6979 = vlaneseq
    %v6980 = vshrl.u32 %v6979, 7
    %v6981 = vsub.s32 0, %v6980
    %v6982 = vrot.slane %v6978, %v6981
    %v6987 = vunpack.c.l.b16 %v6974
    %v6988 = vunpack.c.l.b16 %v6975
    %v6989 = vunpack.c.l.b16 %v6976
    %v6990 = vunpack.c.l.b16 %v6977
    %v6991 = vpack.c.b16 %v6988, %v6987
    %v6992 = vpack.c.b16 %v6990, %v6989
    %v6996 = vsel %vm239, %v6973, 0
    %6998 = vmatprep.subr.bf16.mxu0 0
    %6999 = vmatpush1.bf16.msra.mxu0 %v6991
    %7000 = vmatprep.subr.bf16.mxu0 0
    %7001 = vmatpush1.bf16.msra.mxu0 %v6992
    %7002 = vmatprep.subr.bf16.mxu0 0
    %7003 = vmatpush1.bf16.msra.mxu0 0
    %7004 = vmatprep.subr.bf16.mxu0 0
    %7005 = vmatpush1.bf16.msra.mxu0 0
    %7006 = vmatprep.subr.bf16.mxu0 0
    %7007 = vmatpush1.bf16.msra.mxu0 0
    %7008 = vmatprep.subr.bf16.mxu0 0
    %7009 = vmatpush1.bf16.msra.mxu0 0
    %7010 = vmatprep.subr.bf16.mxu0 0
    %7011 = vmatpush1.bf16.msra.mxu0 0
    %7012 = vmatprep.subr.bf16.mxu0 0
    %7013 = vmatpush1.bf16.msra.mxu0 0
    %7014 = vmatprep.subr.bf16.mxu0 0
    %7015 = vmatpush1.bf16.msra.mxu0 0
    %7016 = vmatprep.subr.bf16.mxu0 0
    %7017 = vmatpush1.bf16.msra.mxu0 0
    %7018 = vmatprep.subr.bf16.mxu0 0
    %7019 = vmatpush1.bf16.msra.mxu0 0
    %7020 = vmatprep.subr.bf16.mxu0 0
    %7021 = vmatpush1.bf16.msra.mxu0 0
    %7022 = vmatprep.subr.bf16.mxu0 0
    %7023 = vmatpush1.bf16.msra.mxu0 0
    %7024 = vmatprep.subr.bf16.mxu0 0
    %7025 = vmatpush1.bf16.msra.mxu0 0
    %7026 = vmatprep.subr.bf16.mxu0 0
    %7027 = vmatpush1.bf16.msra.mxu0 0
    %7028 = vmatprep.subr.bf16.mxu0 0
    %7029 = vmatpush1.bf16.msra.mxu0 0
    %7030 = vmatprep.mubr.bf16.mxu0 0
    %7031 = vmatmul.mubr.bf16.gmra.mrb[0].mxu0 %v6996
    %v7032 = vpop.f32.mrb[0].mxu0
    %v7033 = vadd.f32 %v6982, %v7032
    %v7034 = vpop.f32.mrb[0].mxu0
    %v7035 = vpop.f32.mrb[0].mxu0
    %v7036 = vpop.f32.mrb[0].mxu0
    %7037 = vdwg.mxu0
    %vm7038 = vcmask 74752
    %7039 = vst.msk [vmem:[#allocation2] sm:$0x3] %vm7038, %v7033
    // Predicated region
    $region38: #{forward.1} parent=1 // pred_check
      _
    $region39: #{forward.1} parent=1 // pred_check_branch
      %7041 = sbr.rel (0) target = $region41
    $region40: #{forward.1} parent=1 // pred_region
      %s7043 = ssub.s32 32, 32
      %7044 = vsyncadd [#allocation3], %s7043
      %s7046 = sshll.u32 [#allocation2], 4
      %s7047 = int_to_ptr.vmem [resolvable:$true] %s7046
      %7049 = dma.vmem_to_hbm [thread:$0]  %s7047, 32, %s9, [#allocation3]
    $region41: #{forward.1} parent=1 // pred_fallthru
      _
    // Predicated region
    $region42: #{forward.1} parent=1 // pred_check
      _
    $region43: #{forward.1} parent=1 // pred_check_branch
      %7051 = sbr.rel (0) target = $region45
    $region44: #{forward.1} parent=1 // pred_region
      %7052 = dma.done [#allocation3], 32
    $region45: #{forward.1} parent=1 // pred_fallthru
      _
    %7053 = vsyncpa [#allocation3], 1

</llo_original>
